<compile_context>
chip_gen: v7x
topology: tpu7x:2x2x1
jax: 0.10.0
libtpu: 0.0.40
codegen_flags: <defaults>
</compile_context>

<pallas_src>
import functools
import math

import jax
import jax.numpy as jnp
from jax.experimental import pallas as pl
from jax.experimental.pallas import tpu as pltpu

SQRT2 = 1.4142135623730951
INV_SQRT2 = 0.7071067811865476
_VMEM_LIMIT = 64 * 1024 * 1024      # explicit scoped-VMEM ceiling (all gens)


# ----------------------------------------------------------------------------
# Direct Conv3d kernel (fused bias + leaky-ReLU*sqrt(2) + optional skip branch)
# ----------------------------------------------------------------------------
def _conv3d_kernel(*refs, n_ph, n_pw, kh, kw, ho_n, wo_n, activate, has_skip):
    """One (batch, out-depth-plane, kd-tap) grid step of a direct 3D conv.

    refs = (*phase_refs, w_ref, b_ref, [xs_ref, ws_ref], o_ref, acc_ref)
      phase_refs : n_ph*n_pw activation phases, each (Hph, Wph, Cin) bf16
      w_ref      : (kd, kh, kw, Cin, Cout) bf16  -- grid-invariant, 1 DMA/call
      b_ref      : (1, Cout) f32                 -- grid-invariant
      xs_ref     : (Ho*Wo, Cs) bf16 decimated skip input   (optional)
      ws_ref     : (Cs, Cout)  bf16 1x1x1 skip weight      (optional)
      o_ref      : (Ho*Wo, Cout) output block (lane dense)
      acc_ref    : (Ho*Wo, Cout) f32 accumulator, resident across the kd axis
    """
    n_phase = n_ph * n_pw
    phase_refs = refs[:n_phase]
    if has_skip:
        w_ref, b_ref, xs_ref, ws_ref, o_ref, acc_ref = refs[n_phase:]
    else:
        w_ref, b_ref, o_ref, acc_ref = refs[n_phase:]

    dz = pl.program_id(2)                 # depth tap index (reduction axis)
    m = ho_n * wo_n

    @pl.when(dz == 0)
    def _():
        acc_ref[...] = jnp.zeros_like(acc_ref)

    # M-batched taps: one (Ho*Wo, Cin) x (Cin, Cout) MXU dot per (dy, dx);
    # single accumulator read-modify-write per grid step.
    acc = acc_ref[...]
    for dy in range(kh):
        ph, oh = dy % n_ph, dy // n_ph
        for dx in range(kw):
            pw, ow = dx % n_pw, dx // n_pw
            slab = phase_refs[ph * n_pw + pw][pl.ds(oh, ho_n), pl.ds(ow, wo_n), :]
            a = slab.reshape(m, slab.shape[-1])                  # (Ho*Wo, Cin)
            acc = acc + jnp.dot(a, w_ref[dz, dy, dx],
                                preferred_element_type=jnp.float32)
    acc_ref[...] = acc

    @pl.when(dz == pl.num_programs(2) - 1)
    def _():
        r = acc + b_ref[...]
        if activate:
            r = jnp.where(r >= 0.0, r, 0.2 * r) * SQRT2   # fused leaky ReLU*sqrt2
        if has_skip:
            r = (r + jnp.dot(xs_ref[...], ws_ref[...],
                             preferred_element_type=jnp.float32)) * INV_SQRT2
        o_ref[...] = r.astype(o_ref.dtype)


def conv3d_pallas(x, w, b, *, stride=(1, 1, 1), activate=True, skip=None,
                  out_dtype=jnp.bfloat16):
    """Direct 3D conv, 'same' padding k//2, fused bias/leaky-ReLU/skip.

    x:    (N, D, H, W, Cin)        bf16 activation (channels on the lane axis)
    w:    (kd, kh, kw, Cin, Cout)  bf16 weights (equalized-lr scale folded in)
    b:    (Cout,)                  f32 bias
    skip: None or (x_skip (N,D,H,W,Cs) bf16, ws (Cs, Cout) bf16) — fused
          1x1x1 strided skip:  out = (act(conv(x)) + x_skip @ ws) / sqrt(2)
    """
    N, D, H, W, Cin = x.shape
    kd, kh, kw, _, Cout = w.shape
    sd, sh, sw = stride
    pd, ph_, pw_ = kd // 2, kh // 2, kw // 2

    Do = (D + 2 * pd - kd) // sd + 1
    Ho = (H + 2 * ph_ - kh) // sh + 1
    Wo = (W + 2 * pw_ - kw) // sw + 1

    # TODO(synk): move padding + stride-phase decimation in-kernel (masked /
    #             strided pl.ds loads) to kill these wrapper-side HBM passes.
    xpad = jnp.pad(x, ((0, 0), (pd, pd), (ph_, ph_), (pw_, pw_), (0, 0))) \
        if (pd or ph_ or pw_) else x

    if sh == 1 and sw == 1:
        phases = [xpad]
    else:
        phases = [xpad[:, :, i::sh, j::sw, :]
                  for i in range(sh) for j in range(sw)]

    # Trace-time bounds check for the in-kernel window loads.
    for i in range(sh):
        oh_max = max((dy // sh for dy in range(kh) if dy % sh == i), default=0)
        assert phases[i * sw].shape[2] >= Ho + oh_max
    for j in range(sw):
        ow_max = max((dx // sw for dx in range(kw) if dx % sw == j), default=0)
        assert phases[j].shape[3] >= Wo + ow_max

    def act_map(n, do, dz):
        return (n, do * sd + dz, 0, 0, 0)

    inputs = list(phases) + [w, jnp.asarray(b, jnp.float32).reshape(1, Cout)]
    in_specs = [pl.BlockSpec((None, None, p.shape[2], p.shape[3], Cin), act_map)
                for p in phases]
    in_specs += [
        # grid-invariant weight / bias: one DMA per pallas_call
        pl.BlockSpec((kd, kh, kw, Cin, Cout), lambda n, do, dz: (0, 0, 0, 0, 0)),
        pl.BlockSpec((1, Cout), lambda n, do, dz: (0, 0)),
    ]

    has_skip = skip is not None
    if has_skip:
        xs, ws = skip
        Cs = xs.shape[-1]
        xs_dec = xs[:, :, ::sh, ::sw, :][:, :, :Ho, :Wo, :]
        xs_dec = xs_dec.reshape(N, xs.shape[1], Ho * Wo, Cs)
        inputs += [xs_dec, ws]
        in_specs += [
            pl.BlockSpec((None, None, Ho * Wo, Cs),
                         lambda n, do, dz: (n, do * sd, 0, 0)),
            pl.BlockSpec((Cs, Cout), lambda n, do, dz: (0, 0)),
        ]

    kernel = functools.partial(
        _conv3d_kernel, n_ph=sh, n_pw=sw, kh=kh, kw=kw,
        ho_n=Ho, wo_n=Wo, activate=activate, has_skip=has_skip)

    out = pl.pallas_call(
        kernel,
        out_shape=jax.ShapeDtypeStruct((N, Do, Ho * Wo, Cout), out_dtype),
        grid_spec=pltpu.PrefetchScalarGridSpec(
            num_scalar_prefetch=0,
            grid=(N, Do, kd),                       # kd = reduction, innermost
            in_specs=in_specs,
            out_specs=pl.BlockSpec((None, None, Ho * Wo, Cout),
                                   lambda n, do, dz: (n, do, 0, 0)),
            scratch_shapes=[pltpu.VMEM((Ho * Wo, Cout), jnp.float32)],
        ),
        compiler_params=pltpu.CompilerParams(
            dimension_semantics=("parallel", "parallel", "arbitrary"),
            vmem_limit_bytes=_VMEM_LIMIT),
    )(*inputs)
    return out.reshape(N, Do, Ho, Wo, Cout)


# ----------------------------------------------------------------------------
# Parameter construction (deterministic, mirrors __init__ shapes)
# ----------------------------------------------------------------------------
def _make_conv(key, cin, cout, k, dtype=jnp.bfloat16):
    # Equalized-lr 1/sqrt(fan_in) folded into the weights at init time.
    # TODO(synk): for trained PyTorch checkpoints apply the scale in f32 at
    #             conversion time (folding pre-bf16-cast differs slightly).
    scale = 1.0 / math.sqrt(cin * k * k * k)
    w = (jax.random.normal(key, (k, k, k, cin, cout), jnp.float32) * scale
         ).astype(dtype)
    b = jnp.zeros((cout,), jnp.float32)          # EqualConv bias init = 0
    return w, b


def init_params(key, size, channel_multiplier=1):
    cm = channel_multiplier
    channels = {4: 512, 8: 512, 16: 512, 32: 512, 64: 256 * cm, 128: 128 * cm,
                256: 64 * cm, 512: 32 * cm, 1024: 16 * cm}
    params = {}
    keys = jax.random.split(key, 64)
    kidx = 0

    # convs[0] = Conv3dLayer(3, channels[size], 1): handled as an XLA matmul.
    w0, b0 = _make_conv(keys[kidx], 3, channels[size], 1, dtype=jnp.float32)
    kidx += 1
    params["conv0"] = (w0.reshape(3, channels[size]), b0)

    log_size = int(math.log(size, 2))
    in_channel = channels[size]
    blocks = []
    for idx, i in enumerate(range(log_size, 2, -1)):
        downsample_t = idx < 2
        out_channel = channels[2 ** (i - 1)]
        c1w, c1b = _make_conv(keys[kidx], in_channel, in_channel, 3); kidx += 1
        c2w, c2b = _make_conv(keys[kidx], in_channel, out_channel, 3); kidx += 1
        skw, _ = _make_conv(keys[kidx], in_channel, out_channel, 1); kidx += 1
        blocks.append(dict(conv1_w=c1w, conv1_b=c1b,
                           conv2_w=c2w, conv2_b=c2b,
                           skip_w=skw.reshape(in_channel, out_channel),
                           downsample_t=downsample_t))
        in_channel = out_channel
    params["blocks"] = blocks

    # final_conv = Conv3dLayer(in_channel, 1, 3): Cout=1, no lane padding.
    params["final"] = _make_conv(keys[kidx], in_channel, 1, 3)
    return params


# ----------------------------------------------------------------------------
# Forward pass
# ----------------------------------------------------------------------------
def patch_video_discriminator(x_ncdhw, params):
    # NCDHW (PyTorch) -> NDHWC internally (channels on the lane axis);
    # bf16 activations, f32 accumulation inside the kernels.
    x = jnp.transpose(x_ncdhw, (0, 2, 3, 4, 1)).astype(jnp.float32)

    # conv0 (1x1x1, Cin=3): plain XLA matmul fused with the layout change
    # (a 3-wide lane axis is the Pallas kernel's worst layout case).
    w0, b0 = params["conv0"]
    h = x @ w0 + b0
    h = jnp.where(h >= 0.0, h, 0.2 * h) * SQRT2
    x = h.astype(jnp.bfloat16)

    for blk in params["blocks"]:
        st = (2 if blk["downsample_t"] else 1, 2, 2)
        # TODO(synk): StyleGAN2 blur_kernel=(1,3,3,1) anti-aliasing (upfirdn3d)
        #             before the strided downsample is omitted.
        h = conv3d_pallas(x, blk["conv1_w"], blk["conv1_b"],
                          stride=(1, 1, 1), activate=True)
        # conv2 + fused 1x1x1 strided skip: (act(conv2(h)) + x@ws) / sqrt(2)
        x = conv3d_pallas(h, blk["conv2_w"], blk["conv2_b"], stride=st,
                          activate=True, skip=(x, blk["skip_w"]))

    fw, fb = params["final"]
    # TODO(synk): Conv3dLayer source not provided; the last layer is assumed
    #             activated like the others.  Cout=1 output written directly;
    #             the global mean is a trivial XLA reduction.
    y = conv3d_pallas(x, fw, fb, stride=(1, 1, 1), activate=True,
                      out_dtype=jnp.float32)
    return jnp.mean(y, axis=(1, 2, 3, 4))


# ----------------------------------------------------------------------------
if __name__ == "__main__":
    size = 8          # spatial resolution (power of two, keys into channels dict)
    B, T = 2, 4       # batch, temporal frames

    key = jax.random.PRNGKey(0)
    kx, kp = jax.random.split(key)
    x = jax.random.normal(kx, (B, 3, T, size, size), jnp.float32)  # NCDHW
    params = init_params(kp, size, channel_multiplier=1)

    out = patch_video_discriminator(x, params)
    out = jax.block_until_ready(out)
    assert out.shape == (B,), out.shape
    print("KERNEL_OK")
</pallas_src>

<mosaic_0001>
module attributes {stable_mosaic.version = 11 : i64} {
  func.func @_conv3d_kernel(%arg0: i32, %arg1: i32, %arg2: i32, %arg3: memref<1x1x10x10x512xbf16, #tpu.memory_space<vmem>>, %arg4: memref<3x3x3x512x512xbf16, #tpu.memory_space<vmem>>, %arg5: memref<1x512xf32, #tpu.memory_space<vmem>>, %arg6: memref<1x1x64x512xbf16, #tpu.memory_space<vmem>>, %arg7: memref<64x512xf32, #tpu.memory_space<vmem>>) attributes {dimension_semantics = [#tpu.dimension_semantics<parallel>, #tpu.dimension_semantics<parallel>, #tpu.dimension_semantics<arbitrary>], iteration_bounds = array<i64: 2, 4, 3>, scalar_prefetch = 0 : i64, scratch_operands = 1 : i64, tpu.core_type = #tpu.core_type<tc>, window_params = [{transform_indices = @transform_0, window_bounds = array<i64: 1, 1, 10, 10, 512>}, {pipeline_mode = #tpu.pipeline_mode<synchronous>, transform_indices = @transform_1, window_bounds = array<i64: 3, 3, 3, 512, 512>}, {pipeline_mode = #tpu.pipeline_mode<synchronous>, transform_indices = @transform_2, window_bounds = array<i64: 1, 512>}, {transform_indices = @transform_3, window_bounds = array<i64: 1, 1, 64, 512>}]} {
    %c0_i32 = arith.constant 0 : i32
    %0 = arith.cmpi eq, %arg2, %c0_i32 : i32
    %1 = arith.extui %0 : i1 to i32
    %c0_i32_0 = arith.constant 0 : i32
    %2 = arith.cmpi ne, %1, %c0_i32_0 : i32
    scf.if %2 {
      %cst_92 = arith.constant 0.000000e+00 : f32
      %80 = vector.broadcast %cst_92 : f32 to vector<64x512xf32>
      %c0_93 = arith.constant 0 : index
      %c0_94 = arith.constant 0 : index
      %81 = vector.load %arg7[%c0_93, %c0_94] : memref<64x512xf32, #tpu.memory_space<vmem>>, vector<64x512xf32>
      tpu.vector_store %arg7[%c0_93, %c0_94], %80 {strides = array<i32>} : memref<64x512xf32, #tpu.memory_space<vmem>>, vector<64x512xf32>,
    } else {
    }
    %c0 = arith.constant 0 : index
    %c0_1 = arith.constant 0 : index
    %3 = vector.load %arg7[%c0, %c0_1] : memref<64x512xf32, #tpu.memory_space<vmem>>, vector<64x512xf32>
    %c0_2 = arith.constant 0 : index
    %c0_3 = arith.constant 0 : index
    %c0_4 = arith.constant 0 : index
    %c0_5 = arith.constant 0 : index
    %c0_6 = arith.constant 0 : index
    %4 = vector.load %arg3[%c0_2, %c0_3, %c0_4, %c0_5, %c0_6] : memref<1x1x10x10x512xbf16, #tpu.memory_space<vmem>>, vector<1x1x8x8x512xbf16>
    %5 = vector.shape_cast %4 : vector<1x1x8x8x512xbf16> to vector<8x8x512xbf16>
    %6 = vector.shape_cast %5 : vector<8x8x512xbf16> to vector<64x512xbf16>
    %7 = arith.index_cast %arg2 : i32 to index
    %c0_7 = arith.constant 0 : index
    %c0_8 = arith.constant 0 : index
    %c0_9 = arith.constant 0 : index
    %c0_10 = arith.constant 0 : index
    %8 = vector.load %arg4[%7, %c0_7, %c0_8, %c0_9, %c0_10] : memref<3x3x3x512x512xbf16, #tpu.memory_space<vmem>>, vector<1x1x1x512x512xbf16>
    %9 = vector.shape_cast %8 : vector<1x1x1x512x512xbf16> to vector<512x512xbf16>
    %cst = arith.constant dense<0.000000e+00> : vector<64x512xf32>
    %10 = tpu.matmul %6, %9, %cst {dimension_numbers = #tpu.dot_dimension_numbers<[1], [0], [0], [1], [0, 0, 1, 1], [], []>} : vector<64x512xbf16>, vector<512x512xbf16>, vector<64x512xf32> -> vector<64x512xf32>
    %11 = arith.addf %3, %10 : vector<64x512xf32>
    %c0_11 = arith.constant 0 : index
    %c0_12 = arith.constant 0 : index
    %c0_13 = arith.constant 0 : index
    %c1 = arith.constant 1 : index
    %c0_14 = arith.constant 0 : index
    %12 = vector.load %arg3[%c0_11, %c0_12, %c0_13, %c1, %c0_14] : memref<1x1x10x10x512xbf16, #tpu.memory_space<vmem>>, vector<1x1x8x8x512xbf16>
    %13 = vector.shape_cast %12 : vector<1x1x8x8x512xbf16> to vector<8x8x512xbf16>
    %14 = vector.shape_cast %13 : vector<8x8x512xbf16> to vector<64x512xbf16>
    %15 = arith.index_cast %arg2 : i32 to index
    %c0_15 = arith.constant 0 : index
    %c1_16 = arith.constant 1 : index
    %c0_17 = arith.constant 0 : index
    %c0_18 = arith.constant 0 : index
    %16 = vector.load %arg4[%15, %c0_15, %c1_16, %c0_17, %c0_18] : memref<3x3x3x512x512xbf16, #tpu.memory_space<vmem>>, vector<1x1x1x512x512xbf16>
    %17 = vector.shape_cast %16 : vector<1x1x1x512x512xbf16> to vector<512x512xbf16>
    %cst_19 = arith.constant dense<0.000000e+00> : vector<64x512xf32>
    %18 = tpu.matmul %14, %17, %cst_19 {dimension_numbers = #tpu.dot_dimension_numbers<[1], [0], [0], [1], [0, 0, 1, 1], [], []>} : vector<64x512xbf16>, vector<512x512xbf16>, vector<64x512xf32> -> vector<64x512xf32>
    %19 = arith.addf %11, %18 : vector<64x512xf32>
    %c0_20 = arith.constant 0 : index
    %c0_21 = arith.constant 0 : index
    %c0_22 = arith.constant 0 : index
    %c2 = arith.constant 2 : index
    %c0_23 = arith.constant 0 : index
    %20 = vector.load %arg3[%c0_20, %c0_21, %c0_22, %c2, %c0_23] : memref<1x1x10x10x512xbf16, #tpu.memory_space<vmem>>, vector<1x1x8x8x512xbf16>
    %21 = vector.shape_cast %20 : vector<1x1x8x8x512xbf16> to vector<8x8x512xbf16>
    %22 = vector.shape_cast %21 : vector<8x8x512xbf16> to vector<64x512xbf16>
    %23 = arith.index_cast %arg2 : i32 to index
    %c0_24 = arith.constant 0 : index
    %c2_25 = arith.constant 2 : index
    %c0_26 = arith.constant 0 : index
    %c0_27 = arith.constant 0 : index
    %24 = vector.load %arg4[%23, %c0_24, %c2_25, %c0_26, %c0_27] : memref<3x3x3x512x512xbf16, #tpu.memory_space<vmem>>, vector<1x1x1x512x512xbf16>
    %25 = vector.shape_cast %24 : vector<1x1x1x512x512xbf16> to vector<512x512xbf16>
    %cst_28 = arith.constant dense<0.000000e+00> : vector<64x512xf32>
    %26 = tpu.matmul %22, %25, %cst_28 {dimension_numbers = #tpu.dot_dimension_numbers<[1], [0], [0], [1], [0, 0, 1, 1], [], []>} : vector<64x512xbf16>, vector<512x512xbf16>, vector<64x512xf32> -> vector<64x512xf32>
    %27 = arith.addf %19, %26 : vector<64x512xf32>
    %c0_29 = arith.constant 0 : index
    %c0_30 = arith.constant 0 : index
    %c1_31 = arith.constant 1 : index
    %c0_32 = arith.constant 0 : index
    %c0_33 = arith.constant 0 : index
    %28 = vector.load %arg3[%c0_29, %c0_30, %c1_31, %c0_32, %c0_33] : memref<1x1x10x10x512xbf16, #tpu.memory_space<vmem>>, vector<1x1x8x8x512xbf16>
    %29 = vector.shape_cast %28 : vector<1x1x8x8x512xbf16> to vector<8x8x512xbf16>
    %30 = vector.shape_cast %29 : vector<8x8x512xbf16> to vector<64x512xbf16>
    %31 = arith.index_cast %arg2 : i32 to index
    %c1_34 = arith.constant 1 : index
    %c0_35 = arith.constant 0 : index
    %c0_36 = arith.constant 0 : index
    %c0_37 = arith.constant 0 : index
    %32 = vector.load %arg4[%31, %c1_34, %c0_35, %c0_36, %c0_37] : memref<3x3x3x512x512xbf16, #tpu.memory_space<vmem>>, vector<1x1x1x512x512xbf16>
    %33 = vector.shape_cast %32 : vector<1x1x1x512x512xbf16> to vector<512x512xbf16>
    %cst_38 = arith.constant dense<0.000000e+00> : vector<64x512xf32>
    %34 = tpu.matmul %30, %33, %cst_38 {dimension_numbers = #tpu.dot_dimension_numbers<[1], [0], [0], [1], [0, 0, 1, 1], [], []>} : vector<64x512xbf16>, vector<512x512xbf16>, vector<64x512xf32> -> vector<64x512xf32>
    %35 = arith.addf %27, %34 : vector<64x512xf32>
    %c0_39 = arith.constant 0 : index
    %c0_40 = arith.constant 0 : index
    %c1_41 = arith.constant 1 : index
    %c1_42 = arith.constant 1 : index
    %c0_43 = arith.constant 0 : index
    %36 = vector.load %arg3[%c0_39, %c0_40, %c1_41, %c1_42, %c0_43] : memref<1x1x10x10x512xbf16, #tpu.memory_space<vmem>>, vector<1x1x8x8x512xbf16>
    %37 = vector.shape_cast %36 : vector<1x1x8x8x512xbf16> to vector<8x8x512xbf16>
    %38 = vector.shape_cast %37 : vector<8x8x512xbf16> to vector<64x512xbf16>
    %39 = arith.index_cast %arg2 : i32 to index
    %c1_44 = arith.constant 1 : index
    %c1_45 = arith.constant 1 : index
    %c0_46 = arith.constant 0 : index
    %c0_47 = arith.constant 0 : index
    %40 = vector.load %arg4[%39, %c1_44, %c1_45, %c0_46, %c0_47] : memref<3x3x3x512x512xbf16, #tpu.memory_space<vmem>>, vector<1x1x1x512x512xbf16>
    %41 = vector.shape_cast %40 : vector<1x1x1x512x512xbf16> to vector<512x512xbf16>
    %cst_48 = arith.constant dense<0.000000e+00> : vector<64x512xf32>
    %42 = tpu.matmul %38, %41, %cst_48 {dimension_numbers = #tpu.dot_dimension_numbers<[1], [0], [0], [1], [0, 0, 1, 1], [], []>} : vector<64x512xbf16>, vector<512x512xbf16>, vector<64x512xf32> -> vector<64x512xf32>
    %43 = arith.addf %35, %42 : vector<64x512xf32>
    %c0_49 = arith.constant 0 : index
    %c0_50 = arith.constant 0 : index
    %c1_51 = arith.constant 1 : index
    %c2_52 = arith.constant 2 : index
    %c0_53 = arith.constant 0 : index
    %44 = vector.load %arg3[%c0_49, %c0_50, %c1_51, %c2_52, %c0_53] : memref<1x1x10x10x512xbf16, #tpu.memory_space<vmem>>, vector<1x1x8x8x512xbf16>
    %45 = vector.shape_cast %44 : vector<1x1x8x8x512xbf16> to vector<8x8x512xbf16>
    %46 = vector.shape_cast %45 : vector<8x8x512xbf16> to vector<64x512xbf16>
    %47 = arith.index_cast %arg2 : i32 to index
    %c1_54 = arith.constant 1 : index
    %c2_55 = arith.constant 2 : index
    %c0_56 = arith.constant 0 : index
    %c0_57 = arith.constant 0 : index
    %48 = vector.load %arg4[%47, %c1_54, %c2_55, %c0_56, %c0_57] : memref<3x3x3x512x512xbf16, #tpu.memory_space<vmem>>, vector<1x1x1x512x512xbf16>
    %49 = vector.shape_cast %48 : vector<1x1x1x512x512xbf16> to vector<512x512xbf16>
    %cst_58 = arith.constant dense<0.000000e+00> : vector<64x512xf32>
    %50 = tpu.matmul %46, %49, %cst_58 {dimension_numbers = #tpu.dot_dimension_numbers<[1], [0], [0], [1], [0, 0, 1, 1], [], []>} : vector<64x512xbf16>, vector<512x512xbf16>, vector<64x512xf32> -> vector<64x512xf32>
    %51 = arith.addf %43, %50 : vector<64x512xf32>
    %c0_59 = arith.constant 0 : index
    %c0_60 = arith.constant 0 : index
    %c2_61 = arith.constant 2 : index
    %c0_62 = arith.constant 0 : index
    %c0_63 = arith.constant 0 : index
    %52 = vector.load %arg3[%c0_59, %c0_60, %c2_61, %c0_62, %c0_63] : memref<1x1x10x10x512xbf16, #tpu.memory_space<vmem>>, vector<1x1x8x8x512xbf16>
    %53 = vector.shape_cast %52 : vector<1x1x8x8x512xbf16> to vector<8x8x512xbf16>
    %54 = vector.shape_cast %53 : vector<8x8x512xbf16> to vector<64x512xbf16>
    %55 = arith.index_cast %arg2 : i32 to index
    %c2_64 = arith.constant 2 : index
    %c0_65 = arith.constant 0 : index
    %c0_66 = arith.constant 0 : index
    %c0_67 = arith.constant 0 : index
    %56 = vector.load %arg4[%55, %c2_64, %c0_65, %c0_66, %c0_67] : memref<3x3x3x512x512xbf16, #tpu.memory_space<vmem>>, vector<1x1x1x512x512xbf16>
    %57 = vector.shape_cast %56 : vector<1x1x1x512x512xbf16> to vector<512x512xbf16>
    %cst_68 = arith.constant dense<0.000000e+00> : vector<64x512xf32>
    %58 = tpu.matmul %54, %57, %cst_68 {dimension_numbers = #tpu.dot_dimension_numbers<[1], [0], [0], [1], [0, 0, 1, 1], [], []>} : vector<64x512xbf16>, vector<512x512xbf16>, vector<64x512xf32> -> vector<64x512xf32>
    %59 = arith.addf %51, %58 : vector<64x512xf32>
    %c0_69 = arith.constant 0 : index
    %c0_70 = arith.constant 0 : index
    %c2_71 = arith.constant 2 : index
    %c1_72 = arith.constant 1 : index
    %c0_73 = arith.constant 0 : index
    %60 = vector.load %arg3[%c0_69, %c0_70, %c2_71, %c1_72, %c0_73] : memref<1x1x10x10x512xbf16, #tpu.memory_space<vmem>>, vector<1x1x8x8x512xbf16>
    %61 = vector.shape_cast %60 : vector<1x1x8x8x512xbf16> to vector<8x8x512xbf16>
    %62 = vector.shape_cast %61 : vector<8x8x512xbf16> to vector<64x512xbf16>
    %63 = arith.index_cast %arg2 : i32 to index
    %c2_74 = arith.constant 2 : index
    %c1_75 = arith.constant 1 : index
    %c0_76 = arith.constant 0 : index
    %c0_77 = arith.constant 0 : index
    %64 = vector.load %arg4[%63, %c2_74, %c1_75, %c0_76, %c0_77] : memref<3x3x3x512x512xbf16, #tpu.memory_space<vmem>>, vector<1x1x1x512x512xbf16>
    %65 = vector.shape_cast %64 : vector<1x1x1x512x512xbf16> to vector<512x512xbf16>
    %cst_78 = arith.constant dense<0.000000e+00> : vector<64x512xf32>
    %66 = tpu.matmul %62, %65, %cst_78 {dimension_numbers = #tpu.dot_dimension_numbers<[1], [0], [0], [1], [0, 0, 1, 1], [], []>} : vector<64x512xbf16>, vector<512x512xbf16>, vector<64x512xf32> -> vector<64x512xf32>
    %67 = arith.addf %59, %66 : vector<64x512xf32>
    %c0_79 = arith.constant 0 : index
    %c0_80 = arith.constant 0 : index
    %c2_81 = arith.constant 2 : index
    %c2_82 = arith.constant 2 : index
    %c0_83 = arith.constant 0 : index
    %68 = vector.load %arg3[%c0_79, %c0_80, %c2_81, %c2_82, %c0_83] : memref<1x1x10x10x512xbf16, #tpu.memory_space<vmem>>, vector<1x1x8x8x512xbf16>
    %69 = vector.shape_cast %68 : vector<1x1x8x8x512xbf16> to vector<8x8x512xbf16>
    %70 = vector.shape_cast %69 : vector<8x8x512xbf16> to vector<64x512xbf16>
    %71 = arith.index_cast %arg2 : i32 to index
    %c2_84 = arith.constant 2 : index
    %c2_85 = arith.constant 2 : index
    %c0_86 = arith.constant 0 : index
    %c0_87 = arith.constant 0 : index
    %72 = vector.load %arg4[%71, %c2_84, %c2_85, %c0_86, %c0_87] : memref<3x3x3x512x512xbf16, #tpu.memory_space<vmem>>, vector<1x1x1x512x512xbf16>
    %73 = vector.shape_cast %72 : vector<1x1x1x512x512xbf16> to vector<512x512xbf16>
    %cst_88 = arith.constant dense<0.000000e+00> : vector<64x512xf32>
    %74 = tpu.matmul %70, %73, %cst_88 {dimension_numbers = #tpu.dot_dimension_numbers<[1], [0], [0], [1], [0, 0, 1, 1], [], []>} : vector<64x512xbf16>, vector<512x512xbf16>, vector<64x512xf32> -> vector<64x512xf32>
    %75 = arith.addf %67, %74 : vector<64x512xf32>
    %c0_89 = arith.constant 0 : index
    %c0_90 = arith.constant 0 : index
    %76 = vector.load %arg7[%c0_89, %c0_90] : memref<64x512xf32, #tpu.memory_space<vmem>>, vector<64x512xf32>
    tpu.vector_store %arg7[%c0_89, %c0_90], %75 {strides = array<i32>} : memref<64x512xf32, #tpu.memory_space<vmem>>, vector<64x512xf32>,
    %c2_i32 = arith.constant 2 : i32
    %77 = arith.cmpi eq, %arg2, %c2_i32 : i32
    %78 = arith.extui %77 : i1 to i32
    %c0_i32_91 = arith.constant 0 : i32
    %79 = arith.cmpi ne, %78, %c0_i32_91 : i32
    scf.if %79 {
      %c0_92 = arith.constant 0 : index
      %c0_93 = arith.constant 0 : index
      %80 = vector.load %arg5[%c0_92, %c0_93] : memref<1x512xf32, #tpu.memory_space<vmem>>, vector<1x512xf32>
      %81 = vector.broadcast %80 : vector<1x512xf32> to vector<64x512xf32>
      %82 = arith.addf %75, %81 : vector<64x512xf32>
      %cst_94 = arith.constant 0.000000e+00 : f32
      %83 = vector.broadcast %cst_94 : f32 to vector<64x512xf32>
      %84 = arith.cmpf oge, %82, %83 : vector<64x512xf32>
      %cst_95 = arith.constant 2.000000e-01 : f32
      %85 = vector.broadcast %cst_95 : f32 to vector<64x512xf32>
      %86 = arith.mulf %85, %82 : vector<64x512xf32>
      %87 = arith.select %84, %82, %86 : vector<64x512xi1>, vector<64x512xf32>
      %cst_96 = arith.constant 1.41421354 : f32
      %88 = vector.broadcast %cst_96 : f32 to vector<64x512xf32>
      %89 = arith.mulf %87, %88 : vector<64x512xf32>
      %90 = arith.truncf %89 : vector<64x512xf32> to vector<64x512xbf16>
      %c0_97 = arith.constant 0 : index
      %c0_98 = arith.constant 0 : index
      %c0_99 = arith.constant 0 : index
      %c0_100 = arith.constant 0 : index
      %91 = vector.load %arg6[%c0_97, %c0_98, %c0_99, %c0_100] : memref<1x1x64x512xbf16, #tpu.memory_space<vmem>>, vector<1x1x64x512xbf16>
      %92 = vector.shape_cast %91 : vector<1x1x64x512xbf16> to vector<64x512xbf16>
      %93 = vector.shape_cast %90 : vector<64x512xbf16> to vector<1x1x64x512xbf16>
      tpu.vector_store %arg6[%c0_97, %c0_98, %c0_99, %c0_100], %93 {strides = array<i32>} : memref<1x1x64x512xbf16, #tpu.memory_space<vmem>>, vector<1x1x64x512xbf16>,
    } else {
    }
    return
  }
  func.func @transform_0(%arg0: i32, %arg1: i32, %arg2: i32) -> (i32, i32, i32, i32, i32) {
    %c1_i32 = arith.constant 1 : i32
    %0 = arith.muli %arg1, %c1_i32 : i32
    %1 = arith.addi %0, %arg2 : i32
    %c0_i32 = arith.constant 0 : i32
    %c0_i32_0 = arith.constant 0 : i32
    %c0_i32_1 = arith.constant 0 : i32
    %c0_i32_2 = arith.constant 0 : i32
    return %arg0, %1, %c0_i32, %c0_i32_0, %c0_i32_1 : i32, i32, i32, i32, i32
  }
  func.func @transform_1(%arg0: i32, %arg1: i32, %arg2: i32) -> (i32, i32, i32, i32, i32) {
    %c0_i32 = arith.constant 0 : i32
    %c0_i32_0 = arith.constant 0 : i32
    %c0_i32_1 = arith.constant 0 : i32
    %c0_i32_2 = arith.constant 0 : i32
    %c0_i32_3 = arith.constant 0 : i32
    %c0_i32_4 = arith.constant 0 : i32
    return %c0_i32, %c0_i32_0, %c0_i32_1, %c0_i32_2, %c0_i32_3 : i32, i32, i32, i32, i32
  }
  func.func @transform_2(%arg0: i32, %arg1: i32, %arg2: i32) -> (i32, i32) {
    %c0_i32 = arith.constant 0 : i32
    %c0_i32_0 = arith.constant 0 : i32
    %c0_i32_1 = arith.constant 0 : i32
    return %c0_i32, %c0_i32_0 : i32, i32
  }
  func.func @transform_3(%arg0: i32, %arg1: i32, %arg2: i32) -> (i32, i32, i32, i32) {
    %c0_i32 = arith.constant 0 : i32
    %c0_i32_0 = arith.constant 0 : i32
    %c0_i32_1 = arith.constant 0 : i32
    return %arg0, %arg1, %c0_i32, %c0_i32_0 : i32, i32, i32, i32
  }
}

</mosaic_0001>

<llo_original>
// kernel: tpu_custom_call.1
$region0: #{tpu_custom_call.1}
  #allocation0 [shape = 'u32[]', space=smem, size = 0x4, offset = 0x4, fixed_abs, tag = 'smem constant byte address 0x4 - core index']
  #allocation1 [shape = 'u32[144,128]{1,0:T(1,128)}', space=vmem, size = 0x12000, scoped, tag = 'internal scratch']
  #allocation2 [shape = 'f32[64,512]{1,0:T(8,128)}', space=vmem, size = 0x20000, scoped, tag = 'scratch operand']
  %s0 = inlined_call_operand.hbm [shape: bf16[2,6,10,10,512], index: 0, kind: input, shape index: {}]
  %s1 = inlined_call_operand.hbm [shape: bf16[3,3,3,512,512], index: 1, kind: input, shape index: {}]
  %s2 = inlined_call_operand.hbm [shape: f32[1,512], index: 2, kind: input, shape index: {}]
  %s3 = inlined_call_operand.hbm [shape: bf16[2,4,64,512], index: 3, kind: output, shape index: {}]
  %s4 = sld [smem:[#allocation0]]
  $region65: #{tpu_custom_call.1} parent=0
    _
  %s6 = ssub.s32 1, %s4
  %s7 = scalar_select 0, %s6, %s4
  $region1: #{tpu_custom_call.1} parent=0
    #allocation3 [shape = 'u8[327680]{0}', space=vmem, size = 0x50000, scoped, tag = 'input window, operand 0']
    #allocation4 [shape = 's32[2]{0}', space=sflag, size = 0x8, scoped, tag = 'scoped memory for tpu_custom_call.1']
    #allocation5 [shape = 's32[2]{0}', space=sflag, size = 0x8, scoped, tag = 'scoped memory for tpu_custom_call.1']
    #allocation6 [shape = 'u8[14155776]{0}', space=vmem, size = 0xd80000, scoped, tag = 'input window, operand 1, single buffered']
    #allocation7 [shape = 's32[1]{0}', space=sflag, size = 0x4, scoped, tag = 'scoped memory for tpu_custom_call.1']
    #allocation8 [shape = 'u8[2048]{0}', space=vmem, size = 0x800, scoped, tag = 'input window, operand 2, single buffered']
    #allocation9 [shape = 'u8[131072]{0}', space=vmem, size = 0x20000, scoped, tag = 'output window, operand 0']
    %8 = vsyncpa [#allocation4], 0
    %s9 = scalar_lea.sflag [#allocation4], 1
    %10 = vsyncpa %s9, 0
    %11 = vsyncpa [#allocation7], 0
    %12 = vsyncpa [#allocation5], 0
    %s13 = scalar_lea.sflag [#allocation5], 1
    %14 = vsyncpa %s13, 0
    loop: start=0, step=1, limit=26
    $region2: #{tpu_custom_call.1} parent=1 // loop_pre_header
      _
    $region3: #{tpu_custom_call.1} parent=1 // loop_header
      %s16 = sphi 0, %s20
      %p17 = scmp.ge.s32.totalorder %s16, 26
      %s23 = sphi 0, %s42
      %s24 = sphi 0, %s38
      %s25 = sphi 0, %s34
      %s26 = sphi 0, %s23
      %s27 = sphi 0, %s24
      %s28 = sphi 0, %s25
      %s29 = sphi 0, %s26
      %s30 = sphi 0, %s27
      %s31 = sphi 0, %s28
      %s49 = sphi 0, %s51
      %s52 = sphi 0, %s49
      %s53 = sphi 0, %s52
      %s69 = sphi 0, %s53
      %s73 = sphi 0, %s73
      %s75 = sphi 0, %s73
      %s76 = sphi 0, %s75
      %s90 = sphi 0, %s76
      %s94 = sphi 0, %s94
      %s96 = sphi 0, %s94
      %s97 = sphi 0, %s96
      %s111 = sphi 0, %s97
      %s119 = sphi 0, %s121
      %s122 = sphi 0, %s119
      %s123 = sphi 0, %s122
      %s139 = sphi 0, %s123
    $region4: #{tpu_custom_call.1} parent=1 // loop_header_branch
      %19 = sbr.rel (%p17) target = $region8
    $region5: #{tpu_custom_call.1} parent=1 // loop_body
      %s21 = ssub.s32 %s16, 1
      %s22 = ssub.s32 %s16, 2
      %s32 = sadd.s32 1, %s25
      %p33 = scmp.ge.s32.totalorder %s32, 3
      %s34 = scalar_select %p33, 0, %s32
      %s35 = sadd.s32 1, %s24
      %s36 = scalar_select %p33, %s35, %s24
      %p37 = scmp.ge.s32.totalorder %s36, 4
      %s38 = scalar_select %p37, 0, %s36
      %s39 = sadd.s32 1, %s23
      %s40 = scalar_select %p37, %s39, %s23
      %p41 = scmp.ge.s32.totalorder %s40, 2
      %s42 = scalar_select %p41, 0, %s40
      %s43 = sadd.s32 %s24, %s25
      %s44 = sadd.s32 %s38, %s34
      %s45 = ssub.s32 %s23, %s42
      %s46 = ssub.s32 %s43, %s44
      %s47 = sor.u32 %s45, %s46
      %p48 = scmp.eq.s32.totalorder %s47, 0
      %s50 = sadd.s32 %s49, 1
      %s51 = scalar_select %p48, %s49, %s50
      %p54 = pneg %p48
      %p55 = scmp.eq.s32.totalorder %s16, 23
      %p56 = por %p54, %p55
      %p57 = scmp.ne.s32.totalorder %s49, %s52
      %p58 = scmp.eq.s32.totalorder %s16, 0
      %p59 = por %p57, %p58
      %p60 = scmp.ne.s32.totalorder %s49, %s52
      %p61 = scmp.eq.s32.totalorder %s21, 23
      %p62 = por %p60, %p61
      %p63 = scmp.ne.s32.totalorder %s52, %s53
      %p64 = scmp.eq.s32.totalorder %s21, 0
      %p65 = por %p63, %p64
      %p66 = scmp.ne.s32.totalorder %s52, %s53
      %p67 = scmp.eq.s32.totalorder %s22, 23
      %p68 = por %p66, %p67
      %p70 = scmp.ne.s32.totalorder %s53, %s69
      %p71 = scmp.eq.s32.totalorder %s22, 0
      %p72 = por %p70, %p71
      %s74 = sadd.s32 %s73, 1
      %p77 = scmp.eq.s32.totalorder %s16, 23
      %p78 = scmp.ne.s32.totalorder %s73, %s75
      %p79 = scmp.eq.s32.totalorder %s16, 0
      %p80 = por %p78, %p79
      %p81 = scmp.ne.s32.totalorder %s73, %s75
      %p82 = scmp.eq.s32.totalorder %s21, 23
      %p83 = por %p81, %p82
      %p84 = scmp.ne.s32.totalorder %s75, %s76
      %p85 = scmp.eq.s32.totalorder %s21, 0
      %p86 = por %p84, %p85
      %p87 = scmp.ne.s32.totalorder %s75, %s76
      %p88 = scmp.eq.s32.totalorder %s22, 23
      %p89 = por %p87, %p88
      %p91 = scmp.ne.s32.totalorder %s76, %s90
      %p92 = scmp.eq.s32.totalorder %s22, 0
      %p93 = por %p91, %p92
      %s95 = sadd.s32 %s94, 1
      %p98 = scmp.eq.s32.totalorder %s16, 23
      %p99 = scmp.ne.s32.totalorder %s94, %s96
      %p100 = scmp.eq.s32.totalorder %s16, 0
      %p101 = por %p99, %p100
      %p102 = scmp.ne.s32.totalorder %s94, %s96
      %p103 = scmp.eq.s32.totalorder %s21, 23
      %p104 = por %p102, %p103
      %p105 = scmp.ne.s32.totalorder %s96, %s97
      %p106 = scmp.eq.s32.totalorder %s21, 0
      %p107 = por %p105, %p106
      %p108 = scmp.ne.s32.totalorder %s96, %s97
      %p109 = scmp.eq.s32.totalorder %s22, 23
      %p110 = por %p108, %p109
      %p112 = scmp.ne.s32.totalorder %s97, %s111
      %p113 = scmp.eq.s32.totalorder %s22, 0
      %p114 = por %p112, %p113
      %s115 = ssub.s32 %s23, %s42
      %s116 = ssub.s32 %s24, %s38
      %s117 = sor.u32 %s115, %s116
      %p118 = scmp.eq.s32.totalorder %s117, 0
      %s120 = sadd.s32 %s119, 1
      %s121 = scalar_select %p118, %s119, %s120
      %p124 = pneg %p118
      %p125 = scmp.eq.s32.totalorder %s16, 23
      %p126 = por %p124, %p125
      %p127 = scmp.ne.s32.totalorder %s119, %s122
      %p128 = scmp.eq.s32.totalorder %s16, 0
      %p129 = por %p127, %p128
      %p130 = scmp.ne.s32.totalorder %s119, %s122
      %p131 = scmp.eq.s32.totalorder %s21, 23
      %p132 = por %p130, %p131
      %p133 = scmp.ne.s32.totalorder %s122, %s123
      %p134 = scmp.eq.s32.totalorder %s21, 0
      %p135 = por %p133, %p134
      %p136 = scmp.ne.s32.totalorder %s122, %s123
      %p137 = scmp.eq.s32.totalorder %s22, 23
      %p138 = por %p136, %p137
      %p140 = scmp.ne.s32.totalorder %s123, %s139
      %p141 = scmp.eq.s32.totalorder %s22, 0
      %p142 = por %p140, %p141
      %p143 = scmp.le.s32.totalorder 1, %s16
      %p144 = scmp.lt.s32.totalorder %s16, 25
      %p145 = pnand %p143, %p144
      %p146 = pneg %p145
      // Predicated region
      $region9: #{tpu_custom_call.1} parent=5 // pred_check
        _
      $region10: #{tpu_custom_call.1} parent=5 // pred_check_branch
        %148 = sbr.rel (%p145) target = $region12
      $region11: #{tpu_custom_call.1} parent=5 // pred_region
        %s149 = ssub.s32 %s16, 1
        // Predicated region
        $region13: #{tpu_custom_call.1} parent=11 // pred_check
          %p150 = pneg %p86
        $region14: #{tpu_custom_call.1} parent=11 // pred_check_branch
          %152 = sbr.rel (%p150) target = $region16
        $region15: #{tpu_custom_call.1} parent=11 // pred_region
          %s154 = ssub.s32 442368, 442368
          %155 = vsyncadd [#allocation7], %s154
          %s156 = sshll.u32 [#allocation6], 4
          %s157 = int_to_ptr.vmem [resolvable:$true] %s156
          %162 = dma.hbm_to_vmem [thread:$0]  %s1, 442368, %s157, [#allocation7], 256, 256, 16
        $region16: #{tpu_custom_call.1} parent=11 // pred_fallthru
          _
        // Predicated region
        $region17: #{tpu_custom_call.1} parent=11 // pred_check
          %p163 = pneg %p107
        $region18: #{tpu_custom_call.1} parent=11 // pred_check_branch
          %165 = sbr.rel (%p163) target = $region20
        $region19: #{tpu_custom_call.1} parent=11 // pred_region
          %s167 = ssub.s32 64, 64
          %168 = vsyncadd [#allocation7], %s167
          %s170 = sshll.u32 [#allocation8], 4
          %s171 = int_to_ptr.vmem [resolvable:$true] %s170
          %173 = dma.hbm_to_vmem [thread:$0]  %s2, 64, %s171, [#allocation7]
        $region20: #{tpu_custom_call.1} parent=11 // pred_fallthru
          _
      $region12: #{tpu_custom_call.1} parent=5 // pred_fallthru
        _
      %p174 = scmp.lt.s32.totalorder %s16, 24
      // Predicated region
      $region21: #{tpu_custom_call.1} parent=5 // pred_check
        %p175 = pneg %p174
      $region22: #{tpu_custom_call.1} parent=5 // pred_check_branch
        %177 = sbr.rel (%p175) target = $region24
      $region23: #{tpu_custom_call.1} parent=5 // pred_region
        // Predicated region
        $region25: #{tpu_custom_call.1} parent=23 // pred_check
          %p178 = pneg %p59
        $region26: #{tpu_custom_call.1} parent=23 // pred_check_branch
          %180 = sbr.rel (%p178) target = $region28
        $region27: #{tpu_custom_call.1} parent=23 // pred_region
          %s181 = sand.u32 %s49, 1
          %s182 = scalar_lea.sflag [#allocation4], %s181
          %s183 = sand.u32 %s49, 1
          %s184 = smul.addr %s183, 320
          %s185 = scalar_lea.vmem [#allocation3], %s184
          %s186 = sadd.s32 %s24, %s25
          %s188 = ssub.s32 5120, 5120
          %189 = vsyncadd %s182, %s188
          %s190 = smul.addr %s186, 80
          %s191 = smul.addr %s23, 480
          %s192 = sadd.s32 %s190, %s191
          %s193 = smul.addr %s192, 64
          %s194 = scalar_lea.hbm %s0, %s193
          %s195 = sshll.u32 %s185, 4
          %s196 = int_to_ptr.vmem [resolvable:$true] %s195
          %201 = dma.hbm_to_vmem [thread:$0]  %s194, 5120, %s196, %s182, 256, 256, 16
        $region28: #{tpu_custom_call.1} parent=23 // pred_fallthru
          _
      $region24: #{tpu_custom_call.1} parent=5 // pred_fallthru
        _
      %p202 = scmp.le.s32.totalorder 1, %s16
      %p203 = scmp.lt.s32.totalorder %s16, 25
      %p204 = pnand %p202, %p203
      %p205 = pneg %p204
      // Predicated region
      $region29: #{tpu_custom_call.1} parent=5 // pred_check
        _
      $region30: #{tpu_custom_call.1} parent=5 // pred_check_branch
        %207 = sbr.rel (%p204) target = $region32
      $region31: #{tpu_custom_call.1} parent=5 // pred_region
        %s208 = ssub.s32 %s16, 1
        %s209 = sand.u32 %s52, 1
        %s210 = scalar_lea.sflag [#allocation4], %s209
        %s211 = sand.u32 %s52, 1
        %s212 = smul.addr %s211, 320
        %s213 = scalar_lea.vmem [#allocation3], %s212
        // Predicated region
        $region33: #{tpu_custom_call.1} parent=31 // pred_check
          %p214 = pneg %p65
        $region34: #{tpu_custom_call.1} parent=31 // pred_check_branch
          %216 = sbr.rel (%p214) target = $region36
        $region35: #{tpu_custom_call.1} parent=31 // pred_region
          %217 = dma.done %s210, 5120
        $region36: #{tpu_custom_call.1} parent=31 // pred_fallthru
          _
        // Predicated region
        $region37: #{tpu_custom_call.1} parent=31 // pred_check
          %p218 = pneg %p86
        $region38: #{tpu_custom_call.1} parent=31 // pred_check_branch
          %220 = sbr.rel (%p218) target = $region40
        $region39: #{tpu_custom_call.1} parent=31 // pred_region
          %221 = dma.done [#allocation7], 442368
        $region40: #{tpu_custom_call.1} parent=31 // pred_fallthru
          _
        // Predicated region
        $region41: #{tpu_custom_call.1} parent=31 // pred_check
          %p222 = pneg %p107
        $region42: #{tpu_custom_call.1} parent=31 // pred_check_branch
          %224 = sbr.rel (%p222) target = $region44
        $region43: #{tpu_custom_call.1} parent=31 // pred_region
          %225 = dma.done [#allocation7], 64
        $region44: #{tpu_custom_call.1} parent=31 // pred_fallthru
          _
        %s226 = sand.u32 %s52, 1
        %s227 = scalar_lea.sflag [#allocation4], %s226
        %s228 = sand.u32 %s52, 1
        %s229 = smul.addr %s228, 320
        %s230 = scalar_lea.vmem [#allocation3], %s229
        %p231 = pneg %p65
        %p232 = pneg %p62
        %p233 = pneg %p86
        %p234 = pneg %p83
        %p235 = pneg %p107
        %p236 = pneg %p104
        %p237 = pneg %p135
        %p238 = pneg %p132
        %s239 = sand.u32 %s122, 1
        %s240 = scalar_lea.sflag [#allocation5], %s239
        %s241 = sand.u32 %s122, 1
        %s242 = smul.addr %s241, 128
        %s243 = scalar_lea.vmem [#allocation9], %s242
        %s244 = sadd.s32 %s27, %s28
        %p245 = scmp.eq.s32.totalorder %s28, 0
        // Predicated region
        $region45: #{tpu_custom_call.1} parent=31 // pred_check
          %p246 = pneg %p245
        $region46: #{tpu_custom_call.1} parent=31 // pred_check_branch
          %248 = sbr.rel (%p246) target = $region48
        $region47: #{tpu_custom_call.1} parent=31 // pred_region
          %249 = vst [vmem:[#allocation2] sm:$0xff] 0.0
          %250 = vst [vmem:[#allocation2 + $0x8] sm:$0xff] 0.0
          %251 = vst [vmem:[#allocation2 + $0x10] sm:$0xff] 0.0
          %252 = vst [vmem:[#allocation2 + $0x18] sm:$0xff] 0.0
          %253 = vst [vmem:[#allocation2 + $0x20] sm:$0xff] 0.0
          %254 = vst [vmem:[#allocation2 + $0x28] sm:$0xff] 0.0
          %255 = vst [vmem:[#allocation2 + $0x30] sm:$0xff] 0.0
          %256 = vst [vmem:[#allocation2 + $0x38] sm:$0xff] 0.0
          %257 = vst [vmem:[#allocation2 + $0x40] sm:$0xff] 0.0
          %258 = vst [vmem:[#allocation2 + $0x48] sm:$0xff] 0.0
          %259 = vst [vmem:[#allocation2 + $0x50] sm:$0xff] 0.0
          %260 = vst [vmem:[#allocation2 + $0x58] sm:$0xff] 0.0
          %261 = vst [vmem:[#allocation2 + $0x60] sm:$0xff] 0.0
          %262 = vst [vmem:[#allocation2 + $0x68] sm:$0xff] 0.0
          %263 = vst [vmem:[#allocation2 + $0x70] sm:$0xff] 0.0
          %264 = vst [vmem:[#allocation2 + $0x78] sm:$0xff] 0.0
          %265 = vst [vmem:[#allocation2 + $0x80] sm:$0xff] 0.0
          %266 = vst [vmem:[#allocation2 + $0x88] sm:$0xff] 0.0
          %267 = vst [vmem:[#allocation2 + $0x90] sm:$0xff] 0.0
          %268 = vst [vmem:[#allocation2 + $0x98] sm:$0xff] 0.0
          %269 = vst [vmem:[#allocation2 + $0xa0] sm:$0xff] 0.0
          %270 = vst [vmem:[#allocation2 + $0xa8] sm:$0xff] 0.0
          %271 = vst [vmem:[#allocation2 + $0xb0] sm:$0xff] 0.0
          %272 = vst [vmem:[#allocation2 + $0xb8] sm:$0xff] 0.0
          %273 = vst [vmem:[#allocation2 + $0xc0] sm:$0xff] 0.0
          %274 = vst [vmem:[#allocation2 + $0xc8] sm:$0xff] 0.0
          %275 = vst [vmem:[#allocation2 + $0xd0] sm:$0xff] 0.0
          %276 = vst [vmem:[#allocation2 + $0xd8] sm:$0xff] 0.0
          %277 = vst [vmem:[#allocation2 + $0xe0] sm:$0xff] 0.0
          %278 = vst [vmem:[#allocation2 + $0xe8] sm:$0xff] 0.0
          %279 = vst [vmem:[#allocation2 + $0xf0] sm:$0xff] 0.0
          %280 = vst [vmem:[#allocation2 + $0xf8] sm:$0xff] 0.0
        $region48: #{tpu_custom_call.1} parent=31 // pred_fallthru
          _
        %v281 = vld [vmem:[#allocation2] sm:$0xff]
        %v282 = vld [vmem:[#allocation2 + $0x8] sm:$0xff]
        %v283 = vld [vmem:[#allocation2 + $0x10] sm:$0xff]
        %v284 = vld [vmem:[#allocation2 + $0x18] sm:$0xff]
        %v285 = vld [vmem:[#allocation2 + $0x20] sm:$0xff]
        %v286 = vld [vmem:[#allocation2 + $0x28] sm:$0xff]
        %v287 = vld [vmem:[#allocation2 + $0x30] sm:$0xff]
        %v288 = vld [vmem:[#allocation2 + $0x38] sm:$0xff]
        %v289 = vld [vmem:[#allocation2 + $0x40] sm:$0xff]
        %v290 = vld [vmem:[#allocation2 + $0x48] sm:$0xff]
        %v291 = vld [vmem:[#allocation2 + $0x50] sm:$0xff]
        %v292 = vld [vmem:[#allocation2 + $0x58] sm:$0xff]
        %v293 = vld [vmem:[#allocation2 + $0x60] sm:$0xff]
        %v294 = vld [vmem:[#allocation2 + $0x68] sm:$0xff]
        %v295 = vld [vmem:[#allocation2 + $0x70] sm:$0xff]
        %v296 = vld [vmem:[#allocation2 + $0x78] sm:$0xff]
        %v297 = vld [vmem:[#allocation2 + $0x80] sm:$0xff]
        %v298 = vld [vmem:[#allocation2 + $0x88] sm:$0xff]
        %v299 = vld [vmem:[#allocation2 + $0x90] sm:$0xff]
        %v300 = vld [vmem:[#allocation2 + $0x98] sm:$0xff]
        %v301 = vld [vmem:[#allocation2 + $0xa0] sm:$0xff]
        %v302 = vld [vmem:[#allocation2 + $0xa8] sm:$0xff]
        %v303 = vld [vmem:[#allocation2 + $0xb0] sm:$0xff]
        %v304 = vld [vmem:[#allocation2 + $0xb8] sm:$0xff]
        %v305 = vld [vmem:[#allocation2 + $0xc0] sm:$0xff]
        %v306 = vld [vmem:[#allocation2 + $0xc8] sm:$0xff]
        %v307 = vld [vmem:[#allocation2 + $0xd0] sm:$0xff]
        %v308 = vld [vmem:[#allocation2 + $0xd8] sm:$0xff]
        %v309 = vld [vmem:[#allocation2 + $0xe0] sm:$0xff]
        %v310 = vld [vmem:[#allocation2 + $0xe8] sm:$0xff]
        %v311 = vld [vmem:[#allocation2 + $0xf0] sm:$0xff]
        %v312 = vld [vmem:[#allocation2 + $0xf8] sm:$0xff]
        %v313 = vld [vmem:[%s213] sm:$0xff]
        %v314 = vld [vmem:[%s213 + $0x8] sm:$0xff]
        %v315 = vld [vmem:[%s213 + $0x20] sm:$0xff]
        %v316 = vld [vmem:[%s213 + $0x28] sm:$0xff]
        %v317 = vld [vmem:[%s213 + $0x40] sm:$0xff]
        %v318 = vld [vmem:[%s213 + $0x48] sm:$0xff]
        %v319 = vld [vmem:[%s213 + $0x60] sm:$0xff]
        %v320 = vld [vmem:[%s213 + $0x68] sm:$0xff]
        %v321 = vld [vmem:[%s213 + $0x80] sm:$0xff]
        %v322 = vld [vmem:[%s213 + $0x88] sm:$0xff]
        %v323 = vld [vmem:[%s213 + $0xa0] sm:$0xff]
        %v324 = vld [vmem:[%s213 + $0xa8] sm:$0xff]
        %v325 = vld [vmem:[%s213 + $0xc0] sm:$0xff]
        %v326 = vld [vmem:[%s213 + $0xc8] sm:$0xff]
        %v327 = vld [vmem:[%s213 + $0xe0] sm:$0xff]
        %v328 = vld [vmem:[%s213 + $0xe8] sm:$0xff]
        %s329 = smul.u32 %s28, 2304
        %s330 = smul.addr %s329, 4
        %s331 = scalar_lea.vmem [#allocation6], %s330
        %v332 = vld [vmem:[%s331] sm:$0xff]
        %v333 = vld [vmem:[%s331 + $0x8] sm:$0xff]
        %v334 = vld [vmem:[%s331 + $0x10] sm:$0xff]
        %v335 = vld [vmem:[%s331 + $0x18] sm:$0xff]
        %v336 = vld [vmem:[%s331 + $0x20] sm:$0xff]
        %v337 = vld [vmem:[%s331 + $0x28] sm:$0xff]
        %v338 = vld [vmem:[%s331 + $0x30] sm:$0xff]
        %v339 = vld [vmem:[%s331 + $0x38] sm:$0xff]
        %v340 = vld [vmem:[%s331 + $0x40] sm:$0xff]
        %v341 = vld [vmem:[%s331 + $0x48] sm:$0xff]
        %v342 = vld [vmem:[%s331 + $0x50] sm:$0xff]
        %v343 = vld [vmem:[%s331 + $0x58] sm:$0xff]
        %v344 = vld [vmem:[%s331 + $0x60] sm:$0xff]
        %v345 = vld [vmem:[%s331 + $0x68] sm:$0xff]
        %v346 = vld [vmem:[%s331 + $0x70] sm:$0xff]
        %v347 = vld [vmem:[%s331 + $0x78] sm:$0xff]
        %v348 = vld [vmem:[%s331 + $0x80] sm:$0xff]
        %v349 = vld [vmem:[%s331 + $0x88] sm:$0xff]
        %v350 = vld [vmem:[%s331 + $0x90] sm:$0xff]
        %v351 = vld [vmem:[%s331 + $0x98] sm:$0xff]
        %v352 = vld [vmem:[%s331 + $0xa0] sm:$0xff]
        %v353 = vld [vmem:[%s331 + $0xa8] sm:$0xff]
        %v354 = vld [vmem:[%s331 + $0xb0] sm:$0xff]
        %v355 = vld [vmem:[%s331 + $0xb8] sm:$0xff]
        %v356 = vld [vmem:[%s331 + $0xc0] sm:$0xff]
        %v357 = vld [vmem:[%s331 + $0xc8] sm:$0xff]
        %v358 = vld [vmem:[%s331 + $0xd0] sm:$0xff]
        %v359 = vld [vmem:[%s331 + $0xd8] sm:$0xff]
        %v360 = vld [vmem:[%s331 + $0xe0] sm:$0xff]
        %v361 = vld [vmem:[%s331 + $0xe8] sm:$0xff]
        %v362 = vld [vmem:[%s331 + $0xf0] sm:$0xff]
        %v363 = vld [vmem:[%s331 + $0xf8] sm:$0xff]
        %v364 = vld [vmem:[%s331 + $0x100] sm:$0xff]
        %v365 = vld [vmem:[%s331 + $0x108] sm:$0xff]
        %v366 = vld [vmem:[%s331 + $0x110] sm:$0xff]
        %v367 = vld [vmem:[%s331 + $0x118] sm:$0xff]
        %v368 = vld [vmem:[%s331 + $0x120] sm:$0xff]
        %v369 = vld [vmem:[%s331 + $0x128] sm:$0xff]
        %v370 = vld [vmem:[%s331 + $0x130] sm:$0xff]
        %v371 = vld [vmem:[%s331 + $0x138] sm:$0xff]
        %v372 = vld [vmem:[%s331 + $0x140] sm:$0xff]
        %v373 = vld [vmem:[%s331 + $0x148] sm:$0xff]
        %v374 = vld [vmem:[%s331 + $0x150] sm:$0xff]
        %v375 = vld [vmem:[%s331 + $0x158] sm:$0xff]
        %v376 = vld [vmem:[%s331 + $0x160] sm:$0xff]
        %v377 = vld [vmem:[%s331 + $0x168] sm:$0xff]
        %v378 = vld [vmem:[%s331 + $0x170] sm:$0xff]
        %v379 = vld [vmem:[%s331 + $0x178] sm:$0xff]
        %v380 = vld [vmem:[%s331 + $0x180] sm:$0xff]
        %v381 = vld [vmem:[%s331 + $0x188] sm:$0xff]
        %v382 = vld [vmem:[%s331 + $0x190] sm:$0xff]
        %v383 = vld [vmem:[%s331 + $0x198] sm:$0xff]
        %v384 = vld [vmem:[%s331 + $0x1a0] sm:$0xff]
        %v385 = vld [vmem:[%s331 + $0x1a8] sm:$0xff]
        %v386 = vld [vmem:[%s331 + $0x1b0] sm:$0xff]
        %v387 = vld [vmem:[%s331 + $0x1b8] sm:$0xff]
        %v388 = vld [vmem:[%s331 + $0x1c0] sm:$0xff]
        %v389 = vld [vmem:[%s331 + $0x1c8] sm:$0xff]
        %v390 = vld [vmem:[%s331 + $0x1d0] sm:$0xff]
        %v391 = vld [vmem:[%s331 + $0x1d8] sm:$0xff]
        %v392 = vld [vmem:[%s331 + $0x1e0] sm:$0xff]
        %v393 = vld [vmem:[%s331 + $0x1e8] sm:$0xff]
        %v394 = vld [vmem:[%s331 + $0x1f0] sm:$0xff]
        %v395 = vld [vmem:[%s331 + $0x1f8] sm:$0xff]
        %v396 = vld [vmem:[%s331 + $0x200] sm:$0xff]
        %v397 = vld [vmem:[%s331 + $0x208] sm:$0xff]
        %v398 = vld [vmem:[%s331 + $0x210] sm:$0xff]
        %v399 = vld [vmem:[%s331 + $0x218] sm:$0xff]
        %v400 = vld [vmem:[%s331 + $0x220] sm:$0xff]
        %v401 = vld [vmem:[%s331 + $0x228] sm:$0xff]
        %v402 = vld [vmem:[%s331 + $0x230] sm:$0xff]
        %v403 = vld [vmem:[%s331 + $0x238] sm:$0xff]
        %v404 = vld [vmem:[%s331 + $0x240] sm:$0xff]
        %v405 = vld [vmem:[%s331 + $0x248] sm:$0xff]
        %v406 = vld [vmem:[%s331 + $0x250] sm:$0xff]
        %v407 = vld [vmem:[%s331 + $0x258] sm:$0xff]
        %v408 = vld [vmem:[%s331 + $0x260] sm:$0xff]
        %v409 = vld [vmem:[%s331 + $0x268] sm:$0xff]
        %v410 = vld [vmem:[%s331 + $0x270] sm:$0xff]
        %v411 = vld [vmem:[%s331 + $0x278] sm:$0xff]
        %v412 = vld [vmem:[%s331 + $0x280] sm:$0xff]
        %v413 = vld [vmem:[%s331 + $0x288] sm:$0xff]
        %v414 = vld [vmem:[%s331 + $0x290] sm:$0xff]
        %v415 = vld [vmem:[%s331 + $0x298] sm:$0xff]
        %v416 = vld [vmem:[%s331 + $0x2a0] sm:$0xff]
        %v417 = vld [vmem:[%s331 + $0x2a8] sm:$0xff]
        %v418 = vld [vmem:[%s331 + $0x2b0] sm:$0xff]
        %v419 = vld [vmem:[%s331 + $0x2b8] sm:$0xff]
        %v420 = vld [vmem:[%s331 + $0x2c0] sm:$0xff]
        %v421 = vld [vmem:[%s331 + $0x2c8] sm:$0xff]
        %v422 = vld [vmem:[%s331 + $0x2d0] sm:$0xff]
        %v423 = vld [vmem:[%s331 + $0x2d8] sm:$0xff]
        %v424 = vld [vmem:[%s331 + $0x2e0] sm:$0xff]
        %v425 = vld [vmem:[%s331 + $0x2e8] sm:$0xff]
        %v426 = vld [vmem:[%s331 + $0x2f0] sm:$0xff]
        %v427 = vld [vmem:[%s331 + $0x2f8] sm:$0xff]
        %v428 = vld [vmem:[%s331 + $0x300] sm:$0xff]
        %v429 = vld [vmem:[%s331 + $0x308] sm:$0xff]
        %v430 = vld [vmem:[%s331 + $0x310] sm:$0xff]
        %v431 = vld [vmem:[%s331 + $0x318] sm:$0xff]
        %v432 = vld [vmem:[%s331 + $0x320] sm:$0xff]
        %v433 = vld [vmem:[%s331 + $0x328] sm:$0xff]
        %v434 = vld [vmem:[%s331 + $0x330] sm:$0xff]
        %v435 = vld [vmem:[%s331 + $0x338] sm:$0xff]
        %v436 = vld [vmem:[%s331 + $0x340] sm:$0xff]
        %v437 = vld [vmem:[%s331 + $0x348] sm:$0xff]
        %v438 = vld [vmem:[%s331 + $0x350] sm:$0xff]
        %v439 = vld [vmem:[%s331 + $0x358] sm:$0xff]
        %v440 = vld [vmem:[%s331 + $0x360] sm:$0xff]
        %v441 = vld [vmem:[%s331 + $0x368] sm:$0xff]
        %v442 = vld [vmem:[%s331 + $0x370] sm:$0xff]
        %v443 = vld [vmem:[%s331 + $0x378] sm:$0xff]
        %v444 = vld [vmem:[%s331 + $0x380] sm:$0xff]
        %v445 = vld [vmem:[%s331 + $0x388] sm:$0xff]
        %v446 = vld [vmem:[%s331 + $0x390] sm:$0xff]
        %v447 = vld [vmem:[%s331 + $0x398] sm:$0xff]
        %v448 = vld [vmem:[%s331 + $0x3a0] sm:$0xff]
        %v449 = vld [vmem:[%s331 + $0x3a8] sm:$0xff]
        %v450 = vld [vmem:[%s331 + $0x3b0] sm:$0xff]
        %v451 = vld [vmem:[%s331 + $0x3b8] sm:$0xff]
        %v452 = vld [vmem:[%s331 + $0x3c0] sm:$0xff]
        %v453 = vld [vmem:[%s331 + $0x3c8] sm:$0xff]
        %v454 = vld [vmem:[%s331 + $0x3d0] sm:$0xff]
        %v455 = vld [vmem:[%s331 + $0x3d8] sm:$0xff]
        %v456 = vld [vmem:[%s331 + $0x3e0] sm:$0xff]
        %v457 = vld [vmem:[%s331 + $0x3e8] sm:$0xff]
        %v458 = vld [vmem:[%s331 + $0x3f0] sm:$0xff]
        %v459 = vld [vmem:[%s331 + $0x3f8] sm:$0xff]
        %v476 = vunpack.c.l.b16 %v313
        %v477 = vunpack.c.h.b16 %v313
        %v478 = vunpack.c.l.b16 %v314
        %v479 = vunpack.c.h.b16 %v314
        %v480 = vunpack.c.l.b16 %v315
        %v481 = vunpack.c.h.b16 %v315
        %v482 = vunpack.c.l.b16 %v316
        %v483 = vunpack.c.h.b16 %v316
        %v484 = vunpack.c.l.b16 %v317
        %v485 = vunpack.c.h.b16 %v317
        %v486 = vunpack.c.l.b16 %v318
        %v487 = vunpack.c.h.b16 %v318
        %v488 = vunpack.c.l.b16 %v319
        %v489 = vunpack.c.h.b16 %v319
        %v490 = vunpack.c.l.b16 %v320
        %v491 = vunpack.c.h.b16 %v320
        %v492 = vunpack.c.l.b16 %v321
        %v493 = vunpack.c.h.b16 %v321
        %v494 = vunpack.c.l.b16 %v322
        %v495 = vunpack.c.h.b16 %v322
        %v496 = vunpack.c.l.b16 %v323
        %v497 = vunpack.c.h.b16 %v323
        %v498 = vunpack.c.l.b16 %v324
        %v499 = vunpack.c.h.b16 %v324
        %v500 = vunpack.c.l.b16 %v325
        %v501 = vunpack.c.h.b16 %v325
        %v502 = vunpack.c.l.b16 %v326
        %v503 = vunpack.c.h.b16 %v326
        %v504 = vunpack.c.l.b16 %v327
        %v505 = vunpack.c.h.b16 %v327
        %v506 = vunpack.c.l.b16 %v328
        %v507 = vunpack.c.h.b16 %v328
        %v508 = vpack.c.b16 %v480, %v476
        %v509 = vpack.c.b16 %v481, %v477
        %v510 = vpack.c.b16 %v482, %v478
        %v511 = vpack.c.b16 %v483, %v479
        %v512 = vpack.c.b16 %v488, %v484
        %v513 = vpack.c.b16 %v489, %v485
        %v514 = vpack.c.b16 %v490, %v486
        %v515 = vpack.c.b16 %v491, %v487
        %v516 = vpack.c.b16 %v496, %v492
        %v517 = vpack.c.b16 %v497, %v493
        %v518 = vpack.c.b16 %v498, %v494
        %v519 = vpack.c.b16 %v499, %v495
        %v520 = vpack.c.b16 %v504, %v500
        %v521 = vpack.c.b16 %v505, %v501
        %v522 = vpack.c.b16 %v506, %v502
        %v523 = vpack.c.b16 %v507, %v503
        %v668 = vunpack.c.l.b16 %v332
        %v669 = vunpack.c.h.b16 %v332
        %v670 = vunpack.c.l.b16 %v333
        %v671 = vunpack.c.h.b16 %v333
        %v672 = vunpack.c.l.b16 %v334
        %v673 = vunpack.c.h.b16 %v334
        %v674 = vunpack.c.l.b16 %v335
        %v675 = vunpack.c.h.b16 %v335
        %v676 = vunpack.c.l.b16 %v336
        %v677 = vunpack.c.h.b16 %v336
        %v678 = vunpack.c.l.b16 %v337
        %v679 = vunpack.c.h.b16 %v337
        %v680 = vunpack.c.l.b16 %v338
        %v681 = vunpack.c.h.b16 %v338
        %v682 = vunpack.c.l.b16 %v339
        %v683 = vunpack.c.h.b16 %v339
        %v684 = vunpack.c.l.b16 %v340
        %v685 = vunpack.c.h.b16 %v340
        %v686 = vunpack.c.l.b16 %v341
        %v687 = vunpack.c.h.b16 %v341
        %v688 = vunpack.c.l.b16 %v342
        %v689 = vunpack.c.h.b16 %v342
        %v690 = vunpack.c.l.b16 %v343
        %v691 = vunpack.c.h.b16 %v343
        %v692 = vunpack.c.l.b16 %v344
        %v693 = vunpack.c.h.b16 %v344
        %v694 = vunpack.c.l.b16 %v345
        %v695 = vunpack.c.h.b16 %v345
        %v696 = vunpack.c.l.b16 %v346
        %v697 = vunpack.c.h.b16 %v346
        %v698 = vunpack.c.l.b16 %v347
        %v699 = vunpack.c.h.b16 %v347
        %v700 = vunpack.c.l.b16 %v348
        %v701 = vunpack.c.h.b16 %v348
        %v702 = vunpack.c.l.b16 %v349
        %v703 = vunpack.c.h.b16 %v349
        %v704 = vunpack.c.l.b16 %v350
        %v705 = vunpack.c.h.b16 %v350
        %v706 = vunpack.c.l.b16 %v351
        %v707 = vunpack.c.h.b16 %v351
        %v708 = vunpack.c.l.b16 %v352
        %v709 = vunpack.c.h.b16 %v352
        %v710 = vunpack.c.l.b16 %v353
        %v711 = vunpack.c.h.b16 %v353
        %v712 = vunpack.c.l.b16 %v354
        %v713 = vunpack.c.h.b16 %v354
        %v714 = vunpack.c.l.b16 %v355
        %v715 = vunpack.c.h.b16 %v355
        %v716 = vunpack.c.l.b16 %v356
        %v717 = vunpack.c.h.b16 %v356
        %v718 = vunpack.c.l.b16 %v357
        %v719 = vunpack.c.h.b16 %v357
        %v720 = vunpack.c.l.b16 %v358
        %v721 = vunpack.c.h.b16 %v358
        %v722 = vunpack.c.l.b16 %v359
        %v723 = vunpack.c.h.b16 %v359
        %v724 = vunpack.c.l.b16 %v360
        %v725 = vunpack.c.h.b16 %v360
        %v726 = vunpack.c.l.b16 %v361
        %v727 = vunpack.c.h.b16 %v361
        %v728 = vunpack.c.l.b16 %v362
        %v729 = vunpack.c.h.b16 %v362
        %v730 = vunpack.c.l.b16 %v363
        %v731 = vunpack.c.h.b16 %v363
        %v732 = vunpack.c.l.b16 %v364
        %v733 = vunpack.c.h.b16 %v364
        %v734 = vunpack.c.l.b16 %v365
        %v735 = vunpack.c.h.b16 %v365
        %v736 = vunpack.c.l.b16 %v366
        %v737 = vunpack.c.h.b16 %v366
        %v738 = vunpack.c.l.b16 %v367
        %v739 = vunpack.c.h.b16 %v367
        %v740 = vunpack.c.l.b16 %v368
        %v741 = vunpack.c.h.b16 %v368
        %v742 = vunpack.c.l.b16 %v369
        %v743 = vunpack.c.h.b16 %v369
        %v744 = vunpack.c.l.b16 %v370
        %v745 = vunpack.c.h.b16 %v370
        %v746 = vunpack.c.l.b16 %v371
        %v747 = vunpack.c.h.b16 %v371
        %v748 = vunpack.c.l.b16 %v372
        %v749 = vunpack.c.h.b16 %v372
        %v750 = vunpack.c.l.b16 %v373
        %v751 = vunpack.c.h.b16 %v373
        %v752 = vunpack.c.l.b16 %v374
        %v753 = vunpack.c.h.b16 %v374
        %v754 = vunpack.c.l.b16 %v375
        %v755 = vunpack.c.h.b16 %v375
        %v756 = vunpack.c.l.b16 %v376
        %v757 = vunpack.c.h.b16 %v376
        %v758 = vunpack.c.l.b16 %v377
        %v759 = vunpack.c.h.b16 %v377
        %v760 = vunpack.c.l.b16 %v378
        %v761 = vunpack.c.h.b16 %v378
        %v762 = vunpack.c.l.b16 %v379
        %v763 = vunpack.c.h.b16 %v379
        %v764 = vunpack.c.l.b16 %v380
        %v765 = vunpack.c.h.b16 %v380
        %v766 = vunpack.c.l.b16 %v381
        %v767 = vunpack.c.h.b16 %v381
        %v768 = vunpack.c.l.b16 %v382
        %v769 = vunpack.c.h.b16 %v382
        %v770 = vunpack.c.l.b16 %v383
        %v771 = vunpack.c.h.b16 %v383
        %v772 = vunpack.c.l.b16 %v384
        %v773 = vunpack.c.h.b16 %v384
        %v774 = vunpack.c.l.b16 %v385
        %v775 = vunpack.c.h.b16 %v385
        %v776 = vunpack.c.l.b16 %v386
        %v777 = vunpack.c.h.b16 %v386
        %v778 = vunpack.c.l.b16 %v387
        %v779 = vunpack.c.h.b16 %v387
        %v780 = vunpack.c.l.b16 %v388
        %v781 = vunpack.c.h.b16 %v388
        %v782 = vunpack.c.l.b16 %v389
        %v783 = vunpack.c.h.b16 %v389
        %v784 = vunpack.c.l.b16 %v390
        %v785 = vunpack.c.h.b16 %v390
        %v786 = vunpack.c.l.b16 %v391
        %v787 = vunpack.c.h.b16 %v391
        %v788 = vunpack.c.l.b16 %v392
        %v789 = vunpack.c.h.b16 %v392
        %v790 = vunpack.c.l.b16 %v393
        %v791 = vunpack.c.h.b16 %v393
        %v792 = vunpack.c.l.b16 %v394
        %v793 = vunpack.c.h.b16 %v394
        %v794 = vunpack.c.l.b16 %v395
        %v795 = vunpack.c.h.b16 %v395
        %v796 = vunpack.c.l.b16 %v396
        %v797 = vunpack.c.h.b16 %v396
        %v798 = vunpack.c.l.b16 %v397
        %v799 = vunpack.c.h.b16 %v397
        %v800 = vunpack.c.l.b16 %v398
        %v801 = vunpack.c.h.b16 %v398
        %v802 = vunpack.c.l.b16 %v399
        %v803 = vunpack.c.h.b16 %v399
        %v804 = vunpack.c.l.b16 %v400
        %v805 = vunpack.c.h.b16 %v400
        %v806 = vunpack.c.l.b16 %v401
        %v807 = vunpack.c.h.b16 %v401
        %v808 = vunpack.c.l.b16 %v402
        %v809 = vunpack.c.h.b16 %v402
        %v810 = vunpack.c.l.b16 %v403
        %v811 = vunpack.c.h.b16 %v403
        %v812 = vunpack.c.l.b16 %v404
        %v813 = vunpack.c.h.b16 %v404
        %v814 = vunpack.c.l.b16 %v405
        %v815 = vunpack.c.h.b16 %v405
        %v816 = vunpack.c.l.b16 %v406
        %v817 = vunpack.c.h.b16 %v406
        %v818 = vunpack.c.l.b16 %v407
        %v819 = vunpack.c.h.b16 %v407
        %v820 = vunpack.c.l.b16 %v408
        %v821 = vunpack.c.h.b16 %v408
        %v822 = vunpack.c.l.b16 %v409
        %v823 = vunpack.c.h.b16 %v409
        %v824 = vunpack.c.l.b16 %v410
        %v825 = vunpack.c.h.b16 %v410
        %v826 = vunpack.c.l.b16 %v411
        %v827 = vunpack.c.h.b16 %v411
        %v828 = vunpack.c.l.b16 %v412
        %v829 = vunpack.c.h.b16 %v412
        %v830 = vunpack.c.l.b16 %v413
        %v831 = vunpack.c.h.b16 %v413
        %v832 = vunpack.c.l.b16 %v414
        %v833 = vunpack.c.h.b16 %v414
        %v834 = vunpack.c.l.b16 %v415
        %v835 = vunpack.c.h.b16 %v415
        %v836 = vunpack.c.l.b16 %v416
        %v837 = vunpack.c.h.b16 %v416
        %v838 = vunpack.c.l.b16 %v417
        %v839 = vunpack.c.h.b16 %v417
        %v840 = vunpack.c.l.b16 %v418
        %v841 = vunpack.c.h.b16 %v418
        %v842 = vunpack.c.l.b16 %v419
        %v843 = vunpack.c.h.b16 %v419
        %v844 = vunpack.c.l.b16 %v420
        %v845 = vunpack.c.h.b16 %v420
        %v846 = vunpack.c.l.b16 %v421
        %v847 = vunpack.c.h.b16 %v421
        %v848 = vunpack.c.l.b16 %v422
        %v849 = vunpack.c.h.b16 %v422
        %v850 = vunpack.c.l.b16 %v423
        %v851 = vunpack.c.h.b16 %v423
        %v852 = vunpack.c.l.b16 %v424
        %v853 = vunpack.c.h.b16 %v424
        %v854 = vunpack.c.l.b16 %v425
        %v855 = vunpack.c.h.b16 %v425
        %v856 = vunpack.c.l.b16 %v426
        %v857 = vunpack.c.h.b16 %v426
        %v858 = vunpack.c.l.b16 %v427
        %v859 = vunpack.c.h.b16 %v427
        %v860 = vunpack.c.l.b16 %v428
        %v861 = vunpack.c.h.b16 %v428
        %v862 = vunpack.c.l.b16 %v429
        %v863 = vunpack.c.h.b16 %v429
        %v864 = vunpack.c.l.b16 %v430
        %v865 = vunpack.c.h.b16 %v430
        %v866 = vunpack.c.l.b16 %v431
        %v867 = vunpack.c.h.b16 %v431
        %v868 = vunpack.c.l.b16 %v432
        %v869 = vunpack.c.h.b16 %v432
        %v870 = vunpack.c.l.b16 %v433
        %v871 = vunpack.c.h.b16 %v433
        %v872 = vunpack.c.l.b16 %v434
        %v873 = vunpack.c.h.b16 %v434
        %v874 = vunpack.c.l.b16 %v435
        %v875 = vunpack.c.h.b16 %v435
        %v876 = vunpack.c.l.b16 %v436
        %v877 = vunpack.c.h.b16 %v436
        %v878 = vunpack.c.l.b16 %v437
        %v879 = vunpack.c.h.b16 %v437
        %v880 = vunpack.c.l.b16 %v438
        %v881 = vunpack.c.h.b16 %v438
        %v882 = vunpack.c.l.b16 %v439
        %v883 = vunpack.c.h.b16 %v439
        %v884 = vunpack.c.l.b16 %v440
        %v885 = vunpack.c.h.b16 %v440
        %v886 = vunpack.c.l.b16 %v441
        %v887 = vunpack.c.h.b16 %v441
        %v888 = vunpack.c.l.b16 %v442
        %v889 = vunpack.c.h.b16 %v442
        %v890 = vunpack.c.l.b16 %v443
        %v891 = vunpack.c.h.b16 %v443
        %v892 = vunpack.c.l.b16 %v444
        %v893 = vunpack.c.h.b16 %v444
        %v894 = vunpack.c.l.b16 %v445
        %v895 = vunpack.c.h.b16 %v445
        %v896 = vunpack.c.l.b16 %v446
        %v897 = vunpack.c.h.b16 %v446
        %v898 = vunpack.c.l.b16 %v447
        %v899 = vunpack.c.h.b16 %v447
        %v900 = vunpack.c.l.b16 %v448
        %v901 = vunpack.c.h.b16 %v448
        %v902 = vunpack.c.l.b16 %v449
        %v903 = vunpack.c.h.b16 %v449
        %v904 = vunpack.c.l.b16 %v450
        %v905 = vunpack.c.h.b16 %v450
        %v906 = vunpack.c.l.b16 %v451
        %v907 = vunpack.c.h.b16 %v451
        %v908 = vunpack.c.l.b16 %v452
        %v909 = vunpack.c.h.b16 %v452
        %v910 = vunpack.c.l.b16 %v453
        %v911 = vunpack.c.h.b16 %v453
        %v912 = vunpack.c.l.b16 %v454
        %v913 = vunpack.c.h.b16 %v454
        %v914 = vunpack.c.l.b16 %v455
        %v915 = vunpack.c.h.b16 %v455
        %v916 = vunpack.c.l.b16 %v456
        %v917 = vunpack.c.h.b16 %v456
        %v918 = vunpack.c.l.b16 %v457
        %v919 = vunpack.c.h.b16 %v457
        %v920 = vunpack.c.l.b16 %v458
        %v921 = vunpack.c.h.b16 %v458
        %v922 = vunpack.c.l.b16 %v459
        %v923 = vunpack.c.h.b16 %v459
        %v924 = vpack.c.b16 %v672, %v668
        %v925 = vpack.c.b16 %v673, %v669
        %v926 = vpack.c.b16 %v674, %v670
        %v927 = vpack.c.b16 %v675, %v671
        %v928 = vpack.c.b16 %v680, %v676
        %v929 = vpack.c.b16 %v681, %v677
        %v930 = vpack.c.b16 %v682, %v678
        %v931 = vpack.c.b16 %v683, %v679
        %v932 = vpack.c.b16 %v688, %v684
        %v933 = vpack.c.b16 %v689, %v685
        %v934 = vpack.c.b16 %v690, %v686
        %v935 = vpack.c.b16 %v691, %v687
        %v936 = vpack.c.b16 %v696, %v692
        %v937 = vpack.c.b16 %v697, %v693
        %v938 = vpack.c.b16 %v698, %v694
        %v939 = vpack.c.b16 %v699, %v695
        %v940 = vpack.c.b16 %v704, %v700
        %v941 = vpack.c.b16 %v705, %v701
        %v942 = vpack.c.b16 %v706, %v702
        %v943 = vpack.c.b16 %v707, %v703
        %v944 = vpack.c.b16 %v712, %v708
        %v945 = vpack.c.b16 %v713, %v709
        %v946 = vpack.c.b16 %v714, %v710
        %v947 = vpack.c.b16 %v715, %v711
        %v948 = vpack.c.b16 %v720, %v716
        %v949 = vpack.c.b16 %v721, %v717
        %v950 = vpack.c.b16 %v722, %v718
        %v951 = vpack.c.b16 %v723, %v719
        %v952 = vpack.c.b16 %v728, %v724
        %v953 = vpack.c.b16 %v729, %v725
        %v954 = vpack.c.b16 %v730, %v726
        %v955 = vpack.c.b16 %v731, %v727
        %v956 = vpack.c.b16 %v736, %v732
        %v957 = vpack.c.b16 %v737, %v733
        %v958 = vpack.c.b16 %v738, %v734
        %v959 = vpack.c.b16 %v739, %v735
        %v960 = vpack.c.b16 %v744, %v740
        %v961 = vpack.c.b16 %v745, %v741
        %v962 = vpack.c.b16 %v746, %v742
        %v963 = vpack.c.b16 %v747, %v743
        %v964 = vpack.c.b16 %v752, %v748
        %v965 = vpack.c.b16 %v753, %v749
        %v966 = vpack.c.b16 %v754, %v750
        %v967 = vpack.c.b16 %v755, %v751
        %v968 = vpack.c.b16 %v760, %v756
        %v969 = vpack.c.b16 %v761, %v757
        %v970 = vpack.c.b16 %v762, %v758
        %v971 = vpack.c.b16 %v763, %v759
        %v972 = vpack.c.b16 %v768, %v764
        %v973 = vpack.c.b16 %v769, %v765
        %v974 = vpack.c.b16 %v770, %v766
        %v975 = vpack.c.b16 %v771, %v767
        %v976 = vpack.c.b16 %v776, %v772
        %v977 = vpack.c.b16 %v777, %v773
        %v978 = vpack.c.b16 %v778, %v774
        %v979 = vpack.c.b16 %v779, %v775
        %v980 = vpack.c.b16 %v784, %v780
        %v981 = vpack.c.b16 %v785, %v781
        %v982 = vpack.c.b16 %v786, %v782
        %v983 = vpack.c.b16 %v787, %v783
        %v984 = vpack.c.b16 %v792, %v788
        %v985 = vpack.c.b16 %v793, %v789
        %v986 = vpack.c.b16 %v794, %v790
        %v987 = vpack.c.b16 %v795, %v791
        %v988 = vpack.c.b16 %v800, %v796
        %v989 = vpack.c.b16 %v801, %v797
        %v990 = vpack.c.b16 %v802, %v798
        %v991 = vpack.c.b16 %v803, %v799
        %v992 = vpack.c.b16 %v808, %v804
        %v993 = vpack.c.b16 %v809, %v805
        %v994 = vpack.c.b16 %v810, %v806
        %v995 = vpack.c.b16 %v811, %v807
        %v996 = vpack.c.b16 %v816, %v812
        %v997 = vpack.c.b16 %v817, %v813
        %v998 = vpack.c.b16 %v818, %v814
        %v999 = vpack.c.b16 %v819, %v815
        %v1000 = vpack.c.b16 %v824, %v820
        %v1001 = vpack.c.b16 %v825, %v821
        %v1002 = vpack.c.b16 %v826, %v822
        %v1003 = vpack.c.b16 %v827, %v823
        %v1004 = vpack.c.b16 %v832, %v828
        %v1005 = vpack.c.b16 %v833, %v829
        %v1006 = vpack.c.b16 %v834, %v830
        %v1007 = vpack.c.b16 %v835, %v831
        %v1008 = vpack.c.b16 %v840, %v836
        %v1009 = vpack.c.b16 %v841, %v837
        %v1010 = vpack.c.b16 %v842, %v838
        %v1011 = vpack.c.b16 %v843, %v839
        %v1012 = vpack.c.b16 %v848, %v844
        %v1013 = vpack.c.b16 %v849, %v845
        %v1014 = vpack.c.b16 %v850, %v846
        %v1015 = vpack.c.b16 %v851, %v847
        %v1016 = vpack.c.b16 %v856, %v852
        %v1017 = vpack.c.b16 %v857, %v853
        %v1018 = vpack.c.b16 %v858, %v854
        %v1019 = vpack.c.b16 %v859, %v855
        %v1020 = vpack.c.b16 %v864, %v860
        %v1021 = vpack.c.b16 %v865, %v861
        %v1022 = vpack.c.b16 %v866, %v862
        %v1023 = vpack.c.b16 %v867, %v863
        %v1024 = vpack.c.b16 %v872, %v868
        %v1025 = vpack.c.b16 %v873, %v869
        %v1026 = vpack.c.b16 %v874, %v870
        %v1027 = vpack.c.b16 %v875, %v871
        %v1028 = vpack.c.b16 %v880, %v876
        %v1029 = vpack.c.b16 %v881, %v877
        %v1030 = vpack.c.b16 %v882, %v878
        %v1031 = vpack.c.b16 %v883, %v879
        %v1032 = vpack.c.b16 %v888, %v884
        %v1033 = vpack.c.b16 %v889, %v885
        %v1034 = vpack.c.b16 %v890, %v886
        %v1035 = vpack.c.b16 %v891, %v887
        %v1036 = vpack.c.b16 %v896, %v892
        %v1037 = vpack.c.b16 %v897, %v893
        %v1038 = vpack.c.b16 %v898, %v894
        %v1039 = vpack.c.b16 %v899, %v895
        %v1040 = vpack.c.b16 %v904, %v900
        %v1041 = vpack.c.b16 %v905, %v901
        %v1042 = vpack.c.b16 %v906, %v902
        %v1043 = vpack.c.b16 %v907, %v903
        %v1044 = vpack.c.b16 %v912, %v908
        %v1045 = vpack.c.b16 %v913, %v909
        %v1046 = vpack.c.b16 %v914, %v910
        %v1047 = vpack.c.b16 %v915, %v911
        %v1048 = vpack.c.b16 %v920, %v916
        %v1049 = vpack.c.b16 %v921, %v917
        %v1050 = vpack.c.b16 %v922, %v918
        %v1051 = vpack.c.b16 %v923, %v919
        %1180 = vmatprep.subr.bf16.mxu0 %v925
        %1181 = vmatpush1.bf16.msra.mxu0 %v924
        %1182 = vmatprep.subr.bf16.mxu0 %v929
        %1183 = vmatpush1.bf16.msra.mxu0 %v928
        %1184 = vmatprep.subr.bf16.mxu0 %v933
        %1185 = vmatpush1.bf16.msra.mxu0 %v932
        %1186 = vmatprep.subr.bf16.mxu0 %v937
        %1187 = vmatpush1.bf16.msra.mxu0 %v936
        %1188 = vmatprep.subr.bf16.mxu0 %v941
        %1189 = vmatpush1.bf16.msra.mxu0 %v940
        %1190 = vmatprep.subr.bf16.mxu0 %v945
        %1191 = vmatpush1.bf16.msra.mxu0 %v944
        %1192 = vmatprep.subr.bf16.mxu0 %v949
        %1193 = vmatpush1.bf16.msra.mxu0 %v948
        %1194 = vmatprep.subr.bf16.mxu0 %v953
        %1195 = vmatpush1.bf16.msra.mxu0 %v952
        %1196 = vmatprep.subr.bf16.mxu0 %v957
        %1197 = vmatpush1.bf16.msra.mxu0 %v956
        %1198 = vmatprep.subr.bf16.mxu0 %v961
        %1199 = vmatpush1.bf16.msra.mxu0 %v960
        %1200 = vmatprep.subr.bf16.mxu0 %v965
        %1201 = vmatpush1.bf16.msra.mxu0 %v964
        %1202 = vmatprep.subr.bf16.mxu0 %v969
        %1203 = vmatpush1.bf16.msra.mxu0 %v968
        %1204 = vmatprep.subr.bf16.mxu0 %v973
        %1205 = vmatpush1.bf16.msra.mxu0 %v972
        %1206 = vmatprep.subr.bf16.mxu0 %v977
        %1207 = vmatpush1.bf16.msra.mxu0 %v976
        %1208 = vmatprep.subr.bf16.mxu0 %v981
        %1209 = vmatpush1.bf16.msra.mxu0 %v980
        %1210 = vmatprep.subr.bf16.mxu0 %v985
        %1211 = vmatpush1.bf16.msra.mxu0 %v984
        %1212 = vmatprep.mubr.bf16.mxu0 %v509
        %1213 = vmatmul.mubr.bf16.gmra.mrb[0].mxu0 %v508
        %v1214 = vpop.f32.mrb[0].mxu0
        %v1215 = vadd.f32 0.0, %v1214
        %v1216 = vpop.f32.mrb[0].mxu0
        %v1217 = vadd.f32 0.0, %v1216
        %v1218 = vpop.f32.mrb[0].mxu0
        %v1219 = vadd.f32 0.0, %v1218
        %v1220 = vpop.f32.mrb[0].mxu0
        %v1221 = vadd.f32 0.0, %v1220
        %1222 = vmatprep.mubr.bf16.mxu0 %v513
        %1223 = vmatmul.mubr.bf16.gmra.mrb[0].mxu0 %v512
        %v1224 = vpop.f32.mrb[0].mxu0
        %v1225 = vadd.f32 0.0, %v1224
        %v1226 = vpop.f32.mrb[0].mxu0
        %v1227 = vadd.f32 0.0, %v1226
        %v1228 = vpop.f32.mrb[0].mxu0
        %v1229 = vadd.f32 0.0, %v1228
        %v1230 = vpop.f32.mrb[0].mxu0
        %v1231 = vadd.f32 0.0, %v1230
        %1232 = vmatprep.mubr.bf16.mxu0 %v517
        %1233 = vmatmul.mubr.bf16.gmra.mrb[0].mxu0 %v516
        %v1234 = vpop.f32.mrb[0].mxu0
        %v1235 = vadd.f32 0.0, %v1234
        %v1236 = vpop.f32.mrb[0].mxu0
        %v1237 = vadd.f32 0.0, %v1236
        %v1238 = vpop.f32.mrb[0].mxu0
        %v1239 = vadd.f32 0.0, %v1238
        %v1240 = vpop.f32.mrb[0].mxu0
        %v1241 = vadd.f32 0.0, %v1240
        %1242 = vmatprep.mubr.bf16.mxu0 %v521
        %1243 = vmatmul.mubr.bf16.gmra.mrb[0].mxu0 %v520
        %v1244 = vpop.f32.mrb[0].mxu0
        %v1245 = vadd.f32 0.0, %v1244
        %v1246 = vpop.f32.mrb[0].mxu0
        %v1247 = vadd.f32 0.0, %v1246
        %v1248 = vpop.f32.mrb[0].mxu0
        %v1249 = vadd.f32 0.0, %v1248
        %v1250 = vpop.f32.mrb[0].mxu0
        %v1251 = vadd.f32 0.0, %v1250
        %1252 = vdwg.mxu0
        %1253 = vmatprep.subr.bf16.mxu0 %v989
        %1254 = vmatpush1.bf16.msra.mxu0 %v988
        %1255 = vmatprep.subr.bf16.mxu0 %v993
        %1256 = vmatpush1.bf16.msra.mxu0 %v992
        %1257 = vmatprep.subr.bf16.mxu0 %v997
        %1258 = vmatpush1.bf16.msra.mxu0 %v996
        %1259 = vmatprep.subr.bf16.mxu0 %v1001
        %1260 = vmatpush1.bf16.msra.mxu0 %v1000
        %1261 = vmatprep.subr.bf16.mxu0 %v1005
        %1262 = vmatpush1.bf16.msra.mxu0 %v1004
        %1263 = vmatprep.subr.bf16.mxu0 %v1009
        %1264 = vmatpush1.bf16.msra.mxu0 %v1008
        %1265 = vmatprep.subr.bf16.mxu0 %v1013
        %1266 = vmatpush1.bf16.msra.mxu0 %v1012
        %1267 = vmatprep.subr.bf16.mxu0 %v1017
        %1268 = vmatpush1.bf16.msra.mxu0 %v1016
        %1269 = vmatprep.subr.bf16.mxu0 %v1021
        %1270 = vmatpush1.bf16.msra.mxu0 %v1020
        %1271 = vmatprep.subr.bf16.mxu0 %v1025
        %1272 = vmatpush1.bf16.msra.mxu0 %v1024
        %1273 = vmatprep.subr.bf16.mxu0 %v1029
        %1274 = vmatpush1.bf16.msra.mxu0 %v1028
        %1275 = vmatprep.subr.bf16.mxu0 %v1033
        %1276 = vmatpush1.bf16.msra.mxu0 %v1032
        %1277 = vmatprep.subr.bf16.mxu0 %v1037
        %1278 = vmatpush1.bf16.msra.mxu0 %v1036
        %1279 = vmatprep.subr.bf16.mxu0 %v1041
        %1280 = vmatpush1.bf16.msra.mxu0 %v1040
        %1281 = vmatprep.subr.bf16.mxu0 %v1045
        %1282 = vmatpush1.bf16.msra.mxu0 %v1044
        %1283 = vmatprep.subr.bf16.mxu0 %v1049
        %1284 = vmatpush1.bf16.msra.mxu0 %v1048
        %1285 = vmatprep.mubr.bf16.mxu0 %v511
        %1286 = vmatmul.mubr.bf16.gmra.mrb[0].mxu0 %v510
        %v1287 = vpop.f32.mrb[0].mxu0
        %v1288 = vadd.f32 %v1215, %v1287
        %v1289 = vpop.f32.mrb[0].mxu0
        %v1290 = vadd.f32 %v1217, %v1289
        %v1291 = vpop.f32.mrb[0].mxu0
        %v1292 = vadd.f32 %v1219, %v1291
        %v1293 = vpop.f32.mrb[0].mxu0
        %v1294 = vadd.f32 %v1221, %v1293
        %1295 = vmatprep.mubr.bf16.mxu0 %v515
        %1296 = vmatmul.mubr.bf16.gmra.mrb[0].mxu0 %v514
        %v1297 = vpop.f32.mrb[0].mxu0
        %v1298 = vadd.f32 %v1225, %v1297
        %v1299 = vpop.f32.mrb[0].mxu0
        %v1300 = vadd.f32 %v1227, %v1299
        %v1301 = vpop.f32.mrb[0].mxu0
        %v1302 = vadd.f32 %v1229, %v1301
        %v1303 = vpop.f32.mrb[0].mxu0
        %v1304 = vadd.f32 %v1231, %v1303
        %1305 = vmatprep.mubr.bf16.mxu0 %v519
        %1306 = vmatmul.mubr.bf16.gmra.mrb[0].mxu0 %v518
        %v1307 = vpop.f32.mrb[0].mxu0
        %v1308 = vadd.f32 %v1235, %v1307
        %v1309 = vpop.f32.mrb[0].mxu0
        %v1310 = vadd.f32 %v1237, %v1309
        %v1311 = vpop.f32.mrb[0].mxu0
        %v1312 = vadd.f32 %v1239, %v1311
        %v1313 = vpop.f32.mrb[0].mxu0
        %v1314 = vadd.f32 %v1241, %v1313
        %1315 = vmatprep.mubr.bf16.mxu0 %v523
        %1316 = vmatmul.mubr.bf16.gmra.mrb[0].mxu0 %v522
        %v1317 = vpop.f32.mrb[0].mxu0
        %v1318 = vadd.f32 %v1245, %v1317
        %v1319 = vpop.f32.mrb[0].mxu0
        %v1320 = vadd.f32 %v1247, %v1319
        %v1321 = vpop.f32.mrb[0].mxu0
        %v1322 = vadd.f32 %v1249, %v1321
        %v1323 = vpop.f32.mrb[0].mxu0
        %v1324 = vadd.f32 %v1251, %v1323
        %1325 = vdwg.mxu0
        %1326 = vmatprep.subr.bf16.mxu0 %v927
        %1327 = vmatpush1.bf16.msra.mxu0 %v926
        %1328 = vmatprep.subr.bf16.mxu0 %v931
        %1329 = vmatpush1.bf16.msra.mxu0 %v930
        %1330 = vmatprep.subr.bf16.mxu0 %v935
        %1331 = vmatpush1.bf16.msra.mxu0 %v934
        %1332 = vmatprep.subr.bf16.mxu0 %v939
        %1333 = vmatpush1.bf16.msra.mxu0 %v938
        %1334 = vmatprep.subr.bf16.mxu0 %v943
        %1335 = vmatpush1.bf16.msra.mxu0 %v942
        %1336 = vmatprep.subr.bf16.mxu0 %v947
        %1337 = vmatpush1.bf16.msra.mxu0 %v946
        %1338 = vmatprep.subr.bf16.mxu0 %v951
        %1339 = vmatpush1.bf16.msra.mxu0 %v950
        %1340 = vmatprep.subr.bf16.mxu0 %v955
        %1341 = vmatpush1.bf16.msra.mxu0 %v954
        %1342 = vmatprep.subr.bf16.mxu0 %v959
        %1343 = vmatpush1.bf16.msra.mxu0 %v958
        %1344 = vmatprep.subr.bf16.mxu0 %v963
        %1345 = vmatpush1.bf16.msra.mxu0 %v962
        %1346 = vmatprep.subr.bf16.mxu0 %v967
        %1347 = vmatpush1.bf16.msra.mxu0 %v966
        %1348 = vmatprep.subr.bf16.mxu0 %v971
        %1349 = vmatpush1.bf16.msra.mxu0 %v970
        %1350 = vmatprep.subr.bf16.mxu0 %v975
        %1351 = vmatpush1.bf16.msra.mxu0 %v974
        %1352 = vmatprep.subr.bf16.mxu0 %v979
        %1353 = vmatpush1.bf16.msra.mxu0 %v978
        %1354 = vmatprep.subr.bf16.mxu0 %v983
        %1355 = vmatpush1.bf16.msra.mxu0 %v982
        %1356 = vmatprep.subr.bf16.mxu0 %v987
        %1357 = vmatpush1.bf16.msra.mxu0 %v986
        %1358 = vmatprep.mubr.bf16.mxu0 %v509
        %1359 = vmatmul.mubr.bf16.gmra.mrb[0].mxu0 %v508
        %v1360 = vpop.f32.mrb[0].mxu0
        %v1361 = vadd.f32 0.0, %v1360
        %v1362 = vpop.f32.mrb[0].mxu0
        %v1363 = vadd.f32 0.0, %v1362
        %v1364 = vpop.f32.mrb[0].mxu0
        %v1365 = vadd.f32 0.0, %v1364
        %v1366 = vpop.f32.mrb[0].mxu0
        %v1367 = vadd.f32 0.0, %v1366
        %1368 = vmatprep.mubr.bf16.mxu0 %v513
        %1369 = vmatmul.mubr.bf16.gmra.mrb[0].mxu0 %v512
        %v1370 = vpop.f32.mrb[0].mxu0
        %v1371 = vadd.f32 0.0, %v1370
        %v1372 = vpop.f32.mrb[0].mxu0
        %v1373 = vadd.f32 0.0, %v1372
        %v1374 = vpop.f32.mrb[0].mxu0
        %v1375 = vadd.f32 0.0, %v1374
        %v1376 = vpop.f32.mrb[0].mxu0
        %v1377 = vadd.f32 0.0, %v1376
        %1378 = vmatprep.mubr.bf16.mxu0 %v517
        %1379 = vmatmul.mubr.bf16.gmra.mrb[0].mxu0 %v516
        %v1380 = vpop.f32.mrb[0].mxu0
        %v1381 = vadd.f32 0.0, %v1380
        %v1382 = vpop.f32.mrb[0].mxu0
        %v1383 = vadd.f32 0.0, %v1382
        %v1384 = vpop.f32.mrb[0].mxu0
        %v1385 = vadd.f32 0.0, %v1384
        %v1386 = vpop.f32.mrb[0].mxu0
        %v1387 = vadd.f32 0.0, %v1386
        %1388 = vmatprep.mubr.bf16.mxu0 %v521
        %1389 = vmatmul.mubr.bf16.gmra.mrb[0].mxu0 %v520
        %v1390 = vpop.f32.mrb[0].mxu0
        %v1391 = vadd.f32 0.0, %v1390
        %v1392 = vpop.f32.mrb[0].mxu0
        %v1393 = vadd.f32 0.0, %v1392
        %v1394 = vpop.f32.mrb[0].mxu0
        %v1395 = vadd.f32 0.0, %v1394
        %v1396 = vpop.f32.mrb[0].mxu0
        %v1397 = vadd.f32 0.0, %v1396
        %1398 = vdwg.mxu0
        %1399 = vmatprep.subr.bf16.mxu0 %v991
        %1400 = vmatpush1.bf16.msra.mxu0 %v990
        %1401 = vmatprep.subr.bf16.mxu0 %v995
        %1402 = vmatpush1.bf16.msra.mxu0 %v994
        %1403 = vmatprep.subr.bf16.mxu0 %v999
        %1404 = vmatpush1.bf16.msra.mxu0 %v998
        %1405 = vmatprep.subr.bf16.mxu0 %v1003
        %1406 = vmatpush1.bf16.msra.mxu0 %v1002
        %1407 = vmatprep.subr.bf16.mxu0 %v1007
        %1408 = vmatpush1.bf16.msra.mxu0 %v1006
        %1409 = vmatprep.subr.bf16.mxu0 %v1011
        %1410 = vmatpush1.bf16.msra.mxu0 %v1010
        %1411 = vmatprep.subr.bf16.mxu0 %v1015
        %1412 = vmatpush1.bf16.msra.mxu0 %v1014
        %1413 = vmatprep.subr.bf16.mxu0 %v1019
        %1414 = vmatpush1.bf16.msra.mxu0 %v1018
        %1415 = vmatprep.subr.bf16.mxu0 %v1023
        %1416 = vmatpush1.bf16.msra.mxu0 %v1022
        %1417 = vmatprep.subr.bf16.mxu0 %v1027
        %1418 = vmatpush1.bf16.msra.mxu0 %v1026
        %1419 = vmatprep.subr.bf16.mxu0 %v1031
        %1420 = vmatpush1.bf16.msra.mxu0 %v1030
        %1421 = vmatprep.subr.bf16.mxu0 %v1035
        %1422 = vmatpush1.bf16.msra.mxu0 %v1034
        %1423 = vmatprep.subr.bf16.mxu0 %v1039
        %1424 = vmatpush1.bf16.msra.mxu0 %v1038
        %1425 = vmatprep.subr.bf16.mxu0 %v1043
        %1426 = vmatpush1.bf16.msra.mxu0 %v1042
        %1427 = vmatprep.subr.bf16.mxu0 %v1047
        %1428 = vmatpush1.bf16.msra.mxu0 %v1046
        %1429 = vmatprep.subr.bf16.mxu0 %v1051
        %1430 = vmatpush1.bf16.msra.mxu0 %v1050
        %1431 = vmatprep.mubr.bf16.mxu0 %v511
        %1432 = vmatmul.mubr.bf16.gmra.mrb[0].mxu0 %v510
        %v1433 = vpop.f32.mrb[0].mxu0
        %v1434 = vadd.f32 %v1361, %v1433
        %v1435 = vpop.f32.mrb[0].mxu0
        %v1436 = vadd.f32 %v1363, %v1435
        %v1437 = vpop.f32.mrb[0].mxu0
        %v1438 = vadd.f32 %v1365, %v1437
        %v1439 = vpop.f32.mrb[0].mxu0
        %v1440 = vadd.f32 %v1367, %v1439
        %1441 = vmatprep.mubr.bf16.mxu0 %v515
        %1442 = vmatmul.mubr.bf16.gmra.mrb[0].mxu0 %v514
        %v1443 = vpop.f32.mrb[0].mxu0
        %v1444 = vadd.f32 %v1371, %v1443
        %v1445 = vpop.f32.mrb[0].mxu0
        %v1446 = vadd.f32 %v1373, %v1445
        %v1447 = vpop.f32.mrb[0].mxu0
        %v1448 = vadd.f32 %v1375, %v1447
        %v1449 = vpop.f32.mrb[0].mxu0
        %v1450 = vadd.f32 %v1377, %v1449
        %1451 = vmatprep.mubr.bf16.mxu0 %v519
        %1452 = vmatmul.mubr.bf16.gmra.mrb[0].mxu0 %v518
        %v1453 = vpop.f32.mrb[0].mxu0
        %v1454 = vadd.f32 %v1381, %v1453
        %v1455 = vpop.f32.mrb[0].mxu0
        %v1456 = vadd.f32 %v1383, %v1455
        %v1457 = vpop.f32.mrb[0].mxu0
        %v1458 = vadd.f32 %v1385, %v1457
        %v1459 = vpop.f32.mrb[0].mxu0
        %v1460 = vadd.f32 %v1387, %v1459
        %1461 = vmatprep.mubr.bf16.mxu0 %v523
        %1462 = vmatmul.mubr.bf16.gmra.mrb[0].mxu0 %v522
        %v1463 = vpop.f32.mrb[0].mxu0
        %v1464 = vadd.f32 %v1391, %v1463
        %v1465 = vpop.f32.mrb[0].mxu0
        %v1466 = vadd.f32 %v1393, %v1465
        %v1467 = vpop.f32.mrb[0].mxu0
        %v1468 = vadd.f32 %v1395, %v1467
        %v1469 = vpop.f32.mrb[0].mxu0
        %v1470 = vadd.f32 %v1397, %v1469
        %1471 = vdwg.mxu0
        %v1472 = vadd.f32 %v281, %v1288
        %v1473 = vadd.f32 %v282, %v1290
        %v1474 = vadd.f32 %v283, %v1434
        %v1475 = vadd.f32 %v284, %v1436
        %v1476 = vadd.f32 %v285, %v1292
        %v1477 = vadd.f32 %v286, %v1294
        %v1478 = vadd.f32 %v287, %v1438
        %v1479 = vadd.f32 %v288, %v1440
        %v1480 = vadd.f32 %v289, %v1298
        %v1481 = vadd.f32 %v290, %v1300
        %v1482 = vadd.f32 %v291, %v1444
        %v1483 = vadd.f32 %v292, %v1446
        %v1484 = vadd.f32 %v293, %v1302
        %v1485 = vadd.f32 %v294, %v1304
        %v1486 = vadd.f32 %v295, %v1448
        %v1487 = vadd.f32 %v296, %v1450
        %v1488 = vadd.f32 %v297, %v1308
        %v1489 = vadd.f32 %v298, %v1310
        %v1490 = vadd.f32 %v299, %v1454
        %v1491 = vadd.f32 %v300, %v1456
        %v1492 = vadd.f32 %v301, %v1312
        %v1493 = vadd.f32 %v302, %v1314
        %v1494 = vadd.f32 %v303, %v1458
        %v1495 = vadd.f32 %v304, %v1460
        %v1496 = vadd.f32 %v305, %v1318
        %v1497 = vadd.f32 %v306, %v1320
        %v1498 = vadd.f32 %v307, %v1464
        %v1499 = vadd.f32 %v308, %v1466
        %v1500 = vadd.f32 %v309, %v1322
        %v1501 = vadd.f32 %v310, %v1324
        %v1502 = vadd.f32 %v311, %v1468
        %v1503 = vadd.f32 %v312, %v1470
        %v1504 = vld [vmem:[%s213] sm:$0xff]
        %v1505 = vld [vmem:[%s213 + $0x8] sm:$0xff]
        %v1506 = vld [vmem:[%s213 + $0x10] sm:$0x11]
        %v1507 = vld [vmem:[%s213 + $0x18] sm:$0x11]
        %v1508 = vld [vmem:[%s213 + $0x20] sm:$0xff]
        %v1509 = vld [vmem:[%s213 + $0x28] sm:$0xff]
        %v1510 = vld [vmem:[%s213 + $0x30] sm:$0x11]
        %v1511 = vld [vmem:[%s213 + $0x38] sm:$0x11]
        %v1512 = vld [vmem:[%s213 + $0x40] sm:$0xff]
        %v1513 = vld [vmem:[%s213 + $0x48] sm:$0xff]
        %v1514 = vld [vmem:[%s213 + $0x50] sm:$0x11]
        %v1515 = vld [vmem:[%s213 + $0x58] sm:$0x11]
        %v1516 = vld [vmem:[%s213 + $0x60] sm:$0xff]
        %v1517 = vld [vmem:[%s213 + $0x68] sm:$0xff]
        %v1518 = vld [vmem:[%s213 + $0x70] sm:$0x11]
        %v1519 = vld [vmem:[%s213 + $0x78] sm:$0x11]
        %v1520 = vld [vmem:[%s213 + $0x80] sm:$0xff]
        %v1521 = vld [vmem:[%s213 + $0x88] sm:$0xff]
        %v1522 = vld [vmem:[%s213 + $0x90] sm:$0x11]
        %v1523 = vld [vmem:[%s213 + $0x98] sm:$0x11]
        %v1524 = vld [vmem:[%s213 + $0xa0] sm:$0xff]
        %v1525 = vld [vmem:[%s213 + $0xa8] sm:$0xff]
        %v1526 = vld [vmem:[%s213 + $0xb0] sm:$0x11]
        %v1527 = vld [vmem:[%s213 + $0xb8] sm:$0x11]
        %v1528 = vld [vmem:[%s213 + $0xc0] sm:$0xff]
        %v1529 = vld [vmem:[%s213 + $0xc8] sm:$0xff]
        %v1530 = vld [vmem:[%s213 + $0xd0] sm:$0x11]
        %v1531 = vld [vmem:[%s213 + $0xd8] sm:$0x11]
        %v1532 = vld [vmem:[%s213 + $0xe0] sm:$0xff]
        %v1533 = vld [vmem:[%s213 + $0xe8] sm:$0xff]
        %v1534 = vld [vmem:[%s213 + $0xf0] sm:$0x11]
        %v1535 = vld [vmem:[%s213 + $0xf8] sm:$0x11]
        %vm1536 = vsmask.f32 3328
        %vm1537 = vsmask.f32 7440
        %vm1538 = vmor %vm1536, %vm1537
        %v1540 = vshrl.u32 %v1504, 16
        %v1542 = vrot.slane %v1540, 4
        %v1543 = vshll.u32 %v1504, 16
        %v1545 = vrot.slane %v1543, 5
        %v1546 = vor.u32 %v1542, %v1545
        %v1547 = vrot.slane %v1546, 4
        %v1549 = vshll.u32 %v1506, 16
        %v1551 = vrot.slane %v1549, 5
        %v1552 = vsel %vm1538, %v1547, %v1551
        %v1554 = vshrl.u32 %v1505, 16
        %v1556 = vrot.slane %v1554, 4
        %v1557 = vshll.u32 %v1505, 16
        %v1559 = vrot.slane %v1557, 5
        %v1560 = vor.u32 %v1556, %v1559
        %v1561 = vrot.slane %v1560, 4
        %v1563 = vshll.u32 %v1507, 16
        %v1565 = vrot.slane %v1563, 5
        %v1566 = vsel %vm1538, %v1561, %v1565
        %v1568 = vshrl.u32 %v1508, 16
        %v1570 = vrot.slane %v1568, 4
        %v1571 = vshll.u32 %v1508, 16
        %v1573 = vrot.slane %v1571, 5
        %v1574 = vor.u32 %v1570, %v1573
        %v1575 = vrot.slane %v1574, 4
        %v1577 = vshll.u32 %v1510, 16
        %v1579 = vrot.slane %v1577, 5
        %v1580 = vsel %vm1538, %v1575, %v1579
        %v1582 = vshrl.u32 %v1509, 16
        %v1584 = vrot.slane %v1582, 4
        %v1585 = vshll.u32 %v1509, 16
        %v1587 = vrot.slane %v1585, 5
        %v1588 = vor.u32 %v1584, %v1587
        %v1589 = vrot.slane %v1588, 4
        %v1591 = vshll.u32 %v1511, 16
        %v1593 = vrot.slane %v1591, 5
        %v1594 = vsel %vm1538, %v1589, %v1593
        %v1596 = vshrl.u32 %v1512, 16
        %v1598 = vrot.slane %v1596, 4
        %v1599 = vshll.u32 %v1512, 16
        %v1601 = vrot.slane %v1599, 5
        %v1602 = vor.u32 %v1598, %v1601
        %v1603 = vrot.slane %v1602, 4
        %v1605 = vshll.u32 %v1514, 16
        %v1607 = vrot.slane %v1605, 5
        %v1608 = vsel %vm1538, %v1603, %v1607
        %v1610 = vshrl.u32 %v1513, 16
        %v1612 = vrot.slane %v1610, 4
        %v1613 = vshll.u32 %v1513, 16
        %v1615 = vrot.slane %v1613, 5
        %v1616 = vor.u32 %v1612, %v1615
        %v1617 = vrot.slane %v1616, 4
        %v1619 = vshll.u32 %v1515, 16
        %v1621 = vrot.slane %v1619, 5
        %v1622 = vsel %vm1538, %v1617, %v1621
        %v1624 = vshrl.u32 %v1516, 16
        %v1626 = vrot.slane %v1624, 4
        %v1627 = vshll.u32 %v1516, 16
        %v1629 = vrot.slane %v1627, 5
        %v1630 = vor.u32 %v1626, %v1629
        %v1631 = vrot.slane %v1630, 4
        %v1633 = vshll.u32 %v1518, 16
        %v1635 = vrot.slane %v1633, 5
        %v1636 = vsel %vm1538, %v1631, %v1635
        %v1638 = vshrl.u32 %v1517, 16
        %v1640 = vrot.slane %v1638, 4
        %v1641 = vshll.u32 %v1517, 16
        %v1643 = vrot.slane %v1641, 5
        %v1644 = vor.u32 %v1640, %v1643
        %v1645 = vrot.slane %v1644, 4
        %v1647 = vshll.u32 %v1519, 16
        %v1649 = vrot.slane %v1647, 5
        %v1650 = vsel %vm1538, %v1645, %v1649
        %v1652 = vshrl.u32 %v1520, 16
        %v1654 = vrot.slane %v1652, 4
        %v1655 = vshll.u32 %v1520, 16
        %v1657 = vrot.slane %v1655, 5
        %v1658 = vor.u32 %v1654, %v1657
        %v1659 = vrot.slane %v1658, 4
        %v1661 = vshll.u32 %v1522, 16
        %v1663 = vrot.slane %v1661, 5
        %v1664 = vsel %vm1538, %v1659, %v1663
        %v1666 = vshrl.u32 %v1521, 16
        %v1668 = vrot.slane %v1666, 4
        %v1669 = vshll.u32 %v1521, 16
        %v1671 = vrot.slane %v1669, 5
        %v1672 = vor.u32 %v1668, %v1671
        %v1673 = vrot.slane %v1672, 4
        %v1675 = vshll.u32 %v1523, 16
        %v1677 = vrot.slane %v1675, 5
        %v1678 = vsel %vm1538, %v1673, %v1677
        %v1680 = vshrl.u32 %v1524, 16
        %v1682 = vrot.slane %v1680, 4
        %v1683 = vshll.u32 %v1524, 16
        %v1685 = vrot.slane %v1683, 5
        %v1686 = vor.u32 %v1682, %v1685
        %v1687 = vrot.slane %v1686, 4
        %v1689 = vshll.u32 %v1526, 16
        %v1691 = vrot.slane %v1689, 5
        %v1692 = vsel %vm1538, %v1687, %v1691
        %v1694 = vshrl.u32 %v1525, 16
        %v1696 = vrot.slane %v1694, 4
        %v1697 = vshll.u32 %v1525, 16
        %v1699 = vrot.slane %v1697, 5
        %v1700 = vor.u32 %v1696, %v1699
        %v1701 = vrot.slane %v1700, 4
        %v1703 = vshll.u32 %v1527, 16
        %v1705 = vrot.slane %v1703, 5
        %v1706 = vsel %vm1538, %v1701, %v1705
        %v1708 = vshrl.u32 %v1528, 16
        %v1710 = vrot.slane %v1708, 4
        %v1711 = vshll.u32 %v1528, 16
        %v1713 = vrot.slane %v1711, 5
        %v1714 = vor.u32 %v1710, %v1713
        %v1715 = vrot.slane %v1714, 4
        %v1717 = vshll.u32 %v1530, 16
        %v1719 = vrot.slane %v1717, 5
        %v1720 = vsel %vm1538, %v1715, %v1719
        %v1722 = vshrl.u32 %v1529, 16
        %v1724 = vrot.slane %v1722, 4
        %v1725 = vshll.u32 %v1529, 16
        %v1727 = vrot.slane %v1725, 5
        %v1728 = vor.u32 %v1724, %v1727
        %v1729 = vrot.slane %v1728, 4
        %v1731 = vshll.u32 %v1531, 16
        %v1733 = vrot.slane %v1731, 5
        %v1734 = vsel %vm1538, %v1729, %v1733
        %v1736 = vshrl.u32 %v1532, 16
        %v1738 = vrot.slane %v1736, 4
        %v1739 = vshll.u32 %v1532, 16
        %v1741 = vrot.slane %v1739, 5
        %v1742 = vor.u32 %v1738, %v1741
        %v1743 = vrot.slane %v1742, 4
        %v1745 = vshll.u32 %v1534, 16
        %v1747 = vrot.slane %v1745, 5
        %v1748 = vsel %vm1538, %v1743, %v1747
        %v1750 = vshrl.u32 %v1533, 16
        %v1752 = vrot.slane %v1750, 4
        %v1753 = vshll.u32 %v1533, 16
        %v1755 = vrot.slane %v1753, 5
        %v1756 = vor.u32 %v1752, %v1755
        %v1757 = vrot.slane %v1756, 4
        %v1759 = vshll.u32 %v1535, 16
        %v1761 = vrot.slane %v1759, 5
        %v1762 = vsel %vm1538, %v1757, %v1761
        %s1763 = sadd.s32 256, %s329
        %s1764 = smul.addr %s1763, 4
        %s1765 = scalar_lea.vmem [#allocation6], %s1764
        %v1766 = vld [vmem:[%s1765] sm:$0xff]
        %v1767 = vld [vmem:[%s1765 + $0x8] sm:$0xff]
        %v1768 = vld [vmem:[%s1765 + $0x10] sm:$0xff]
        %v1769 = vld [vmem:[%s1765 + $0x18] sm:$0xff]
        %v1770 = vld [vmem:[%s1765 + $0x20] sm:$0xff]
        %v1771 = vld [vmem:[%s1765 + $0x28] sm:$0xff]
        %v1772 = vld [vmem:[%s1765 + $0x30] sm:$0xff]
        %v1773 = vld [vmem:[%s1765 + $0x38] sm:$0xff]
        %v1774 = vld [vmem:[%s1765 + $0x40] sm:$0xff]
        %v1775 = vld [vmem:[%s1765 + $0x48] sm:$0xff]
        %v1776 = vld [vmem:[%s1765 + $0x50] sm:$0xff]
        %v1777 = vld [vmem:[%s1765 + $0x58] sm:$0xff]
        %v1778 = vld [vmem:[%s1765 + $0x60] sm:$0xff]
        %v1779 = vld [vmem:[%s1765 + $0x68] sm:$0xff]
        %v1780 = vld [vmem:[%s1765 + $0x70] sm:$0xff]
        %v1781 = vld [vmem:[%s1765 + $0x78] sm:$0xff]
        %v1782 = vld [vmem:[%s1765 + $0x80] sm:$0xff]
        %v1783 = vld [vmem:[%s1765 + $0x88] sm:$0xff]
        %v1784 = vld [vmem:[%s1765 + $0x90] sm:$0xff]
        %v1785 = vld [vmem:[%s1765 + $0x98] sm:$0xff]
        %v1786 = vld [vmem:[%s1765 + $0xa0] sm:$0xff]
        %v1787 = vld [vmem:[%s1765 + $0xa8] sm:$0xff]
        %v1788 = vld [vmem:[%s1765 + $0xb0] sm:$0xff]
        %v1789 = vld [vmem:[%s1765 + $0xb8] sm:$0xff]
        %v1790 = vld [vmem:[%s1765 + $0xc0] sm:$0xff]
        %v1791 = vld [vmem:[%s1765 + $0xc8] sm:$0xff]
        %v1792 = vld [vmem:[%s1765 + $0xd0] sm:$0xff]
        %v1793 = vld [vmem:[%s1765 + $0xd8] sm:$0xff]
        %v1794 = vld [vmem:[%s1765 + $0xe0] sm:$0xff]
        %v1795 = vld [vmem:[%s1765 + $0xe8] sm:$0xff]
        %v1796 = vld [vmem:[%s1765 + $0xf0] sm:$0xff]
        %v1797 = vld [vmem:[%s1765 + $0xf8] sm:$0xff]
        %v1798 = vld [vmem:[%s1765 + $0x100] sm:$0xff]
        %v1799 = vld [vmem:[%s1765 + $0x108] sm:$0xff]
        %v1800 = vld [vmem:[%s1765 + $0x110] sm:$0xff]
        %v1801 = vld [vmem:[%s1765 + $0x118] sm:$0xff]
        %v1802 = vld [vmem:[%s1765 + $0x120] sm:$0xff]
        %v1803 = vld [vmem:[%s1765 + $0x128] sm:$0xff]
        %v1804 = vld [vmem:[%s1765 + $0x130] sm:$0xff]
        %v1805 = vld [vmem:[%s1765 + $0x138] sm:$0xff]
        %v1806 = vld [vmem:[%s1765 + $0x140] sm:$0xff]
        %v1807 = vld [vmem:[%s1765 + $0x148] sm:$0xff]
        %v1808 = vld [vmem:[%s1765 + $0x150] sm:$0xff]
        %v1809 = vld [vmem:[%s1765 + $0x158] sm:$0xff]
        %v1810 = vld [vmem:[%s1765 + $0x160] sm:$0xff]
        %v1811 = vld [vmem:[%s1765 + $0x168] sm:$0xff]
        %v1812 = vld [vmem:[%s1765 + $0x170] sm:$0xff]
        %v1813 = vld [vmem:[%s1765 + $0x178] sm:$0xff]
        %v1814 = vld [vmem:[%s1765 + $0x180] sm:$0xff]
        %v1815 = vld [vmem:[%s1765 + $0x188] sm:$0xff]
        %v1816 = vld [vmem:[%s1765 + $0x190] sm:$0xff]
        %v1817 = vld [vmem:[%s1765 + $0x198] sm:$0xff]
        %v1818 = vld [vmem:[%s1765 + $0x1a0] sm:$0xff]
        %v1819 = vld [vmem:[%s1765 + $0x1a8] sm:$0xff]
        %v1820 = vld [vmem:[%s1765 + $0x1b0] sm:$0xff]
        %v1821 = vld [vmem:[%s1765 + $0x1b8] sm:$0xff]
        %v1822 = vld [vmem:[%s1765 + $0x1c0] sm:$0xff]
        %v1823 = vld [vmem:[%s1765 + $0x1c8] sm:$0xff]
        %v1824 = vld [vmem:[%s1765 + $0x1d0] sm:$0xff]
        %v1825 = vld [vmem:[%s1765 + $0x1d8] sm:$0xff]
        %v1826 = vld [vmem:[%s1765 + $0x1e0] sm:$0xff]
        %v1827 = vld [vmem:[%s1765 + $0x1e8] sm:$0xff]
        %v1828 = vld [vmem:[%s1765 + $0x1f0] sm:$0xff]
        %v1829 = vld [vmem:[%s1765 + $0x1f8] sm:$0xff]
        %v1830 = vld [vmem:[%s1765 + $0x200] sm:$0xff]
        %v1831 = vld [vmem:[%s1765 + $0x208] sm:$0xff]
        %v1832 = vld [vmem:[%s1765 + $0x210] sm:$0xff]
        %v1833 = vld [vmem:[%s1765 + $0x218] sm:$0xff]
        %v1834 = vld [vmem:[%s1765 + $0x220] sm:$0xff]
        %v1835 = vld [vmem:[%s1765 + $0x228] sm:$0xff]
        %v1836 = vld [vmem:[%s1765 + $0x230] sm:$0xff]
        %v1837 = vld [vmem:[%s1765 + $0x238] sm:$0xff]
        %v1838 = vld [vmem:[%s1765 + $0x240] sm:$0xff]
        %v1839 = vld [vmem:[%s1765 + $0x248] sm:$0xff]
        %v1840 = vld [vmem:[%s1765 + $0x250] sm:$0xff]
        %v1841 = vld [vmem:[%s1765 + $0x258] sm:$0xff]
        %v1842 = vld [vmem:[%s1765 + $0x260] sm:$0xff]
        %v1843 = vld [vmem:[%s1765 + $0x268] sm:$0xff]
        %v1844 = vld [vmem:[%s1765 + $0x270] sm:$0xff]
        %v1845 = vld [vmem:[%s1765 + $0x278] sm:$0xff]
        %v1846 = vld [vmem:[%s1765 + $0x280] sm:$0xff]
        %v1847 = vld [vmem:[%s1765 + $0x288] sm:$0xff]
        %v1848 = vld [vmem:[%s1765 + $0x290] sm:$0xff]
        %v1849 = vld [vmem:[%s1765 + $0x298] sm:$0xff]
        %v1850 = vld [vmem:[%s1765 + $0x2a0] sm:$0xff]
        %v1851 = vld [vmem:[%s1765 + $0x2a8] sm:$0xff]
        %v1852 = vld [vmem:[%s1765 + $0x2b0] sm:$0xff]
        %v1853 = vld [vmem:[%s1765 + $0x2b8] sm:$0xff]
        %v1854 = vld [vmem:[%s1765 + $0x2c0] sm:$0xff]
        %v1855 = vld [vmem:[%s1765 + $0x2c8] sm:$0xff]
        %v1856 = vld [vmem:[%s1765 + $0x2d0] sm:$0xff]
        %v1857 = vld [vmem:[%s1765 + $0x2d8] sm:$0xff]
        %v1858 = vld [vmem:[%s1765 + $0x2e0] sm:$0xff]
        %v1859 = vld [vmem:[%s1765 + $0x2e8] sm:$0xff]
        %v1860 = vld [vmem:[%s1765 + $0x2f0] sm:$0xff]
        %v1861 = vld [vmem:[%s1765 + $0x2f8] sm:$0xff]
        %v1862 = vld [vmem:[%s1765 + $0x300] sm:$0xff]
        %v1863 = vld [vmem:[%s1765 + $0x308] sm:$0xff]
        %v1864 = vld [vmem:[%s1765 + $0x310] sm:$0xff]
        %v1865 = vld [vmem:[%s1765 + $0x318] sm:$0xff]
        %v1866 = vld [vmem:[%s1765 + $0x320] sm:$0xff]
        %v1867 = vld [vmem:[%s1765 + $0x328] sm:$0xff]
        %v1868 = vld [vmem:[%s1765 + $0x330] sm:$0xff]
        %v1869 = vld [vmem:[%s1765 + $0x338] sm:$0xff]
        %v1870 = vld [vmem:[%s1765 + $0x340] sm:$0xff]
        %v1871 = vld [vmem:[%s1765 + $0x348] sm:$0xff]
        %v1872 = vld [vmem:[%s1765 + $0x350] sm:$0xff]
        %v1873 = vld [vmem:[%s1765 + $0x358] sm:$0xff]
        %v1874 = vld [vmem:[%s1765 + $0x360] sm:$0xff]
        %v1875 = vld [vmem:[%s1765 + $0x368] sm:$0xff]
        %v1876 = vld [vmem:[%s1765 + $0x370] sm:$0xff]
        %v1877 = vld [vmem:[%s1765 + $0x378] sm:$0xff]
        %v1878 = vld [vmem:[%s1765 + $0x380] sm:$0xff]
        %v1879 = vld [vmem:[%s1765 + $0x388] sm:$0xff]
        %v1880 = vld [vmem:[%s1765 + $0x390] sm:$0xff]
        %v1881 = vld [vmem:[%s1765 + $0x398] sm:$0xff]
        %v1882 = vld [vmem:[%s1765 + $0x3a0] sm:$0xff]
        %v1883 = vld [vmem:[%s1765 + $0x3a8] sm:$0xff]
        %v1884 = vld [vmem:[%s1765 + $0x3b0] sm:$0xff]
        %v1885 = vld [vmem:[%s1765 + $0x3b8] sm:$0xff]
        %v1886 = vld [vmem:[%s1765 + $0x3c0] sm:$0xff]
        %v1887 = vld [vmem:[%s1765 + $0x3c8] sm:$0xff]
        %v1888 = vld [vmem:[%s1765 + $0x3d0] sm:$0xff]
        %v1889 = vld [vmem:[%s1765 + $0x3d8] sm:$0xff]
        %v1890 = vld [vmem:[%s1765 + $0x3e0] sm:$0xff]
        %v1891 = vld [vmem:[%s1765 + $0x3e8] sm:$0xff]
        %v1892 = vld [vmem:[%s1765 + $0x3f0] sm:$0xff]
        %v1893 = vld [vmem:[%s1765 + $0x3f8] sm:$0xff]
        %v1894 = vunpack.c.l.b16 %v1552
        %v1895 = vunpack.c.h.b16 %v1552
        %v1896 = vunpack.c.l.b16 %v1566
        %v1897 = vunpack.c.h.b16 %v1566
        %v1898 = vunpack.c.l.b16 %v1580
        %v1899 = vunpack.c.h.b16 %v1580
        %v1900 = vunpack.c.l.b16 %v1594
        %v1901 = vunpack.c.h.b16 %v1594
        %v1902 = vunpack.c.l.b16 %v1608
        %v1903 = vunpack.c.h.b16 %v1608
        %v1904 = vunpack.c.l.b16 %v1622
        %v1905 = vunpack.c.h.b16 %v1622
        %v1906 = vunpack.c.l.b16 %v1636
        %v1907 = vunpack.c.h.b16 %v1636
        %v1908 = vunpack.c.l.b16 %v1650
        %v1909 = vunpack.c.h.b16 %v1650
        %v1910 = vunpack.c.l.b16 %v1664
        %v1911 = vunpack.c.h.b16 %v1664
        %v1912 = vunpack.c.l.b16 %v1678
        %v1913 = vunpack.c.h.b16 %v1678
        %v1914 = vunpack.c.l.b16 %v1692
        %v1915 = vunpack.c.h.b16 %v1692
        %v1916 = vunpack.c.l.b16 %v1706
        %v1917 = vunpack.c.h.b16 %v1706
        %v1918 = vunpack.c.l.b16 %v1720
        %v1919 = vunpack.c.h.b16 %v1720
        %v1920 = vunpack.c.l.b16 %v1734
        %v1921 = vunpack.c.h.b16 %v1734
        %v1922 = vunpack.c.l.b16 %v1748
        %v1923 = vunpack.c.h.b16 %v1748
        %v1924 = vunpack.c.l.b16 %v1762
        %v1925 = vunpack.c.h.b16 %v1762
        %v1926 = vpack.c.b16 %v1898, %v1894
        %v1927 = vpack.c.b16 %v1899, %v1895
        %v1928 = vpack.c.b16 %v1900, %v1896
        %v1929 = vpack.c.b16 %v1901, %v1897
        %v1930 = vpack.c.b16 %v1906, %v1902
        %v1931 = vpack.c.b16 %v1907, %v1903
        %v1932 = vpack.c.b16 %v1908, %v1904
        %v1933 = vpack.c.b16 %v1909, %v1905
        %v1934 = vpack.c.b16 %v1914, %v1910
        %v1935 = vpack.c.b16 %v1915, %v1911
        %v1936 = vpack.c.b16 %v1916, %v1912
        %v1937 = vpack.c.b16 %v1917, %v1913
        %v1938 = vpack.c.b16 %v1922, %v1918
        %v1939 = vpack.c.b16 %v1923, %v1919
        %v1940 = vpack.c.b16 %v1924, %v1920
        %v1941 = vpack.c.b16 %v1925, %v1921
        %v2086 = vunpack.c.l.b16 %v1766
        %v2087 = vunpack.c.h.b16 %v1766
        %v2088 = vunpack.c.l.b16 %v1767
        %v2089 = vunpack.c.h.b16 %v1767
        %v2090 = vunpack.c.l.b16 %v1768
        %v2091 = vunpack.c.h.b16 %v1768
        %v2092 = vunpack.c.l.b16 %v1769
        %v2093 = vunpack.c.h.b16 %v1769
        %v2094 = vunpack.c.l.b16 %v1770
        %v2095 = vunpack.c.h.b16 %v1770
        %v2096 = vunpack.c.l.b16 %v1771
        %v2097 = vunpack.c.h.b16 %v1771
        %v2098 = vunpack.c.l.b16 %v1772
        %v2099 = vunpack.c.h.b16 %v1772
        %v2100 = vunpack.c.l.b16 %v1773
        %v2101 = vunpack.c.h.b16 %v1773
        %v2102 = vunpack.c.l.b16 %v1774
        %v2103 = vunpack.c.h.b16 %v1774
        %v2104 = vunpack.c.l.b16 %v1775
        %v2105 = vunpack.c.h.b16 %v1775
        %v2106 = vunpack.c.l.b16 %v1776
        %v2107 = vunpack.c.h.b16 %v1776
        %v2108 = vunpack.c.l.b16 %v1777
        %v2109 = vunpack.c.h.b16 %v1777
        %v2110 = vunpack.c.l.b16 %v1778
        %v2111 = vunpack.c.h.b16 %v1778
        %v2112 = vunpack.c.l.b16 %v1779
        %v2113 = vunpack.c.h.b16 %v1779
        %v2114 = vunpack.c.l.b16 %v1780
        %v2115 = vunpack.c.h.b16 %v1780
        %v2116 = vunpack.c.l.b16 %v1781
        %v2117 = vunpack.c.h.b16 %v1781
        %v2118 = vunpack.c.l.b16 %v1782
        %v2119 = vunpack.c.h.b16 %v1782
        %v2120 = vunpack.c.l.b16 %v1783
        %v2121 = vunpack.c.h.b16 %v1783
        %v2122 = vunpack.c.l.b16 %v1784
        %v2123 = vunpack.c.h.b16 %v1784
        %v2124 = vunpack.c.l.b16 %v1785
        %v2125 = vunpack.c.h.b16 %v1785
        %v2126 = vunpack.c.l.b16 %v1786
        %v2127 = vunpack.c.h.b16 %v1786
        %v2128 = vunpack.c.l.b16 %v1787
        %v2129 = vunpack.c.h.b16 %v1787
        %v2130 = vunpack.c.l.b16 %v1788
        %v2131 = vunpack.c.h.b16 %v1788
        %v2132 = vunpack.c.l.b16 %v1789
        %v2133 = vunpack.c.h.b16 %v1789
        %v2134 = vunpack.c.l.b16 %v1790
        %v2135 = vunpack.c.h.b16 %v1790
        %v2136 = vunpack.c.l.b16 %v1791
        %v2137 = vunpack.c.h.b16 %v1791
        %v2138 = vunpack.c.l.b16 %v1792
        %v2139 = vunpack.c.h.b16 %v1792
        %v2140 = vunpack.c.l.b16 %v1793
        %v2141 = vunpack.c.h.b16 %v1793
        %v2142 = vunpack.c.l.b16 %v1794
        %v2143 = vunpack.c.h.b16 %v1794
        %v2144 = vunpack.c.l.b16 %v1795
        %v2145 = vunpack.c.h.b16 %v1795
        %v2146 = vunpack.c.l.b16 %v1796
        %v2147 = vunpack.c.h.b16 %v1796
        %v2148 = vunpack.c.l.b16 %v1797
        %v2149 = vunpack.c.h.b16 %v1797
        %v2150 = vunpack.c.l.b16 %v1798
        %v2151 = vunpack.c.h.b16 %v1798
        %v2152 = vunpack.c.l.b16 %v1799
        %v2153 = vunpack.c.h.b16 %v1799
        %v2154 = vunpack.c.l.b16 %v1800
        %v2155 = vunpack.c.h.b16 %v1800
        %v2156 = vunpack.c.l.b16 %v1801
        %v2157 = vunpack.c.h.b16 %v1801
        %v2158 = vunpack.c.l.b16 %v1802
        %v2159 = vunpack.c.h.b16 %v1802
        %v2160 = vunpack.c.l.b16 %v1803
        %v2161 = vunpack.c.h.b16 %v1803
        %v2162 = vunpack.c.l.b16 %v1804
        %v2163 = vunpack.c.h.b16 %v1804
        %v2164 = vunpack.c.l.b16 %v1805
        %v2165 = vunpack.c.h.b16 %v1805
        %v2166 = vunpack.c.l.b16 %v1806
        %v2167 = vunpack.c.h.b16 %v1806
        %v2168 = vunpack.c.l.b16 %v1807
        %v2169 = vunpack.c.h.b16 %v1807
        %v2170 = vunpack.c.l.b16 %v1808
        %v2171 = vunpack.c.h.b16 %v1808
        %v2172 = vunpack.c.l.b16 %v1809
        %v2173 = vunpack.c.h.b16 %v1809
        %v2174 = vunpack.c.l.b16 %v1810
        %v2175 = vunpack.c.h.b16 %v1810
        %v2176 = vunpack.c.l.b16 %v1811
        %v2177 = vunpack.c.h.b16 %v1811
        %v2178 = vunpack.c.l.b16 %v1812
        %v2179 = vunpack.c.h.b16 %v1812
        %v2180 = vunpack.c.l.b16 %v1813
        %v2181 = vunpack.c.h.b16 %v1813
        %v2182 = vunpack.c.l.b16 %v1814
        %v2183 = vunpack.c.h.b16 %v1814
        %v2184 = vunpack.c.l.b16 %v1815
        %v2185 = vunpack.c.h.b16 %v1815
        %v2186 = vunpack.c.l.b16 %v1816
        %v2187 = vunpack.c.h.b16 %v1816
        %v2188 = vunpack.c.l.b16 %v1817
        %v2189 = vunpack.c.h.b16 %v1817
        %v2190 = vunpack.c.l.b16 %v1818
        %v2191 = vunpack.c.h.b16 %v1818
        %v2192 = vunpack.c.l.b16 %v1819
        %v2193 = vunpack.c.h.b16 %v1819
        %v2194 = vunpack.c.l.b16 %v1820
        %v2195 = vunpack.c.h.b16 %v1820
        %v2196 = vunpack.c.l.b16 %v1821
        %v2197 = vunpack.c.h.b16 %v1821
        %v2198 = vunpack.c.l.b16 %v1822
        %v2199 = vunpack.c.h.b16 %v1822
        %v2200 = vunpack.c.l.b16 %v1823
        %v2201 = vunpack.c.h.b16 %v1823
        %v2202 = vunpack.c.l.b16 %v1824
        %v2203 = vunpack.c.h.b16 %v1824
        %v2204 = vunpack.c.l.b16 %v1825
        %v2205 = vunpack.c.h.b16 %v1825
        %v2206 = vunpack.c.l.b16 %v1826
        %v2207 = vunpack.c.h.b16 %v1826
        %v2208 = vunpack.c.l.b16 %v1827
        %v2209 = vunpack.c.h.b16 %v1827
        %v2210 = vunpack.c.l.b16 %v1828
        %v2211 = vunpack.c.h.b16 %v1828
        %v2212 = vunpack.c.l.b16 %v1829
        %v2213 = vunpack.c.h.b16 %v1829
        %v2214 = vunpack.c.l.b16 %v1830
        %v2215 = vunpack.c.h.b16 %v1830
        %v2216 = vunpack.c.l.b16 %v1831
        %v2217 = vunpack.c.h.b16 %v1831
        %v2218 = vunpack.c.l.b16 %v1832
        %v2219 = vunpack.c.h.b16 %v1832
        %v2220 = vunpack.c.l.b16 %v1833
        %v2221 = vunpack.c.h.b16 %v1833
        %v2222 = vunpack.c.l.b16 %v1834
        %v2223 = vunpack.c.h.b16 %v1834
        %v2224 = vunpack.c.l.b16 %v1835
        %v2225 = vunpack.c.h.b16 %v1835
        %v2226 = vunpack.c.l.b16 %v1836
        %v2227 = vunpack.c.h.b16 %v1836
        %v2228 = vunpack.c.l.b16 %v1837
        %v2229 = vunpack.c.h.b16 %v1837
        %v2230 = vunpack.c.l.b16 %v1838
        %v2231 = vunpack.c.h.b16 %v1838
        %v2232 = vunpack.c.l.b16 %v1839
        %v2233 = vunpack.c.h.b16 %v1839
        %v2234 = vunpack.c.l.b16 %v1840
        %v2235 = vunpack.c.h.b16 %v1840
        %v2236 = vunpack.c.l.b16 %v1841
        %v2237 = vunpack.c.h.b16 %v1841
        %v2238 = vunpack.c.l.b16 %v1842
        %v2239 = vunpack.c.h.b16 %v1842
        %v2240 = vunpack.c.l.b16 %v1843
        %v2241 = vunpack.c.h.b16 %v1843
        %v2242 = vunpack.c.l.b16 %v1844
        %v2243 = vunpack.c.h.b16 %v1844
        %v2244 = vunpack.c.l.b16 %v1845
        %v2245 = vunpack.c.h.b16 %v1845
        %v2246 = vunpack.c.l.b16 %v1846
        %v2247 = vunpack.c.h.b16 %v1846
        %v2248 = vunpack.c.l.b16 %v1847
        %v2249 = vunpack.c.h.b16 %v1847
        %v2250 = vunpack.c.l.b16 %v1848
        %v2251 = vunpack.c.h.b16 %v1848
        %v2252 = vunpack.c.l.b16 %v1849
        %v2253 = vunpack.c.h.b16 %v1849
        %v2254 = vunpack.c.l.b16 %v1850
        %v2255 = vunpack.c.h.b16 %v1850
        %v2256 = vunpack.c.l.b16 %v1851
        %v2257 = vunpack.c.h.b16 %v1851
        %v2258 = vunpack.c.l.b16 %v1852
        %v2259 = vunpack.c.h.b16 %v1852
        %v2260 = vunpack.c.l.b16 %v1853
        %v2261 = vunpack.c.h.b16 %v1853
        %v2262 = vunpack.c.l.b16 %v1854
        %v2263 = vunpack.c.h.b16 %v1854
        %v2264 = vunpack.c.l.b16 %v1855
        %v2265 = vunpack.c.h.b16 %v1855
        %v2266 = vunpack.c.l.b16 %v1856
        %v2267 = vunpack.c.h.b16 %v1856
        %v2268 = vunpack.c.l.b16 %v1857
        %v2269 = vunpack.c.h.b16 %v1857
        %v2270 = vunpack.c.l.b16 %v1858
        %v2271 = vunpack.c.h.b16 %v1858
        %v2272 = vunpack.c.l.b16 %v1859
        %v2273 = vunpack.c.h.b16 %v1859
        %v2274 = vunpack.c.l.b16 %v1860
        %v2275 = vunpack.c.h.b16 %v1860
        %v2276 = vunpack.c.l.b16 %v1861
        %v2277 = vunpack.c.h.b16 %v1861
        %v2278 = vunpack.c.l.b16 %v1862
        %v2279 = vunpack.c.h.b16 %v1862
        %v2280 = vunpack.c.l.b16 %v1863
        %v2281 = vunpack.c.h.b16 %v1863
        %v2282 = vunpack.c.l.b16 %v1864
        %v2283 = vunpack.c.h.b16 %v1864
        %v2284 = vunpack.c.l.b16 %v1865
        %v2285 = vunpack.c.h.b16 %v1865
        %v2286 = vunpack.c.l.b16 %v1866
        %v2287 = vunpack.c.h.b16 %v1866
        %v2288 = vunpack.c.l.b16 %v1867
        %v2289 = vunpack.c.h.b16 %v1867
        %v2290 = vunpack.c.l.b16 %v1868
        %v2291 = vunpack.c.h.b16 %v1868
        %v2292 = vunpack.c.l.b16 %v1869
        %v2293 = vunpack.c.h.b16 %v1869
        %v2294 = vunpack.c.l.b16 %v1870
        %v2295 = vunpack.c.h.b16 %v1870
        %v2296 = vunpack.c.l.b16 %v1871
        %v2297 = vunpack.c.h.b16 %v1871
        %v2298 = vunpack.c.l.b16 %v1872
        %v2299 = vunpack.c.h.b16 %v1872
        %v2300 = vunpack.c.l.b16 %v1873
        %v2301 = vunpack.c.h.b16 %v1873
        %v2302 = vunpack.c.l.b16 %v1874
        %v2303 = vunpack.c.h.b16 %v1874
        %v2304 = vunpack.c.l.b16 %v1875
        %v2305 = vunpack.c.h.b16 %v1875
        %v2306 = vunpack.c.l.b16 %v1876
        %v2307 = vunpack.c.h.b16 %v1876
        %v2308 = vunpack.c.l.b16 %v1877
        %v2309 = vunpack.c.h.b16 %v1877
        %v2310 = vunpack.c.l.b16 %v1878
        %v2311 = vunpack.c.h.b16 %v1878
        %v2312 = vunpack.c.l.b16 %v1879
        %v2313 = vunpack.c.h.b16 %v1879
        %v2314 = vunpack.c.l.b16 %v1880
        %v2315 = vunpack.c.h.b16 %v1880
        %v2316 = vunpack.c.l.b16 %v1881
        %v2317 = vunpack.c.h.b16 %v1881
        %v2318 = vunpack.c.l.b16 %v1882
        %v2319 = vunpack.c.h.b16 %v1882
        %v2320 = vunpack.c.l.b16 %v1883
        %v2321 = vunpack.c.h.b16 %v1883
        %v2322 = vunpack.c.l.b16 %v1884
        %v2323 = vunpack.c.h.b16 %v1884
        %v2324 = vunpack.c.l.b16 %v1885
        %v2325 = vunpack.c.h.b16 %v1885
        %v2326 = vunpack.c.l.b16 %v1886
        %v2327 = vunpack.c.h.b16 %v1886
        %v2328 = vunpack.c.l.b16 %v1887
        %v2329 = vunpack.c.h.b16 %v1887
        %v2330 = vunpack.c.l.b16 %v1888
        %v2331 = vunpack.c.h.b16 %v1888
        %v2332 = vunpack.c.l.b16 %v1889
        %v2333 = vunpack.c.h.b16 %v1889
        %v2334 = vunpack.c.l.b16 %v1890
        %v2335 = vunpack.c.h.b16 %v1890
        %v2336 = vunpack.c.l.b16 %v1891
        %v2337 = vunpack.c.h.b16 %v1891
        %v2338 = vunpack.c.l.b16 %v1892
        %v2339 = vunpack.c.h.b16 %v1892
        %v2340 = vunpack.c.l.b16 %v1893
        %v2341 = vunpack.c.h.b16 %v1893
        %v2342 = vpack.c.b16 %v2090, %v2086
        %v2343 = vpack.c.b16 %v2091, %v2087
        %v2344 = vpack.c.b16 %v2092, %v2088
        %v2345 = vpack.c.b16 %v2093, %v2089
        %v2346 = vpack.c.b16 %v2098, %v2094
        %v2347 = vpack.c.b16 %v2099, %v2095
        %v2348 = vpack.c.b16 %v2100, %v2096
        %v2349 = vpack.c.b16 %v2101, %v2097
        %v2350 = vpack.c.b16 %v2106, %v2102
        %v2351 = vpack.c.b16 %v2107, %v2103
        %v2352 = vpack.c.b16 %v2108, %v2104
        %v2353 = vpack.c.b16 %v2109, %v2105
        %v2354 = vpack.c.b16 %v2114, %v2110
        %v2355 = vpack.c.b16 %v2115, %v2111
        %v2356 = vpack.c.b16 %v2116, %v2112
        %v2357 = vpack.c.b16 %v2117, %v2113
        %v2358 = vpack.c.b16 %v2122, %v2118
        %v2359 = vpack.c.b16 %v2123, %v2119
        %v2360 = vpack.c.b16 %v2124, %v2120
        %v2361 = vpack.c.b16 %v2125, %v2121
        %v2362 = vpack.c.b16 %v2130, %v2126
        %v2363 = vpack.c.b16 %v2131, %v2127
        %v2364 = vpack.c.b16 %v2132, %v2128
        %v2365 = vpack.c.b16 %v2133, %v2129
        %v2366 = vpack.c.b16 %v2138, %v2134
        %v2367 = vpack.c.b16 %v2139, %v2135
        %v2368 = vpack.c.b16 %v2140, %v2136
        %v2369 = vpack.c.b16 %v2141, %v2137
        %v2370 = vpack.c.b16 %v2146, %v2142
        %v2371 = vpack.c.b16 %v2147, %v2143
        %v2372 = vpack.c.b16 %v2148, %v2144
        %v2373 = vpack.c.b16 %v2149, %v2145
        %v2374 = vpack.c.b16 %v2154, %v2150
        %v2375 = vpack.c.b16 %v2155, %v2151
        %v2376 = vpack.c.b16 %v2156, %v2152
        %v2377 = vpack.c.b16 %v2157, %v2153
        %v2378 = vpack.c.b16 %v2162, %v2158
        %v2379 = vpack.c.b16 %v2163, %v2159
        %v2380 = vpack.c.b16 %v2164, %v2160
        %v2381 = vpack.c.b16 %v2165, %v2161
        %v2382 = vpack.c.b16 %v2170, %v2166
        %v2383 = vpack.c.b16 %v2171, %v2167
        %v2384 = vpack.c.b16 %v2172, %v2168
        %v2385 = vpack.c.b16 %v2173, %v2169
        %v2386 = vpack.c.b16 %v2178, %v2174
        %v2387 = vpack.c.b16 %v2179, %v2175
        %v2388 = vpack.c.b16 %v2180, %v2176
        %v2389 = vpack.c.b16 %v2181, %v2177
        %v2390 = vpack.c.b16 %v2186, %v2182
        %v2391 = vpack.c.b16 %v2187, %v2183
        %v2392 = vpack.c.b16 %v2188, %v2184
        %v2393 = vpack.c.b16 %v2189, %v2185
        %v2394 = vpack.c.b16 %v2194, %v2190
        %v2395 = vpack.c.b16 %v2195, %v2191
        %v2396 = vpack.c.b16 %v2196, %v2192
        %v2397 = vpack.c.b16 %v2197, %v2193
        %v2398 = vpack.c.b16 %v2202, %v2198
        %v2399 = vpack.c.b16 %v2203, %v2199
        %v2400 = vpack.c.b16 %v2204, %v2200
        %v2401 = vpack.c.b16 %v2205, %v2201
        %v2402 = vpack.c.b16 %v2210, %v2206
        %v2403 = vpack.c.b16 %v2211, %v2207
        %v2404 = vpack.c.b16 %v2212, %v2208
        %v2405 = vpack.c.b16 %v2213, %v2209
        %v2406 = vpack.c.b16 %v2218, %v2214
        %v2407 = vpack.c.b16 %v2219, %v2215
        %v2408 = vpack.c.b16 %v2220, %v2216
        %v2409 = vpack.c.b16 %v2221, %v2217
        %v2410 = vpack.c.b16 %v2226, %v2222
        %v2411 = vpack.c.b16 %v2227, %v2223
        %v2412 = vpack.c.b16 %v2228, %v2224
        %v2413 = vpack.c.b16 %v2229, %v2225
        %v2414 = vpack.c.b16 %v2234, %v2230
        %v2415 = vpack.c.b16 %v2235, %v2231
        %v2416 = vpack.c.b16 %v2236, %v2232
        %v2417 = vpack.c.b16 %v2237, %v2233
        %v2418 = vpack.c.b16 %v2242, %v2238
        %v2419 = vpack.c.b16 %v2243, %v2239
        %v2420 = vpack.c.b16 %v2244, %v2240
        %v2421 = vpack.c.b16 %v2245, %v2241
        %v2422 = vpack.c.b16 %v2250, %v2246
        %v2423 = vpack.c.b16 %v2251, %v2247
        %v2424 = vpack.c.b16 %v2252, %v2248
        %v2425 = vpack.c.b16 %v2253, %v2249
        %v2426 = vpack.c.b16 %v2258, %v2254
        %v2427 = vpack.c.b16 %v2259, %v2255
        %v2428 = vpack.c.b16 %v2260, %v2256
        %v2429 = vpack.c.b16 %v2261, %v2257
        %v2430 = vpack.c.b16 %v2266, %v2262
        %v2431 = vpack.c.b16 %v2267, %v2263
        %v2432 = vpack.c.b16 %v2268, %v2264
        %v2433 = vpack.c.b16 %v2269, %v2265
        %v2434 = vpack.c.b16 %v2274, %v2270
        %v2435 = vpack.c.b16 %v2275, %v2271
        %v2436 = vpack.c.b16 %v2276, %v2272
        %v2437 = vpack.c.b16 %v2277, %v2273
        %v2438 = vpack.c.b16 %v2282, %v2278
        %v2439 = vpack.c.b16 %v2283, %v2279
        %v2440 = vpack.c.b16 %v2284, %v2280
        %v2441 = vpack.c.b16 %v2285, %v2281
        %v2442 = vpack.c.b16 %v2290, %v2286
        %v2443 = vpack.c.b16 %v2291, %v2287
        %v2444 = vpack.c.b16 %v2292, %v2288
        %v2445 = vpack.c.b16 %v2293, %v2289
        %v2446 = vpack.c.b16 %v2298, %v2294
        %v2447 = vpack.c.b16 %v2299, %v2295
        %v2448 = vpack.c.b16 %v2300, %v2296
        %v2449 = vpack.c.b16 %v2301, %v2297
        %v2450 = vpack.c.b16 %v2306, %v2302
        %v2451 = vpack.c.b16 %v2307, %v2303
        %v2452 = vpack.c.b16 %v2308, %v2304
        %v2453 = vpack.c.b16 %v2309, %v2305
        %v2454 = vpack.c.b16 %v2314, %v2310
        %v2455 = vpack.c.b16 %v2315, %v2311
        %v2456 = vpack.c.b16 %v2316, %v2312
        %v2457 = vpack.c.b16 %v2317, %v2313
        %v2458 = vpack.c.b16 %v2322, %v2318
        %v2459 = vpack.c.b16 %v2323, %v2319
        %v2460 = vpack.c.b16 %v2324, %v2320
        %v2461 = vpack.c.b16 %v2325, %v2321
        %v2462 = vpack.c.b16 %v2330, %v2326
        %v2463 = vpack.c.b16 %v2331, %v2327
        %v2464 = vpack.c.b16 %v2332, %v2328
        %v2465 = vpack.c.b16 %v2333, %v2329
        %v2466 = vpack.c.b16 %v2338, %v2334
        %v2467 = vpack.c.b16 %v2339, %v2335
        %v2468 = vpack.c.b16 %v2340, %v2336
        %v2469 = vpack.c.b16 %v2341, %v2337
        %2598 = vmatprep.subr.bf16.mxu0 %v2343
        %2599 = vmatpush1.bf16.msra.mxu0 %v2342
        %2600 = vmatprep.subr.bf16.mxu0 %v2347
        %2601 = vmatpush1.bf16.msra.mxu0 %v2346
        %2602 = vmatprep.subr.bf16.mxu0 %v2351
        %2603 = vmatpush1.bf16.msra.mxu0 %v2350
        %2604 = vmatprep.subr.bf16.mxu0 %v2355
        %2605 = vmatpush1.bf16.msra.mxu0 %v2354
        %2606 = vmatprep.subr.bf16.mxu0 %v2359
        %2607 = vmatpush1.bf16.msra.mxu0 %v2358
        %2608 = vmatprep.subr.bf16.mxu0 %v2363
        %2609 = vmatpush1.bf16.msra.mxu0 %v2362
        %2610 = vmatprep.subr.bf16.mxu0 %v2367
        %2611 = vmatpush1.bf16.msra.mxu0 %v2366
        %2612 = vmatprep.subr.bf16.mxu0 %v2371
        %2613 = vmatpush1.bf16.msra.mxu0 %v2370
        %2614 = vmatprep.subr.bf16.mxu0 %v2375
        %2615 = vmatpush1.bf16.msra.mxu0 %v2374
        %2616 = vmatprep.subr.bf16.mxu0 %v2379
        %2617 = vmatpush1.bf16.msra.mxu0 %v2378
        %2618 = vmatprep.subr.bf16.mxu0 %v2383
        %2619 = vmatpush1.bf16.msra.mxu0 %v2382
        %2620 = vmatprep.subr.bf16.mxu0 %v2387
        %2621 = vmatpush1.bf16.msra.mxu0 %v2386
        %2622 = vmatprep.subr.bf16.mxu0 %v2391
        %2623 = vmatpush1.bf16.msra.mxu0 %v2390
        %2624 = vmatprep.subr.bf16.mxu0 %v2395
        %2625 = vmatpush1.bf16.msra.mxu0 %v2394
        %2626 = vmatprep.subr.bf16.mxu0 %v2399
        %2627 = vmatpush1.bf16.msra.mxu0 %v2398
        %2628 = vmatprep.subr.bf16.mxu0 %v2403
        %2629 = vmatpush1.bf16.msra.mxu0 %v2402
        %2630 = vmatprep.mubr.bf16.mxu0 %v1927
        %2631 = vmatmul.mubr.bf16.gmra.mrb[0].mxu0 %v1926
        %v2632 = vpop.f32.mrb[0].mxu0
        %v2633 = vadd.f32 0.0, %v2632
        %v2634 = vpop.f32.mrb[0].mxu0
        %v2635 = vadd.f32 0.0, %v2634
        %v2636 = vpop.f32.mrb[0].mxu0
        %v2637 = vadd.f32 0.0, %v2636
        %v2638 = vpop.f32.mrb[0].mxu0
        %v2639 = vadd.f32 0.0, %v2638
        %2640 = vmatprep.mubr.bf16.mxu0 %v1931
        %2641 = vmatmul.mubr.bf16.gmra.mrb[0].mxu0 %v1930
        %v2642 = vpop.f32.mrb[0].mxu0
        %v2643 = vadd.f32 0.0, %v2642
        %v2644 = vpop.f32.mrb[0].mxu0
        %v2645 = vadd.f32 0.0, %v2644
        %v2646 = vpop.f32.mrb[0].mxu0
        %v2647 = vadd.f32 0.0, %v2646
        %v2648 = vpop.f32.mrb[0].mxu0
        %v2649 = vadd.f32 0.0, %v2648
        %2650 = vmatprep.mubr.bf16.mxu0 %v1935
        %2651 = vmatmul.mubr.bf16.gmra.mrb[0].mxu0 %v1934
        %v2652 = vpop.f32.mrb[0].mxu0
        %v2653 = vadd.f32 0.0, %v2652
        %v2654 = vpop.f32.mrb[0].mxu0
        %v2655 = vadd.f32 0.0, %v2654
        %v2656 = vpop.f32.mrb[0].mxu0
        %v2657 = vadd.f32 0.0, %v2656
        %v2658 = vpop.f32.mrb[0].mxu0
        %v2659 = vadd.f32 0.0, %v2658
        %2660 = vmatprep.mubr.bf16.mxu0 %v1939
        %2661 = vmatmul.mubr.bf16.gmra.mrb[0].mxu0 %v1938
        %v2662 = vpop.f32.mrb[0].mxu0
        %v2663 = vadd.f32 0.0, %v2662
        %v2664 = vpop.f32.mrb[0].mxu0
        %v2665 = vadd.f32 0.0, %v2664
        %v2666 = vpop.f32.mrb[0].mxu0
        %v2667 = vadd.f32 0.0, %v2666
        %v2668 = vpop.f32.mrb[0].mxu0
        %v2669 = vadd.f32 0.0, %v2668
        %2670 = vdwg.mxu0
        %2671 = vmatprep.subr.bf16.mxu0 %v2407
        %2672 = vmatpush1.bf16.msra.mxu0 %v2406
        %2673 = vmatprep.subr.bf16.mxu0 %v2411
        %2674 = vmatpush1.bf16.msra.mxu0 %v2410
        %2675 = vmatprep.subr.bf16.mxu0 %v2415
        %2676 = vmatpush1.bf16.msra.mxu0 %v2414
        %2677 = vmatprep.subr.bf16.mxu0 %v2419
        %2678 = vmatpush1.bf16.msra.mxu0 %v2418
        %2679 = vmatprep.subr.bf16.mxu0 %v2423
        %2680 = vmatpush1.bf16.msra.mxu0 %v2422
        %2681 = vmatprep.subr.bf16.mxu0 %v2427
        %2682 = vmatpush1.bf16.msra.mxu0 %v2426
        %2683 = vmatprep.subr.bf16.mxu0 %v2431
        %2684 = vmatpush1.bf16.msra.mxu0 %v2430
        %2685 = vmatprep.subr.bf16.mxu0 %v2435
        %2686 = vmatpush1.bf16.msra.mxu0 %v2434
        %2687 = vmatprep.subr.bf16.mxu0 %v2439
        %2688 = vmatpush1.bf16.msra.mxu0 %v2438
        %2689 = vmatprep.subr.bf16.mxu0 %v2443
        %2690 = vmatpush1.bf16.msra.mxu0 %v2442
        %2691 = vmatprep.subr.bf16.mxu0 %v2447
        %2692 = vmatpush1.bf16.msra.mxu0 %v2446
        %2693 = vmatprep.subr.bf16.mxu0 %v2451
        %2694 = vmatpush1.bf16.msra.mxu0 %v2450
        %2695 = vmatprep.subr.bf16.mxu0 %v2455
        %2696 = vmatpush1.bf16.msra.mxu0 %v2454
        %2697 = vmatprep.subr.bf16.mxu0 %v2459
        %2698 = vmatpush1.bf16.msra.mxu0 %v2458
        %2699 = vmatprep.subr.bf16.mxu0 %v2463
        %2700 = vmatpush1.bf16.msra.mxu0 %v2462
        %2701 = vmatprep.subr.bf16.mxu0 %v2467
        %2702 = vmatpush1.bf16.msra.mxu0 %v2466
        %2703 = vmatprep.mubr.bf16.mxu0 %v1929
        %2704 = vmatmul.mubr.bf16.gmra.mrb[0].mxu0 %v1928
        %v2705 = vpop.f32.mrb[0].mxu0
        %v2706 = vadd.f32 %v2633, %v2705
        %v2707 = vpop.f32.mrb[0].mxu0
        %v2708 = vadd.f32 %v2635, %v2707
        %v2709 = vpop.f32.mrb[0].mxu0
        %v2710 = vadd.f32 %v2637, %v2709
        %v2711 = vpop.f32.mrb[0].mxu0
        %v2712 = vadd.f32 %v2639, %v2711
        %2713 = vmatprep.mubr.bf16.mxu0 %v1933
        %2714 = vmatmul.mubr.bf16.gmra.mrb[0].mxu0 %v1932
        %v2715 = vpop.f32.mrb[0].mxu0
        %v2716 = vadd.f32 %v2643, %v2715
        %v2717 = vpop.f32.mrb[0].mxu0
        %v2718 = vadd.f32 %v2645, %v2717
        %v2719 = vpop.f32.mrb[0].mxu0
        %v2720 = vadd.f32 %v2647, %v2719
        %v2721 = vpop.f32.mrb[0].mxu0
        %v2722 = vadd.f32 %v2649, %v2721
        %2723 = vmatprep.mubr.bf16.mxu0 %v1937
        %2724 = vmatmul.mubr.bf16.gmra.mrb[0].mxu0 %v1936
        %v2725 = vpop.f32.mrb[0].mxu0
        %v2726 = vadd.f32 %v2653, %v2725
        %v2727 = vpop.f32.mrb[0].mxu0
        %v2728 = vadd.f32 %v2655, %v2727
        %v2729 = vpop.f32.mrb[0].mxu0
        %v2730 = vadd.f32 %v2657, %v2729
        %v2731 = vpop.f32.mrb[0].mxu0
        %v2732 = vadd.f32 %v2659, %v2731
        %2733 = vmatprep.mubr.bf16.mxu0 %v1941
        %2734 = vmatmul.mubr.bf16.gmra.mrb[0].mxu0 %v1940
        %v2735 = vpop.f32.mrb[0].mxu0
        %v2736 = vadd.f32 %v2663, %v2735
        %v2737 = vpop.f32.mrb[0].mxu0
        %v2738 = vadd.f32 %v2665, %v2737
        %v2739 = vpop.f32.mrb[0].mxu0
        %v2740 = vadd.f32 %v2667, %v2739
        %v2741 = vpop.f32.mrb[0].mxu0
        %v2742 = vadd.f32 %v2669, %v2741
        %2743 = vdwg.mxu0
        %2744 = vmatprep.subr.bf16.mxu0 %v2345
        %2745 = vmatpush1.bf16.msra.mxu0 %v2344
        %2746 = vmatprep.subr.bf16.mxu0 %v2349
        %2747 = vmatpush1.bf16.msra.mxu0 %v2348
        %2748 = vmatprep.subr.bf16.mxu0 %v2353
        %2749 = vmatpush1.bf16.msra.mxu0 %v2352
        %2750 = vmatprep.subr.bf16.mxu0 %v2357
        %2751 = vmatpush1.bf16.msra.mxu0 %v2356
        %2752 = vmatprep.subr.bf16.mxu0 %v2361
        %2753 = vmatpush1.bf16.msra.mxu0 %v2360
        %2754 = vmatprep.subr.bf16.mxu0 %v2365
        %2755 = vmatpush1.bf16.msra.mxu0 %v2364
        %2756 = vmatprep.subr.bf16.mxu0 %v2369
        %2757 = vmatpush1.bf16.msra.mxu0 %v2368
        %2758 = vmatprep.subr.bf16.mxu0 %v2373
        %2759 = vmatpush1.bf16.msra.mxu0 %v2372
        %2760 = vmatprep.subr.bf16.mxu0 %v2377
        %2761 = vmatpush1.bf16.msra.mxu0 %v2376
        %2762 = vmatprep.subr.bf16.mxu0 %v2381
        %2763 = vmatpush1.bf16.msra.mxu0 %v2380
        %2764 = vmatprep.subr.bf16.mxu0 %v2385
        %2765 = vmatpush1.bf16.msra.mxu0 %v2384
        %2766 = vmatprep.subr.bf16.mxu0 %v2389
        %2767 = vmatpush1.bf16.msra.mxu0 %v2388
        %2768 = vmatprep.subr.bf16.mxu0 %v2393
        %2769 = vmatpush1.bf16.msra.mxu0 %v2392
        %2770 = vmatprep.subr.bf16.mxu0 %v2397
        %2771 = vmatpush1.bf16.msra.mxu0 %v2396
        %2772 = vmatprep.subr.bf16.mxu0 %v2401
        %2773 = vmatpush1.bf16.msra.mxu0 %v2400
        %2774 = vmatprep.subr.bf16.mxu0 %v2405
        %2775 = vmatpush1.bf16.msra.mxu0 %v2404
        %2776 = vmatprep.mubr.bf16.mxu0 %v1927
        %2777 = vmatmul.mubr.bf16.gmra.mrb[0].mxu0 %v1926
        %v2778 = vpop.f32.mrb[0].mxu0
        %v2779 = vadd.f32 0.0, %v2778
        %v2780 = vpop.f32.mrb[0].mxu0
        %v2781 = vadd.f32 0.0, %v2780
        %v2782 = vpop.f32.mrb[0].mxu0
        %v2783 = vadd.f32 0.0, %v2782
        %v2784 = vpop.f32.mrb[0].mxu0
        %v2785 = vadd.f32 0.0, %v2784
        %2786 = vmatprep.mubr.bf16.mxu0 %v1931
        %2787 = vmatmul.mubr.bf16.gmra.mrb[0].mxu0 %v1930
        %v2788 = vpop.f32.mrb[0].mxu0
        %v2789 = vadd.f32 0.0, %v2788
        %v2790 = vpop.f32.mrb[0].mxu0
        %v2791 = vadd.f32 0.0, %v2790
        %v2792 = vpop.f32.mrb[0].mxu0
        %v2793 = vadd.f32 0.0, %v2792
        %v2794 = vpop.f32.mrb[0].mxu0
        %v2795 = vadd.f32 0.0, %v2794
        %2796 = vmatprep.mubr.bf16.mxu0 %v1935
        %2797 = vmatmul.mubr.bf16.gmra.mrb[0].mxu0 %v1934
        %v2798 = vpop.f32.mrb[0].mxu0
        %v2799 = vadd.f32 0.0, %v2798
        %v2800 = vpop.f32.mrb[0].mxu0
        %v2801 = vadd.f32 0.0, %v2800
        %v2802 = vpop.f32.mrb[0].mxu0
        %v2803 = vadd.f32 0.0, %v2802
        %v2804 = vpop.f32.mrb[0].mxu0
        %v2805 = vadd.f32 0.0, %v2804
        %2806 = vmatprep.mubr.bf16.mxu0 %v1939
        %2807 = vmatmul.mubr.bf16.gmra.mrb[0].mxu0 %v1938
        %v2808 = vpop.f32.mrb[0].mxu0
        %v2809 = vadd.f32 0.0, %v2808
        %v2810 = vpop.f32.mrb[0].mxu0
        %v2811 = vadd.f32 0.0, %v2810
        %v2812 = vpop.f32.mrb[0].mxu0
        %v2813 = vadd.f32 0.0, %v2812
        %v2814 = vpop.f32.mrb[0].mxu0
        %v2815 = vadd.f32 0.0, %v2814
        %2816 = vdwg.mxu0
        %2817 = vmatprep.subr.bf16.mxu0 %v2409
        %2818 = vmatpush1.bf16.msra.mxu0 %v2408
        %2819 = vmatprep.subr.bf16.mxu0 %v2413
        %2820 = vmatpush1.bf16.msra.mxu0 %v2412
        %2821 = vmatprep.subr.bf16.mxu0 %v2417
        %2822 = vmatpush1.bf16.msra.mxu0 %v2416
        %2823 = vmatprep.subr.bf16.mxu0 %v2421
        %2824 = vmatpush1.bf16.msra.mxu0 %v2420
        %2825 = vmatprep.subr.bf16.mxu0 %v2425
        %2826 = vmatpush1.bf16.msra.mxu0 %v2424
        %2827 = vmatprep.subr.bf16.mxu0 %v2429
        %2828 = vmatpush1.bf16.msra.mxu0 %v2428
        %2829 = vmatprep.subr.bf16.mxu0 %v2433
        %2830 = vmatpush1.bf16.msra.mxu0 %v2432
        %2831 = vmatprep.subr.bf16.mxu0 %v2437
        %2832 = vmatpush1.bf16.msra.mxu0 %v2436
        %2833 = vmatprep.subr.bf16.mxu0 %v2441
        %2834 = vmatpush1.bf16.msra.mxu0 %v2440
        %2835 = vmatprep.subr.bf16.mxu0 %v2445
        %2836 = vmatpush1.bf16.msra.mxu0 %v2444
        %2837 = vmatprep.subr.bf16.mxu0 %v2449
        %2838 = vmatpush1.bf16.msra.mxu0 %v2448
        %2839 = vmatprep.subr.bf16.mxu0 %v2453
        %2840 = vmatpush1.bf16.msra.mxu0 %v2452
        %2841 = vmatprep.subr.bf16.mxu0 %v2457
        %2842 = vmatpush1.bf16.msra.mxu0 %v2456
        %2843 = vmatprep.subr.bf16.mxu0 %v2461
        %2844 = vmatpush1.bf16.msra.mxu0 %v2460
        %2845 = vmatprep.subr.bf16.mxu0 %v2465
        %2846 = vmatpush1.bf16.msra.mxu0 %v2464
        %2847 = vmatprep.subr.bf16.mxu0 %v2469
        %2848 = vmatpush1.bf16.msra.mxu0 %v2468
        %2849 = vmatprep.mubr.bf16.mxu0 %v1929
        %2850 = vmatmul.mubr.bf16.gmra.mrb[0].mxu0 %v1928
        %v2851 = vpop.f32.mrb[0].mxu0
        %v2852 = vadd.f32 %v2779, %v2851
        %v2853 = vpop.f32.mrb[0].mxu0
        %v2854 = vadd.f32 %v2781, %v2853
        %v2855 = vpop.f32.mrb[0].mxu0
        %v2856 = vadd.f32 %v2783, %v2855
        %v2857 = vpop.f32.mrb[0].mxu0
        %v2858 = vadd.f32 %v2785, %v2857
        %2859 = vmatprep.mubr.bf16.mxu0 %v1933
        %2860 = vmatmul.mubr.bf16.gmra.mrb[0].mxu0 %v1932
        %v2861 = vpop.f32.mrb[0].mxu0
        %v2862 = vadd.f32 %v2789, %v2861
        %v2863 = vpop.f32.mrb[0].mxu0
        %v2864 = vadd.f32 %v2791, %v2863
        %v2865 = vpop.f32.mrb[0].mxu0
        %v2866 = vadd.f32 %v2793, %v2865
        %v2867 = vpop.f32.mrb[0].mxu0
        %v2868 = vadd.f32 %v2795, %v2867
        %2869 = vmatprep.mubr.bf16.mxu0 %v1937
        %2870 = vmatmul.mubr.bf16.gmra.mrb[0].mxu0 %v1936
        %v2871 = vpop.f32.mrb[0].mxu0
        %v2872 = vadd.f32 %v2799, %v2871
        %v2873 = vpop.f32.mrb[0].mxu0
        %v2874 = vadd.f32 %v2801, %v2873
        %v2875 = vpop.f32.mrb[0].mxu0
        %v2876 = vadd.f32 %v2803, %v2875
        %v2877 = vpop.f32.mrb[0].mxu0
        %v2878 = vadd.f32 %v2805, %v2877
        %2879 = vmatprep.mubr.bf16.mxu0 %v1941
        %2880 = vmatmul.mubr.bf16.gmra.mrb[0].mxu0 %v1940
        %v2881 = vpop.f32.mrb[0].mxu0
        %v2882 = vadd.f32 %v2809, %v2881
        %v2883 = vpop.f32.mrb[0].mxu0
        %v2884 = vadd.f32 %v2811, %v2883
        %v2885 = vpop.f32.mrb[0].mxu0
        %v2886 = vadd.f32 %v2813, %v2885
        %v2887 = vpop.f32.mrb[0].mxu0
        %v2888 = vadd.f32 %v2815, %v2887
        %2889 = vdwg.mxu0
        %v2890 = vadd.f32 %v1472, %v2706
        %v2891 = vadd.f32 %v1473, %v2708
        %v2892 = vadd.f32 %v1474, %v2852
        %v2893 = vadd.f32 %v1475, %v2854
        %v2894 = vadd.f32 %v1476, %v2710
        %v2895 = vadd.f32 %v1477, %v2712
        %v2896 = vadd.f32 %v1478, %v2856
        %v2897 = vadd.f32 %v1479, %v2858
        %v2898 = vadd.f32 %v1480, %v2716
        %v2899 = vadd.f32 %v1481, %v2718
        %v2900 = vadd.f32 %v1482, %v2862
        %v2901 = vadd.f32 %v1483, %v2864
        %v2902 = vadd.f32 %v1484, %v2720
        %v2903 = vadd.f32 %v1485, %v2722
        %v2904 = vadd.f32 %v1486, %v2866
        %v2905 = vadd.f32 %v1487, %v2868
        %v2906 = vadd.f32 %v1488, %v2726
        %v2907 = vadd.f32 %v1489, %v2728
        %v2908 = vadd.f32 %v1490, %v2872
        %v2909 = vadd.f32 %v1491, %v2874
        %v2910 = vadd.f32 %v1492, %v2730
        %v2911 = vadd.f32 %v1493, %v2732
        %v2912 = vadd.f32 %v1494, %v2876
        %v2913 = vadd.f32 %v1495, %v2878
        %v2914 = vadd.f32 %v1496, %v2736
        %v2915 = vadd.f32 %v1497, %v2738
        %v2916 = vadd.f32 %v1498, %v2882
        %v2917 = vadd.f32 %v1499, %v2884
        %v2918 = vadd.f32 %v1500, %v2740
        %v2919 = vadd.f32 %v1501, %v2742
        %v2920 = vadd.f32 %v1502, %v2886
        %v2921 = vadd.f32 %v1503, %v2888
        %v2922 = vld [vmem:[%s213] sm:$0xee]
        %v2923 = vld [vmem:[%s213 + $0x8] sm:$0xee]
        %v2924 = vld [vmem:[%s213 + $0x20] sm:$0xee]
        %v2925 = vld [vmem:[%s213 + $0x28] sm:$0xee]
        %v2926 = vld [vmem:[%s213 + $0x40] sm:$0xee]
        %v2927 = vld [vmem:[%s213 + $0x48] sm:$0xee]
        %v2928 = vld [vmem:[%s213 + $0x60] sm:$0xee]
        %v2929 = vld [vmem:[%s213 + $0x68] sm:$0xee]
        %v2930 = vld [vmem:[%s213 + $0x80] sm:$0xee]
        %v2931 = vld [vmem:[%s213 + $0x88] sm:$0xee]
        %v2932 = vld [vmem:[%s213 + $0xa0] sm:$0xee]
        %v2933 = vld [vmem:[%s213 + $0xa8] sm:$0xee]
        %v2934 = vld [vmem:[%s213 + $0xc0] sm:$0xee]
        %v2935 = vld [vmem:[%s213 + $0xc8] sm:$0xee]
        %v2936 = vld [vmem:[%s213 + $0xe0] sm:$0xee]
        %v2937 = vld [vmem:[%s213 + $0xe8] sm:$0xee]
        %vm2970 = vcmask 1042432
        %vm2971 = vcmask 1046532
        %vm2972 = vmor %vm2970, %vm2971
        %v2973 = vrot.slane %v2922, 5
        %v2974 = vrot.slane %v2973, 4
        %v2975 = vrot.slane %v1506, 5
        %v2976 = vsel %vm2972, %v2974, %v2975
        %v2977 = vrot.slane %v2923, 5
        %v2978 = vrot.slane %v2977, 4
        %v2979 = vrot.slane %v1507, 5
        %v2980 = vsel %vm2972, %v2978, %v2979
        %v2981 = vrot.slane %v2924, 5
        %v2982 = vrot.slane %v2981, 4
        %v2983 = vrot.slane %v1510, 5
        %v2984 = vsel %vm2972, %v2982, %v2983
        %v2985 = vrot.slane %v2925, 5
        %v2986 = vrot.slane %v2985, 4
        %v2987 = vrot.slane %v1511, 5
        %v2988 = vsel %vm2972, %v2986, %v2987
        %v2989 = vrot.slane %v2926, 5
        %v2990 = vrot.slane %v2989, 4
        %v2991 = vrot.slane %v1514, 5
        %v2992 = vsel %vm2972, %v2990, %v2991
        %v2993 = vrot.slane %v2927, 5
        %v2994 = vrot.slane %v2993, 4
        %v2995 = vrot.slane %v1515, 5
        %v2996 = vsel %vm2972, %v2994, %v2995
        %v2997 = vrot.slane %v2928, 5
        %v2998 = vrot.slane %v2997, 4
        %v2999 = vrot.slane %v1518, 5
        %v3000 = vsel %vm2972, %v2998, %v2999
        %v3001 = vrot.slane %v2929, 5
        %v3002 = vrot.slane %v3001, 4
        %v3003 = vrot.slane %v1519, 5
        %v3004 = vsel %vm2972, %v3002, %v3003
        %v3005 = vrot.slane %v2930, 5
        %v3006 = vrot.slane %v3005, 4
        %v3007 = vrot.slane %v1522, 5
        %v3008 = vsel %vm2972, %v3006, %v3007
        %v3009 = vrot.slane %v2931, 5
        %v3010 = vrot.slane %v3009, 4
        %v3011 = vrot.slane %v1523, 5
        %v3012 = vsel %vm2972, %v3010, %v3011
        %v3013 = vrot.slane %v2932, 5
        %v3014 = vrot.slane %v3013, 4
        %v3015 = vrot.slane %v1526, 5
        %v3016 = vsel %vm2972, %v3014, %v3015
        %v3017 = vrot.slane %v2933, 5
        %v3018 = vrot.slane %v3017, 4
        %v3019 = vrot.slane %v1527, 5
        %v3020 = vsel %vm2972, %v3018, %v3019
        %v3021 = vrot.slane %v2934, 5
        %v3022 = vrot.slane %v3021, 4
        %v3023 = vrot.slane %v1530, 5
        %v3024 = vsel %vm2972, %v3022, %v3023
        %v3025 = vrot.slane %v2935, 5
        %v3026 = vrot.slane %v3025, 4
        %v3027 = vrot.slane %v1531, 5
        %v3028 = vsel %vm2972, %v3026, %v3027
        %v3029 = vrot.slane %v2936, 5
        %v3030 = vrot.slane %v3029, 4
        %v3031 = vrot.slane %v1534, 5
        %v3032 = vsel %vm2972, %v3030, %v3031
        %v3033 = vrot.slane %v2937, 5
        %v3034 = vrot.slane %v3033, 4
        %v3035 = vrot.slane %v1535, 5
        %v3036 = vsel %vm2972, %v3034, %v3035
        %s3037 = sadd.s32 512, %s329
        %s3038 = smul.addr %s3037, 4
        %s3039 = scalar_lea.vmem [#allocation6], %s3038
        %v3040 = vld [vmem:[%s3039] sm:$0xff]
        %v3041 = vld [vmem:[%s3039 + $0x8] sm:$0xff]
        %v3042 = vld [vmem:[%s3039 + $0x10] sm:$0xff]
        %v3043 = vld [vmem:[%s3039 + $0x18] sm:$0xff]
        %v3044 = vld [vmem:[%s3039 + $0x20] sm:$0xff]
        %v3045 = vld [vmem:[%s3039 + $0x28] sm:$0xff]
        %v3046 = vld [vmem:[%s3039 + $0x30] sm:$0xff]
        %v3047 = vld [vmem:[%s3039 + $0x38] sm:$0xff]
        %v3048 = vld [vmem:[%s3039 + $0x40] sm:$0xff]
        %v3049 = vld [vmem:[%s3039 + $0x48] sm:$0xff]
        %v3050 = vld [vmem:[%s3039 + $0x50] sm:$0xff]
        %v3051 = vld [vmem:[%s3039 + $0x58] sm:$0xff]
        %v3052 = vld [vmem:[%s3039 + $0x60] sm:$0xff]
        %v3053 = vld [vmem:[%s3039 + $0x68] sm:$0xff]
        %v3054 = vld [vmem:[%s3039 + $0x70] sm:$0xff]
        %v3055 = vld [vmem:[%s3039 + $0x78] sm:$0xff]
        %v3056 = vld [vmem:[%s3039 + $0x80] sm:$0xff]
        %v3057 = vld [vmem:[%s3039 + $0x88] sm:$0xff]
        %v3058 = vld [vmem:[%s3039 + $0x90] sm:$0xff]
        %v3059 = vld [vmem:[%s3039 + $0x98] sm:$0xff]
        %v3060 = vld [vmem:[%s3039 + $0xa0] sm:$0xff]
        %v3061 = vld [vmem:[%s3039 + $0xa8] sm:$0xff]
        %v3062 = vld [vmem:[%s3039 + $0xb0] sm:$0xff]
        %v3063 = vld [vmem:[%s3039 + $0xb8] sm:$0xff]
        %v3064 = vld [vmem:[%s3039 + $0xc0] sm:$0xff]
        %v3065 = vld [vmem:[%s3039 + $0xc8] sm:$0xff]
        %v3066 = vld [vmem:[%s3039 + $0xd0] sm:$0xff]
        %v3067 = vld [vmem:[%s3039 + $0xd8] sm:$0xff]
        %v3068 = vld [vmem:[%s3039 + $0xe0] sm:$0xff]
        %v3069 = vld [vmem:[%s3039 + $0xe8] sm:$0xff]
        %v3070 = vld [vmem:[%s3039 + $0xf0] sm:$0xff]
        %v3071 = vld [vmem:[%s3039 + $0xf8] sm:$0xff]
        %v3072 = vld [vmem:[%s3039 + $0x100] sm:$0xff]
        %v3073 = vld [vmem:[%s3039 + $0x108] sm:$0xff]
        %v3074 = vld [vmem:[%s3039 + $0x110] sm:$0xff]
        %v3075 = vld [vmem:[%s3039 + $0x118] sm:$0xff]
        %v3076 = vld [vmem:[%s3039 + $0x120] sm:$0xff]
        %v3077 = vld [vmem:[%s3039 + $0x128] sm:$0xff]
        %v3078 = vld [vmem:[%s3039 + $0x130] sm:$0xff]
        %v3079 = vld [vmem:[%s3039 + $0x138] sm:$0xff]
        %v3080 = vld [vmem:[%s3039 + $0x140] sm:$0xff]
        %v3081 = vld [vmem:[%s3039 + $0x148] sm:$0xff]
        %v3082 = vld [vmem:[%s3039 + $0x150] sm:$0xff]
        %v3083 = vld [vmem:[%s3039 + $0x158] sm:$0xff]
        %v3084 = vld [vmem:[%s3039 + $0x160] sm:$0xff]
        %v3085 = vld [vmem:[%s3039 + $0x168] sm:$0xff]
        %v3086 = vld [vmem:[%s3039 + $0x170] sm:$0xff]
        %v3087 = vld [vmem:[%s3039 + $0x178] sm:$0xff]
        %v3088 = vld [vmem:[%s3039 + $0x180] sm:$0xff]
        %v3089 = vld [vmem:[%s3039 + $0x188] sm:$0xff]
        %v3090 = vld [vmem:[%s3039 + $0x190] sm:$0xff]
        %v3091 = vld [vmem:[%s3039 + $0x198] sm:$0xff]
        %v3092 = vld [vmem:[%s3039 + $0x1a0] sm:$0xff]
        %v3093 = vld [vmem:[%s3039 + $0x1a8] sm:$0xff]
        %v3094 = vld [vmem:[%s3039 + $0x1b0] sm:$0xff]
        %v3095 = vld [vmem:[%s3039 + $0x1b8] sm:$0xff]
        %v3096 = vld [vmem:[%s3039 + $0x1c0] sm:$0xff]
        %v3097 = vld [vmem:[%s3039 + $0x1c8] sm:$0xff]
        %v3098 = vld [vmem:[%s3039 + $0x1d0] sm:$0xff]
        %v3099 = vld [vmem:[%s3039 + $0x1d8] sm:$0xff]
        %v3100 = vld [vmem:[%s3039 + $0x1e0] sm:$0xff]
        %v3101 = vld [vmem:[%s3039 + $0x1e8] sm:$0xff]
        %v3102 = vld [vmem:[%s3039 + $0x1f0] sm:$0xff]
        %v3103 = vld [vmem:[%s3039 + $0x1f8] sm:$0xff]
        %v3104 = vld [vmem:[%s3039 + $0x200] sm:$0xff]
        %v3105 = vld [vmem:[%s3039 + $0x208] sm:$0xff]
        %v3106 = vld [vmem:[%s3039 + $0x210] sm:$0xff]
        %v3107 = vld [vmem:[%s3039 + $0x218] sm:$0xff]
        %v3108 = vld [vmem:[%s3039 + $0x220] sm:$0xff]
        %v3109 = vld [vmem:[%s3039 + $0x228] sm:$0xff]
        %v3110 = vld [vmem:[%s3039 + $0x230] sm:$0xff]
        %v3111 = vld [vmem:[%s3039 + $0x238] sm:$0xff]
        %v3112 = vld [vmem:[%s3039 + $0x240] sm:$0xff]
        %v3113 = vld [vmem:[%s3039 + $0x248] sm:$0xff]
        %v3114 = vld [vmem:[%s3039 + $0x250] sm:$0xff]
        %v3115 = vld [vmem:[%s3039 + $0x258] sm:$0xff]
        %v3116 = vld [vmem:[%s3039 + $0x260] sm:$0xff]
        %v3117 = vld [vmem:[%s3039 + $0x268] sm:$0xff]
        %v3118 = vld [vmem:[%s3039 + $0x270] sm:$0xff]
        %v3119 = vld [vmem:[%s3039 + $0x278] sm:$0xff]
        %v3120 = vld [vmem:[%s3039 + $0x280] sm:$0xff]
        %v3121 = vld [vmem:[%s3039 + $0x288] sm:$0xff]
        %v3122 = vld [vmem:[%s3039 + $0x290] sm:$0xff]
        %v3123 = vld [vmem:[%s3039 + $0x298] sm:$0xff]
        %v3124 = vld [vmem:[%s3039 + $0x2a0] sm:$0xff]
        %v3125 = vld [vmem:[%s3039 + $0x2a8] sm:$0xff]
        %v3126 = vld [vmem:[%s3039 + $0x2b0] sm:$0xff]
        %v3127 = vld [vmem:[%s3039 + $0x2b8] sm:$0xff]
        %v3128 = vld [vmem:[%s3039 + $0x2c0] sm:$0xff]
        %v3129 = vld [vmem:[%s3039 + $0x2c8] sm:$0xff]
        %v3130 = vld [vmem:[%s3039 + $0x2d0] sm:$0xff]
        %v3131 = vld [vmem:[%s3039 + $0x2d8] sm:$0xff]
        %v3132 = vld [vmem:[%s3039 + $0x2e0] sm:$0xff]
        %v3133 = vld [vmem:[%s3039 + $0x2e8] sm:$0xff]
        %v3134 = vld [vmem:[%s3039 + $0x2f0] sm:$0xff]
        %v3135 = vld [vmem:[%s3039 + $0x2f8] sm:$0xff]
        %v3136 = vld [vmem:[%s3039 + $0x300] sm:$0xff]
        %v3137 = vld [vmem:[%s3039 + $0x308] sm:$0xff]
        %v3138 = vld [vmem:[%s3039 + $0x310] sm:$0xff]
        %v3139 = vld [vmem:[%s3039 + $0x318] sm:$0xff]
        %v3140 = vld [vmem:[%s3039 + $0x320] sm:$0xff]
        %v3141 = vld [vmem:[%s3039 + $0x328] sm:$0xff]
        %v3142 = vld [vmem:[%s3039 + $0x330] sm:$0xff]
        %v3143 = vld [vmem:[%s3039 + $0x338] sm:$0xff]
        %v3144 = vld [vmem:[%s3039 + $0x340] sm:$0xff]
        %v3145 = vld [vmem:[%s3039 + $0x348] sm:$0xff]
        %v3146 = vld [vmem:[%s3039 + $0x350] sm:$0xff]
        %v3147 = vld [vmem:[%s3039 + $0x358] sm:$0xff]
        %v3148 = vld [vmem:[%s3039 + $0x360] sm:$0xff]
        %v3149 = vld [vmem:[%s3039 + $0x368] sm:$0xff]
        %v3150 = vld [vmem:[%s3039 + $0x370] sm:$0xff]
        %v3151 = vld [vmem:[%s3039 + $0x378] sm:$0xff]
        %v3152 = vld [vmem:[%s3039 + $0x380] sm:$0xff]
        %v3153 = vld [vmem:[%s3039 + $0x388] sm:$0xff]
        %v3154 = vld [vmem:[%s3039 + $0x390] sm:$0xff]
        %v3155 = vld [vmem:[%s3039 + $0x398] sm:$0xff]
        %v3156 = vld [vmem:[%s3039 + $0x3a0] sm:$0xff]
        %v3157 = vld [vmem:[%s3039 + $0x3a8] sm:$0xff]
        %v3158 = vld [vmem:[%s3039 + $0x3b0] sm:$0xff]
        %v3159 = vld [vmem:[%s3039 + $0x3b8] sm:$0xff]
        %v3160 = vld [vmem:[%s3039 + $0x3c0] sm:$0xff]
        %v3161 = vld [vmem:[%s3039 + $0x3c8] sm:$0xff]
        %v3162 = vld [vmem:[%s3039 + $0x3d0] sm:$0xff]
        %v3163 = vld [vmem:[%s3039 + $0x3d8] sm:$0xff]
        %v3164 = vld [vmem:[%s3039 + $0x3e0] sm:$0xff]
        %v3165 = vld [vmem:[%s3039 + $0x3e8] sm:$0xff]
        %v3166 = vld [vmem:[%s3039 + $0x3f0] sm:$0xff]
        %v3167 = vld [vmem:[%s3039 + $0x3f8] sm:$0xff]
        %v3168 = vunpack.c.l.b16 %v2976
        %v3169 = vunpack.c.h.b16 %v2976
        %v3170 = vunpack.c.l.b16 %v2980
        %v3171 = vunpack.c.h.b16 %v2980
        %v3172 = vunpack.c.l.b16 %v2984
        %v3173 = vunpack.c.h.b16 %v2984
        %v3174 = vunpack.c.l.b16 %v2988
        %v3175 = vunpack.c.h.b16 %v2988
        %v3176 = vunpack.c.l.b16 %v2992
        %v3177 = vunpack.c.h.b16 %v2992
        %v3178 = vunpack.c.l.b16 %v2996
        %v3179 = vunpack.c.h.b16 %v2996
        %v3180 = vunpack.c.l.b16 %v3000
        %v3181 = vunpack.c.h.b16 %v3000
        %v3182 = vunpack.c.l.b16 %v3004
        %v3183 = vunpack.c.h.b16 %v3004
        %v3184 = vunpack.c.l.b16 %v3008
        %v3185 = vunpack.c.h.b16 %v3008
        %v3186 = vunpack.c.l.b16 %v3012
        %v3187 = vunpack.c.h.b16 %v3012
        %v3188 = vunpack.c.l.b16 %v3016
        %v3189 = vunpack.c.h.b16 %v3016
        %v3190 = vunpack.c.l.b16 %v3020
        %v3191 = vunpack.c.h.b16 %v3020
        %v3192 = vunpack.c.l.b16 %v3024
        %v3193 = vunpack.c.h.b16 %v3024
        %v3194 = vunpack.c.l.b16 %v3028
        %v3195 = vunpack.c.h.b16 %v3028
        %v3196 = vunpack.c.l.b16 %v3032
        %v3197 = vunpack.c.h.b16 %v3032
        %v3198 = vunpack.c.l.b16 %v3036
        %v3199 = vunpack.c.h.b16 %v3036
        %v3200 = vpack.c.b16 %v3172, %v3168
        %v3201 = vpack.c.b16 %v3173, %v3169
        %v3202 = vpack.c.b16 %v3174, %v3170
        %v3203 = vpack.c.b16 %v3175, %v3171
        %v3204 = vpack.c.b16 %v3180, %v3176
        %v3205 = vpack.c.b16 %v3181, %v3177
        %v3206 = vpack.c.b16 %v3182, %v3178
        %v3207 = vpack.c.b16 %v3183, %v3179
        %v3208 = vpack.c.b16 %v3188, %v3184
        %v3209 = vpack.c.b16 %v3189, %v3185
        %v3210 = vpack.c.b16 %v3190, %v3186
        %v3211 = vpack.c.b16 %v3191, %v3187
        %v3212 = vpack.c.b16 %v3196, %v3192
        %v3213 = vpack.c.b16 %v3197, %v3193
        %v3214 = vpack.c.b16 %v3198, %v3194
        %v3215 = vpack.c.b16 %v3199, %v3195
        %v3360 = vunpack.c.l.b16 %v3040
        %v3361 = vunpack.c.h.b16 %v3040
        %v3362 = vunpack.c.l.b16 %v3041
        %v3363 = vunpack.c.h.b16 %v3041
        %v3364 = vunpack.c.l.b16 %v3042
        %v3365 = vunpack.c.h.b16 %v3042
        %v3366 = vunpack.c.l.b16 %v3043
        %v3367 = vunpack.c.h.b16 %v3043
        %v3368 = vunpack.c.l.b16 %v3044
        %v3369 = vunpack.c.h.b16 %v3044
        %v3370 = vunpack.c.l.b16 %v3045
        %v3371 = vunpack.c.h.b16 %v3045
        %v3372 = vunpack.c.l.b16 %v3046
        %v3373 = vunpack.c.h.b16 %v3046
        %v3374 = vunpack.c.l.b16 %v3047
        %v3375 = vunpack.c.h.b16 %v3047
        %v3376 = vunpack.c.l.b16 %v3048
        %v3377 = vunpack.c.h.b16 %v3048
        %v3378 = vunpack.c.l.b16 %v3049
        %v3379 = vunpack.c.h.b16 %v3049
        %v3380 = vunpack.c.l.b16 %v3050
        %v3381 = vunpack.c.h.b16 %v3050
        %v3382 = vunpack.c.l.b16 %v3051
        %v3383 = vunpack.c.h.b16 %v3051
        %v3384 = vunpack.c.l.b16 %v3052
        %v3385 = vunpack.c.h.b16 %v3052
        %v3386 = vunpack.c.l.b16 %v3053
        %v3387 = vunpack.c.h.b16 %v3053
        %v3388 = vunpack.c.l.b16 %v3054
        %v3389 = vunpack.c.h.b16 %v3054
        %v3390 = vunpack.c.l.b16 %v3055
        %v3391 = vunpack.c.h.b16 %v3055
        %v3392 = vunpack.c.l.b16 %v3056
        %v3393 = vunpack.c.h.b16 %v3056
        %v3394 = vunpack.c.l.b16 %v3057
        %v3395 = vunpack.c.h.b16 %v3057
        %v3396 = vunpack.c.l.b16 %v3058
        %v3397 = vunpack.c.h.b16 %v3058
        %v3398 = vunpack.c.l.b16 %v3059
        %v3399 = vunpack.c.h.b16 %v3059
        %v3400 = vunpack.c.l.b16 %v3060
        %v3401 = vunpack.c.h.b16 %v3060
        %v3402 = vunpack.c.l.b16 %v3061
        %v3403 = vunpack.c.h.b16 %v3061
        %v3404 = vunpack.c.l.b16 %v3062
        %v3405 = vunpack.c.h.b16 %v3062
        %v3406 = vunpack.c.l.b16 %v3063
        %v3407 = vunpack.c.h.b16 %v3063
        %v3408 = vunpack.c.l.b16 %v3064
        %v3409 = vunpack.c.h.b16 %v3064
        %v3410 = vunpack.c.l.b16 %v3065
        %v3411 = vunpack.c.h.b16 %v3065
        %v3412 = vunpack.c.l.b16 %v3066
        %v3413 = vunpack.c.h.b16 %v3066
        %v3414 = vunpack.c.l.b16 %v3067
        %v3415 = vunpack.c.h.b16 %v3067
        %v3416 = vunpack.c.l.b16 %v3068
        %v3417 = vunpack.c.h.b16 %v3068
        %v3418 = vunpack.c.l.b16 %v3069
        %v3419 = vunpack.c.h.b16 %v3069
        %v3420 = vunpack.c.l.b16 %v3070
        %v3421 = vunpack.c.h.b16 %v3070
        %v3422 = vunpack.c.l.b16 %v3071
        %v3423 = vunpack.c.h.b16 %v3071
        %v3424 = vunpack.c.l.b16 %v3072
        %v3425 = vunpack.c.h.b16 %v3072
        %v3426 = vunpack.c.l.b16 %v3073
        %v3427 = vunpack.c.h.b16 %v3073
        %v3428 = vunpack.c.l.b16 %v3074
        %v3429 = vunpack.c.h.b16 %v3074
        %v3430 = vunpack.c.l.b16 %v3075
        %v3431 = vunpack.c.h.b16 %v3075
        %v3432 = vunpack.c.l.b16 %v3076
        %v3433 = vunpack.c.h.b16 %v3076
        %v3434 = vunpack.c.l.b16 %v3077
        %v3435 = vunpack.c.h.b16 %v3077
        %v3436 = vunpack.c.l.b16 %v3078
        %v3437 = vunpack.c.h.b16 %v3078
        %v3438 = vunpack.c.l.b16 %v3079
        %v3439 = vunpack.c.h.b16 %v3079
        %v3440 = vunpack.c.l.b16 %v3080
        %v3441 = vunpack.c.h.b16 %v3080
        %v3442 = vunpack.c.l.b16 %v3081
        %v3443 = vunpack.c.h.b16 %v3081
        %v3444 = vunpack.c.l.b16 %v3082
        %v3445 = vunpack.c.h.b16 %v3082
        %v3446 = vunpack.c.l.b16 %v3083
        %v3447 = vunpack.c.h.b16 %v3083
        %v3448 = vunpack.c.l.b16 %v3084
        %v3449 = vunpack.c.h.b16 %v3084
        %v3450 = vunpack.c.l.b16 %v3085
        %v3451 = vunpack.c.h.b16 %v3085
        %v3452 = vunpack.c.l.b16 %v3086
        %v3453 = vunpack.c.h.b16 %v3086
        %v3454 = vunpack.c.l.b16 %v3087
        %v3455 = vunpack.c.h.b16 %v3087
        %v3456 = vunpack.c.l.b16 %v3088
        %v3457 = vunpack.c.h.b16 %v3088
        %v3458 = vunpack.c.l.b16 %v3089
        %v3459 = vunpack.c.h.b16 %v3089
        %v3460 = vunpack.c.l.b16 %v3090
        %v3461 = vunpack.c.h.b16 %v3090
        %v3462 = vunpack.c.l.b16 %v3091
        %v3463 = vunpack.c.h.b16 %v3091
        %v3464 = vunpack.c.l.b16 %v3092
        %v3465 = vunpack.c.h.b16 %v3092
        %v3466 = vunpack.c.l.b16 %v3093
        %v3467 = vunpack.c.h.b16 %v3093
        %v3468 = vunpack.c.l.b16 %v3094
        %v3469 = vunpack.c.h.b16 %v3094
        %v3470 = vunpack.c.l.b16 %v3095
        %v3471 = vunpack.c.h.b16 %v3095
        %v3472 = vunpack.c.l.b16 %v3096
        %v3473 = vunpack.c.h.b16 %v3096
        %v3474 = vunpack.c.l.b16 %v3097
        %v3475 = vunpack.c.h.b16 %v3097
        %v3476 = vunpack.c.l.b16 %v3098
        %v3477 = vunpack.c.h.b16 %v3098
        %v3478 = vunpack.c.l.b16 %v3099
        %v3479 = vunpack.c.h.b16 %v3099
        %v3480 = vunpack.c.l.b16 %v3100
        %v3481 = vunpack.c.h.b16 %v3100
        %v3482 = vunpack.c.l.b16 %v3101
        %v3483 = vunpack.c.h.b16 %v3101
        %v3484 = vunpack.c.l.b16 %v3102
        %v3485 = vunpack.c.h.b16 %v3102
        %v3486 = vunpack.c.l.b16 %v3103
        %v3487 = vunpack.c.h.b16 %v3103
        %v3488 = vunpack.c.l.b16 %v3104
        %v3489 = vunpack.c.h.b16 %v3104
        %v3490 = vunpack.c.l.b16 %v3105
        %v3491 = vunpack.c.h.b16 %v3105
        %v3492 = vunpack.c.l.b16 %v3106
        %v3493 = vunpack.c.h.b16 %v3106
        %v3494 = vunpack.c.l.b16 %v3107
        %v3495 = vunpack.c.h.b16 %v3107
        %v3496 = vunpack.c.l.b16 %v3108
        %v3497 = vunpack.c.h.b16 %v3108
        %v3498 = vunpack.c.l.b16 %v3109
        %v3499 = vunpack.c.h.b16 %v3109
        %v3500 = vunpack.c.l.b16 %v3110
        %v3501 = vunpack.c.h.b16 %v3110
        %v3502 = vunpack.c.l.b16 %v3111
        %v3503 = vunpack.c.h.b16 %v3111
        %v3504 = vunpack.c.l.b16 %v3112
        %v3505 = vunpack.c.h.b16 %v3112
        %v3506 = vunpack.c.l.b16 %v3113
        %v3507 = vunpack.c.h.b16 %v3113
        %v3508 = vunpack.c.l.b16 %v3114
        %v3509 = vunpack.c.h.b16 %v3114
        %v3510 = vunpack.c.l.b16 %v3115
        %v3511 = vunpack.c.h.b16 %v3115
        %v3512 = vunpack.c.l.b16 %v3116
        %v3513 = vunpack.c.h.b16 %v3116
        %v3514 = vunpack.c.l.b16 %v3117
        %v3515 = vunpack.c.h.b16 %v3117
        %v3516 = vunpack.c.l.b16 %v3118
        %v3517 = vunpack.c.h.b16 %v3118
        %v3518 = vunpack.c.l.b16 %v3119
        %v3519 = vunpack.c.h.b16 %v3119
        %v3520 = vunpack.c.l.b16 %v3120
        %v3521 = vunpack.c.h.b16 %v3120
        %v3522 = vunpack.c.l.b16 %v3121
        %v3523 = vunpack.c.h.b16 %v3121
        %v3524 = vunpack.c.l.b16 %v3122
        %v3525 = vunpack.c.h.b16 %v3122
        %v3526 = vunpack.c.l.b16 %v3123
        %v3527 = vunpack.c.h.b16 %v3123
        %v3528 = vunpack.c.l.b16 %v3124
        %v3529 = vunpack.c.h.b16 %v3124
        %v3530 = vunpack.c.l.b16 %v3125
        %v3531 = vunpack.c.h.b16 %v3125
        %v3532 = vunpack.c.l.b16 %v3126
        %v3533 = vunpack.c.h.b16 %v3126
        %v3534 = vunpack.c.l.b16 %v3127
        %v3535 = vunpack.c.h.b16 %v3127
        %v3536 = vunpack.c.l.b16 %v3128
        %v3537 = vunpack.c.h.b16 %v3128
        %v3538 = vunpack.c.l.b16 %v3129
        %v3539 = vunpack.c.h.b16 %v3129
        %v3540 = vunpack.c.l.b16 %v3130
        %v3541 = vunpack.c.h.b16 %v3130
        %v3542 = vunpack.c.l.b16 %v3131
        %v3543 = vunpack.c.h.b16 %v3131
        %v3544 = vunpack.c.l.b16 %v3132
        %v3545 = vunpack.c.h.b16 %v3132
        %v3546 = vunpack.c.l.b16 %v3133
        %v3547 = vunpack.c.h.b16 %v3133
        %v3548 = vunpack.c.l.b16 %v3134
        %v3549 = vunpack.c.h.b16 %v3134
        %v3550 = vunpack.c.l.b16 %v3135
        %v3551 = vunpack.c.h.b16 %v3135
        %v3552 = vunpack.c.l.b16 %v3136
        %v3553 = vunpack.c.h.b16 %v3136
        %v3554 = vunpack.c.l.b16 %v3137
        %v3555 = vunpack.c.h.b16 %v3137
        %v3556 = vunpack.c.l.b16 %v3138
        %v3557 = vunpack.c.h.b16 %v3138
        %v3558 = vunpack.c.l.b16 %v3139
        %v3559 = vunpack.c.h.b16 %v3139
        %v3560 = vunpack.c.l.b16 %v3140
        %v3561 = vunpack.c.h.b16 %v3140
        %v3562 = vunpack.c.l.b16 %v3141
        %v3563 = vunpack.c.h.b16 %v3141
        %v3564 = vunpack.c.l.b16 %v3142
        %v3565 = vunpack.c.h.b16 %v3142
        %v3566 = vunpack.c.l.b16 %v3143
        %v3567 = vunpack.c.h.b16 %v3143
        %v3568 = vunpack.c.l.b16 %v3144
        %v3569 = vunpack.c.h.b16 %v3144
        %v3570 = vunpack.c.l.b16 %v3145
        %v3571 = vunpack.c.h.b16 %v3145
        %v3572 = vunpack.c.l.b16 %v3146
        %v3573 = vunpack.c.h.b16 %v3146
        %v3574 = vunpack.c.l.b16 %v3147
        %v3575 = vunpack.c.h.b16 %v3147
        %v3576 = vunpack.c.l.b16 %v3148
        %v3577 = vunpack.c.h.b16 %v3148
        %v3578 = vunpack.c.l.b16 %v3149
        %v3579 = vunpack.c.h.b16 %v3149
        %v3580 = vunpack.c.l.b16 %v3150
        %v3581 = vunpack.c.h.b16 %v3150
        %v3582 = vunpack.c.l.b16 %v3151
        %v3583 = vunpack.c.h.b16 %v3151
        %v3584 = vunpack.c.l.b16 %v3152
        %v3585 = vunpack.c.h.b16 %v3152
        %v3586 = vunpack.c.l.b16 %v3153
        %v3587 = vunpack.c.h.b16 %v3153
        %v3588 = vunpack.c.l.b16 %v3154
        %v3589 = vunpack.c.h.b16 %v3154
        %v3590 = vunpack.c.l.b16 %v3155
        %v3591 = vunpack.c.h.b16 %v3155
        %v3592 = vunpack.c.l.b16 %v3156
        %v3593 = vunpack.c.h.b16 %v3156
        %v3594 = vunpack.c.l.b16 %v3157
        %v3595 = vunpack.c.h.b16 %v3157
        %v3596 = vunpack.c.l.b16 %v3158
        %v3597 = vunpack.c.h.b16 %v3158
        %v3598 = vunpack.c.l.b16 %v3159
        %v3599 = vunpack.c.h.b16 %v3159
        %v3600 = vunpack.c.l.b16 %v3160
        %v3601 = vunpack.c.h.b16 %v3160
        %v3602 = vunpack.c.l.b16 %v3161
        %v3603 = vunpack.c.h.b16 %v3161
        %v3604 = vunpack.c.l.b16 %v3162
        %v3605 = vunpack.c.h.b16 %v3162
        %v3606 = vunpack.c.l.b16 %v3163
        %v3607 = vunpack.c.h.b16 %v3163
        %v3608 = vunpack.c.l.b16 %v3164
        %v3609 = vunpack.c.h.b16 %v3164
        %v3610 = vunpack.c.l.b16 %v3165
        %v3611 = vunpack.c.h.b16 %v3165
        %v3612 = vunpack.c.l.b16 %v3166
        %v3613 = vunpack.c.h.b16 %v3166
        %v3614 = vunpack.c.l.b16 %v3167
        %v3615 = vunpack.c.h.b16 %v3167
        %v3616 = vpack.c.b16 %v3364, %v3360
        %v3617 = vpack.c.b16 %v3365, %v3361
        %v3618 = vpack.c.b16 %v3366, %v3362
        %v3619 = vpack.c.b16 %v3367, %v3363
        %v3620 = vpack.c.b16 %v3372, %v3368
        %v3621 = vpack.c.b16 %v3373, %v3369
        %v3622 = vpack.c.b16 %v3374, %v3370
        %v3623 = vpack.c.b16 %v3375, %v3371
        %v3624 = vpack.c.b16 %v3380, %v3376
        %v3625 = vpack.c.b16 %v3381, %v3377
        %v3626 = vpack.c.b16 %v3382, %v3378
        %v3627 = vpack.c.b16 %v3383, %v3379
        %v3628 = vpack.c.b16 %v3388, %v3384
        %v3629 = vpack.c.b16 %v3389, %v3385
        %v3630 = vpack.c.b16 %v3390, %v3386
        %v3631 = vpack.c.b16 %v3391, %v3387
        %v3632 = vpack.c.b16 %v3396, %v3392
        %v3633 = vpack.c.b16 %v3397, %v3393
        %v3634 = vpack.c.b16 %v3398, %v3394
        %v3635 = vpack.c.b16 %v3399, %v3395
        %v3636 = vpack.c.b16 %v3404, %v3400
        %v3637 = vpack.c.b16 %v3405, %v3401
        %v3638 = vpack.c.b16 %v3406, %v3402
        %v3639 = vpack.c.b16 %v3407, %v3403
        %v3640 = vpack.c.b16 %v3412, %v3408
        %v3641 = vpack.c.b16 %v3413, %v3409
        %v3642 = vpack.c.b16 %v3414, %v3410
        %v3643 = vpack.c.b16 %v3415, %v3411
        %v3644 = vpack.c.b16 %v3420, %v3416
        %v3645 = vpack.c.b16 %v3421, %v3417
        %v3646 = vpack.c.b16 %v3422, %v3418
        %v3647 = vpack.c.b16 %v3423, %v3419
        %v3648 = vpack.c.b16 %v3428, %v3424
        %v3649 = vpack.c.b16 %v3429, %v3425
        %v3650 = vpack.c.b16 %v3430, %v3426
        %v3651 = vpack.c.b16 %v3431, %v3427
        %v3652 = vpack.c.b16 %v3436, %v3432
        %v3653 = vpack.c.b16 %v3437, %v3433
        %v3654 = vpack.c.b16 %v3438, %v3434
        %v3655 = vpack.c.b16 %v3439, %v3435
        %v3656 = vpack.c.b16 %v3444, %v3440
        %v3657 = vpack.c.b16 %v3445, %v3441
        %v3658 = vpack.c.b16 %v3446, %v3442
        %v3659 = vpack.c.b16 %v3447, %v3443
        %v3660 = vpack.c.b16 %v3452, %v3448
        %v3661 = vpack.c.b16 %v3453, %v3449
        %v3662 = vpack.c.b16 %v3454, %v3450
        %v3663 = vpack.c.b16 %v3455, %v3451
        %v3664 = vpack.c.b16 %v3460, %v3456
        %v3665 = vpack.c.b16 %v3461, %v3457
        %v3666 = vpack.c.b16 %v3462, %v3458
        %v3667 = vpack.c.b16 %v3463, %v3459
        %v3668 = vpack.c.b16 %v3468, %v3464
        %v3669 = vpack.c.b16 %v3469, %v3465
        %v3670 = vpack.c.b16 %v3470, %v3466
        %v3671 = vpack.c.b16 %v3471, %v3467
        %v3672 = vpack.c.b16 %v3476, %v3472
        %v3673 = vpack.c.b16 %v3477, %v3473
        %v3674 = vpack.c.b16 %v3478, %v3474
        %v3675 = vpack.c.b16 %v3479, %v3475
        %v3676 = vpack.c.b16 %v3484, %v3480
        %v3677 = vpack.c.b16 %v3485, %v3481
        %v3678 = vpack.c.b16 %v3486, %v3482
        %v3679 = vpack.c.b16 %v3487, %v3483
        %v3680 = vpack.c.b16 %v3492, %v3488
        %v3681 = vpack.c.b16 %v3493, %v3489
        %v3682 = vpack.c.b16 %v3494, %v3490
        %v3683 = vpack.c.b16 %v3495, %v3491
        %v3684 = vpack.c.b16 %v3500, %v3496
        %v3685 = vpack.c.b16 %v3501, %v3497
        %v3686 = vpack.c.b16 %v3502, %v3498
        %v3687 = vpack.c.b16 %v3503, %v3499
        %v3688 = vpack.c.b16 %v3508, %v3504
        %v3689 = vpack.c.b16 %v3509, %v3505
        %v3690 = vpack.c.b16 %v3510, %v3506
        %v3691 = vpack.c.b16 %v3511, %v3507
        %v3692 = vpack.c.b16 %v3516, %v3512
        %v3693 = vpack.c.b16 %v3517, %v3513
        %v3694 = vpack.c.b16 %v3518, %v3514
        %v3695 = vpack.c.b16 %v3519, %v3515
        %v3696 = vpack.c.b16 %v3524, %v3520
        %v3697 = vpack.c.b16 %v3525, %v3521
        %v3698 = vpack.c.b16 %v3526, %v3522
        %v3699 = vpack.c.b16 %v3527, %v3523
        %v3700 = vpack.c.b16 %v3532, %v3528
        %v3701 = vpack.c.b16 %v3533, %v3529
        %v3702 = vpack.c.b16 %v3534, %v3530
        %v3703 = vpack.c.b16 %v3535, %v3531
        %v3704 = vpack.c.b16 %v3540, %v3536
        %v3705 = vpack.c.b16 %v3541, %v3537
        %v3706 = vpack.c.b16 %v3542, %v3538
        %v3707 = vpack.c.b16 %v3543, %v3539
        %v3708 = vpack.c.b16 %v3548, %v3544
        %v3709 = vpack.c.b16 %v3549, %v3545
        %v3710 = vpack.c.b16 %v3550, %v3546
        %v3711 = vpack.c.b16 %v3551, %v3547
        %v3712 = vpack.c.b16 %v3556, %v3552
        %v3713 = vpack.c.b16 %v3557, %v3553
        %v3714 = vpack.c.b16 %v3558, %v3554
        %v3715 = vpack.c.b16 %v3559, %v3555
        %v3716 = vpack.c.b16 %v3564, %v3560
        %v3717 = vpack.c.b16 %v3565, %v3561
        %v3718 = vpack.c.b16 %v3566, %v3562
        %v3719 = vpack.c.b16 %v3567, %v3563
        %v3720 = vpack.c.b16 %v3572, %v3568
        %v3721 = vpack.c.b16 %v3573, %v3569
        %v3722 = vpack.c.b16 %v3574, %v3570
        %v3723 = vpack.c.b16 %v3575, %v3571
        %v3724 = vpack.c.b16 %v3580, %v3576
        %v3725 = vpack.c.b16 %v3581, %v3577
        %v3726 = vpack.c.b16 %v3582, %v3578
        %v3727 = vpack.c.b16 %v3583, %v3579
        %v3728 = vpack.c.b16 %v3588, %v3584
        %v3729 = vpack.c.b16 %v3589, %v3585
        %v3730 = vpack.c.b16 %v3590, %v3586
        %v3731 = vpack.c.b16 %v3591, %v3587
        %v3732 = vpack.c.b16 %v3596, %v3592
        %v3733 = vpack.c.b16 %v3597, %v3593
        %v3734 = vpack.c.b16 %v3598, %v3594
        %v3735 = vpack.c.b16 %v3599, %v3595
        %v3736 = vpack.c.b16 %v3604, %v3600
        %v3737 = vpack.c.b16 %v3605, %v3601
        %v3738 = vpack.c.b16 %v3606, %v3602
        %v3739 = vpack.c.b16 %v3607, %v3603
        %v3740 = vpack.c.b16 %v3612, %v3608
        %v3741 = vpack.c.b16 %v3613, %v3609
        %v3742 = vpack.c.b16 %v3614, %v3610
        %v3743 = vpack.c.b16 %v3615, %v3611
        %3872 = vmatprep.subr.bf16.mxu0 %v3617
        %3873 = vmatpush1.bf16.msra.mxu0 %v3616
        %3874 = vmatprep.subr.bf16.mxu0 %v3621
        %3875 = vmatpush1.bf16.msra.mxu0 %v3620
        %3876 = vmatprep.subr.bf16.mxu0 %v3625
        %3877 = vmatpush1.bf16.msra.mxu0 %v3624
        %3878 = vmatprep.subr.bf16.mxu0 %v3629
        %3879 = vmatpush1.bf16.msra.mxu0 %v3628
        %3880 = vmatprep.subr.bf16.mxu0 %v3633
        %3881 = vmatpush1.bf16.msra.mxu0 %v3632
        %3882 = vmatprep.subr.bf16.mxu0 %v3637
        %3883 = vmatpush1.bf16.msra.mxu0 %v3636
        %3884 = vmatprep.subr.bf16.mxu0 %v3641
        %3885 = vmatpush1.bf16.msra.mxu0 %v3640
        %3886 = vmatprep.subr.bf16.mxu0 %v3645
        %3887 = vmatpush1.bf16.msra.mxu0 %v3644
        %3888 = vmatprep.subr.bf16.mxu0 %v3649
        %3889 = vmatpush1.bf16.msra.mxu0 %v3648
        %3890 = vmatprep.subr.bf16.mxu0 %v3653
        %3891 = vmatpush1.bf16.msra.mxu0 %v3652
        %3892 = vmatprep.subr.bf16.mxu0 %v3657
        %3893 = vmatpush1.bf16.msra.mxu0 %v3656
        %3894 = vmatprep.subr.bf16.mxu0 %v3661
        %3895 = vmatpush1.bf16.msra.mxu0 %v3660
        %3896 = vmatprep.subr.bf16.mxu0 %v3665
        %3897 = vmatpush1.bf16.msra.mxu0 %v3664
        %3898 = vmatprep.subr.bf16.mxu0 %v3669
        %3899 = vmatpush1.bf16.msra.mxu0 %v3668
        %3900 = vmatprep.subr.bf16.mxu0 %v3673
        %3901 = vmatpush1.bf16.msra.mxu0 %v3672
        %3902 = vmatprep.subr.bf16.mxu0 %v3677
        %3903 = vmatpush1.bf16.msra.mxu0 %v3676
        %3904 = vmatprep.mubr.bf16.mxu0 %v3201
        %3905 = vmatmul.mubr.bf16.gmra.mrb[0].mxu0 %v3200
        %v3906 = vpop.f32.mrb[0].mxu0
        %v3907 = vadd.f32 0.0, %v3906
        %v3908 = vpop.f32.mrb[0].mxu0
        %v3909 = vadd.f32 0.0, %v3908
        %v3910 = vpop.f32.mrb[0].mxu0
        %v3911 = vadd.f32 0.0, %v3910
        %v3912 = vpop.f32.mrb[0].mxu0
        %v3913 = vadd.f32 0.0, %v3912
        %3914 = vmatprep.mubr.bf16.mxu0 %v3205
        %3915 = vmatmul.mubr.bf16.gmra.mrb[0].mxu0 %v3204
        %v3916 = vpop.f32.mrb[0].mxu0
        %v3917 = vadd.f32 0.0, %v3916
        %v3918 = vpop.f32.mrb[0].mxu0
        %v3919 = vadd.f32 0.0, %v3918
        %v3920 = vpop.f32.mrb[0].mxu0
        %v3921 = vadd.f32 0.0, %v3920
        %v3922 = vpop.f32.mrb[0].mxu0
        %v3923 = vadd.f32 0.0, %v3922
        %3924 = vmatprep.mubr.bf16.mxu0 %v3209
        %3925 = vmatmul.mubr.bf16.gmra.mrb[0].mxu0 %v3208
        %v3926 = vpop.f32.mrb[0].mxu0
        %v3927 = vadd.f32 0.0, %v3926
        %v3928 = vpop.f32.mrb[0].mxu0
        %v3929 = vadd.f32 0.0, %v3928
        %v3930 = vpop.f32.mrb[0].mxu0
        %v3931 = vadd.f32 0.0, %v3930
        %v3932 = vpop.f32.mrb[0].mxu0
        %v3933 = vadd.f32 0.0, %v3932
        %3934 = vmatprep.mubr.bf16.mxu0 %v3213
        %3935 = vmatmul.mubr.bf16.gmra.mrb[0].mxu0 %v3212
        %v3936 = vpop.f32.mrb[0].mxu0
        %v3937 = vadd.f32 0.0, %v3936
        %v3938 = vpop.f32.mrb[0].mxu0
        %v3939 = vadd.f32 0.0, %v3938
        %v3940 = vpop.f32.mrb[0].mxu0
        %v3941 = vadd.f32 0.0, %v3940
        %v3942 = vpop.f32.mrb[0].mxu0
        %v3943 = vadd.f32 0.0, %v3942
        %3944 = vdwg.mxu0
        %3945 = vmatprep.subr.bf16.mxu0 %v3681
        %3946 = vmatpush1.bf16.msra.mxu0 %v3680
        %3947 = vmatprep.subr.bf16.mxu0 %v3685
        %3948 = vmatpush1.bf16.msra.mxu0 %v3684
        %3949 = vmatprep.subr.bf16.mxu0 %v3689
        %3950 = vmatpush1.bf16.msra.mxu0 %v3688
        %3951 = vmatprep.subr.bf16.mxu0 %v3693
        %3952 = vmatpush1.bf16.msra.mxu0 %v3692
        %3953 = vmatprep.subr.bf16.mxu0 %v3697
        %3954 = vmatpush1.bf16.msra.mxu0 %v3696
        %3955 = vmatprep.subr.bf16.mxu0 %v3701
        %3956 = vmatpush1.bf16.msra.mxu0 %v3700
        %3957 = vmatprep.subr.bf16.mxu0 %v3705
        %3958 = vmatpush1.bf16.msra.mxu0 %v3704
        %3959 = vmatprep.subr.bf16.mxu0 %v3709
        %3960 = vmatpush1.bf16.msra.mxu0 %v3708
        %3961 = vmatprep.subr.bf16.mxu0 %v3713
        %3962 = vmatpush1.bf16.msra.mxu0 %v3712
        %3963 = vmatprep.subr.bf16.mxu0 %v3717
        %3964 = vmatpush1.bf16.msra.mxu0 %v3716
        %3965 = vmatprep.subr.bf16.mxu0 %v3721
        %3966 = vmatpush1.bf16.msra.mxu0 %v3720
        %3967 = vmatprep.subr.bf16.mxu0 %v3725
        %3968 = vmatpush1.bf16.msra.mxu0 %v3724
        %3969 = vmatprep.subr.bf16.mxu0 %v3729
        %3970 = vmatpush1.bf16.msra.mxu0 %v3728
        %3971 = vmatprep.subr.bf16.mxu0 %v3733
        %3972 = vmatpush1.bf16.msra.mxu0 %v3732
        %3973 = vmatprep.subr.bf16.mxu0 %v3737
        %3974 = vmatpush1.bf16.msra.mxu0 %v3736
        %3975 = vmatprep.subr.bf16.mxu0 %v3741
        %3976 = vmatpush1.bf16.msra.mxu0 %v3740
        %3977 = vmatprep.mubr.bf16.mxu0 %v3203
        %3978 = vmatmul.mubr.bf16.gmra.mrb[0].mxu0 %v3202
        %v3979 = vpop.f32.mrb[0].mxu0
        %v3980 = vadd.f32 %v3907, %v3979
        %v3981 = vpop.f32.mrb[0].mxu0
        %v3982 = vadd.f32 %v3909, %v3981
        %v3983 = vpop.f32.mrb[0].mxu0
        %v3984 = vadd.f32 %v3911, %v3983
        %v3985 = vpop.f32.mrb[0].mxu0
        %v3986 = vadd.f32 %v3913, %v3985
        %3987 = vmatprep.mubr.bf16.mxu0 %v3207
        %3988 = vmatmul.mubr.bf16.gmra.mrb[0].mxu0 %v3206
        %v3989 = vpop.f32.mrb[0].mxu0
        %v3990 = vadd.f32 %v3917, %v3989
        %v3991 = vpop.f32.mrb[0].mxu0
        %v3992 = vadd.f32 %v3919, %v3991
        %v3993 = vpop.f32.mrb[0].mxu0
        %v3994 = vadd.f32 %v3921, %v3993
        %v3995 = vpop.f32.mrb[0].mxu0
        %v3996 = vadd.f32 %v3923, %v3995
        %3997 = vmatprep.mubr.bf16.mxu0 %v3211
        %3998 = vmatmul.mubr.bf16.gmra.mrb[0].mxu0 %v3210
        %v3999 = vpop.f32.mrb[0].mxu0
        %v4000 = vadd.f32 %v3927, %v3999
        %v4001 = vpop.f32.mrb[0].mxu0
        %v4002 = vadd.f32 %v3929, %v4001
        %v4003 = vpop.f32.mrb[0].mxu0
        %v4004 = vadd.f32 %v3931, %v4003
        %v4005 = vpop.f32.mrb[0].mxu0
        %v4006 = vadd.f32 %v3933, %v4005
        %4007 = vmatprep.mubr.bf16.mxu0 %v3215
        %4008 = vmatmul.mubr.bf16.gmra.mrb[0].mxu0 %v3214
        %v4009 = vpop.f32.mrb[0].mxu0
        %v4010 = vadd.f32 %v3937, %v4009
        %v4011 = vpop.f32.mrb[0].mxu0
        %v4012 = vadd.f32 %v3939, %v4011
        %v4013 = vpop.f32.mrb[0].mxu0
        %v4014 = vadd.f32 %v3941, %v4013
        %v4015 = vpop.f32.mrb[0].mxu0
        %v4016 = vadd.f32 %v3943, %v4015
        %4017 = vdwg.mxu0
        %4018 = vmatprep.subr.bf16.mxu0 %v3619
        %4019 = vmatpush1.bf16.msra.mxu0 %v3618
        %4020 = vmatprep.subr.bf16.mxu0 %v3623
        %4021 = vmatpush1.bf16.msra.mxu0 %v3622
        %4022 = vmatprep.subr.bf16.mxu0 %v3627
        %4023 = vmatpush1.bf16.msra.mxu0 %v3626
        %4024 = vmatprep.subr.bf16.mxu0 %v3631
        %4025 = vmatpush1.bf16.msra.mxu0 %v3630
        %4026 = vmatprep.subr.bf16.mxu0 %v3635
        %4027 = vmatpush1.bf16.msra.mxu0 %v3634
        %4028 = vmatprep.subr.bf16.mxu0 %v3639
        %4029 = vmatpush1.bf16.msra.mxu0 %v3638
        %4030 = vmatprep.subr.bf16.mxu0 %v3643
        %4031 = vmatpush1.bf16.msra.mxu0 %v3642
        %4032 = vmatprep.subr.bf16.mxu0 %v3647
        %4033 = vmatpush1.bf16.msra.mxu0 %v3646
        %4034 = vmatprep.subr.bf16.mxu0 %v3651
        %4035 = vmatpush1.bf16.msra.mxu0 %v3650
        %4036 = vmatprep.subr.bf16.mxu0 %v3655
        %4037 = vmatpush1.bf16.msra.mxu0 %v3654
        %4038 = vmatprep.subr.bf16.mxu0 %v3659
        %4039 = vmatpush1.bf16.msra.mxu0 %v3658
        %4040 = vmatprep.subr.bf16.mxu0 %v3663
        %4041 = vmatpush1.bf16.msra.mxu0 %v3662
        %4042 = vmatprep.subr.bf16.mxu0 %v3667
        %4043 = vmatpush1.bf16.msra.mxu0 %v3666
        %4044 = vmatprep.subr.bf16.mxu0 %v3671
        %4045 = vmatpush1.bf16.msra.mxu0 %v3670
        %4046 = vmatprep.subr.bf16.mxu0 %v3675
        %4047 = vmatpush1.bf16.msra.mxu0 %v3674
        %4048 = vmatprep.subr.bf16.mxu0 %v3679
        %4049 = vmatpush1.bf16.msra.mxu0 %v3678
        %4050 = vmatprep.mubr.bf16.mxu0 %v3201
        %4051 = vmatmul.mubr.bf16.gmra.mrb[0].mxu0 %v3200
        %v4052 = vpop.f32.mrb[0].mxu0
        %v4053 = vadd.f32 0.0, %v4052
        %v4054 = vpop.f32.mrb[0].mxu0
        %v4055 = vadd.f32 0.0, %v4054
        %v4056 = vpop.f32.mrb[0].mxu0
        %v4057 = vadd.f32 0.0, %v4056
        %v4058 = vpop.f32.mrb[0].mxu0
        %v4059 = vadd.f32 0.0, %v4058
        %4060 = vmatprep.mubr.bf16.mxu0 %v3205
        %4061 = vmatmul.mubr.bf16.gmra.mrb[0].mxu0 %v3204
        %v4062 = vpop.f32.mrb[0].mxu0
        %v4063 = vadd.f32 0.0, %v4062
        %v4064 = vpop.f32.mrb[0].mxu0
        %v4065 = vadd.f32 0.0, %v4064
        %v4066 = vpop.f32.mrb[0].mxu0
        %v4067 = vadd.f32 0.0, %v4066
        %v4068 = vpop.f32.mrb[0].mxu0
        %v4069 = vadd.f32 0.0, %v4068
        %4070 = vmatprep.mubr.bf16.mxu0 %v3209
        %4071 = vmatmul.mubr.bf16.gmra.mrb[0].mxu0 %v3208
        %v4072 = vpop.f32.mrb[0].mxu0
        %v4073 = vadd.f32 0.0, %v4072
        %v4074 = vpop.f32.mrb[0].mxu0
        %v4075 = vadd.f32 0.0, %v4074
        %v4076 = vpop.f32.mrb[0].mxu0
        %v4077 = vadd.f32 0.0, %v4076
        %v4078 = vpop.f32.mrb[0].mxu0
        %v4079 = vadd.f32 0.0, %v4078
        %4080 = vmatprep.mubr.bf16.mxu0 %v3213
        %4081 = vmatmul.mubr.bf16.gmra.mrb[0].mxu0 %v3212
        %v4082 = vpop.f32.mrb[0].mxu0
        %v4083 = vadd.f32 0.0, %v4082
        %v4084 = vpop.f32.mrb[0].mxu0
        %v4085 = vadd.f32 0.0, %v4084
        %v4086 = vpop.f32.mrb[0].mxu0
        %v4087 = vadd.f32 0.0, %v4086
        %v4088 = vpop.f32.mrb[0].mxu0
        %v4089 = vadd.f32 0.0, %v4088
        %4090 = vdwg.mxu0
        %4091 = vmatprep.subr.bf16.mxu0 %v3683
        %4092 = vmatpush1.bf16.msra.mxu0 %v3682
        %4093 = vmatprep.subr.bf16.mxu0 %v3687
        %4094 = vmatpush1.bf16.msra.mxu0 %v3686
        %4095 = vmatprep.subr.bf16.mxu0 %v3691
        %4096 = vmatpush1.bf16.msra.mxu0 %v3690
        %4097 = vmatprep.subr.bf16.mxu0 %v3695
        %4098 = vmatpush1.bf16.msra.mxu0 %v3694
        %4099 = vmatprep.subr.bf16.mxu0 %v3699
        %4100 = vmatpush1.bf16.msra.mxu0 %v3698
        %4101 = vmatprep.subr.bf16.mxu0 %v3703
        %4102 = vmatpush1.bf16.msra.mxu0 %v3702
        %4103 = vmatprep.subr.bf16.mxu0 %v3707
        %4104 = vmatpush1.bf16.msra.mxu0 %v3706
        %4105 = vmatprep.subr.bf16.mxu0 %v3711
        %4106 = vmatpush1.bf16.msra.mxu0 %v3710
        %4107 = vmatprep.subr.bf16.mxu0 %v3715
        %4108 = vmatpush1.bf16.msra.mxu0 %v3714
        %4109 = vmatprep.subr.bf16.mxu0 %v3719
        %4110 = vmatpush1.bf16.msra.mxu0 %v3718
        %4111 = vmatprep.subr.bf16.mxu0 %v3723
        %4112 = vmatpush1.bf16.msra.mxu0 %v3722
        %4113 = vmatprep.subr.bf16.mxu0 %v3727
        %4114 = vmatpush1.bf16.msra.mxu0 %v3726
        %4115 = vmatprep.subr.bf16.mxu0 %v3731
        %4116 = vmatpush1.bf16.msra.mxu0 %v3730
        %4117 = vmatprep.subr.bf16.mxu0 %v3735
        %4118 = vmatpush1.bf16.msra.mxu0 %v3734
        %4119 = vmatprep.subr.bf16.mxu0 %v3739
        %4120 = vmatpush1.bf16.msra.mxu0 %v3738
        %4121 = vmatprep.subr.bf16.mxu0 %v3743
        %4122 = vmatpush1.bf16.msra.mxu0 %v3742
        %4123 = vmatprep.mubr.bf16.mxu0 %v3203
        %4124 = vmatmul.mubr.bf16.gmra.mrb[0].mxu0 %v3202
        %v4125 = vpop.f32.mrb[0].mxu0
        %v4126 = vadd.f32 %v4053, %v4125
        %v4127 = vpop.f32.mrb[0].mxu0
        %v4128 = vadd.f32 %v4055, %v4127
        %v4129 = vpop.f32.mrb[0].mxu0
        %v4130 = vadd.f32 %v4057, %v4129
        %v4131 = vpop.f32.mrb[0].mxu0
        %v4132 = vadd.f32 %v4059, %v4131
        %4133 = vmatprep.mubr.bf16.mxu0 %v3207
        %4134 = vmatmul.mubr.bf16.gmra.mrb[0].mxu0 %v3206
        %v4135 = vpop.f32.mrb[0].mxu0
        %v4136 = vadd.f32 %v4063, %v4135
        %v4137 = vpop.f32.mrb[0].mxu0
        %v4138 = vadd.f32 %v4065, %v4137
        %v4139 = vpop.f32.mrb[0].mxu0
        %v4140 = vadd.f32 %v4067, %v4139
        %v4141 = vpop.f32.mrb[0].mxu0
        %v4142 = vadd.f32 %v4069, %v4141
        %4143 = vmatprep.mubr.bf16.mxu0 %v3211
        %4144 = vmatmul.mubr.bf16.gmra.mrb[0].mxu0 %v3210
        %v4145 = vpop.f32.mrb[0].mxu0
        %v4146 = vadd.f32 %v4073, %v4145
        %v4147 = vpop.f32.mrb[0].mxu0
        %v4148 = vadd.f32 %v4075, %v4147
        %v4149 = vpop.f32.mrb[0].mxu0
        %v4150 = vadd.f32 %v4077, %v4149
        %v4151 = vpop.f32.mrb[0].mxu0
        %v4152 = vadd.f32 %v4079, %v4151
        %4153 = vmatprep.mubr.bf16.mxu0 %v3215
        %4154 = vmatmul.mubr.bf16.gmra.mrb[0].mxu0 %v3214
        %v4155 = vpop.f32.mrb[0].mxu0
        %v4156 = vadd.f32 %v4083, %v4155
        %v4157 = vpop.f32.mrb[0].mxu0
        %v4158 = vadd.f32 %v4085, %v4157
        %v4159 = vpop.f32.mrb[0].mxu0
        %v4160 = vadd.f32 %v4087, %v4159
        %v4161 = vpop.f32.mrb[0].mxu0
        %v4162 = vadd.f32 %v4089, %v4161
        %4163 = vdwg.mxu0
        %v4164 = vadd.f32 %v2890, %v3980
        %v4165 = vadd.f32 %v2891, %v3982
        %v4166 = vadd.f32 %v2892, %v4126
        %v4167 = vadd.f32 %v2893, %v4128
        %v4168 = vadd.f32 %v2894, %v3984
        %v4169 = vadd.f32 %v2895, %v3986
        %v4170 = vadd.f32 %v2896, %v4130
        %v4171 = vadd.f32 %v2897, %v4132
        %v4172 = vadd.f32 %v2898, %v3990
        %v4173 = vadd.f32 %v2899, %v3992
        %v4174 = vadd.f32 %v2900, %v4136
        %v4175 = vadd.f32 %v2901, %v4138
        %v4176 = vadd.f32 %v2902, %v3994
        %v4177 = vadd.f32 %v2903, %v3996
        %v4178 = vadd.f32 %v2904, %v4140
        %v4179 = vadd.f32 %v2905, %v4142
        %v4180 = vadd.f32 %v2906, %v4000
        %v4181 = vadd.f32 %v2907, %v4002
        %v4182 = vadd.f32 %v2908, %v4146
        %v4183 = vadd.f32 %v2909, %v4148
        %v4184 = vadd.f32 %v2910, %v4004
        %v4185 = vadd.f32 %v2911, %v4006
        %v4186 = vadd.f32 %v2912, %v4150
        %v4187 = vadd.f32 %v2913, %v4152
        %v4188 = vadd.f32 %v2914, %v4010
        %v4189 = vadd.f32 %v2915, %v4012
        %v4190 = vadd.f32 %v2916, %v4156
        %v4191 = vadd.f32 %v2917, %v4158
        %v4192 = vadd.f32 %v2918, %v4014
        %v4193 = vadd.f32 %v2919, %v4016
        %v4194 = vadd.f32 %v2920, %v4160
        %v4195 = vadd.f32 %v2921, %v4162
        %s4196 = scalar_lea.vmem %s213, 32 [#allocation3]
        %v4197 = vld [vmem:[%s4196] sm:$0xff]
        %v4198 = vld [vmem:[%s4196 + $0x8] sm:$0xff]
        %v4199 = vld [vmem:[%s4196 + $0x20] sm:$0xff]
        %v4200 = vld [vmem:[%s4196 + $0x28] sm:$0xff]
        %v4201 = vld [vmem:[%s4196 + $0x40] sm:$0xff]
        %v4202 = vld [vmem:[%s4196 + $0x48] sm:$0xff]
        %v4203 = vld [vmem:[%s4196 + $0x60] sm:$0xff]
        %v4204 = vld [vmem:[%s4196 + $0x68] sm:$0xff]
        %v4205 = vld [vmem:[%s4196 + $0x80] sm:$0xff]
        %v4206 = vld [vmem:[%s4196 + $0x88] sm:$0xff]
        %v4207 = vld [vmem:[%s4196 + $0xa0] sm:$0xff]
        %v4208 = vld [vmem:[%s4196 + $0xa8] sm:$0xff]
        %v4209 = vld [vmem:[%s4196 + $0xc0] sm:$0xff]
        %v4210 = vld [vmem:[%s4196 + $0xc8] sm:$0xff]
        %v4211 = vld [vmem:[%s4196 + $0xe0] sm:$0xff]
        %v4212 = vld [vmem:[%s4196 + $0xe8] sm:$0xff]
        %s4213 = sadd.s32 768, %s329
        %s4214 = smul.addr %s4213, 4
        %s4215 = scalar_lea.vmem [#allocation6], %s4214
        %v4216 = vld [vmem:[%s4215] sm:$0xff]
        %v4217 = vld [vmem:[%s4215 + $0x8] sm:$0xff]
        %v4218 = vld [vmem:[%s4215 + $0x10] sm:$0xff]
        %v4219 = vld [vmem:[%s4215 + $0x18] sm:$0xff]
        %v4220 = vld [vmem:[%s4215 + $0x20] sm:$0xff]
        %v4221 = vld [vmem:[%s4215 + $0x28] sm:$0xff]
        %v4222 = vld [vmem:[%s4215 + $0x30] sm:$0xff]
        %v4223 = vld [vmem:[%s4215 + $0x38] sm:$0xff]
        %v4224 = vld [vmem:[%s4215 + $0x40] sm:$0xff]
        %v4225 = vld [vmem:[%s4215 + $0x48] sm:$0xff]
        %v4226 = vld [vmem:[%s4215 + $0x50] sm:$0xff]
        %v4227 = vld [vmem:[%s4215 + $0x58] sm:$0xff]
        %v4228 = vld [vmem:[%s4215 + $0x60] sm:$0xff]
        %v4229 = vld [vmem:[%s4215 + $0x68] sm:$0xff]
        %v4230 = vld [vmem:[%s4215 + $0x70] sm:$0xff]
        %v4231 = vld [vmem:[%s4215 + $0x78] sm:$0xff]
        %v4232 = vld [vmem:[%s4215 + $0x80] sm:$0xff]
        %v4233 = vld [vmem:[%s4215 + $0x88] sm:$0xff]
        %v4234 = vld [vmem:[%s4215 + $0x90] sm:$0xff]
        %v4235 = vld [vmem:[%s4215 + $0x98] sm:$0xff]
        %v4236 = vld [vmem:[%s4215 + $0xa0] sm:$0xff]
        %v4237 = vld [vmem:[%s4215 + $0xa8] sm:$0xff]
        %v4238 = vld [vmem:[%s4215 + $0xb0] sm:$0xff]
        %v4239 = vld [vmem:[%s4215 + $0xb8] sm:$0xff]
        %v4240 = vld [vmem:[%s4215 + $0xc0] sm:$0xff]
        %v4241 = vld [vmem:[%s4215 + $0xc8] sm:$0xff]
        %v4242 = vld [vmem:[%s4215 + $0xd0] sm:$0xff]
        %v4243 = vld [vmem:[%s4215 + $0xd8] sm:$0xff]
        %v4244 = vld [vmem:[%s4215 + $0xe0] sm:$0xff]
        %v4245 = vld [vmem:[%s4215 + $0xe8] sm:$0xff]
        %v4246 = vld [vmem:[%s4215 + $0xf0] sm:$0xff]
        %v4247 = vld [vmem:[%s4215 + $0xf8] sm:$0xff]
        %v4248 = vld [vmem:[%s4215 + $0x100] sm:$0xff]
        %v4249 = vld [vmem:[%s4215 + $0x108] sm:$0xff]
        %v4250 = vld [vmem:[%s4215 + $0x110] sm:$0xff]
        %v4251 = vld [vmem:[%s4215 + $0x118] sm:$0xff]
        %v4252 = vld [vmem:[%s4215 + $0x120] sm:$0xff]
        %v4253 = vld [vmem:[%s4215 + $0x128] sm:$0xff]
        %v4254 = vld [vmem:[%s4215 + $0x130] sm:$0xff]
        %v4255 = vld [vmem:[%s4215 + $0x138] sm:$0xff]
        %v4256 = vld [vmem:[%s4215 + $0x140] sm:$0xff]
        %v4257 = vld [vmem:[%s4215 + $0x148] sm:$0xff]
        %v4258 = vld [vmem:[%s4215 + $0x150] sm:$0xff]
        %v4259 = vld [vmem:[%s4215 + $0x158] sm:$0xff]
        %v4260 = vld [vmem:[%s4215 + $0x160] sm:$0xff]
        %v4261 = vld [vmem:[%s4215 + $0x168] sm:$0xff]
        %v4262 = vld [vmem:[%s4215 + $0x170] sm:$0xff]
        %v4263 = vld [vmem:[%s4215 + $0x178] sm:$0xff]
        %v4264 = vld [vmem:[%s4215 + $0x180] sm:$0xff]
        %v4265 = vld [vmem:[%s4215 + $0x188] sm:$0xff]
        %v4266 = vld [vmem:[%s4215 + $0x190] sm:$0xff]
        %v4267 = vld [vmem:[%s4215 + $0x198] sm:$0xff]
        %v4268 = vld [vmem:[%s4215 + $0x1a0] sm:$0xff]
        %v4269 = vld [vmem:[%s4215 + $0x1a8] sm:$0xff]
        %v4270 = vld [vmem:[%s4215 + $0x1b0] sm:$0xff]
        %v4271 = vld [vmem:[%s4215 + $0x1b8] sm:$0xff]
        %v4272 = vld [vmem:[%s4215 + $0x1c0] sm:$0xff]
        %v4273 = vld [vmem:[%s4215 + $0x1c8] sm:$0xff]
        %v4274 = vld [vmem:[%s4215 + $0x1d0] sm:$0xff]
        %v4275 = vld [vmem:[%s4215 + $0x1d8] sm:$0xff]
        %v4276 = vld [vmem:[%s4215 + $0x1e0] sm:$0xff]
        %v4277 = vld [vmem:[%s4215 + $0x1e8] sm:$0xff]
        %v4278 = vld [vmem:[%s4215 + $0x1f0] sm:$0xff]
        %v4279 = vld [vmem:[%s4215 + $0x1f8] sm:$0xff]
        %v4280 = vld [vmem:[%s4215 + $0x200] sm:$0xff]
        %v4281 = vld [vmem:[%s4215 + $0x208] sm:$0xff]
        %v4282 = vld [vmem:[%s4215 + $0x210] sm:$0xff]
        %v4283 = vld [vmem:[%s4215 + $0x218] sm:$0xff]
        %v4284 = vld [vmem:[%s4215 + $0x220] sm:$0xff]
        %v4285 = vld [vmem:[%s4215 + $0x228] sm:$0xff]
        %v4286 = vld [vmem:[%s4215 + $0x230] sm:$0xff]
        %v4287 = vld [vmem:[%s4215 + $0x238] sm:$0xff]
        %v4288 = vld [vmem:[%s4215 + $0x240] sm:$0xff]
        %v4289 = vld [vmem:[%s4215 + $0x248] sm:$0xff]
        %v4290 = vld [vmem:[%s4215 + $0x250] sm:$0xff]
        %v4291 = vld [vmem:[%s4215 + $0x258] sm:$0xff]
        %v4292 = vld [vmem:[%s4215 + $0x260] sm:$0xff]
        %v4293 = vld [vmem:[%s4215 + $0x268] sm:$0xff]
        %v4294 = vld [vmem:[%s4215 + $0x270] sm:$0xff]
        %v4295 = vld [vmem:[%s4215 + $0x278] sm:$0xff]
        %v4296 = vld [vmem:[%s4215 + $0x280] sm:$0xff]
        %v4297 = vld [vmem:[%s4215 + $0x288] sm:$0xff]
        %v4298 = vld [vmem:[%s4215 + $0x290] sm:$0xff]
        %v4299 = vld [vmem:[%s4215 + $0x298] sm:$0xff]
        %v4300 = vld [vmem:[%s4215 + $0x2a0] sm:$0xff]
        %v4301 = vld [vmem:[%s4215 + $0x2a8] sm:$0xff]
        %v4302 = vld [vmem:[%s4215 + $0x2b0] sm:$0xff]
        %v4303 = vld [vmem:[%s4215 + $0x2b8] sm:$0xff]
        %v4304 = vld [vmem:[%s4215 + $0x2c0] sm:$0xff]
        %v4305 = vld [vmem:[%s4215 + $0x2c8] sm:$0xff]
        %v4306 = vld [vmem:[%s4215 + $0x2d0] sm:$0xff]
        %v4307 = vld [vmem:[%s4215 + $0x2d8] sm:$0xff]
        %v4308 = vld [vmem:[%s4215 + $0x2e0] sm:$0xff]
        %v4309 = vld [vmem:[%s4215 + $0x2e8] sm:$0xff]
        %v4310 = vld [vmem:[%s4215 + $0x2f0] sm:$0xff]
        %v4311 = vld [vmem:[%s4215 + $0x2f8] sm:$0xff]
        %v4312 = vld [vmem:[%s4215 + $0x300] sm:$0xff]
        %v4313 = vld [vmem:[%s4215 + $0x308] sm:$0xff]
        %v4314 = vld [vmem:[%s4215 + $0x310] sm:$0xff]
        %v4315 = vld [vmem:[%s4215 + $0x318] sm:$0xff]
        %v4316 = vld [vmem:[%s4215 + $0x320] sm:$0xff]
        %v4317 = vld [vmem:[%s4215 + $0x328] sm:$0xff]
        %v4318 = vld [vmem:[%s4215 + $0x330] sm:$0xff]
        %v4319 = vld [vmem:[%s4215 + $0x338] sm:$0xff]
        %v4320 = vld [vmem:[%s4215 + $0x340] sm:$0xff]
        %v4321 = vld [vmem:[%s4215 + $0x348] sm:$0xff]
        %v4322 = vld [vmem:[%s4215 + $0x350] sm:$0xff]
        %v4323 = vld [vmem:[%s4215 + $0x358] sm:$0xff]
        %v4324 = vld [vmem:[%s4215 + $0x360] sm:$0xff]
        %v4325 = vld [vmem:[%s4215 + $0x368] sm:$0xff]
        %v4326 = vld [vmem:[%s4215 + $0x370] sm:$0xff]
        %v4327 = vld [vmem:[%s4215 + $0x378] sm:$0xff]
        %v4328 = vld [vmem:[%s4215 + $0x380] sm:$0xff]
        %v4329 = vld [vmem:[%s4215 + $0x388] sm:$0xff]
        %v4330 = vld [vmem:[%s4215 + $0x390] sm:$0xff]
        %v4331 = vld [vmem:[%s4215 + $0x398] sm:$0xff]
        %v4332 = vld [vmem:[%s4215 + $0x3a0] sm:$0xff]
        %v4333 = vld [vmem:[%s4215 + $0x3a8] sm:$0xff]
        %v4334 = vld [vmem:[%s4215 + $0x3b0] sm:$0xff]
        %v4335 = vld [vmem:[%s4215 + $0x3b8] sm:$0xff]
        %v4336 = vld [vmem:[%s4215 + $0x3c0] sm:$0xff]
        %v4337 = vld [vmem:[%s4215 + $0x3c8] sm:$0xff]
        %v4338 = vld [vmem:[%s4215 + $0x3d0] sm:$0xff]
        %v4339 = vld [vmem:[%s4215 + $0x3d8] sm:$0xff]
        %v4340 = vld [vmem:[%s4215 + $0x3e0] sm:$0xff]
        %v4341 = vld [vmem:[%s4215 + $0x3e8] sm:$0xff]
        %v4342 = vld [vmem:[%s4215 + $0x3f0] sm:$0xff]
        %v4343 = vld [vmem:[%s4215 + $0x3f8] sm:$0xff]
        %v4360 = vunpack.c.l.b16 %v4197
        %v4361 = vunpack.c.h.b16 %v4197
        %v4362 = vunpack.c.l.b16 %v4198
        %v4363 = vunpack.c.h.b16 %v4198
        %v4364 = vunpack.c.l.b16 %v4199
        %v4365 = vunpack.c.h.b16 %v4199
        %v4366 = vunpack.c.l.b16 %v4200
        %v4367 = vunpack.c.h.b16 %v4200
        %v4368 = vunpack.c.l.b16 %v4201
        %v4369 = vunpack.c.h.b16 %v4201
        %v4370 = vunpack.c.l.b16 %v4202
        %v4371 = vunpack.c.h.b16 %v4202
        %v4372 = vunpack.c.l.b16 %v4203
        %v4373 = vunpack.c.h.b16 %v4203
        %v4374 = vunpack.c.l.b16 %v4204
        %v4375 = vunpack.c.h.b16 %v4204
        %v4376 = vunpack.c.l.b16 %v4205
        %v4377 = vunpack.c.h.b16 %v4205
        %v4378 = vunpack.c.l.b16 %v4206
        %v4379 = vunpack.c.h.b16 %v4206
        %v4380 = vunpack.c.l.b16 %v4207
        %v4381 = vunpack.c.h.b16 %v4207
        %v4382 = vunpack.c.l.b16 %v4208
        %v4383 = vunpack.c.h.b16 %v4208
        %v4384 = vunpack.c.l.b16 %v4209
        %v4385 = vunpack.c.h.b16 %v4209
        %v4386 = vunpack.c.l.b16 %v4210
        %v4387 = vunpack.c.h.b16 %v4210
        %v4388 = vunpack.c.l.b16 %v4211
        %v4389 = vunpack.c.h.b16 %v4211
        %v4390 = vunpack.c.l.b16 %v4212
        %v4391 = vunpack.c.h.b16 %v4212
        %v4392 = vpack.c.b16 %v4364, %v4360
        %v4393 = vpack.c.b16 %v4365, %v4361
        %v4394 = vpack.c.b16 %v4366, %v4362
        %v4395 = vpack.c.b16 %v4367, %v4363
        %v4396 = vpack.c.b16 %v4372, %v4368
        %v4397 = vpack.c.b16 %v4373, %v4369
        %v4398 = vpack.c.b16 %v4374, %v4370
        %v4399 = vpack.c.b16 %v4375, %v4371
        %v4400 = vpack.c.b16 %v4380, %v4376
        %v4401 = vpack.c.b16 %v4381, %v4377
        %v4402 = vpack.c.b16 %v4382, %v4378
        %v4403 = vpack.c.b16 %v4383, %v4379
        %v4404 = vpack.c.b16 %v4388, %v4384
        %v4405 = vpack.c.b16 %v4389, %v4385
        %v4406 = vpack.c.b16 %v4390, %v4386
        %v4407 = vpack.c.b16 %v4391, %v4387
        %v4552 = vunpack.c.l.b16 %v4216
        %v4553 = vunpack.c.h.b16 %v4216
        %v4554 = vunpack.c.l.b16 %v4217
        %v4555 = vunpack.c.h.b16 %v4217
        %v4556 = vunpack.c.l.b16 %v4218
        %v4557 = vunpack.c.h.b16 %v4218
        %v4558 = vunpack.c.l.b16 %v4219
        %v4559 = vunpack.c.h.b16 %v4219
        %v4560 = vunpack.c.l.b16 %v4220
        %v4561 = vunpack.c.h.b16 %v4220
        %v4562 = vunpack.c.l.b16 %v4221
        %v4563 = vunpack.c.h.b16 %v4221
        %v4564 = vunpack.c.l.b16 %v4222
        %v4565 = vunpack.c.h.b16 %v4222
        %v4566 = vunpack.c.l.b16 %v4223
        %v4567 = vunpack.c.h.b16 %v4223
        %v4568 = vunpack.c.l.b16 %v4224
        %v4569 = vunpack.c.h.b16 %v4224
        %v4570 = vunpack.c.l.b16 %v4225
        %v4571 = vunpack.c.h.b16 %v4225
        %v4572 = vunpack.c.l.b16 %v4226
        %v4573 = vunpack.c.h.b16 %v4226
        %v4574 = vunpack.c.l.b16 %v4227
        %v4575 = vunpack.c.h.b16 %v4227
        %v4576 = vunpack.c.l.b16 %v4228
        %v4577 = vunpack.c.h.b16 %v4228
        %v4578 = vunpack.c.l.b16 %v4229
        %v4579 = vunpack.c.h.b16 %v4229
        %v4580 = vunpack.c.l.b16 %v4230
        %v4581 = vunpack.c.h.b16 %v4230
        %v4582 = vunpack.c.l.b16 %v4231
        %v4583 = vunpack.c.h.b16 %v4231
        %v4584 = vunpack.c.l.b16 %v4232
        %v4585 = vunpack.c.h.b16 %v4232
        %v4586 = vunpack.c.l.b16 %v4233
        %v4587 = vunpack.c.h.b16 %v4233
        %v4588 = vunpack.c.l.b16 %v4234
        %v4589 = vunpack.c.h.b16 %v4234
        %v4590 = vunpack.c.l.b16 %v4235
        %v4591 = vunpack.c.h.b16 %v4235
        %v4592 = vunpack.c.l.b16 %v4236
        %v4593 = vunpack.c.h.b16 %v4236
        %v4594 = vunpack.c.l.b16 %v4237
        %v4595 = vunpack.c.h.b16 %v4237
        %v4596 = vunpack.c.l.b16 %v4238
        %v4597 = vunpack.c.h.b16 %v4238
        %v4598 = vunpack.c.l.b16 %v4239
        %v4599 = vunpack.c.h.b16 %v4239
        %v4600 = vunpack.c.l.b16 %v4240
        %v4601 = vunpack.c.h.b16 %v4240
        %v4602 = vunpack.c.l.b16 %v4241
        %v4603 = vunpack.c.h.b16 %v4241
        %v4604 = vunpack.c.l.b16 %v4242
        %v4605 = vunpack.c.h.b16 %v4242
        %v4606 = vunpack.c.l.b16 %v4243
        %v4607 = vunpack.c.h.b16 %v4243
        %v4608 = vunpack.c.l.b16 %v4244
        %v4609 = vunpack.c.h.b16 %v4244
        %v4610 = vunpack.c.l.b16 %v4245
        %v4611 = vunpack.c.h.b16 %v4245
        %v4612 = vunpack.c.l.b16 %v4246
        %v4613 = vunpack.c.h.b16 %v4246
        %v4614 = vunpack.c.l.b16 %v4247
        %v4615 = vunpack.c.h.b16 %v4247
        %v4616 = vunpack.c.l.b16 %v4248
        %v4617 = vunpack.c.h.b16 %v4248
        %v4618 = vunpack.c.l.b16 %v4249
        %v4619 = vunpack.c.h.b16 %v4249
        %v4620 = vunpack.c.l.b16 %v4250
        %v4621 = vunpack.c.h.b16 %v4250
        %v4622 = vunpack.c.l.b16 %v4251
        %v4623 = vunpack.c.h.b16 %v4251
        %v4624 = vunpack.c.l.b16 %v4252
        %v4625 = vunpack.c.h.b16 %v4252
        %v4626 = vunpack.c.l.b16 %v4253
        %v4627 = vunpack.c.h.b16 %v4253
        %v4628 = vunpack.c.l.b16 %v4254
        %v4629 = vunpack.c.h.b16 %v4254
        %v4630 = vunpack.c.l.b16 %v4255
        %v4631 = vunpack.c.h.b16 %v4255
        %v4632 = vunpack.c.l.b16 %v4256
        %v4633 = vunpack.c.h.b16 %v4256
        %v4634 = vunpack.c.l.b16 %v4257
        %v4635 = vunpack.c.h.b16 %v4257
        %v4636 = vunpack.c.l.b16 %v4258
        %v4637 = vunpack.c.h.b16 %v4258
        %v4638 = vunpack.c.l.b16 %v4259
        %v4639 = vunpack.c.h.b16 %v4259
        %v4640 = vunpack.c.l.b16 %v4260
        %v4641 = vunpack.c.h.b16 %v4260
        %v4642 = vunpack.c.l.b16 %v4261
        %v4643 = vunpack.c.h.b16 %v4261
        %v4644 = vunpack.c.l.b16 %v4262
        %v4645 = vunpack.c.h.b16 %v4262
        %v4646 = vunpack.c.l.b16 %v4263
        %v4647 = vunpack.c.h.b16 %v4263
        %v4648 = vunpack.c.l.b16 %v4264
        %v4649 = vunpack.c.h.b16 %v4264
        %v4650 = vunpack.c.l.b16 %v4265
        %v4651 = vunpack.c.h.b16 %v4265
        %v4652 = vunpack.c.l.b16 %v4266
        %v4653 = vunpack.c.h.b16 %v4266
        %v4654 = vunpack.c.l.b16 %v4267
        %v4655 = vunpack.c.h.b16 %v4267
        %v4656 = vunpack.c.l.b16 %v4268
        %v4657 = vunpack.c.h.b16 %v4268
        %v4658 = vunpack.c.l.b16 %v4269
        %v4659 = vunpack.c.h.b16 %v4269
        %v4660 = vunpack.c.l.b16 %v4270
        %v4661 = vunpack.c.h.b16 %v4270
        %v4662 = vunpack.c.l.b16 %v4271
        %v4663 = vunpack.c.h.b16 %v4271
        %v4664 = vunpack.c.l.b16 %v4272
        %v4665 = vunpack.c.h.b16 %v4272
        %v4666 = vunpack.c.l.b16 %v4273
        %v4667 = vunpack.c.h.b16 %v4273
        %v4668 = vunpack.c.l.b16 %v4274
        %v4669 = vunpack.c.h.b16 %v4274
        %v4670 = vunpack.c.l.b16 %v4275
        %v4671 = vunpack.c.h.b16 %v4275
        %v4672 = vunpack.c.l.b16 %v4276
        %v4673 = vunpack.c.h.b16 %v4276
        %v4674 = vunpack.c.l.b16 %v4277
        %v4675 = vunpack.c.h.b16 %v4277
        %v4676 = vunpack.c.l.b16 %v4278
        %v4677 = vunpack.c.h.b16 %v4278
        %v4678 = vunpack.c.l.b16 %v4279
        %v4679 = vunpack.c.h.b16 %v4279
        %v4680 = vunpack.c.l.b16 %v4280
        %v4681 = vunpack.c.h.b16 %v4280
        %v4682 = vunpack.c.l.b16 %v4281
        %v4683 = vunpack.c.h.b16 %v4281
        %v4684 = vunpack.c.l.b16 %v4282
        %v4685 = vunpack.c.h.b16 %v4282
        %v4686 = vunpack.c.l.b16 %v4283
        %v4687 = vunpack.c.h.b16 %v4283
        %v4688 = vunpack.c.l.b16 %v4284
        %v4689 = vunpack.c.h.b16 %v4284
        %v4690 = vunpack.c.l.b16 %v4285
        %v4691 = vunpack.c.h.b16 %v4285
        %v4692 = vunpack.c.l.b16 %v4286
        %v4693 = vunpack.c.h.b16 %v4286
        %v4694 = vunpack.c.l.b16 %v4287
        %v4695 = vunpack.c.h.b16 %v4287
        %v4696 = vunpack.c.l.b16 %v4288
        %v4697 = vunpack.c.h.b16 %v4288
        %v4698 = vunpack.c.l.b16 %v4289
        %v4699 = vunpack.c.h.b16 %v4289
        %v4700 = vunpack.c.l.b16 %v4290
        %v4701 = vunpack.c.h.b16 %v4290
        %v4702 = vunpack.c.l.b16 %v4291
        %v4703 = vunpack.c.h.b16 %v4291
        %v4704 = vunpack.c.l.b16 %v4292
        %v4705 = vunpack.c.h.b16 %v4292
        %v4706 = vunpack.c.l.b16 %v4293
        %v4707 = vunpack.c.h.b16 %v4293
        %v4708 = vunpack.c.l.b16 %v4294
        %v4709 = vunpack.c.h.b16 %v4294
        %v4710 = vunpack.c.l.b16 %v4295
        %v4711 = vunpack.c.h.b16 %v4295
        %v4712 = vunpack.c.l.b16 %v4296
        %v4713 = vunpack.c.h.b16 %v4296
        %v4714 = vunpack.c.l.b16 %v4297
        %v4715 = vunpack.c.h.b16 %v4297
        %v4716 = vunpack.c.l.b16 %v4298
        %v4717 = vunpack.c.h.b16 %v4298
        %v4718 = vunpack.c.l.b16 %v4299
        %v4719 = vunpack.c.h.b16 %v4299
        %v4720 = vunpack.c.l.b16 %v4300
        %v4721 = vunpack.c.h.b16 %v4300
        %v4722 = vunpack.c.l.b16 %v4301
        %v4723 = vunpack.c.h.b16 %v4301
        %v4724 = vunpack.c.l.b16 %v4302
        %v4725 = vunpack.c.h.b16 %v4302
        %v4726 = vunpack.c.l.b16 %v4303
        %v4727 = vunpack.c.h.b16 %v4303
        %v4728 = vunpack.c.l.b16 %v4304
        %v4729 = vunpack.c.h.b16 %v4304
        %v4730 = vunpack.c.l.b16 %v4305
        %v4731 = vunpack.c.h.b16 %v4305
        %v4732 = vunpack.c.l.b16 %v4306
        %v4733 = vunpack.c.h.b16 %v4306
        %v4734 = vunpack.c.l.b16 %v4307
        %v4735 = vunpack.c.h.b16 %v4307
        %v4736 = vunpack.c.l.b16 %v4308
        %v4737 = vunpack.c.h.b16 %v4308
        %v4738 = vunpack.c.l.b16 %v4309
        %v4739 = vunpack.c.h.b16 %v4309
        %v4740 = vunpack.c.l.b16 %v4310
        %v4741 = vunpack.c.h.b16 %v4310
        %v4742 = vunpack.c.l.b16 %v4311
        %v4743 = vunpack.c.h.b16 %v4311
        %v4744 = vunpack.c.l.b16 %v4312
        %v4745 = vunpack.c.h.b16 %v4312
        %v4746 = vunpack.c.l.b16 %v4313
        %v4747 = vunpack.c.h.b16 %v4313
        %v4748 = vunpack.c.l.b16 %v4314
        %v4749 = vunpack.c.h.b16 %v4314
        %v4750 = vunpack.c.l.b16 %v4315
        %v4751 = vunpack.c.h.b16 %v4315
        %v4752 = vunpack.c.l.b16 %v4316
        %v4753 = vunpack.c.h.b16 %v4316
        %v4754 = vunpack.c.l.b16 %v4317
        %v4755 = vunpack.c.h.b16 %v4317
        %v4756 = vunpack.c.l.b16 %v4318
        %v4757 = vunpack.c.h.b16 %v4318
        %v4758 = vunpack.c.l.b16 %v4319
        %v4759 = vunpack.c.h.b16 %v4319
        %v4760 = vunpack.c.l.b16 %v4320
        %v4761 = vunpack.c.h.b16 %v4320
        %v4762 = vunpack.c.l.b16 %v4321
        %v4763 = vunpack.c.h.b16 %v4321
        %v4764 = vunpack.c.l.b16 %v4322
        %v4765 = vunpack.c.h.b16 %v4322
        %v4766 = vunpack.c.l.b16 %v4323
        %v4767 = vunpack.c.h.b16 %v4323
        %v4768 = vunpack.c.l.b16 %v4324
        %v4769 = vunpack.c.h.b16 %v4324
        %v4770 = vunpack.c.l.b16 %v4325
        %v4771 = vunpack.c.h.b16 %v4325
        %v4772 = vunpack.c.l.b16 %v4326
        %v4773 = vunpack.c.h.b16 %v4326
        %v4774 = vunpack.c.l.b16 %v4327
        %v4775 = vunpack.c.h.b16 %v4327
        %v4776 = vunpack.c.l.b16 %v4328
        %v4777 = vunpack.c.h.b16 %v4328
        %v4778 = vunpack.c.l.b16 %v4329
        %v4779 = vunpack.c.h.b16 %v4329
        %v4780 = vunpack.c.l.b16 %v4330
        %v4781 = vunpack.c.h.b16 %v4330
        %v4782 = vunpack.c.l.b16 %v4331
        %v4783 = vunpack.c.h.b16 %v4331
        %v4784 = vunpack.c.l.b16 %v4332
        %v4785 = vunpack.c.h.b16 %v4332
        %v4786 = vunpack.c.l.b16 %v4333
        %v4787 = vunpack.c.h.b16 %v4333
        %v4788 = vunpack.c.l.b16 %v4334
        %v4789 = vunpack.c.h.b16 %v4334
        %v4790 = vunpack.c.l.b16 %v4335
        %v4791 = vunpack.c.h.b16 %v4335
        %v4792 = vunpack.c.l.b16 %v4336
        %v4793 = vunpack.c.h.b16 %v4336
        %v4794 = vunpack.c.l.b16 %v4337
        %v4795 = vunpack.c.h.b16 %v4337
        %v4796 = vunpack.c.l.b16 %v4338
        %v4797 = vunpack.c.h.b16 %v4338
        %v4798 = vunpack.c.l.b16 %v4339
        %v4799 = vunpack.c.h.b16 %v4339
        %v4800 = vunpack.c.l.b16 %v4340
        %v4801 = vunpack.c.h.b16 %v4340
        %v4802 = vunpack.c.l.b16 %v4341
        %v4803 = vunpack.c.h.b16 %v4341
        %v4804 = vunpack.c.l.b16 %v4342
        %v4805 = vunpack.c.h.b16 %v4342
        %v4806 = vunpack.c.l.b16 %v4343
        %v4807 = vunpack.c.h.b16 %v4343
        %v4808 = vpack.c.b16 %v4556, %v4552
        %v4809 = vpack.c.b16 %v4557, %v4553
        %v4810 = vpack.c.b16 %v4558, %v4554
        %v4811 = vpack.c.b16 %v4559, %v4555
        %v4812 = vpack.c.b16 %v4564, %v4560
        %v4813 = vpack.c.b16 %v4565, %v4561
        %v4814 = vpack.c.b16 %v4566, %v4562
        %v4815 = vpack.c.b16 %v4567, %v4563
        %v4816 = vpack.c.b16 %v4572, %v4568
        %v4817 = vpack.c.b16 %v4573, %v4569
        %v4818 = vpack.c.b16 %v4574, %v4570
        %v4819 = vpack.c.b16 %v4575, %v4571
        %v4820 = vpack.c.b16 %v4580, %v4576
        %v4821 = vpack.c.b16 %v4581, %v4577
        %v4822 = vpack.c.b16 %v4582, %v4578
        %v4823 = vpack.c.b16 %v4583, %v4579
        %v4824 = vpack.c.b16 %v4588, %v4584
        %v4825 = vpack.c.b16 %v4589, %v4585
        %v4826 = vpack.c.b16 %v4590, %v4586
        %v4827 = vpack.c.b16 %v4591, %v4587
        %v4828 = vpack.c.b16 %v4596, %v4592
        %v4829 = vpack.c.b16 %v4597, %v4593
        %v4830 = vpack.c.b16 %v4598, %v4594
        %v4831 = vpack.c.b16 %v4599, %v4595
        %v4832 = vpack.c.b16 %v4604, %v4600
        %v4833 = vpack.c.b16 %v4605, %v4601
        %v4834 = vpack.c.b16 %v4606, %v4602
        %v4835 = vpack.c.b16 %v4607, %v4603
        %v4836 = vpack.c.b16 %v4612, %v4608
        %v4837 = vpack.c.b16 %v4613, %v4609
        %v4838 = vpack.c.b16 %v4614, %v4610
        %v4839 = vpack.c.b16 %v4615, %v4611
        %v4840 = vpack.c.b16 %v4620, %v4616
        %v4841 = vpack.c.b16 %v4621, %v4617
        %v4842 = vpack.c.b16 %v4622, %v4618
        %v4843 = vpack.c.b16 %v4623, %v4619
        %v4844 = vpack.c.b16 %v4628, %v4624
        %v4845 = vpack.c.b16 %v4629, %v4625
        %v4846 = vpack.c.b16 %v4630, %v4626
        %v4847 = vpack.c.b16 %v4631, %v4627
        %v4848 = vpack.c.b16 %v4636, %v4632
        %v4849 = vpack.c.b16 %v4637, %v4633
        %v4850 = vpack.c.b16 %v4638, %v4634
        %v4851 = vpack.c.b16 %v4639, %v4635
        %v4852 = vpack.c.b16 %v4644, %v4640
        %v4853 = vpack.c.b16 %v4645, %v4641
        %v4854 = vpack.c.b16 %v4646, %v4642
        %v4855 = vpack.c.b16 %v4647, %v4643
        %v4856 = vpack.c.b16 %v4652, %v4648
        %v4857 = vpack.c.b16 %v4653, %v4649
        %v4858 = vpack.c.b16 %v4654, %v4650
        %v4859 = vpack.c.b16 %v4655, %v4651
        %v4860 = vpack.c.b16 %v4660, %v4656
        %v4861 = vpack.c.b16 %v4661, %v4657
        %v4862 = vpack.c.b16 %v4662, %v4658
        %v4863 = vpack.c.b16 %v4663, %v4659
        %v4864 = vpack.c.b16 %v4668, %v4664
        %v4865 = vpack.c.b16 %v4669, %v4665
        %v4866 = vpack.c.b16 %v4670, %v4666
        %v4867 = vpack.c.b16 %v4671, %v4667
        %v4868 = vpack.c.b16 %v4676, %v4672
        %v4869 = vpack.c.b16 %v4677, %v4673
        %v4870 = vpack.c.b16 %v4678, %v4674
        %v4871 = vpack.c.b16 %v4679, %v4675
        %v4872 = vpack.c.b16 %v4684, %v4680
        %v4873 = vpack.c.b16 %v4685, %v4681
        %v4874 = vpack.c.b16 %v4686, %v4682
        %v4875 = vpack.c.b16 %v4687, %v4683
        %v4876 = vpack.c.b16 %v4692, %v4688
        %v4877 = vpack.c.b16 %v4693, %v4689
        %v4878 = vpack.c.b16 %v4694, %v4690
        %v4879 = vpack.c.b16 %v4695, %v4691
        %v4880 = vpack.c.b16 %v4700, %v4696
        %v4881 = vpack.c.b16 %v4701, %v4697
        %v4882 = vpack.c.b16 %v4702, %v4698
        %v4883 = vpack.c.b16 %v4703, %v4699
        %v4884 = vpack.c.b16 %v4708, %v4704
        %v4885 = vpack.c.b16 %v4709, %v4705
        %v4886 = vpack.c.b16 %v4710, %v4706
        %v4887 = vpack.c.b16 %v4711, %v4707
        %v4888 = vpack.c.b16 %v4716, %v4712
        %v4889 = vpack.c.b16 %v4717, %v4713
        %v4890 = vpack.c.b16 %v4718, %v4714
        %v4891 = vpack.c.b16 %v4719, %v4715
        %v4892 = vpack.c.b16 %v4724, %v4720
        %v4893 = vpack.c.b16 %v4725, %v4721
        %v4894 = vpack.c.b16 %v4726, %v4722
        %v4895 = vpack.c.b16 %v4727, %v4723
        %v4896 = vpack.c.b16 %v4732, %v4728
        %v4897 = vpack.c.b16 %v4733, %v4729
        %v4898 = vpack.c.b16 %v4734, %v4730
        %v4899 = vpack.c.b16 %v4735, %v4731
        %v4900 = vpack.c.b16 %v4740, %v4736
        %v4901 = vpack.c.b16 %v4741, %v4737
        %v4902 = vpack.c.b16 %v4742, %v4738
        %v4903 = vpack.c.b16 %v4743, %v4739
        %v4904 = vpack.c.b16 %v4748, %v4744
        %v4905 = vpack.c.b16 %v4749, %v4745
        %v4906 = vpack.c.b16 %v4750, %v4746
        %v4907 = vpack.c.b16 %v4751, %v4747
        %v4908 = vpack.c.b16 %v4756, %v4752
        %v4909 = vpack.c.b16 %v4757, %v4753
        %v4910 = vpack.c.b16 %v4758, %v4754
        %v4911 = vpack.c.b16 %v4759, %v4755
        %v4912 = vpack.c.b16 %v4764, %v4760
        %v4913 = vpack.c.b16 %v4765, %v4761
        %v4914 = vpack.c.b16 %v4766, %v4762
        %v4915 = vpack.c.b16 %v4767, %v4763
        %v4916 = vpack.c.b16 %v4772, %v4768
        %v4917 = vpack.c.b16 %v4773, %v4769
        %v4918 = vpack.c.b16 %v4774, %v4770
        %v4919 = vpack.c.b16 %v4775, %v4771
        %v4920 = vpack.c.b16 %v4780, %v4776
        %v4921 = vpack.c.b16 %v4781, %v4777
        %v4922 = vpack.c.b16 %v4782, %v4778
        %v4923 = vpack.c.b16 %v4783, %v4779
        %v4924 = vpack.c.b16 %v4788, %v4784
        %v4925 = vpack.c.b16 %v4789, %v4785
        %v4926 = vpack.c.b16 %v4790, %v4786
        %v4927 = vpack.c.b16 %v4791, %v4787
        %v4928 = vpack.c.b16 %v4796, %v4792
        %v4929 = vpack.c.b16 %v4797, %v4793
        %v4930 = vpack.c.b16 %v4798, %v4794
        %v4931 = vpack.c.b16 %v4799, %v4795
        %v4932 = vpack.c.b16 %v4804, %v4800
        %v4933 = vpack.c.b16 %v4805, %v4801
        %v4934 = vpack.c.b16 %v4806, %v4802
        %v4935 = vpack.c.b16 %v4807, %v4803
        %5064 = vmatprep.subr.bf16.mxu0 %v4809
        %5065 = vmatpush1.bf16.msra.mxu0 %v4808
        %5066 = vmatprep.subr.bf16.mxu0 %v4813
        %5067 = vmatpush1.bf16.msra.mxu0 %v4812
        %5068 = vmatprep.subr.bf16.mxu0 %v4817
        %5069 = vmatpush1.bf16.msra.mxu0 %v4816
        %5070 = vmatprep.subr.bf16.mxu0 %v4821
        %5071 = vmatpush1.bf16.msra.mxu0 %v4820
        %5072 = vmatprep.subr.bf16.mxu0 %v4825
        %5073 = vmatpush1.bf16.msra.mxu0 %v4824
        %5074 = vmatprep.subr.bf16.mxu0 %v4829
        %5075 = vmatpush1.bf16.msra.mxu0 %v4828
        %5076 = vmatprep.subr.bf16.mxu0 %v4833
        %5077 = vmatpush1.bf16.msra.mxu0 %v4832
        %5078 = vmatprep.subr.bf16.mxu0 %v4837
        %5079 = vmatpush1.bf16.msra.mxu0 %v4836
        %5080 = vmatprep.subr.bf16.mxu0 %v4841
        %5081 = vmatpush1.bf16.msra.mxu0 %v4840
        %5082 = vmatprep.subr.bf16.mxu0 %v4845
        %5083 = vmatpush1.bf16.msra.mxu0 %v4844
        %5084 = vmatprep.subr.bf16.mxu0 %v4849
        %5085 = vmatpush1.bf16.msra.mxu0 %v4848
        %5086 = vmatprep.subr.bf16.mxu0 %v4853
        %5087 = vmatpush1.bf16.msra.mxu0 %v4852
        %5088 = vmatprep.subr.bf16.mxu0 %v4857
        %5089 = vmatpush1.bf16.msra.mxu0 %v4856
        %5090 = vmatprep.subr.bf16.mxu0 %v4861
        %5091 = vmatpush1.bf16.msra.mxu0 %v4860
        %5092 = vmatprep.subr.bf16.mxu0 %v4865
        %5093 = vmatpush1.bf16.msra.mxu0 %v4864
        %5094 = vmatprep.subr.bf16.mxu0 %v4869
        %5095 = vmatpush1.bf16.msra.mxu0 %v4868
        %5096 = vmatprep.mubr.bf16.mxu0 %v4393
        %5097 = vmatmul.mubr.bf16.gmra.mrb[0].mxu0 %v4392
        %v5098 = vpop.f32.mrb[0].mxu0
        %v5099 = vadd.f32 0.0, %v5098
        %v5100 = vpop.f32.mrb[0].mxu0
        %v5101 = vadd.f32 0.0, %v5100
        %v5102 = vpop.f32.mrb[0].mxu0
        %v5103 = vadd.f32 0.0, %v5102
        %v5104 = vpop.f32.mrb[0].mxu0
        %v5105 = vadd.f32 0.0, %v5104
        %5106 = vmatprep.mubr.bf16.mxu0 %v4397
        %5107 = vmatmul.mubr.bf16.gmra.mrb[0].mxu0 %v4396
        %v5108 = vpop.f32.mrb[0].mxu0
        %v5109 = vadd.f32 0.0, %v5108
        %v5110 = vpop.f32.mrb[0].mxu0
        %v5111 = vadd.f32 0.0, %v5110
        %v5112 = vpop.f32.mrb[0].mxu0
        %v5113 = vadd.f32 0.0, %v5112
        %v5114 = vpop.f32.mrb[0].mxu0
        %v5115 = vadd.f32 0.0, %v5114
        %5116 = vmatprep.mubr.bf16.mxu0 %v4401
        %5117 = vmatmul.mubr.bf16.gmra.mrb[0].mxu0 %v4400
        %v5118 = vpop.f32.mrb[0].mxu0
        %v5119 = vadd.f32 0.0, %v5118
        %v5120 = vpop.f32.mrb[0].mxu0
        %v5121 = vadd.f32 0.0, %v5120
        %v5122 = vpop.f32.mrb[0].mxu0
        %v5123 = vadd.f32 0.0, %v5122
        %v5124 = vpop.f32.mrb[0].mxu0
        %v5125 = vadd.f32 0.0, %v5124
        %5126 = vmatprep.mubr.bf16.mxu0 %v4405
        %5127 = vmatmul.mubr.bf16.gmra.mrb[0].mxu0 %v4404
        %v5128 = vpop.f32.mrb[0].mxu0
        %v5129 = vadd.f32 0.0, %v5128
        %v5130 = vpop.f32.mrb[0].mxu0
        %v5131 = vadd.f32 0.0, %v5130
        %v5132 = vpop.f32.mrb[0].mxu0
        %v5133 = vadd.f32 0.0, %v5132
        %v5134 = vpop.f32.mrb[0].mxu0
        %v5135 = vadd.f32 0.0, %v5134
        %5136 = vdwg.mxu0
        %5137 = vmatprep.subr.bf16.mxu0 %v4873
        %5138 = vmatpush1.bf16.msra.mxu0 %v4872
        %5139 = vmatprep.subr.bf16.mxu0 %v4877
        %5140 = vmatpush1.bf16.msra.mxu0 %v4876
        %5141 = vmatprep.subr.bf16.mxu0 %v4881
        %5142 = vmatpush1.bf16.msra.mxu0 %v4880
        %5143 = vmatprep.subr.bf16.mxu0 %v4885
        %5144 = vmatpush1.bf16.msra.mxu0 %v4884
        %5145 = vmatprep.subr.bf16.mxu0 %v4889
        %5146 = vmatpush1.bf16.msra.mxu0 %v4888
        %5147 = vmatprep.subr.bf16.mxu0 %v4893
        %5148 = vmatpush1.bf16.msra.mxu0 %v4892
        %5149 = vmatprep.subr.bf16.mxu0 %v4897
        %5150 = vmatpush1.bf16.msra.mxu0 %v4896
        %5151 = vmatprep.subr.bf16.mxu0 %v4901
        %5152 = vmatpush1.bf16.msra.mxu0 %v4900
        %5153 = vmatprep.subr.bf16.mxu0 %v4905
        %5154 = vmatpush1.bf16.msra.mxu0 %v4904
        %5155 = vmatprep.subr.bf16.mxu0 %v4909
        %5156 = vmatpush1.bf16.msra.mxu0 %v4908
        %5157 = vmatprep.subr.bf16.mxu0 %v4913
        %5158 = vmatpush1.bf16.msra.mxu0 %v4912
        %5159 = vmatprep.subr.bf16.mxu0 %v4917
        %5160 = vmatpush1.bf16.msra.mxu0 %v4916
        %5161 = vmatprep.subr.bf16.mxu0 %v4921
        %5162 = vmatpush1.bf16.msra.mxu0 %v4920
        %5163 = vmatprep.subr.bf16.mxu0 %v4925
        %5164 = vmatpush1.bf16.msra.mxu0 %v4924
        %5165 = vmatprep.subr.bf16.mxu0 %v4929
        %5166 = vmatpush1.bf16.msra.mxu0 %v4928
        %5167 = vmatprep.subr.bf16.mxu0 %v4933
        %5168 = vmatpush1.bf16.msra.mxu0 %v4932
        %5169 = vmatprep.mubr.bf16.mxu0 %v4395
        %5170 = vmatmul.mubr.bf16.gmra.mrb[0].mxu0 %v4394
        %v5171 = vpop.f32.mrb[0].mxu0
        %v5172 = vadd.f32 %v5099, %v5171
        %v5173 = vpop.f32.mrb[0].mxu0
        %v5174 = vadd.f32 %v5101, %v5173
        %v5175 = vpop.f32.mrb[0].mxu0
        %v5176 = vadd.f32 %v5103, %v5175
        %v5177 = vpop.f32.mrb[0].mxu0
        %v5178 = vadd.f32 %v5105, %v5177
        %5179 = vmatprep.mubr.bf16.mxu0 %v4399
        %5180 = vmatmul.mubr.bf16.gmra.mrb[0].mxu0 %v4398
        %v5181 = vpop.f32.mrb[0].mxu0
        %v5182 = vadd.f32 %v5109, %v5181
        %v5183 = vpop.f32.mrb[0].mxu0
        %v5184 = vadd.f32 %v5111, %v5183
        %v5185 = vpop.f32.mrb[0].mxu0
        %v5186 = vadd.f32 %v5113, %v5185
        %v5187 = vpop.f32.mrb[0].mxu0
        %v5188 = vadd.f32 %v5115, %v5187
        %5189 = vmatprep.mubr.bf16.mxu0 %v4403
        %5190 = vmatmul.mubr.bf16.gmra.mrb[0].mxu0 %v4402
        %v5191 = vpop.f32.mrb[0].mxu0
        %v5192 = vadd.f32 %v5119, %v5191
        %v5193 = vpop.f32.mrb[0].mxu0
        %v5194 = vadd.f32 %v5121, %v5193
        %v5195 = vpop.f32.mrb[0].mxu0
        %v5196 = vadd.f32 %v5123, %v5195
        %v5197 = vpop.f32.mrb[0].mxu0
        %v5198 = vadd.f32 %v5125, %v5197
        %5199 = vmatprep.mubr.bf16.mxu0 %v4407
        %5200 = vmatmul.mubr.bf16.gmra.mrb[0].mxu0 %v4406
        %v5201 = vpop.f32.mrb[0].mxu0
        %v5202 = vadd.f32 %v5129, %v5201
        %v5203 = vpop.f32.mrb[0].mxu0
        %v5204 = vadd.f32 %v5131, %v5203
        %v5205 = vpop.f32.mrb[0].mxu0
        %v5206 = vadd.f32 %v5133, %v5205
        %v5207 = vpop.f32.mrb[0].mxu0
        %v5208 = vadd.f32 %v5135, %v5207
        %5209 = vdwg.mxu0
        %5210 = vmatprep.subr.bf16.mxu0 %v4811
        %5211 = vmatpush1.bf16.msra.mxu0 %v4810
        %5212 = vmatprep.subr.bf16.mxu0 %v4815
        %5213 = vmatpush1.bf16.msra.mxu0 %v4814
        %5214 = vmatprep.subr.bf16.mxu0 %v4819
        %5215 = vmatpush1.bf16.msra.mxu0 %v4818
        %5216 = vmatprep.subr.bf16.mxu0 %v4823
        %5217 = vmatpush1.bf16.msra.mxu0 %v4822
        %5218 = vmatprep.subr.bf16.mxu0 %v4827
        %5219 = vmatpush1.bf16.msra.mxu0 %v4826
        %5220 = vmatprep.subr.bf16.mxu0 %v4831
        %5221 = vmatpush1.bf16.msra.mxu0 %v4830
        %5222 = vmatprep.subr.bf16.mxu0 %v4835
        %5223 = vmatpush1.bf16.msra.mxu0 %v4834
        %5224 = vmatprep.subr.bf16.mxu0 %v4839
        %5225 = vmatpush1.bf16.msra.mxu0 %v4838
        %5226 = vmatprep.subr.bf16.mxu0 %v4843
        %5227 = vmatpush1.bf16.msra.mxu0 %v4842
        %5228 = vmatprep.subr.bf16.mxu0 %v4847
        %5229 = vmatpush1.bf16.msra.mxu0 %v4846
        %5230 = vmatprep.subr.bf16.mxu0 %v4851
        %5231 = vmatpush1.bf16.msra.mxu0 %v4850
        %5232 = vmatprep.subr.bf16.mxu0 %v4855
        %5233 = vmatpush1.bf16.msra.mxu0 %v4854
        %5234 = vmatprep.subr.bf16.mxu0 %v4859
        %5235 = vmatpush1.bf16.msra.mxu0 %v4858
        %5236 = vmatprep.subr.bf16.mxu0 %v4863
        %5237 = vmatpush1.bf16.msra.mxu0 %v4862
        %5238 = vmatprep.subr.bf16.mxu0 %v4867
        %5239 = vmatpush1.bf16.msra.mxu0 %v4866
        %5240 = vmatprep.subr.bf16.mxu0 %v4871
        %5241 = vmatpush1.bf16.msra.mxu0 %v4870
        %5242 = vmatprep.mubr.bf16.mxu0 %v4393
        %5243 = vmatmul.mubr.bf16.gmra.mrb[0].mxu0 %v4392
        %v5244 = vpop.f32.mrb[0].mxu0
        %v5245 = vadd.f32 0.0, %v5244
        %v5246 = vpop.f32.mrb[0].mxu0
        %v5247 = vadd.f32 0.0, %v5246
        %v5248 = vpop.f32.mrb[0].mxu0
        %v5249 = vadd.f32 0.0, %v5248
        %v5250 = vpop.f32.mrb[0].mxu0
        %v5251 = vadd.f32 0.0, %v5250
        %5252 = vmatprep.mubr.bf16.mxu0 %v4397
        %5253 = vmatmul.mubr.bf16.gmra.mrb[0].mxu0 %v4396
        %v5254 = vpop.f32.mrb[0].mxu0
        %v5255 = vadd.f32 0.0, %v5254
        %v5256 = vpop.f32.mrb[0].mxu0
        %v5257 = vadd.f32 0.0, %v5256
        %v5258 = vpop.f32.mrb[0].mxu0
        %v5259 = vadd.f32 0.0, %v5258
        %v5260 = vpop.f32.mrb[0].mxu0
        %v5261 = vadd.f32 0.0, %v5260
        %5262 = vmatprep.mubr.bf16.mxu0 %v4401
        %5263 = vmatmul.mubr.bf16.gmra.mrb[0].mxu0 %v4400
        %v5264 = vpop.f32.mrb[0].mxu0
        %v5265 = vadd.f32 0.0, %v5264
        %v5266 = vpop.f32.mrb[0].mxu0
        %v5267 = vadd.f32 0.0, %v5266
        %v5268 = vpop.f32.mrb[0].mxu0
        %v5269 = vadd.f32 0.0, %v5268
        %v5270 = vpop.f32.mrb[0].mxu0
        %v5271 = vadd.f32 0.0, %v5270
        %5272 = vmatprep.mubr.bf16.mxu0 %v4405
        %5273 = vmatmul.mubr.bf16.gmra.mrb[0].mxu0 %v4404
        %v5274 = vpop.f32.mrb[0].mxu0
        %v5275 = vadd.f32 0.0, %v5274
        %v5276 = vpop.f32.mrb[0].mxu0
        %v5277 = vadd.f32 0.0, %v5276
        %v5278 = vpop.f32.mrb[0].mxu0
        %v5279 = vadd.f32 0.0, %v5278
        %v5280 = vpop.f32.mrb[0].mxu0
        %v5281 = vadd.f32 0.0, %v5280
        %5282 = vdwg.mxu0
        %5283 = vmatprep.subr.bf16.mxu0 %v4875
        %5284 = vmatpush1.bf16.msra.mxu0 %v4874
        %5285 = vmatprep.subr.bf16.mxu0 %v4879
        %5286 = vmatpush1.bf16.msra.mxu0 %v4878
        %5287 = vmatprep.subr.bf16.mxu0 %v4883
        %5288 = vmatpush1.bf16.msra.mxu0 %v4882
        %5289 = vmatprep.subr.bf16.mxu0 %v4887
        %5290 = vmatpush1.bf16.msra.mxu0 %v4886
        %5291 = vmatprep.subr.bf16.mxu0 %v4891
        %5292 = vmatpush1.bf16.msra.mxu0 %v4890
        %5293 = vmatprep.subr.bf16.mxu0 %v4895
        %5294 = vmatpush1.bf16.msra.mxu0 %v4894
        %5295 = vmatprep.subr.bf16.mxu0 %v4899
        %5296 = vmatpush1.bf16.msra.mxu0 %v4898
        %5297 = vmatprep.subr.bf16.mxu0 %v4903
        %5298 = vmatpush1.bf16.msra.mxu0 %v4902
        %5299 = vmatprep.subr.bf16.mxu0 %v4907
        %5300 = vmatpush1.bf16.msra.mxu0 %v4906
        %5301 = vmatprep.subr.bf16.mxu0 %v4911
        %5302 = vmatpush1.bf16.msra.mxu0 %v4910
        %5303 = vmatprep.subr.bf16.mxu0 %v4915
        %5304 = vmatpush1.bf16.msra.mxu0 %v4914
        %5305 = vmatprep.subr.bf16.mxu0 %v4919
        %5306 = vmatpush1.bf16.msra.mxu0 %v4918
        %5307 = vmatprep.subr.bf16.mxu0 %v4923
        %5308 = vmatpush1.bf16.msra.mxu0 %v4922
        %5309 = vmatprep.subr.bf16.mxu0 %v4927
        %5310 = vmatpush1.bf16.msra.mxu0 %v4926
        %5311 = vmatprep.subr.bf16.mxu0 %v4931
        %5312 = vmatpush1.bf16.msra.mxu0 %v4930
        %5313 = vmatprep.subr.bf16.mxu0 %v4935
        %5314 = vmatpush1.bf16.msra.mxu0 %v4934
        %5315 = vmatprep.mubr.bf16.mxu0 %v4395
        %5316 = vmatmul.mubr.bf16.gmra.mrb[0].mxu0 %v4394
        %v5317 = vpop.f32.mrb[0].mxu0
        %v5318 = vadd.f32 %v5245, %v5317
        %v5319 = vpop.f32.mrb[0].mxu0
        %v5320 = vadd.f32 %v5247, %v5319
        %v5321 = vpop.f32.mrb[0].mxu0
        %v5322 = vadd.f32 %v5249, %v5321
        %v5323 = vpop.f32.mrb[0].mxu0
        %v5324 = vadd.f32 %v5251, %v5323
        %5325 = vmatprep.mubr.bf16.mxu0 %v4399
        %5326 = vmatmul.mubr.bf16.gmra.mrb[0].mxu0 %v4398
        %v5327 = vpop.f32.mrb[0].mxu0
        %v5328 = vadd.f32 %v5255, %v5327
        %v5329 = vpop.f32.mrb[0].mxu0
        %v5330 = vadd.f32 %v5257, %v5329
        %v5331 = vpop.f32.mrb[0].mxu0
        %v5332 = vadd.f32 %v5259, %v5331
        %v5333 = vpop.f32.mrb[0].mxu0
        %v5334 = vadd.f32 %v5261, %v5333
        %5335 = vmatprep.mubr.bf16.mxu0 %v4403
        %5336 = vmatmul.mubr.bf16.gmra.mrb[0].mxu0 %v4402
        %v5337 = vpop.f32.mrb[0].mxu0
        %v5338 = vadd.f32 %v5265, %v5337
        %v5339 = vpop.f32.mrb[0].mxu0
        %v5340 = vadd.f32 %v5267, %v5339
        %v5341 = vpop.f32.mrb[0].mxu0
        %v5342 = vadd.f32 %v5269, %v5341
        %v5343 = vpop.f32.mrb[0].mxu0
        %v5344 = vadd.f32 %v5271, %v5343
        %5345 = vmatprep.mubr.bf16.mxu0 %v4407
        %5346 = vmatmul.mubr.bf16.gmra.mrb[0].mxu0 %v4406
        %v5347 = vpop.f32.mrb[0].mxu0
        %v5348 = vadd.f32 %v5275, %v5347
        %v5349 = vpop.f32.mrb[0].mxu0
        %v5350 = vadd.f32 %v5277, %v5349
        %v5351 = vpop.f32.mrb[0].mxu0
        %v5352 = vadd.f32 %v5279, %v5351
        %v5353 = vpop.f32.mrb[0].mxu0
        %v5354 = vadd.f32 %v5281, %v5353
        %5355 = vdwg.mxu0
        %v5356 = vadd.f32 %v4164, %v5172
        %v5357 = vadd.f32 %v4165, %v5174
        %v5358 = vadd.f32 %v4166, %v5318
        %v5359 = vadd.f32 %v4167, %v5320
        %v5360 = vadd.f32 %v4168, %v5176
        %v5361 = vadd.f32 %v4169, %v5178
        %v5362 = vadd.f32 %v4170, %v5322
        %v5363 = vadd.f32 %v4171, %v5324
        %v5364 = vadd.f32 %v4172, %v5182
        %v5365 = vadd.f32 %v4173, %v5184
        %v5366 = vadd.f32 %v4174, %v5328
        %v5367 = vadd.f32 %v4175, %v5330
        %v5368 = vadd.f32 %v4176, %v5186
        %v5369 = vadd.f32 %v4177, %v5188
        %v5370 = vadd.f32 %v4178, %v5332
        %v5371 = vadd.f32 %v4179, %v5334
        %v5372 = vadd.f32 %v4180, %v5192
        %v5373 = vadd.f32 %v4181, %v5194
        %v5374 = vadd.f32 %v4182, %v5338
        %v5375 = vadd.f32 %v4183, %v5340
        %v5376 = vadd.f32 %v4184, %v5196
        %v5377 = vadd.f32 %v4185, %v5198
        %v5378 = vadd.f32 %v4186, %v5342
        %v5379 = vadd.f32 %v4187, %v5344
        %v5380 = vadd.f32 %v4188, %v5202
        %v5381 = vadd.f32 %v4189, %v5204
        %v5382 = vadd.f32 %v4190, %v5348
        %v5383 = vadd.f32 %v4191, %v5350
        %v5384 = vadd.f32 %v4192, %v5206
        %v5385 = vadd.f32 %v4193, %v5208
        %v5386 = vadd.f32 %v4194, %v5352
        %v5387 = vadd.f32 %v4195, %v5354
        %v5388 = vld [vmem:[%s4196] sm:$0xff]
        %v5389 = vld [vmem:[%s4196 + $0x8] sm:$0xff]
        %v5390 = vld [vmem:[%s4196 + $0x10] sm:$0x11]
        %v5391 = vld [vmem:[%s4196 + $0x18] sm:$0x11]
        %v5392 = vld [vmem:[%s4196 + $0x20] sm:$0xff]
        %v5393 = vld [vmem:[%s4196 + $0x28] sm:$0xff]
        %v5394 = vld [vmem:[%s4196 + $0x30] sm:$0x11]
        %v5395 = vld [vmem:[%s4196 + $0x38] sm:$0x11]
        %v5396 = vld [vmem:[%s4196 + $0x40] sm:$0xff]
        %v5397 = vld [vmem:[%s4196 + $0x48] sm:$0xff]
        %v5398 = vld [vmem:[%s4196 + $0x50] sm:$0x11]
        %v5399 = vld [vmem:[%s4196 + $0x58] sm:$0x11]
        %v5400 = vld [vmem:[%s4196 + $0x60] sm:$0xff]
        %v5401 = vld [vmem:[%s4196 + $0x68] sm:$0xff]
        %v5402 = vld [vmem:[%s4196 + $0x70] sm:$0x11]
        %v5403 = vld [vmem:[%s4196 + $0x78] sm:$0x11]
        %v5404 = vld [vmem:[%s4196 + $0x80] sm:$0xff]
        %v5405 = vld [vmem:[%s4196 + $0x88] sm:$0xff]
        %v5406 = vld [vmem:[%s4196 + $0x90] sm:$0x11]
        %v5407 = vld [vmem:[%s4196 + $0x98] sm:$0x11]
        %v5408 = vld [vmem:[%s4196 + $0xa0] sm:$0xff]
        %v5409 = vld [vmem:[%s4196 + $0xa8] sm:$0xff]
        %v5410 = vld [vmem:[%s4196 + $0xb0] sm:$0x11]
        %v5411 = vld [vmem:[%s4196 + $0xb8] sm:$0x11]
        %v5412 = vld [vmem:[%s4196 + $0xc0] sm:$0xff]
        %v5413 = vld [vmem:[%s4196 + $0xc8] sm:$0xff]
        %v5414 = vld [vmem:[%s4196 + $0xd0] sm:$0x11]
        %v5415 = vld [vmem:[%s4196 + $0xd8] sm:$0x11]
        %v5416 = vld [vmem:[%s4196 + $0xe0] sm:$0xff]
        %v5417 = vld [vmem:[%s4196 + $0xe8] sm:$0xff]
        %v5418 = vld [vmem:[%s4196 + $0xf0] sm:$0x11]
        %v5419 = vld [vmem:[%s4196 + $0xf8] sm:$0x11]
        %v5421 = vshrl.u32 %v5388, 16
        %v5423 = vrot.slane %v5421, 4
        %v5424 = vshll.u32 %v5388, 16
        %v5426 = vrot.slane %v5424, 5
        %v5427 = vor.u32 %v5423, %v5426
        %v5428 = vrot.slane %v5427, 4
        %v5430 = vshll.u32 %v5390, 16
        %v5432 = vrot.slane %v5430, 5
        %v5433 = vsel %vm1538, %v5428, %v5432
        %v5435 = vshrl.u32 %v5389, 16
        %v5437 = vrot.slane %v5435, 4
        %v5438 = vshll.u32 %v5389, 16
        %v5440 = vrot.slane %v5438, 5
        %v5441 = vor.u32 %v5437, %v5440
        %v5442 = vrot.slane %v5441, 4
        %v5444 = vshll.u32 %v5391, 16
        %v5446 = vrot.slane %v5444, 5
        %v5447 = vsel %vm1538, %v5442, %v5446
        %v5449 = vshrl.u32 %v5392, 16
        %v5451 = vrot.slane %v5449, 4
        %v5452 = vshll.u32 %v5392, 16
        %v5454 = vrot.slane %v5452, 5
        %v5455 = vor.u32 %v5451, %v5454
        %v5456 = vrot.slane %v5455, 4
        %v5458 = vshll.u32 %v5394, 16
        %v5460 = vrot.slane %v5458, 5
        %v5461 = vsel %vm1538, %v5456, %v5460
        %v5463 = vshrl.u32 %v5393, 16
        %v5465 = vrot.slane %v5463, 4
        %v5466 = vshll.u32 %v5393, 16
        %v5468 = vrot.slane %v5466, 5
        %v5469 = vor.u32 %v5465, %v5468
        %v5470 = vrot.slane %v5469, 4
        %v5472 = vshll.u32 %v5395, 16
        %v5474 = vrot.slane %v5472, 5
        %v5475 = vsel %vm1538, %v5470, %v5474
        %v5477 = vshrl.u32 %v5396, 16
        %v5479 = vrot.slane %v5477, 4
        %v5480 = vshll.u32 %v5396, 16
        %v5482 = vrot.slane %v5480, 5
        %v5483 = vor.u32 %v5479, %v5482
        %v5484 = vrot.slane %v5483, 4
        %v5486 = vshll.u32 %v5398, 16
        %v5488 = vrot.slane %v5486, 5
        %v5489 = vsel %vm1538, %v5484, %v5488
        %v5491 = vshrl.u32 %v5397, 16
        %v5493 = vrot.slane %v5491, 4
        %v5494 = vshll.u32 %v5397, 16
        %v5496 = vrot.slane %v5494, 5
        %v5497 = vor.u32 %v5493, %v5496
        %v5498 = vrot.slane %v5497, 4
        %v5500 = vshll.u32 %v5399, 16
        %v5502 = vrot.slane %v5500, 5
        %v5503 = vsel %vm1538, %v5498, %v5502
        %v5505 = vshrl.u32 %v5400, 16
        %v5507 = vrot.slane %v5505, 4
        %v5508 = vshll.u32 %v5400, 16
        %v5510 = vrot.slane %v5508, 5
        %v5511 = vor.u32 %v5507, %v5510
        %v5512 = vrot.slane %v5511, 4
        %v5514 = vshll.u32 %v5402, 16
        %v5516 = vrot.slane %v5514, 5
        %v5517 = vsel %vm1538, %v5512, %v5516
        %v5519 = vshrl.u32 %v5401, 16
        %v5521 = vrot.slane %v5519, 4
        %v5522 = vshll.u32 %v5401, 16
        %v5524 = vrot.slane %v5522, 5
        %v5525 = vor.u32 %v5521, %v5524
        %v5526 = vrot.slane %v5525, 4
        %v5528 = vshll.u32 %v5403, 16
        %v5530 = vrot.slane %v5528, 5
        %v5531 = vsel %vm1538, %v5526, %v5530
        %v5533 = vshrl.u32 %v5404, 16
        %v5535 = vrot.slane %v5533, 4
        %v5536 = vshll.u32 %v5404, 16
        %v5538 = vrot.slane %v5536, 5
        %v5539 = vor.u32 %v5535, %v5538
        %v5540 = vrot.slane %v5539, 4
        %v5542 = vshll.u32 %v5406, 16
        %v5544 = vrot.slane %v5542, 5
        %v5545 = vsel %vm1538, %v5540, %v5544
        %v5547 = vshrl.u32 %v5405, 16
        %v5549 = vrot.slane %v5547, 4
        %v5550 = vshll.u32 %v5405, 16
        %v5552 = vrot.slane %v5550, 5
        %v5553 = vor.u32 %v5549, %v5552
        %v5554 = vrot.slane %v5553, 4
        %v5556 = vshll.u32 %v5407, 16
        %v5558 = vrot.slane %v5556, 5
        %v5559 = vsel %vm1538, %v5554, %v5558
        %v5561 = vshrl.u32 %v5408, 16
        %v5563 = vrot.slane %v5561, 4
        %v5564 = vshll.u32 %v5408, 16
        %v5566 = vrot.slane %v5564, 5
        %v5567 = vor.u32 %v5563, %v5566
        %v5568 = vrot.slane %v5567, 4
        %v5570 = vshll.u32 %v5410, 16
        %v5572 = vrot.slane %v5570, 5
        %v5573 = vsel %vm1538, %v5568, %v5572
        %v5575 = vshrl.u32 %v5409, 16
        %v5577 = vrot.slane %v5575, 4
        %v5578 = vshll.u32 %v5409, 16
        %v5580 = vrot.slane %v5578, 5
        %v5581 = vor.u32 %v5577, %v5580
        %v5582 = vrot.slane %v5581, 4
        %v5584 = vshll.u32 %v5411, 16
        %v5586 = vrot.slane %v5584, 5
        %v5587 = vsel %vm1538, %v5582, %v5586
        %v5589 = vshrl.u32 %v5412, 16
        %v5591 = vrot.slane %v5589, 4
        %v5592 = vshll.u32 %v5412, 16
        %v5594 = vrot.slane %v5592, 5
        %v5595 = vor.u32 %v5591, %v5594
        %v5596 = vrot.slane %v5595, 4
        %v5598 = vshll.u32 %v5414, 16
        %v5600 = vrot.slane %v5598, 5
        %v5601 = vsel %vm1538, %v5596, %v5600
        %v5603 = vshrl.u32 %v5413, 16
        %v5605 = vrot.slane %v5603, 4
        %v5606 = vshll.u32 %v5413, 16
        %v5608 = vrot.slane %v5606, 5
        %v5609 = vor.u32 %v5605, %v5608
        %v5610 = vrot.slane %v5609, 4
        %v5612 = vshll.u32 %v5415, 16
        %v5614 = vrot.slane %v5612, 5
        %v5615 = vsel %vm1538, %v5610, %v5614
        %v5617 = vshrl.u32 %v5416, 16
        %v5619 = vrot.slane %v5617, 4
        %v5620 = vshll.u32 %v5416, 16
        %v5622 = vrot.slane %v5620, 5
        %v5623 = vor.u32 %v5619, %v5622
        %v5624 = vrot.slane %v5623, 4
        %v5626 = vshll.u32 %v5418, 16
        %v5628 = vrot.slane %v5626, 5
        %v5629 = vsel %vm1538, %v5624, %v5628
        %v5631 = vshrl.u32 %v5417, 16
        %v5633 = vrot.slane %v5631, 4
        %v5634 = vshll.u32 %v5417, 16
        %v5636 = vrot.slane %v5634, 5
        %v5637 = vor.u32 %v5633, %v5636
        %v5638 = vrot.slane %v5637, 4
        %v5640 = vshll.u32 %v5419, 16
        %v5642 = vrot.slane %v5640, 5
        %v5643 = vsel %vm1538, %v5638, %v5642
        %s5644 = sadd.s32 1024, %s329
        %s5645 = smul.addr %s5644, 4
        %s5646 = scalar_lea.vmem [#allocation6], %s5645
        %v5647 = vld [vmem:[%s5646] sm:$0xff]
        %v5648 = vld [vmem:[%s5646 + $0x8] sm:$0xff]
        %v5649 = vld [vmem:[%s5646 + $0x10] sm:$0xff]
        %v5650 = vld [vmem:[%s5646 + $0x18] sm:$0xff]
        %v5651 = vld [vmem:[%s5646 + $0x20] sm:$0xff]
        %v5652 = vld [vmem:[%s5646 + $0x28] sm:$0xff]
        %v5653 = vld [vmem:[%s5646 + $0x30] sm:$0xff]
        %v5654 = vld [vmem:[%s5646 + $0x38] sm:$0xff]
        %v5655 = vld [vmem:[%s5646 + $0x40] sm:$0xff]
        %v5656 = vld [vmem:[%s5646 + $0x48] sm:$0xff]
        %v5657 = vld [vmem:[%s5646 + $0x50] sm:$0xff]
        %v5658 = vld [vmem:[%s5646 + $0x58] sm:$0xff]
        %v5659 = vld [vmem:[%s5646 + $0x60] sm:$0xff]
        %v5660 = vld [vmem:[%s5646 + $0x68] sm:$0xff]
        %v5661 = vld [vmem:[%s5646 + $0x70] sm:$0xff]
        %v5662 = vld [vmem:[%s5646 + $0x78] sm:$0xff]
        %v5663 = vld [vmem:[%s5646 + $0x80] sm:$0xff]
        %v5664 = vld [vmem:[%s5646 + $0x88] sm:$0xff]
        %v5665 = vld [vmem:[%s5646 + $0x90] sm:$0xff]
        %v5666 = vld [vmem:[%s5646 + $0x98] sm:$0xff]
        %v5667 = vld [vmem:[%s5646 + $0xa0] sm:$0xff]
        %v5668 = vld [vmem:[%s5646 + $0xa8] sm:$0xff]
        %v5669 = vld [vmem:[%s5646 + $0xb0] sm:$0xff]
        %v5670 = vld [vmem:[%s5646 + $0xb8] sm:$0xff]
        %v5671 = vld [vmem:[%s5646 + $0xc0] sm:$0xff]
        %v5672 = vld [vmem:[%s5646 + $0xc8] sm:$0xff]
        %v5673 = vld [vmem:[%s5646 + $0xd0] sm:$0xff]
        %v5674 = vld [vmem:[%s5646 + $0xd8] sm:$0xff]
        %v5675 = vld [vmem:[%s5646 + $0xe0] sm:$0xff]
        %v5676 = vld [vmem:[%s5646 + $0xe8] sm:$0xff]
        %v5677 = vld [vmem:[%s5646 + $0xf0] sm:$0xff]
        %v5678 = vld [vmem:[%s5646 + $0xf8] sm:$0xff]
        %v5679 = vld [vmem:[%s5646 + $0x100] sm:$0xff]
        %v5680 = vld [vmem:[%s5646 + $0x108] sm:$0xff]
        %v5681 = vld [vmem:[%s5646 + $0x110] sm:$0xff]
        %v5682 = vld [vmem:[%s5646 + $0x118] sm:$0xff]
        %v5683 = vld [vmem:[%s5646 + $0x120] sm:$0xff]
        %v5684 = vld [vmem:[%s5646 + $0x128] sm:$0xff]
        %v5685 = vld [vmem:[%s5646 + $0x130] sm:$0xff]
        %v5686 = vld [vmem:[%s5646 + $0x138] sm:$0xff]
        %v5687 = vld [vmem:[%s5646 + $0x140] sm:$0xff]
        %v5688 = vld [vmem:[%s5646 + $0x148] sm:$0xff]
        %v5689 = vld [vmem:[%s5646 + $0x150] sm:$0xff]
        %v5690 = vld [vmem:[%s5646 + $0x158] sm:$0xff]
        %v5691 = vld [vmem:[%s5646 + $0x160] sm:$0xff]
        %v5692 = vld [vmem:[%s5646 + $0x168] sm:$0xff]
        %v5693 = vld [vmem:[%s5646 + $0x170] sm:$0xff]
        %v5694 = vld [vmem:[%s5646 + $0x178] sm:$0xff]
        %v5695 = vld [vmem:[%s5646 + $0x180] sm:$0xff]
        %v5696 = vld [vmem:[%s5646 + $0x188] sm:$0xff]
        %v5697 = vld [vmem:[%s5646 + $0x190] sm:$0xff]
        %v5698 = vld [vmem:[%s5646 + $0x198] sm:$0xff]
        %v5699 = vld [vmem:[%s5646 + $0x1a0] sm:$0xff]
        %v5700 = vld [vmem:[%s5646 + $0x1a8] sm:$0xff]
        %v5701 = vld [vmem:[%s5646 + $0x1b0] sm:$0xff]
        %v5702 = vld [vmem:[%s5646 + $0x1b8] sm:$0xff]
        %v5703 = vld [vmem:[%s5646 + $0x1c0] sm:$0xff]
        %v5704 = vld [vmem:[%s5646 + $0x1c8] sm:$0xff]
        %v5705 = vld [vmem:[%s5646 + $0x1d0] sm:$0xff]
        %v5706 = vld [vmem:[%s5646 + $0x1d8] sm:$0xff]
        %v5707 = vld [vmem:[%s5646 + $0x1e0] sm:$0xff]
        %v5708 = vld [vmem:[%s5646 + $0x1e8] sm:$0xff]
        %v5709 = vld [vmem:[%s5646 + $0x1f0] sm:$0xff]
        %v5710 = vld [vmem:[%s5646 + $0x1f8] sm:$0xff]
        %v5711 = vld [vmem:[%s5646 + $0x200] sm:$0xff]
        %v5712 = vld [vmem:[%s5646 + $0x208] sm:$0xff]
        %v5713 = vld [vmem:[%s5646 + $0x210] sm:$0xff]
        %v5714 = vld [vmem:[%s5646 + $0x218] sm:$0xff]
        %v5715 = vld [vmem:[%s5646 + $0x220] sm:$0xff]
        %v5716 = vld [vmem:[%s5646 + $0x228] sm:$0xff]
        %v5717 = vld [vmem:[%s5646 + $0x230] sm:$0xff]
        %v5718 = vld [vmem:[%s5646 + $0x238] sm:$0xff]
        %v5719 = vld [vmem:[%s5646 + $0x240] sm:$0xff]
        %v5720 = vld [vmem:[%s5646 + $0x248] sm:$0xff]
        %v5721 = vld [vmem:[%s5646 + $0x250] sm:$0xff]
        %v5722 = vld [vmem:[%s5646 + $0x258] sm:$0xff]
        %v5723 = vld [vmem:[%s5646 + $0x260] sm:$0xff]
        %v5724 = vld [vmem:[%s5646 + $0x268] sm:$0xff]
        %v5725 = vld [vmem:[%s5646 + $0x270] sm:$0xff]
        %v5726 = vld [vmem:[%s5646 + $0x278] sm:$0xff]
        %v5727 = vld [vmem:[%s5646 + $0x280] sm:$0xff]
        %v5728 = vld [vmem:[%s5646 + $0x288] sm:$0xff]
        %v5729 = vld [vmem:[%s5646 + $0x290] sm:$0xff]
        %v5730 = vld [vmem:[%s5646 + $0x298] sm:$0xff]
        %v5731 = vld [vmem:[%s5646 + $0x2a0] sm:$0xff]
        %v5732 = vld [vmem:[%s5646 + $0x2a8] sm:$0xff]
        %v5733 = vld [vmem:[%s5646 + $0x2b0] sm:$0xff]
        %v5734 = vld [vmem:[%s5646 + $0x2b8] sm:$0xff]
        %v5735 = vld [vmem:[%s5646 + $0x2c0] sm:$0xff]
        %v5736 = vld [vmem:[%s5646 + $0x2c8] sm:$0xff]
        %v5737 = vld [vmem:[%s5646 + $0x2d0] sm:$0xff]
        %v5738 = vld [vmem:[%s5646 + $0x2d8] sm:$0xff]
        %v5739 = vld [vmem:[%s5646 + $0x2e0] sm:$0xff]
        %v5740 = vld [vmem:[%s5646 + $0x2e8] sm:$0xff]
        %v5741 = vld [vmem:[%s5646 + $0x2f0] sm:$0xff]
        %v5742 = vld [vmem:[%s5646 + $0x2f8] sm:$0xff]
        %v5743 = vld [vmem:[%s5646 + $0x300] sm:$0xff]
        %v5744 = vld [vmem:[%s5646 + $0x308] sm:$0xff]
        %v5745 = vld [vmem:[%s5646 + $0x310] sm:$0xff]
        %v5746 = vld [vmem:[%s5646 + $0x318] sm:$0xff]
        %v5747 = vld [vmem:[%s5646 + $0x320] sm:$0xff]
        %v5748 = vld [vmem:[%s5646 + $0x328] sm:$0xff]
        %v5749 = vld [vmem:[%s5646 + $0x330] sm:$0xff]
        %v5750 = vld [vmem:[%s5646 + $0x338] sm:$0xff]
        %v5751 = vld [vmem:[%s5646 + $0x340] sm:$0xff]
        %v5752 = vld [vmem:[%s5646 + $0x348] sm:$0xff]
        %v5753 = vld [vmem:[%s5646 + $0x350] sm:$0xff]
        %v5754 = vld [vmem:[%s5646 + $0x358] sm:$0xff]
        %v5755 = vld [vmem:[%s5646 + $0x360] sm:$0xff]
        %v5756 = vld [vmem:[%s5646 + $0x368] sm:$0xff]
        %v5757 = vld [vmem:[%s5646 + $0x370] sm:$0xff]
        %v5758 = vld [vmem:[%s5646 + $0x378] sm:$0xff]
        %v5759 = vld [vmem:[%s5646 + $0x380] sm:$0xff]
        %v5760 = vld [vmem:[%s5646 + $0x388] sm:$0xff]
        %v5761 = vld [vmem:[%s5646 + $0x390] sm:$0xff]
        %v5762 = vld [vmem:[%s5646 + $0x398] sm:$0xff]
        %v5763 = vld [vmem:[%s5646 + $0x3a0] sm:$0xff]
        %v5764 = vld [vmem:[%s5646 + $0x3a8] sm:$0xff]
        %v5765 = vld [vmem:[%s5646 + $0x3b0] sm:$0xff]
        %v5766 = vld [vmem:[%s5646 + $0x3b8] sm:$0xff]
        %v5767 = vld [vmem:[%s5646 + $0x3c0] sm:$0xff]
        %v5768 = vld [vmem:[%s5646 + $0x3c8] sm:$0xff]
        %v5769 = vld [vmem:[%s5646 + $0x3d0] sm:$0xff]
        %v5770 = vld [vmem:[%s5646 + $0x3d8] sm:$0xff]
        %v5771 = vld [vmem:[%s5646 + $0x3e0] sm:$0xff]
        %v5772 = vld [vmem:[%s5646 + $0x3e8] sm:$0xff]
        %v5773 = vld [vmem:[%s5646 + $0x3f0] sm:$0xff]
        %v5774 = vld [vmem:[%s5646 + $0x3f8] sm:$0xff]
        %v5775 = vunpack.c.l.b16 %v5433
        %v5776 = vunpack.c.h.b16 %v5433
        %v5777 = vunpack.c.l.b16 %v5447
        %v5778 = vunpack.c.h.b16 %v5447
        %v5779 = vunpack.c.l.b16 %v5461
        %v5780 = vunpack.c.h.b16 %v5461
        %v5781 = vunpack.c.l.b16 %v5475
        %v5782 = vunpack.c.h.b16 %v5475
        %v5783 = vunpack.c.l.b16 %v5489
        %v5784 = vunpack.c.h.b16 %v5489
        %v5785 = vunpack.c.l.b16 %v5503
        %v5786 = vunpack.c.h.b16 %v5503
        %v5787 = vunpack.c.l.b16 %v5517
        %v5788 = vunpack.c.h.b16 %v5517
        %v5789 = vunpack.c.l.b16 %v5531
        %v5790 = vunpack.c.h.b16 %v5531
        %v5791 = vunpack.c.l.b16 %v5545
        %v5792 = vunpack.c.h.b16 %v5545
        %v5793 = vunpack.c.l.b16 %v5559
        %v5794 = vunpack.c.h.b16 %v5559
        %v5795 = vunpack.c.l.b16 %v5573
        %v5796 = vunpack.c.h.b16 %v5573
        %v5797 = vunpack.c.l.b16 %v5587
        %v5798 = vunpack.c.h.b16 %v5587
        %v5799 = vunpack.c.l.b16 %v5601
        %v5800 = vunpack.c.h.b16 %v5601
        %v5801 = vunpack.c.l.b16 %v5615
        %v5802 = vunpack.c.h.b16 %v5615
        %v5803 = vunpack.c.l.b16 %v5629
        %v5804 = vunpack.c.h.b16 %v5629
        %v5805 = vunpack.c.l.b16 %v5643
        %v5806 = vunpack.c.h.b16 %v5643
        %v5807 = vpack.c.b16 %v5779, %v5775
        %v5808 = vpack.c.b16 %v5780, %v5776
        %v5809 = vpack.c.b16 %v5781, %v5777
        %v5810 = vpack.c.b16 %v5782, %v5778
        %v5811 = vpack.c.b16 %v5787, %v5783
        %v5812 = vpack.c.b16 %v5788, %v5784
        %v5813 = vpack.c.b16 %v5789, %v5785
        %v5814 = vpack.c.b16 %v5790, %v5786
        %v5815 = vpack.c.b16 %v5795, %v5791
        %v5816 = vpack.c.b16 %v5796, %v5792
        %v5817 = vpack.c.b16 %v5797, %v5793
        %v5818 = vpack.c.b16 %v5798, %v5794
        %v5819 = vpack.c.b16 %v5803, %v5799
        %v5820 = vpack.c.b16 %v5804, %v5800
        %v5821 = vpack.c.b16 %v5805, %v5801
        %v5822 = vpack.c.b16 %v5806, %v5802
        %v5967 = vunpack.c.l.b16 %v5647
        %v5968 = vunpack.c.h.b16 %v5647
        %v5969 = vunpack.c.l.b16 %v5648
        %v5970 = vunpack.c.h.b16 %v5648
        %v5971 = vunpack.c.l.b16 %v5649
        %v5972 = vunpack.c.h.b16 %v5649
        %v5973 = vunpack.c.l.b16 %v5650
        %v5974 = vunpack.c.h.b16 %v5650
        %v5975 = vunpack.c.l.b16 %v5651
        %v5976 = vunpack.c.h.b16 %v5651
        %v5977 = vunpack.c.l.b16 %v5652
        %v5978 = vunpack.c.h.b16 %v5652
        %v5979 = vunpack.c.l.b16 %v5653
        %v5980 = vunpack.c.h.b16 %v5653
        %v5981 = vunpack.c.l.b16 %v5654
        %v5982 = vunpack.c.h.b16 %v5654
        %v5983 = vunpack.c.l.b16 %v5655
        %v5984 = vunpack.c.h.b16 %v5655
        %v5985 = vunpack.c.l.b16 %v5656
        %v5986 = vunpack.c.h.b16 %v5656
        %v5987 = vunpack.c.l.b16 %v5657
        %v5988 = vunpack.c.h.b16 %v5657
        %v5989 = vunpack.c.l.b16 %v5658
        %v5990 = vunpack.c.h.b16 %v5658
        %v5991 = vunpack.c.l.b16 %v5659
        %v5992 = vunpack.c.h.b16 %v5659
        %v5993 = vunpack.c.l.b16 %v5660
        %v5994 = vunpack.c.h.b16 %v5660
        %v5995 = vunpack.c.l.b16 %v5661
        %v5996 = vunpack.c.h.b16 %v5661
        %v5997 = vunpack.c.l.b16 %v5662
        %v5998 = vunpack.c.h.b16 %v5662
        %v5999 = vunpack.c.l.b16 %v5663
        %v6000 = vunpack.c.h.b16 %v5663
        %v6001 = vunpack.c.l.b16 %v5664
        %v6002 = vunpack.c.h.b16 %v5664
        %v6003 = vunpack.c.l.b16 %v5665
        %v6004 = vunpack.c.h.b16 %v5665
        %v6005 = vunpack.c.l.b16 %v5666
        %v6006 = vunpack.c.h.b16 %v5666
        %v6007 = vunpack.c.l.b16 %v5667
        %v6008 = vunpack.c.h.b16 %v5667
        %v6009 = vunpack.c.l.b16 %v5668
        %v6010 = vunpack.c.h.b16 %v5668
        %v6011 = vunpack.c.l.b16 %v5669
        %v6012 = vunpack.c.h.b16 %v5669
        %v6013 = vunpack.c.l.b16 %v5670
        %v6014 = vunpack.c.h.b16 %v5670
        %v6015 = vunpack.c.l.b16 %v5671
        %v6016 = vunpack.c.h.b16 %v5671
        %v6017 = vunpack.c.l.b16 %v5672
        %v6018 = vunpack.c.h.b16 %v5672
        %v6019 = vunpack.c.l.b16 %v5673
        %v6020 = vunpack.c.h.b16 %v5673
        %v6021 = vunpack.c.l.b16 %v5674
        %v6022 = vunpack.c.h.b16 %v5674
        %v6023 = vunpack.c.l.b16 %v5675
        %v6024 = vunpack.c.h.b16 %v5675
        %v6025 = vunpack.c.l.b16 %v5676
        %v6026 = vunpack.c.h.b16 %v5676
        %v6027 = vunpack.c.l.b16 %v5677
        %v6028 = vunpack.c.h.b16 %v5677
        %v6029 = vunpack.c.l.b16 %v5678
        %v6030 = vunpack.c.h.b16 %v5678
        %v6031 = vunpack.c.l.b16 %v5679
        %v6032 = vunpack.c.h.b16 %v5679
        %v6033 = vunpack.c.l.b16 %v5680
        %v6034 = vunpack.c.h.b16 %v5680
        %v6035 = vunpack.c.l.b16 %v5681
        %v6036 = vunpack.c.h.b16 %v5681
        %v6037 = vunpack.c.l.b16 %v5682
        %v6038 = vunpack.c.h.b16 %v5682
        %v6039 = vunpack.c.l.b16 %v5683
        %v6040 = vunpack.c.h.b16 %v5683
        %v6041 = vunpack.c.l.b16 %v5684
        %v6042 = vunpack.c.h.b16 %v5684
        %v6043 = vunpack.c.l.b16 %v5685
        %v6044 = vunpack.c.h.b16 %v5685
        %v6045 = vunpack.c.l.b16 %v5686
        %v6046 = vunpack.c.h.b16 %v5686
        %v6047 = vunpack.c.l.b16 %v5687
        %v6048 = vunpack.c.h.b16 %v5687
        %v6049 = vunpack.c.l.b16 %v5688
        %v6050 = vunpack.c.h.b16 %v5688
        %v6051 = vunpack.c.l.b16 %v5689
        %v6052 = vunpack.c.h.b16 %v5689
        %v6053 = vunpack.c.l.b16 %v5690
        %v6054 = vunpack.c.h.b16 %v5690
        %v6055 = vunpack.c.l.b16 %v5691
        %v6056 = vunpack.c.h.b16 %v5691
        %v6057 = vunpack.c.l.b16 %v5692
        %v6058 = vunpack.c.h.b16 %v5692
        %v6059 = vunpack.c.l.b16 %v5693
        %v6060 = vunpack.c.h.b16 %v5693
        %v6061 = vunpack.c.l.b16 %v5694
        %v6062 = vunpack.c.h.b16 %v5694
        %v6063 = vunpack.c.l.b16 %v5695
        %v6064 = vunpack.c.h.b16 %v5695
        %v6065 = vunpack.c.l.b16 %v5696
        %v6066 = vunpack.c.h.b16 %v5696
        %v6067 = vunpack.c.l.b16 %v5697
        %v6068 = vunpack.c.h.b16 %v5697
        %v6069 = vunpack.c.l.b16 %v5698
        %v6070 = vunpack.c.h.b16 %v5698
        %v6071 = vunpack.c.l.b16 %v5699
        %v6072 = vunpack.c.h.b16 %v5699
        %v6073 = vunpack.c.l.b16 %v5700
        %v6074 = vunpack.c.h.b16 %v5700
        %v6075 = vunpack.c.l.b16 %v5701
        %v6076 = vunpack.c.h.b16 %v5701
        %v6077 = vunpack.c.l.b16 %v5702
        %v6078 = vunpack.c.h.b16 %v5702
        %v6079 = vunpack.c.l.b16 %v5703
        %v6080 = vunpack.c.h.b16 %v5703
        %v6081 = vunpack.c.l.b16 %v5704
        %v6082 = vunpack.c.h.b16 %v5704
        %v6083 = vunpack.c.l.b16 %v5705
        %v6084 = vunpack.c.h.b16 %v5705
        %v6085 = vunpack.c.l.b16 %v5706
        %v6086 = vunpack.c.h.b16 %v5706
        %v6087 = vunpack.c.l.b16 %v5707
        %v6088 = vunpack.c.h.b16 %v5707
        %v6089 = vunpack.c.l.b16 %v5708
        %v6090 = vunpack.c.h.b16 %v5708
        %v6091 = vunpack.c.l.b16 %v5709
        %v6092 = vunpack.c.h.b16 %v5709
        %v6093 = vunpack.c.l.b16 %v5710
        %v6094 = vunpack.c.h.b16 %v5710
        %v6095 = vunpack.c.l.b16 %v5711
        %v6096 = vunpack.c.h.b16 %v5711
        %v6097 = vunpack.c.l.b16 %v5712
        %v6098 = vunpack.c.h.b16 %v5712
        %v6099 = vunpack.c.l.b16 %v5713
        %v6100 = vunpack.c.h.b16 %v5713
        %v6101 = vunpack.c.l.b16 %v5714
        %v6102 = vunpack.c.h.b16 %v5714
        %v6103 = vunpack.c.l.b16 %v5715
        %v6104 = vunpack.c.h.b16 %v5715
        %v6105 = vunpack.c.l.b16 %v5716
        %v6106 = vunpack.c.h.b16 %v5716
        %v6107 = vunpack.c.l.b16 %v5717
        %v6108 = vunpack.c.h.b16 %v5717
        %v6109 = vunpack.c.l.b16 %v5718
        %v6110 = vunpack.c.h.b16 %v5718
        %v6111 = vunpack.c.l.b16 %v5719
        %v6112 = vunpack.c.h.b16 %v5719
        %v6113 = vunpack.c.l.b16 %v5720
        %v6114 = vunpack.c.h.b16 %v5720
        %v6115 = vunpack.c.l.b16 %v5721
        %v6116 = vunpack.c.h.b16 %v5721
        %v6117 = vunpack.c.l.b16 %v5722
        %v6118 = vunpack.c.h.b16 %v5722
        %v6119 = vunpack.c.l.b16 %v5723
        %v6120 = vunpack.c.h.b16 %v5723
        %v6121 = vunpack.c.l.b16 %v5724
        %v6122 = vunpack.c.h.b16 %v5724
        %v6123 = vunpack.c.l.b16 %v5725
        %v6124 = vunpack.c.h.b16 %v5725
        %v6125 = vunpack.c.l.b16 %v5726
        %v6126 = vunpack.c.h.b16 %v5726
        %v6127 = vunpack.c.l.b16 %v5727
        %v6128 = vunpack.c.h.b16 %v5727
        %v6129 = vunpack.c.l.b16 %v5728
        %v6130 = vunpack.c.h.b16 %v5728
        %v6131 = vunpack.c.l.b16 %v5729
        %v6132 = vunpack.c.h.b16 %v5729
        %v6133 = vunpack.c.l.b16 %v5730
        %v6134 = vunpack.c.h.b16 %v5730
        %v6135 = vunpack.c.l.b16 %v5731
        %v6136 = vunpack.c.h.b16 %v5731
        %v6137 = vunpack.c.l.b16 %v5732
        %v6138 = vunpack.c.h.b16 %v5732
        %v6139 = vunpack.c.l.b16 %v5733
        %v6140 = vunpack.c.h.b16 %v5733
        %v6141 = vunpack.c.l.b16 %v5734
        %v6142 = vunpack.c.h.b16 %v5734
        %v6143 = vunpack.c.l.b16 %v5735
        %v6144 = vunpack.c.h.b16 %v5735
        %v6145 = vunpack.c.l.b16 %v5736
        %v6146 = vunpack.c.h.b16 %v5736
        %v6147 = vunpack.c.l.b16 %v5737
        %v6148 = vunpack.c.h.b16 %v5737
        %v6149 = vunpack.c.l.b16 %v5738
        %v6150 = vunpack.c.h.b16 %v5738
        %v6151 = vunpack.c.l.b16 %v5739
        %v6152 = vunpack.c.h.b16 %v5739
        %v6153 = vunpack.c.l.b16 %v5740
        %v6154 = vunpack.c.h.b16 %v5740
        %v6155 = vunpack.c.l.b16 %v5741
        %v6156 = vunpack.c.h.b16 %v5741
        %v6157 = vunpack.c.l.b16 %v5742
        %v6158 = vunpack.c.h.b16 %v5742
        %v6159 = vunpack.c.l.b16 %v5743
        %v6160 = vunpack.c.h.b16 %v5743
        %v6161 = vunpack.c.l.b16 %v5744
        %v6162 = vunpack.c.h.b16 %v5744
        %v6163 = vunpack.c.l.b16 %v5745
        %v6164 = vunpack.c.h.b16 %v5745
        %v6165 = vunpack.c.l.b16 %v5746
        %v6166 = vunpack.c.h.b16 %v5746
        %v6167 = vunpack.c.l.b16 %v5747
        %v6168 = vunpack.c.h.b16 %v5747
        %v6169 = vunpack.c.l.b16 %v5748
        %v6170 = vunpack.c.h.b16 %v5748
        %v6171 = vunpack.c.l.b16 %v5749
        %v6172 = vunpack.c.h.b16 %v5749
        %v6173 = vunpack.c.l.b16 %v5750
        %v6174 = vunpack.c.h.b16 %v5750
        %v6175 = vunpack.c.l.b16 %v5751
        %v6176 = vunpack.c.h.b16 %v5751
        %v6177 = vunpack.c.l.b16 %v5752
        %v6178 = vunpack.c.h.b16 %v5752
        %v6179 = vunpack.c.l.b16 %v5753
        %v6180 = vunpack.c.h.b16 %v5753
        %v6181 = vunpack.c.l.b16 %v5754
        %v6182 = vunpack.c.h.b16 %v5754
        %v6183 = vunpack.c.l.b16 %v5755
        %v6184 = vunpack.c.h.b16 %v5755
        %v6185 = vunpack.c.l.b16 %v5756
        %v6186 = vunpack.c.h.b16 %v5756
        %v6187 = vunpack.c.l.b16 %v5757
        %v6188 = vunpack.c.h.b16 %v5757
        %v6189 = vunpack.c.l.b16 %v5758
        %v6190 = vunpack.c.h.b16 %v5758
        %v6191 = vunpack.c.l.b16 %v5759
        %v6192 = vunpack.c.h.b16 %v5759
        %v6193 = vunpack.c.l.b16 %v5760
        %v6194 = vunpack.c.h.b16 %v5760
        %v6195 = vunpack.c.l.b16 %v5761
        %v6196 = vunpack.c.h.b16 %v5761
        %v6197 = vunpack.c.l.b16 %v5762
        %v6198 = vunpack.c.h.b16 %v5762
        %v6199 = vunpack.c.l.b16 %v5763
        %v6200 = vunpack.c.h.b16 %v5763
        %v6201 = vunpack.c.l.b16 %v5764
        %v6202 = vunpack.c.h.b16 %v5764
        %v6203 = vunpack.c.l.b16 %v5765
        %v6204 = vunpack.c.h.b16 %v5765
        %v6205 = vunpack.c.l.b16 %v5766
        %v6206 = vunpack.c.h.b16 %v5766
        %v6207 = vunpack.c.l.b16 %v5767
        %v6208 = vunpack.c.h.b16 %v5767
        %v6209 = vunpack.c.l.b16 %v5768
        %v6210 = vunpack.c.h.b16 %v5768
        %v6211 = vunpack.c.l.b16 %v5769
        %v6212 = vunpack.c.h.b16 %v5769
        %v6213 = vunpack.c.l.b16 %v5770
        %v6214 = vunpack.c.h.b16 %v5770
        %v6215 = vunpack.c.l.b16 %v5771
        %v6216 = vunpack.c.h.b16 %v5771
        %v6217 = vunpack.c.l.b16 %v5772
        %v6218 = vunpack.c.h.b16 %v5772
        %v6219 = vunpack.c.l.b16 %v5773
        %v6220 = vunpack.c.h.b16 %v5773
        %v6221 = vunpack.c.l.b16 %v5774
        %v6222 = vunpack.c.h.b16 %v5774
        %v6223 = vpack.c.b16 %v5971, %v5967
        %v6224 = vpack.c.b16 %v5972, %v5968
        %v6225 = vpack.c.b16 %v5973, %v5969
        %v6226 = vpack.c.b16 %v5974, %v5970
        %v6227 = vpack.c.b16 %v5979, %v5975
        %v6228 = vpack.c.b16 %v5980, %v5976
        %v6229 = vpack.c.b16 %v5981, %v5977
        %v6230 = vpack.c.b16 %v5982, %v5978
        %v6231 = vpack.c.b16 %v5987, %v5983
        %v6232 = vpack.c.b16 %v5988, %v5984
        %v6233 = vpack.c.b16 %v5989, %v5985
        %v6234 = vpack.c.b16 %v5990, %v5986
        %v6235 = vpack.c.b16 %v5995, %v5991
        %v6236 = vpack.c.b16 %v5996, %v5992
        %v6237 = vpack.c.b16 %v5997, %v5993
        %v6238 = vpack.c.b16 %v5998, %v5994
        %v6239 = vpack.c.b16 %v6003, %v5999
        %v6240 = vpack.c.b16 %v6004, %v6000
        %v6241 = vpack.c.b16 %v6005, %v6001
        %v6242 = vpack.c.b16 %v6006, %v6002
        %v6243 = vpack.c.b16 %v6011, %v6007
        %v6244 = vpack.c.b16 %v6012, %v6008
        %v6245 = vpack.c.b16 %v6013, %v6009
        %v6246 = vpack.c.b16 %v6014, %v6010
        %v6247 = vpack.c.b16 %v6019, %v6015
        %v6248 = vpack.c.b16 %v6020, %v6016
        %v6249 = vpack.c.b16 %v6021, %v6017
        %v6250 = vpack.c.b16 %v6022, %v6018
        %v6251 = vpack.c.b16 %v6027, %v6023
        %v6252 = vpack.c.b16 %v6028, %v6024
        %v6253 = vpack.c.b16 %v6029, %v6025
        %v6254 = vpack.c.b16 %v6030, %v6026
        %v6255 = vpack.c.b16 %v6035, %v6031
        %v6256 = vpack.c.b16 %v6036, %v6032
        %v6257 = vpack.c.b16 %v6037, %v6033
        %v6258 = vpack.c.b16 %v6038, %v6034
        %v6259 = vpack.c.b16 %v6043, %v6039
        %v6260 = vpack.c.b16 %v6044, %v6040
        %v6261 = vpack.c.b16 %v6045, %v6041
        %v6262 = vpack.c.b16 %v6046, %v6042
        %v6263 = vpack.c.b16 %v6051, %v6047
        %v6264 = vpack.c.b16 %v6052, %v6048
        %v6265 = vpack.c.b16 %v6053, %v6049
        %v6266 = vpack.c.b16 %v6054, %v6050
        %v6267 = vpack.c.b16 %v6059, %v6055
        %v6268 = vpack.c.b16 %v6060, %v6056
        %v6269 = vpack.c.b16 %v6061, %v6057
        %v6270 = vpack.c.b16 %v6062, %v6058
        %v6271 = vpack.c.b16 %v6067, %v6063
        %v6272 = vpack.c.b16 %v6068, %v6064
        %v6273 = vpack.c.b16 %v6069, %v6065
        %v6274 = vpack.c.b16 %v6070, %v6066
        %v6275 = vpack.c.b16 %v6075, %v6071
        %v6276 = vpack.c.b16 %v6076, %v6072
        %v6277 = vpack.c.b16 %v6077, %v6073
        %v6278 = vpack.c.b16 %v6078, %v6074
        %v6279 = vpack.c.b16 %v6083, %v6079
        %v6280 = vpack.c.b16 %v6084, %v6080
        %v6281 = vpack.c.b16 %v6085, %v6081
        %v6282 = vpack.c.b16 %v6086, %v6082
        %v6283 = vpack.c.b16 %v6091, %v6087
        %v6284 = vpack.c.b16 %v6092, %v6088
        %v6285 = vpack.c.b16 %v6093, %v6089
        %v6286 = vpack.c.b16 %v6094, %v6090
        %v6287 = vpack.c.b16 %v6099, %v6095
        %v6288 = vpack.c.b16 %v6100, %v6096
        %v6289 = vpack.c.b16 %v6101, %v6097
        %v6290 = vpack.c.b16 %v6102, %v6098
        %v6291 = vpack.c.b16 %v6107, %v6103
        %v6292 = vpack.c.b16 %v6108, %v6104
        %v6293 = vpack.c.b16 %v6109, %v6105
        %v6294 = vpack.c.b16 %v6110, %v6106
        %v6295 = vpack.c.b16 %v6115, %v6111
        %v6296 = vpack.c.b16 %v6116, %v6112
        %v6297 = vpack.c.b16 %v6117, %v6113
        %v6298 = vpack.c.b16 %v6118, %v6114
        %v6299 = vpack.c.b16 %v6123, %v6119
        %v6300 = vpack.c.b16 %v6124, %v6120
        %v6301 = vpack.c.b16 %v6125, %v6121
        %v6302 = vpack.c.b16 %v6126, %v6122
        %v6303 = vpack.c.b16 %v6131, %v6127
        %v6304 = vpack.c.b16 %v6132, %v6128
        %v6305 = vpack.c.b16 %v6133, %v6129
        %v6306 = vpack.c.b16 %v6134, %v6130
        %v6307 = vpack.c.b16 %v6139, %v6135
        %v6308 = vpack.c.b16 %v6140, %v6136
        %v6309 = vpack.c.b16 %v6141, %v6137
        %v6310 = vpack.c.b16 %v6142, %v6138
        %v6311 = vpack.c.b16 %v6147, %v6143
        %v6312 = vpack.c.b16 %v6148, %v6144
        %v6313 = vpack.c.b16 %v6149, %v6145
        %v6314 = vpack.c.b16 %v6150, %v6146
        %v6315 = vpack.c.b16 %v6155, %v6151
        %v6316 = vpack.c.b16 %v6156, %v6152
        %v6317 = vpack.c.b16 %v6157, %v6153
        %v6318 = vpack.c.b16 %v6158, %v6154
        %v6319 = vpack.c.b16 %v6163, %v6159
        %v6320 = vpack.c.b16 %v6164, %v6160
        %v6321 = vpack.c.b16 %v6165, %v6161
        %v6322 = vpack.c.b16 %v6166, %v6162
        %v6323 = vpack.c.b16 %v6171, %v6167
        %v6324 = vpack.c.b16 %v6172, %v6168
        %v6325 = vpack.c.b16 %v6173, %v6169
        %v6326 = vpack.c.b16 %v6174, %v6170
        %v6327 = vpack.c.b16 %v6179, %v6175
        %v6328 = vpack.c.b16 %v6180, %v6176
        %v6329 = vpack.c.b16 %v6181, %v6177
        %v6330 = vpack.c.b16 %v6182, %v6178
        %v6331 = vpack.c.b16 %v6187, %v6183
        %v6332 = vpack.c.b16 %v6188, %v6184
        %v6333 = vpack.c.b16 %v6189, %v6185
        %v6334 = vpack.c.b16 %v6190, %v6186
        %v6335 = vpack.c.b16 %v6195, %v6191
        %v6336 = vpack.c.b16 %v6196, %v6192
        %v6337 = vpack.c.b16 %v6197, %v6193
        %v6338 = vpack.c.b16 %v6198, %v6194
        %v6339 = vpack.c.b16 %v6203, %v6199
        %v6340 = vpack.c.b16 %v6204, %v6200
        %v6341 = vpack.c.b16 %v6205, %v6201
        %v6342 = vpack.c.b16 %v6206, %v6202
        %v6343 = vpack.c.b16 %v6211, %v6207
        %v6344 = vpack.c.b16 %v6212, %v6208
        %v6345 = vpack.c.b16 %v6213, %v6209
        %v6346 = vpack.c.b16 %v6214, %v6210
        %v6347 = vpack.c.b16 %v6219, %v6215
        %v6348 = vpack.c.b16 %v6220, %v6216
        %v6349 = vpack.c.b16 %v6221, %v6217
        %v6350 = vpack.c.b16 %v6222, %v6218
        %6479 = vmatprep.subr.bf16.mxu0 %v6224
        %6480 = vmatpush1.bf16.msra.mxu0 %v6223
        %6481 = vmatprep.subr.bf16.mxu0 %v6228
        %6482 = vmatpush1.bf16.msra.mxu0 %v6227
        %6483 = vmatprep.subr.bf16.mxu0 %v6232
        %6484 = vmatpush1.bf16.msra.mxu0 %v6231
        %6485 = vmatprep.subr.bf16.mxu0 %v6236
        %6486 = vmatpush1.bf16.msra.mxu0 %v6235
        %6487 = vmatprep.subr.bf16.mxu0 %v6240
        %6488 = vmatpush1.bf16.msra.mxu0 %v6239
        %6489 = vmatprep.subr.bf16.mxu0 %v6244
        %6490 = vmatpush1.bf16.msra.mxu0 %v6243
        %6491 = vmatprep.subr.bf16.mxu0 %v6248
        %6492 = vmatpush1.bf16.msra.mxu0 %v6247
        %6493 = vmatprep.subr.bf16.mxu0 %v6252
        %6494 = vmatpush1.bf16.msra.mxu0 %v6251
        %6495 = vmatprep.subr.bf16.mxu0 %v6256
        %6496 = vmatpush1.bf16.msra.mxu0 %v6255
        %6497 = vmatprep.subr.bf16.mxu0 %v6260
        %6498 = vmatpush1.bf16.msra.mxu0 %v6259
        %6499 = vmatprep.subr.bf16.mxu0 %v6264
        %6500 = vmatpush1.bf16.msra.mxu0 %v6263
        %6501 = vmatprep.subr.bf16.mxu0 %v6268
        %6502 = vmatpush1.bf16.msra.mxu0 %v6267
        %6503 = vmatprep.subr.bf16.mxu0 %v6272
        %6504 = vmatpush1.bf16.msra.mxu0 %v6271
        %6505 = vmatprep.subr.bf16.mxu0 %v6276
        %6506 = vmatpush1.bf16.msra.mxu0 %v6275
        %6507 = vmatprep.subr.bf16.mxu0 %v6280
        %6508 = vmatpush1.bf16.msra.mxu0 %v6279
        %6509 = vmatprep.subr.bf16.mxu0 %v6284
        %6510 = vmatpush1.bf16.msra.mxu0 %v6283
        %6511 = vmatprep.mubr.bf16.mxu0 %v5808
        %6512 = vmatmul.mubr.bf16.gmra.mrb[0].mxu0 %v5807
        %v6513 = vpop.f32.mrb[0].mxu0
        %v6514 = vadd.f32 0.0, %v6513
        %v6515 = vpop.f32.mrb[0].mxu0
        %v6516 = vadd.f32 0.0, %v6515
        %v6517 = vpop.f32.mrb[0].mxu0
        %v6518 = vadd.f32 0.0, %v6517
        %v6519 = vpop.f32.mrb[0].mxu0
        %v6520 = vadd.f32 0.0, %v6519
        %6521 = vmatprep.mubr.bf16.mxu0 %v5812
        %6522 = vmatmul.mubr.bf16.gmra.mrb[0].mxu0 %v5811
        %v6523 = vpop.f32.mrb[0].mxu0
        %v6524 = vadd.f32 0.0, %v6523
        %v6525 = vpop.f32.mrb[0].mxu0
        %v6526 = vadd.f32 0.0, %v6525
        %v6527 = vpop.f32.mrb[0].mxu0
        %v6528 = vadd.f32 0.0, %v6527
        %v6529 = vpop.f32.mrb[0].mxu0
        %v6530 = vadd.f32 0.0, %v6529
        %6531 = vmatprep.mubr.bf16.mxu0 %v5816
        %6532 = vmatmul.mubr.bf16.gmra.mrb[0].mxu0 %v5815
        %v6533 = vpop.f32.mrb[0].mxu0
        %v6534 = vadd.f32 0.0, %v6533
        %v6535 = vpop.f32.mrb[0].mxu0
        %v6536 = vadd.f32 0.0, %v6535
        %v6537 = vpop.f32.mrb[0].mxu0
        %v6538 = vadd.f32 0.0, %v6537
        %v6539 = vpop.f32.mrb[0].mxu0
        %v6540 = vadd.f32 0.0, %v6539
        %6541 = vmatprep.mubr.bf16.mxu0 %v5820
        %6542 = vmatmul.mubr.bf16.gmra.mrb[0].mxu0 %v5819
        %v6543 = vpop.f32.mrb[0].mxu0
        %v6544 = vadd.f32 0.0, %v6543
        %v6545 = vpop.f32.mrb[0].mxu0
        %v6546 = vadd.f32 0.0, %v6545
        %v6547 = vpop.f32.mrb[0].mxu0
        %v6548 = vadd.f32 0.0, %v6547
        %v6549 = vpop.f32.mrb[0].mxu0
        %v6550 = vadd.f32 0.0, %v6549
        %6551 = vdwg.mxu0
        %6552 = vmatprep.subr.bf16.mxu0 %v6288
        %6553 = vmatpush1.bf16.msra.mxu0 %v6287
        %6554 = vmatprep.subr.bf16.mxu0 %v6292
        %6555 = vmatpush1.bf16.msra.mxu0 %v6291
        %6556 = vmatprep.subr.bf16.mxu0 %v6296
        %6557 = vmatpush1.bf16.msra.mxu0 %v6295
        %6558 = vmatprep.subr.bf16.mxu0 %v6300
        %6559 = vmatpush1.bf16.msra.mxu0 %v6299
        %6560 = vmatprep.subr.bf16.mxu0 %v6304
        %6561 = vmatpush1.bf16.msra.mxu0 %v6303
        %6562 = vmatprep.subr.bf16.mxu0 %v6308
        %6563 = vmatpush1.bf16.msra.mxu0 %v6307
        %6564 = vmatprep.subr.bf16.mxu0 %v6312
        %6565 = vmatpush1.bf16.msra.mxu0 %v6311
        %6566 = vmatprep.subr.bf16.mxu0 %v6316
        %6567 = vmatpush1.bf16.msra.mxu0 %v6315
        %6568 = vmatprep.subr.bf16.mxu0 %v6320
        %6569 = vmatpush1.bf16.msra.mxu0 %v6319
        %6570 = vmatprep.subr.bf16.mxu0 %v6324
        %6571 = vmatpush1.bf16.msra.mxu0 %v6323
        %6572 = vmatprep.subr.bf16.mxu0 %v6328
        %6573 = vmatpush1.bf16.msra.mxu0 %v6327
        %6574 = vmatprep.subr.bf16.mxu0 %v6332
        %6575 = vmatpush1.bf16.msra.mxu0 %v6331
        %6576 = vmatprep.subr.bf16.mxu0 %v6336
        %6577 = vmatpush1.bf16.msra.mxu0 %v6335
        %6578 = vmatprep.subr.bf16.mxu0 %v6340
        %6579 = vmatpush1.bf16.msra.mxu0 %v6339
        %6580 = vmatprep.subr.bf16.mxu0 %v6344
        %6581 = vmatpush1.bf16.msra.mxu0 %v6343
        %6582 = vmatprep.subr.bf16.mxu0 %v6348
        %6583 = vmatpush1.bf16.msra.mxu0 %v6347
        %6584 = vmatprep.mubr.bf16.mxu0 %v5810
        %6585 = vmatmul.mubr.bf16.gmra.mrb[0].mxu0 %v5809
        %v6586 = vpop.f32.mrb[0].mxu0
        %v6587 = vadd.f32 %v6514, %v6586
        %v6588 = vpop.f32.mrb[0].mxu0
        %v6589 = vadd.f32 %v6516, %v6588
        %v6590 = vpop.f32.mrb[0].mxu0
        %v6591 = vadd.f32 %v6518, %v6590
        %v6592 = vpop.f32.mrb[0].mxu0
        %v6593 = vadd.f32 %v6520, %v6592
        %6594 = vmatprep.mubr.bf16.mxu0 %v5814
        %6595 = vmatmul.mubr.bf16.gmra.mrb[0].mxu0 %v5813
        %v6596 = vpop.f32.mrb[0].mxu0
        %v6597 = vadd.f32 %v6524, %v6596
        %v6598 = vpop.f32.mrb[0].mxu0
        %v6599 = vadd.f32 %v6526, %v6598
        %v6600 = vpop.f32.mrb[0].mxu0
        %v6601 = vadd.f32 %v6528, %v6600
        %v6602 = vpop.f32.mrb[0].mxu0
        %v6603 = vadd.f32 %v6530, %v6602
        %6604 = vmatprep.mubr.bf16.mxu0 %v5818
        %6605 = vmatmul.mubr.bf16.gmra.mrb[0].mxu0 %v5817
        %v6606 = vpop.f32.mrb[0].mxu0
        %v6607 = vadd.f32 %v6534, %v6606
        %v6608 = vpop.f32.mrb[0].mxu0
        %v6609 = vadd.f32 %v6536, %v6608
        %v6610 = vpop.f32.mrb[0].mxu0
        %v6611 = vadd.f32 %v6538, %v6610
        %v6612 = vpop.f32.mrb[0].mxu0
        %v6613 = vadd.f32 %v6540, %v6612
        %6614 = vmatprep.mubr.bf16.mxu0 %v5822
        %6615 = vmatmul.mubr.bf16.gmra.mrb[0].mxu0 %v5821
        %v6616 = vpop.f32.mrb[0].mxu0
        %v6617 = vadd.f32 %v6544, %v6616
        %v6618 = vpop.f32.mrb[0].mxu0
        %v6619 = vadd.f32 %v6546, %v6618
        %v6620 = vpop.f32.mrb[0].mxu0
        %v6621 = vadd.f32 %v6548, %v6620
        %v6622 = vpop.f32.mrb[0].mxu0
        %v6623 = vadd.f32 %v6550, %v6622
        %6624 = vdwg.mxu0
        %6625 = vmatprep.subr.bf16.mxu0 %v6226
        %6626 = vmatpush1.bf16.msra.mxu0 %v6225
        %6627 = vmatprep.subr.bf16.mxu0 %v6230
        %6628 = vmatpush1.bf16.msra.mxu0 %v6229
        %6629 = vmatprep.subr.bf16.mxu0 %v6234
        %6630 = vmatpush1.bf16.msra.mxu0 %v6233
        %6631 = vmatprep.subr.bf16.mxu0 %v6238
        %6632 = vmatpush1.bf16.msra.mxu0 %v6237
        %6633 = vmatprep.subr.bf16.mxu0 %v6242
        %6634 = vmatpush1.bf16.msra.mxu0 %v6241
        %6635 = vmatprep.subr.bf16.mxu0 %v6246
        %6636 = vmatpush1.bf16.msra.mxu0 %v6245
        %6637 = vmatprep.subr.bf16.mxu0 %v6250
        %6638 = vmatpush1.bf16.msra.mxu0 %v6249
        %6639 = vmatprep.subr.bf16.mxu0 %v6254
        %6640 = vmatpush1.bf16.msra.mxu0 %v6253
        %6641 = vmatprep.subr.bf16.mxu0 %v6258
        %6642 = vmatpush1.bf16.msra.mxu0 %v6257
        %6643 = vmatprep.subr.bf16.mxu0 %v6262
        %6644 = vmatpush1.bf16.msra.mxu0 %v6261
        %6645 = vmatprep.subr.bf16.mxu0 %v6266
        %6646 = vmatpush1.bf16.msra.mxu0 %v6265
        %6647 = vmatprep.subr.bf16.mxu0 %v6270
        %6648 = vmatpush1.bf16.msra.mxu0 %v6269
        %6649 = vmatprep.subr.bf16.mxu0 %v6274
        %6650 = vmatpush1.bf16.msra.mxu0 %v6273
        %6651 = vmatprep.subr.bf16.mxu0 %v6278
        %6652 = vmatpush1.bf16.msra.mxu0 %v6277
        %6653 = vmatprep.subr.bf16.mxu0 %v6282
        %6654 = vmatpush1.bf16.msra.mxu0 %v6281
        %6655 = vmatprep.subr.bf16.mxu0 %v6286
        %6656 = vmatpush1.bf16.msra.mxu0 %v6285
        %6657 = vmatprep.mubr.bf16.mxu0 %v5808
        %6658 = vmatmul.mubr.bf16.gmra.mrb[0].mxu0 %v5807
        %v6659 = vpop.f32.mrb[0].mxu0
        %v6660 = vadd.f32 0.0, %v6659
        %v6661 = vpop.f32.mrb[0].mxu0
        %v6662 = vadd.f32 0.0, %v6661
        %v6663 = vpop.f32.mrb[0].mxu0
        %v6664 = vadd.f32 0.0, %v6663
        %v6665 = vpop.f32.mrb[0].mxu0
        %v6666 = vadd.f32 0.0, %v6665
        %6667 = vmatprep.mubr.bf16.mxu0 %v5812
        %6668 = vmatmul.mubr.bf16.gmra.mrb[0].mxu0 %v5811
        %v6669 = vpop.f32.mrb[0].mxu0
        %v6670 = vadd.f32 0.0, %v6669
        %v6671 = vpop.f32.mrb[0].mxu0
        %v6672 = vadd.f32 0.0, %v6671
        %v6673 = vpop.f32.mrb[0].mxu0
        %v6674 = vadd.f32 0.0, %v6673
        %v6675 = vpop.f32.mrb[0].mxu0
        %v6676 = vadd.f32 0.0, %v6675
        %6677 = vmatprep.mubr.bf16.mxu0 %v5816
        %6678 = vmatmul.mubr.bf16.gmra.mrb[0].mxu0 %v5815
        %v6679 = vpop.f32.mrb[0].mxu0
        %v6680 = vadd.f32 0.0, %v6679
        %v6681 = vpop.f32.mrb[0].mxu0
        %v6682 = vadd.f32 0.0, %v6681
        %v6683 = vpop.f32.mrb[0].mxu0
        %v6684 = vadd.f32 0.0, %v6683
        %v6685 = vpop.f32.mrb[0].mxu0
        %v6686 = vadd.f32 0.0, %v6685
        %6687 = vmatprep.mubr.bf16.mxu0 %v5820
        %6688 = vmatmul.mubr.bf16.gmra.mrb[0].mxu0 %v5819
        %v6689 = vpop.f32.mrb[0].mxu0
        %v6690 = vadd.f32 0.0, %v6689
        %v6691 = vpop.f32.mrb[0].mxu0
        %v6692 = vadd.f32 0.0, %v6691
        %v6693 = vpop.f32.mrb[0].mxu0
        %v6694 = vadd.f32 0.0, %v6693
        %v6695 = vpop.f32.mrb[0].mxu0
        %v6696 = vadd.f32 0.0, %v6695
        %6697 = vdwg.mxu0
        %6698 = vmatprep.subr.bf16.mxu0 %v6290
        %6699 = vmatpush1.bf16.msra.mxu0 %v6289
        %6700 = vmatprep.subr.bf16.mxu0 %v6294
        %6701 = vmatpush1.bf16.msra.mxu0 %v6293
        %6702 = vmatprep.subr.bf16.mxu0 %v6298
        %6703 = vmatpush1.bf16.msra.mxu0 %v6297
        %6704 = vmatprep.subr.bf16.mxu0 %v6302
        %6705 = vmatpush1.bf16.msra.mxu0 %v6301
        %6706 = vmatprep.subr.bf16.mxu0 %v6306
        %6707 = vmatpush1.bf16.msra.mxu0 %v6305
        %6708 = vmatprep.subr.bf16.mxu0 %v6310
        %6709 = vmatpush1.bf16.msra.mxu0 %v6309
        %6710 = vmatprep.subr.bf16.mxu0 %v6314
        %6711 = vmatpush1.bf16.msra.mxu0 %v6313
        %6712 = vmatprep.subr.bf16.mxu0 %v6318
        %6713 = vmatpush1.bf16.msra.mxu0 %v6317
        %6714 = vmatprep.subr.bf16.mxu0 %v6322
        %6715 = vmatpush1.bf16.msra.mxu0 %v6321
        %6716 = vmatprep.subr.bf16.mxu0 %v6326
        %6717 = vmatpush1.bf16.msra.mxu0 %v6325
        %6718 = vmatprep.subr.bf16.mxu0 %v6330
        %6719 = vmatpush1.bf16.msra.mxu0 %v6329
        %6720 = vmatprep.subr.bf16.mxu0 %v6334
        %6721 = vmatpush1.bf16.msra.mxu0 %v6333
        %6722 = vmatprep.subr.bf16.mxu0 %v6338
        %6723 = vmatpush1.bf16.msra.mxu0 %v6337
        %6724 = vmatprep.subr.bf16.mxu0 %v6342
        %6725 = vmatpush1.bf16.msra.mxu0 %v6341
        %6726 = vmatprep.subr.bf16.mxu0 %v6346
        %6727 = vmatpush1.bf16.msra.mxu0 %v6345
        %6728 = vmatprep.subr.bf16.mxu0 %v6350
        %6729 = vmatpush1.bf16.msra.mxu0 %v6349
        %6730 = vmatprep.mubr.bf16.mxu0 %v5810
        %6731 = vmatmul.mubr.bf16.gmra.mrb[0].mxu0 %v5809
        %v6732 = vpop.f32.mrb[0].mxu0
        %v6733 = vadd.f32 %v6660, %v6732
        %v6734 = vpop.f32.mrb[0].mxu0
        %v6735 = vadd.f32 %v6662, %v6734
        %v6736 = vpop.f32.mrb[0].mxu0
        %v6737 = vadd.f32 %v6664, %v6736
        %v6738 = vpop.f32.mrb[0].mxu0
        %v6739 = vadd.f32 %v6666, %v6738
        %6740 = vmatprep.mubr.bf16.mxu0 %v5814
        %6741 = vmatmul.mubr.bf16.gmra.mrb[0].mxu0 %v5813
        %v6742 = vpop.f32.mrb[0].mxu0
        %v6743 = vadd.f32 %v6670, %v6742
        %v6744 = vpop.f32.mrb[0].mxu0
        %v6745 = vadd.f32 %v6672, %v6744
        %v6746 = vpop.f32.mrb[0].mxu0
        %v6747 = vadd.f32 %v6674, %v6746
        %v6748 = vpop.f32.mrb[0].mxu0
        %v6749 = vadd.f32 %v6676, %v6748
        %6750 = vmatprep.mubr.bf16.mxu0 %v5818
        %6751 = vmatmul.mubr.bf16.gmra.mrb[0].mxu0 %v5817
        %v6752 = vpop.f32.mrb[0].mxu0
        %v6753 = vadd.f32 %v6680, %v6752
        %v6754 = vpop.f32.mrb[0].mxu0
        %v6755 = vadd.f32 %v6682, %v6754
        %v6756 = vpop.f32.mrb[0].mxu0
        %v6757 = vadd.f32 %v6684, %v6756
        %v6758 = vpop.f32.mrb[0].mxu0
        %v6759 = vadd.f32 %v6686, %v6758
        %6760 = vmatprep.mubr.bf16.mxu0 %v5822
        %6761 = vmatmul.mubr.bf16.gmra.mrb[0].mxu0 %v5821
        %v6762 = vpop.f32.mrb[0].mxu0
        %v6763 = vadd.f32 %v6690, %v6762
        %v6764 = vpop.f32.mrb[0].mxu0
        %v6765 = vadd.f32 %v6692, %v6764
        %v6766 = vpop.f32.mrb[0].mxu0
        %v6767 = vadd.f32 %v6694, %v6766
        %v6768 = vpop.f32.mrb[0].mxu0
        %v6769 = vadd.f32 %v6696, %v6768
        %6770 = vdwg.mxu0
        %v6771 = vadd.f32 %v5356, %v6587
        %v6772 = vadd.f32 %v5357, %v6589
        %v6773 = vadd.f32 %v5358, %v6733
        %v6774 = vadd.f32 %v5359, %v6735
        %v6775 = vadd.f32 %v5360, %v6591
        %v6776 = vadd.f32 %v5361, %v6593
        %v6777 = vadd.f32 %v5362, %v6737
        %v6778 = vadd.f32 %v5363, %v6739
        %v6779 = vadd.f32 %v5364, %v6597
        %v6780 = vadd.f32 %v5365, %v6599
        %v6781 = vadd.f32 %v5366, %v6743
        %v6782 = vadd.f32 %v5367, %v6745
        %v6783 = vadd.f32 %v5368, %v6601
        %v6784 = vadd.f32 %v5369, %v6603
        %v6785 = vadd.f32 %v5370, %v6747
        %v6786 = vadd.f32 %v5371, %v6749
        %v6787 = vadd.f32 %v5372, %v6607
        %v6788 = vadd.f32 %v5373, %v6609
        %v6789 = vadd.f32 %v5374, %v6753
        %v6790 = vadd.f32 %v5375, %v6755
        %v6791 = vadd.f32 %v5376, %v6611
        %v6792 = vadd.f32 %v5377, %v6613
        %v6793 = vadd.f32 %v5378, %v6757
        %v6794 = vadd.f32 %v5379, %v6759
        %v6795 = vadd.f32 %v5380, %v6617
        %v6796 = vadd.f32 %v5381, %v6619
        %v6797 = vadd.f32 %v5382, %v6763
        %v6798 = vadd.f32 %v5383, %v6765
        %v6799 = vadd.f32 %v5384, %v6621
        %v6800 = vadd.f32 %v5385, %v6623
        %v6801 = vadd.f32 %v5386, %v6767
        %v6802 = vadd.f32 %v5387, %v6769
        %v6803 = vld [vmem:[%s4196] sm:$0xee]
        %v6804 = vld [vmem:[%s4196 + $0x8] sm:$0xee]
        %v6805 = vld [vmem:[%s4196 + $0x20] sm:$0xee]
        %v6806 = vld [vmem:[%s4196 + $0x28] sm:$0xee]
        %v6807 = vld [vmem:[%s4196 + $0x40] sm:$0xee]
        %v6808 = vld [vmem:[%s4196 + $0x48] sm:$0xee]
        %v6809 = vld [vmem:[%s4196 + $0x60] sm:$0xee]
        %v6810 = vld [vmem:[%s4196 + $0x68] sm:$0xee]
        %v6811 = vld [vmem:[%s4196 + $0x80] sm:$0xee]
        %v6812 = vld [vmem:[%s4196 + $0x88] sm:$0xee]
        %v6813 = vld [vmem:[%s4196 + $0xa0] sm:$0xee]
        %v6814 = vld [vmem:[%s4196 + $0xa8] sm:$0xee]
        %v6815 = vld [vmem:[%s4196 + $0xc0] sm:$0xee]
        %v6816 = vld [vmem:[%s4196 + $0xc8] sm:$0xee]
        %v6817 = vld [vmem:[%s4196 + $0xe0] sm:$0xee]
        %v6818 = vld [vmem:[%s4196 + $0xe8] sm:$0xee]
        %v6851 = vrot.slane %v6803, 5
        %v6852 = vrot.slane %v6851, 4
        %v6853 = vrot.slane %v5390, 5
        %v6854 = vsel %vm2972, %v6852, %v6853
        %v6855 = vrot.slane %v6804, 5
        %v6856 = vrot.slane %v6855, 4
        %v6857 = vrot.slane %v5391, 5
        %v6858 = vsel %vm2972, %v6856, %v6857
        %v6859 = vrot.slane %v6805, 5
        %v6860 = vrot.slane %v6859, 4
        %v6861 = vrot.slane %v5394, 5
        %v6862 = vsel %vm2972, %v6860, %v6861
        %v6863 = vrot.slane %v6806, 5
        %v6864 = vrot.slane %v6863, 4
        %v6865 = vrot.slane %v5395, 5
        %v6866 = vsel %vm2972, %v6864, %v6865
        %v6867 = vrot.slane %v6807, 5
        %v6868 = vrot.slane %v6867, 4
        %v6869 = vrot.slane %v5398, 5
        %v6870 = vsel %vm2972, %v6868, %v6869
        %v6871 = vrot.slane %v6808, 5
        %v6872 = vrot.slane %v6871, 4
        %v6873 = vrot.slane %v5399, 5
        %v6874 = vsel %vm2972, %v6872, %v6873
        %v6875 = vrot.slane %v6809, 5
        %v6876 = vrot.slane %v6875, 4
        %v6877 = vrot.slane %v5402, 5
        %v6878 = vsel %vm2972, %v6876, %v6877
        %v6879 = vrot.slane %v6810, 5
        %v6880 = vrot.slane %v6879, 4
        %v6881 = vrot.slane %v5403, 5
        %v6882 = vsel %vm2972, %v6880, %v6881
        %v6883 = vrot.slane %v6811, 5
        %v6884 = vrot.slane %v6883, 4
        %v6885 = vrot.slane %v5406, 5
        %v6886 = vsel %vm2972, %v6884, %v6885
        %v6887 = vrot.slane %v6812, 5
        %v6888 = vrot.slane %v6887, 4
        %v6889 = vrot.slane %v5407, 5
        %v6890 = vsel %vm2972, %v6888, %v6889
        %v6891 = vrot.slane %v6813, 5
        %v6892 = vrot.slane %v6891, 4
        %v6893 = vrot.slane %v5410, 5
        %v6894 = vsel %vm2972, %v6892, %v6893
        %v6895 = vrot.slane %v6814, 5
        %v6896 = vrot.slane %v6895, 4
        %v6897 = vrot.slane %v5411, 5
        %v6898 = vsel %vm2972, %v6896, %v6897
        %v6899 = vrot.slane %v6815, 5
        %v6900 = vrot.slane %v6899, 4
        %v6901 = vrot.slane %v5414, 5
        %v6902 = vsel %vm2972, %v6900, %v6901
        %v6903 = vrot.slane %v6816, 5
        %v6904 = vrot.slane %v6903, 4
        %v6905 = vrot.slane %v5415, 5
        %v6906 = vsel %vm2972, %v6904, %v6905
        %v6907 = vrot.slane %v6817, 5
        %v6908 = vrot.slane %v6907, 4
        %v6909 = vrot.slane %v5418, 5
        %v6910 = vsel %vm2972, %v6908, %v6909
        %v6911 = vrot.slane %v6818, 5
        %v6912 = vrot.slane %v6911, 4
        %v6913 = vrot.slane %v5419, 5
        %v6914 = vsel %vm2972, %v6912, %v6913
        %s6915 = sadd.s32 1280, %s329
        %s6916 = smul.addr %s6915, 4
        %s6917 = scalar_lea.vmem [#allocation6], %s6916
        %v6918 = vld [vmem:[%s6917] sm:$0xff]
        %v6919 = vld [vmem:[%s6917 + $0x8] sm:$0xff]
        %v6920 = vld [vmem:[%s6917 + $0x10] sm:$0xff]
        %v6921 = vld [vmem:[%s6917 + $0x18] sm:$0xff]
        %v6922 = vld [vmem:[%s6917 + $0x20] sm:$0xff]
        %v6923 = vld [vmem:[%s6917 + $0x28] sm:$0xff]
        %v6924 = vld [vmem:[%s6917 + $0x30] sm:$0xff]
        %v6925 = vld [vmem:[%s6917 + $0x38] sm:$0xff]
        %v6926 = vld [vmem:[%s6917 + $0x40] sm:$0xff]
        %v6927 = vld [vmem:[%s6917 + $0x48] sm:$0xff]
        %v6928 = vld [vmem:[%s6917 + $0x50] sm:$0xff]
        %v6929 = vld [vmem:[%s6917 + $0x58] sm:$0xff]
        %v6930 = vld [vmem:[%s6917 + $0x60] sm:$0xff]
        %v6931 = vld [vmem:[%s6917 + $0x68] sm:$0xff]
        %v6932 = vld [vmem:[%s6917 + $0x70] sm:$0xff]
        %v6933 = vld [vmem:[%s6917 + $0x78] sm:$0xff]
        %v6934 = vld [vmem:[%s6917 + $0x80] sm:$0xff]
        %v6935 = vld [vmem:[%s6917 + $0x88] sm:$0xff]
        %v6936 = vld [vmem:[%s6917 + $0x90] sm:$0xff]
        %v6937 = vld [vmem:[%s6917 + $0x98] sm:$0xff]
        %v6938 = vld [vmem:[%s6917 + $0xa0] sm:$0xff]
        %v6939 = vld [vmem:[%s6917 + $0xa8] sm:$0xff]
        %v6940 = vld [vmem:[%s6917 + $0xb0] sm:$0xff]
        %v6941 = vld [vmem:[%s6917 + $0xb8] sm:$0xff]
        %v6942 = vld [vmem:[%s6917 + $0xc0] sm:$0xff]
        %v6943 = vld [vmem:[%s6917 + $0xc8] sm:$0xff]
        %v6944 = vld [vmem:[%s6917 + $0xd0] sm:$0xff]
        %v6945 = vld [vmem:[%s6917 + $0xd8] sm:$0xff]
        %v6946 = vld [vmem:[%s6917 + $0xe0] sm:$0xff]
        %v6947 = vld [vmem:[%s6917 + $0xe8] sm:$0xff]
        %v6948 = vld [vmem:[%s6917 + $0xf0] sm:$0xff]
        %v6949 = vld [vmem:[%s6917 + $0xf8] sm:$0xff]
        %v6950 = vld [vmem:[%s6917 + $0x100] sm:$0xff]
        %v6951 = vld [vmem:[%s6917 + $0x108] sm:$0xff]
        %v6952 = vld [vmem:[%s6917 + $0x110] sm:$0xff]
        %v6953 = vld [vmem:[%s6917 + $0x118] sm:$0xff]
        %v6954 = vld [vmem:[%s6917 + $0x120] sm:$0xff]
        %v6955 = vld [vmem:[%s6917 + $0x128] sm:$0xff]
        %v6956 = vld [vmem:[%s6917 + $0x130] sm:$0xff]
        %v6957 = vld [vmem:[%s6917 + $0x138] sm:$0xff]
        %v6958 = vld [vmem:[%s6917 + $0x140] sm:$0xff]
        %v6959 = vld [vmem:[%s6917 + $0x148] sm:$0xff]
        %v6960 = vld [vmem:[%s6917 + $0x150] sm:$0xff]
        %v6961 = vld [vmem:[%s6917 + $0x158] sm:$0xff]
        %v6962 = vld [vmem:[%s6917 + $0x160] sm:$0xff]
        %v6963 = vld [vmem:[%s6917 + $0x168] sm:$0xff]
        %v6964 = vld [vmem:[%s6917 + $0x170] sm:$0xff]
        %v6965 = vld [vmem:[%s6917 + $0x178] sm:$0xff]
        %v6966 = vld [vmem:[%s6917 + $0x180] sm:$0xff]
        %v6967 = vld [vmem:[%s6917 + $0x188] sm:$0xff]
        %v6968 = vld [vmem:[%s6917 + $0x190] sm:$0xff]
        %v6969 = vld [vmem:[%s6917 + $0x198] sm:$0xff]
        %v6970 = vld [vmem:[%s6917 + $0x1a0] sm:$0xff]
        %v6971 = vld [vmem:[%s6917 + $0x1a8] sm:$0xff]
        %v6972 = vld [vmem:[%s6917 + $0x1b0] sm:$0xff]
        %v6973 = vld [vmem:[%s6917 + $0x1b8] sm:$0xff]
        %v6974 = vld [vmem:[%s6917 + $0x1c0] sm:$0xff]
        %v6975 = vld [vmem:[%s6917 + $0x1c8] sm:$0xff]
        %v6976 = vld [vmem:[%s6917 + $0x1d0] sm:$0xff]
        %v6977 = vld [vmem:[%s6917 + $0x1d8] sm:$0xff]
        %v6978 = vld [vmem:[%s6917 + $0x1e0] sm:$0xff]
        %v6979 = vld [vmem:[%s6917 + $0x1e8] sm:$0xff]
        %v6980 = vld [vmem:[%s6917 + $0x1f0] sm:$0xff]
        %v6981 = vld [vmem:[%s6917 + $0x1f8] sm:$0xff]
        %v6982 = vld [vmem:[%s6917 + $0x200] sm:$0xff]
        %v6983 = vld [vmem:[%s6917 + $0x208] sm:$0xff]
        %v6984 = vld [vmem:[%s6917 + $0x210] sm:$0xff]
        %v6985 = vld [vmem:[%s6917 + $0x218] sm:$0xff]
        %v6986 = vld [vmem:[%s6917 + $0x220] sm:$0xff]
        %v6987 = vld [vmem:[%s6917 + $0x228] sm:$0xff]
        %v6988 = vld [vmem:[%s6917 + $0x230] sm:$0xff]
        %v6989 = vld [vmem:[%s6917 + $0x238] sm:$0xff]
        %v6990 = vld [vmem:[%s6917 + $0x240] sm:$0xff]
        %v6991 = vld [vmem:[%s6917 + $0x248] sm:$0xff]
        %v6992 = vld [vmem:[%s6917 + $0x250] sm:$0xff]
        %v6993 = vld [vmem:[%s6917 + $0x258] sm:$0xff]
        %v6994 = vld [vmem:[%s6917 + $0x260] sm:$0xff]
        %v6995 = vld [vmem:[%s6917 + $0x268] sm:$0xff]
        %v6996 = vld [vmem:[%s6917 + $0x270] sm:$0xff]
        %v6997 = vld [vmem:[%s6917 + $0x278] sm:$0xff]
        %v6998 = vld [vmem:[%s6917 + $0x280] sm:$0xff]
        %v6999 = vld [vmem:[%s6917 + $0x288] sm:$0xff]
        %v7000 = vld [vmem:[%s6917 + $0x290] sm:$0xff]
        %v7001 = vld [vmem:[%s6917 + $0x298] sm:$0xff]
        %v7002 = vld [vmem:[%s6917 + $0x2a0] sm:$0xff]
        %v7003 = vld [vmem:[%s6917 + $0x2a8] sm:$0xff]
        %v7004 = vld [vmem:[%s6917 + $0x2b0] sm:$0xff]
        %v7005 = vld [vmem:[%s6917 + $0x2b8] sm:$0xff]
        %v7006 = vld [vmem:[%s6917 + $0x2c0] sm:$0xff]
        %v7007 = vld [vmem:[%s6917 + $0x2c8] sm:$0xff]
        %v7008 = vld [vmem:[%s6917 + $0x2d0] sm:$0xff]
        %v7009 = vld [vmem:[%s6917 + $0x2d8] sm:$0xff]
        %v7010 = vld [vmem:[%s6917 + $0x2e0] sm:$0xff]
        %v7011 = vld [vmem:[%s6917 + $0x2e8] sm:$0xff]
        %v7012 = vld [vmem:[%s6917 + $0x2f0] sm:$0xff]
        %v7013 = vld [vmem:[%s6917 + $0x2f8] sm:$0xff]
        %v7014 = vld [vmem:[%s6917 + $0x300] sm:$0xff]
        %v7015 = vld [vmem:[%s6917 + $0x308] sm:$0xff]
        %v7016 = vld [vmem:[%s6917 + $0x310] sm:$0xff]
        %v7017 = vld [vmem:[%s6917 + $0x318] sm:$0xff]
        %v7018 = vld [vmem:[%s6917 + $0x320] sm:$0xff]
        %v7019 = vld [vmem:[%s6917 + $0x328] sm:$0xff]
        %v7020 = vld [vmem:[%s6917 + $0x330] sm:$0xff]
        %v7021 = vld [vmem:[%s6917 + $0x338] sm:$0xff]
        %v7022 = vld [vmem:[%s6917 + $0x340] sm:$0xff]
        %v7023 = vld [vmem:[%s6917 + $0x348] sm:$0xff]
        %v7024 = vld [vmem:[%s6917 + $0x350] sm:$0xff]
        %v7025 = vld [vmem:[%s6917 + $0x358] sm:$0xff]
        %v7026 = vld [vmem:[%s6917 + $0x360] sm:$0xff]
        %v7027 = vld [vmem:[%s6917 + $0x368] sm:$0xff]
        %v7028 = vld [vmem:[%s6917 + $0x370] sm:$0xff]
        %v7029 = vld [vmem:[%s6917 + $0x378] sm:$0xff]
        %v7030 = vld [vmem:[%s6917 + $0x380] sm:$0xff]
        %v7031 = vld [vmem:[%s6917 + $0x388] sm:$0xff]
        %v7032 = vld [vmem:[%s6917 + $0x390] sm:$0xff]
        %v7033 = vld [vmem:[%s6917 + $0x398] sm:$0xff]
        %v7034 = vld [vmem:[%s6917 + $0x3a0] sm:$0xff]
        %v7035 = vld [vmem:[%s6917 + $0x3a8] sm:$0xff]
        %v7036 = vld [vmem:[%s6917 + $0x3b0] sm:$0xff]
        %v7037 = vld [vmem:[%s6917 + $0x3b8] sm:$0xff]
        %v7038 = vld [vmem:[%s6917 + $0x3c0] sm:$0xff]
        %v7039 = vld [vmem:[%s6917 + $0x3c8] sm:$0xff]
        %v7040 = vld [vmem:[%s6917 + $0x3d0] sm:$0xff]
        %v7041 = vld [vmem:[%s6917 + $0x3d8] sm:$0xff]
        %v7042 = vld [vmem:[%s6917 + $0x3e0] sm:$0xff]
        %v7043 = vld [vmem:[%s6917 + $0x3e8] sm:$0xff]
        %v7044 = vld [vmem:[%s6917 + $0x3f0] sm:$0xff]
        %v7045 = vld [vmem:[%s6917 + $0x3f8] sm:$0xff]
        %v7046 = vunpack.c.l.b16 %v6854
        %v7047 = vunpack.c.h.b16 %v6854
        %v7048 = vunpack.c.l.b16 %v6858
        %v7049 = vunpack.c.h.b16 %v6858
        %v7050 = vunpack.c.l.b16 %v6862
        %v7051 = vunpack.c.h.b16 %v6862
        %v7052 = vunpack.c.l.b16 %v6866
        %v7053 = vunpack.c.h.b16 %v6866
        %v7054 = vunpack.c.l.b16 %v6870
        %v7055 = vunpack.c.h.b16 %v6870
        %v7056 = vunpack.c.l.b16 %v6874
        %v7057 = vunpack.c.h.b16 %v6874
        %v7058 = vunpack.c.l.b16 %v6878
        %v7059 = vunpack.c.h.b16 %v6878
        %v7060 = vunpack.c.l.b16 %v6882
        %v7061 = vunpack.c.h.b16 %v6882
        %v7062 = vunpack.c.l.b16 %v6886
        %v7063 = vunpack.c.h.b16 %v6886
        %v7064 = vunpack.c.l.b16 %v6890
        %v7065 = vunpack.c.h.b16 %v6890
        %v7066 = vunpack.c.l.b16 %v6894
        %v7067 = vunpack.c.h.b16 %v6894
        %v7068 = vunpack.c.l.b16 %v6898
        %v7069 = vunpack.c.h.b16 %v6898
        %v7070 = vunpack.c.l.b16 %v6902
        %v7071 = vunpack.c.h.b16 %v6902
        %v7072 = vunpack.c.l.b16 %v6906
        %v7073 = vunpack.c.h.b16 %v6906
        %v7074 = vunpack.c.l.b16 %v6910
        %v7075 = vunpack.c.h.b16 %v6910
        %v7076 = vunpack.c.l.b16 %v6914
        %v7077 = vunpack.c.h.b16 %v6914
        %v7078 = vpack.c.b16 %v7050, %v7046
        %v7079 = vpack.c.b16 %v7051, %v7047
        %v7080 = vpack.c.b16 %v7052, %v7048
        %v7081 = vpack.c.b16 %v7053, %v7049
        %v7082 = vpack.c.b16 %v7058, %v7054
        %v7083 = vpack.c.b16 %v7059, %v7055
        %v7084 = vpack.c.b16 %v7060, %v7056
        %v7085 = vpack.c.b16 %v7061, %v7057
        %v7086 = vpack.c.b16 %v7066, %v7062
        %v7087 = vpack.c.b16 %v7067, %v7063
        %v7088 = vpack.c.b16 %v7068, %v7064
        %v7089 = vpack.c.b16 %v7069, %v7065
        %v7090 = vpack.c.b16 %v7074, %v7070
        %v7091 = vpack.c.b16 %v7075, %v7071
        %v7092 = vpack.c.b16 %v7076, %v7072
        %v7093 = vpack.c.b16 %v7077, %v7073
        %v7238 = vunpack.c.l.b16 %v6918
        %v7239 = vunpack.c.h.b16 %v6918
        %v7240 = vunpack.c.l.b16 %v6919
        %v7241 = vunpack.c.h.b16 %v6919
        %v7242 = vunpack.c.l.b16 %v6920
        %v7243 = vunpack.c.h.b16 %v6920
        %v7244 = vunpack.c.l.b16 %v6921
        %v7245 = vunpack.c.h.b16 %v6921
        %v7246 = vunpack.c.l.b16 %v6922
        %v7247 = vunpack.c.h.b16 %v6922
        %v7248 = vunpack.c.l.b16 %v6923
        %v7249 = vunpack.c.h.b16 %v6923
        %v7250 = vunpack.c.l.b16 %v6924
        %v7251 = vunpack.c.h.b16 %v6924
        %v7252 = vunpack.c.l.b16 %v6925
        %v7253 = vunpack.c.h.b16 %v6925
        %v7254 = vunpack.c.l.b16 %v6926
        %v7255 = vunpack.c.h.b16 %v6926
        %v7256 = vunpack.c.l.b16 %v6927
        %v7257 = vunpack.c.h.b16 %v6927
        %v7258 = vunpack.c.l.b16 %v6928
        %v7259 = vunpack.c.h.b16 %v6928
        %v7260 = vunpack.c.l.b16 %v6929
        %v7261 = vunpack.c.h.b16 %v6929
        %v7262 = vunpack.c.l.b16 %v6930
        %v7263 = vunpack.c.h.b16 %v6930
        %v7264 = vunpack.c.l.b16 %v6931
        %v7265 = vunpack.c.h.b16 %v6931
        %v7266 = vunpack.c.l.b16 %v6932
        %v7267 = vunpack.c.h.b16 %v6932
        %v7268 = vunpack.c.l.b16 %v6933
        %v7269 = vunpack.c.h.b16 %v6933
        %v7270 = vunpack.c.l.b16 %v6934
        %v7271 = vunpack.c.h.b16 %v6934
        %v7272 = vunpack.c.l.b16 %v6935
        %v7273 = vunpack.c.h.b16 %v6935
        %v7274 = vunpack.c.l.b16 %v6936
        %v7275 = vunpack.c.h.b16 %v6936
        %v7276 = vunpack.c.l.b16 %v6937
        %v7277 = vunpack.c.h.b16 %v6937
        %v7278 = vunpack.c.l.b16 %v6938
        %v7279 = vunpack.c.h.b16 %v6938
        %v7280 = vunpack.c.l.b16 %v6939
        %v7281 = vunpack.c.h.b16 %v6939
        %v7282 = vunpack.c.l.b16 %v6940
        %v7283 = vunpack.c.h.b16 %v6940
        %v7284 = vunpack.c.l.b16 %v6941
        %v7285 = vunpack.c.h.b16 %v6941
        %v7286 = vunpack.c.l.b16 %v6942
        %v7287 = vunpack.c.h.b16 %v6942
        %v7288 = vunpack.c.l.b16 %v6943
        %v7289 = vunpack.c.h.b16 %v6943
        %v7290 = vunpack.c.l.b16 %v6944
        %v7291 = vunpack.c.h.b16 %v6944
        %v7292 = vunpack.c.l.b16 %v6945
        %v7293 = vunpack.c.h.b16 %v6945
        %v7294 = vunpack.c.l.b16 %v6946
        %v7295 = vunpack.c.h.b16 %v6946
        %v7296 = vunpack.c.l.b16 %v6947
        %v7297 = vunpack.c.h.b16 %v6947
        %v7298 = vunpack.c.l.b16 %v6948
        %v7299 = vunpack.c.h.b16 %v6948
        %v7300 = vunpack.c.l.b16 %v6949
        %v7301 = vunpack.c.h.b16 %v6949
        %v7302 = vunpack.c.l.b16 %v6950
        %v7303 = vunpack.c.h.b16 %v6950
        %v7304 = vunpack.c.l.b16 %v6951
        %v7305 = vunpack.c.h.b16 %v6951
        %v7306 = vunpack.c.l.b16 %v6952
        %v7307 = vunpack.c.h.b16 %v6952
        %v7308 = vunpack.c.l.b16 %v6953
        %v7309 = vunpack.c.h.b16 %v6953
        %v7310 = vunpack.c.l.b16 %v6954
        %v7311 = vunpack.c.h.b16 %v6954
        %v7312 = vunpack.c.l.b16 %v6955
        %v7313 = vunpack.c.h.b16 %v6955
        %v7314 = vunpack.c.l.b16 %v6956
        %v7315 = vunpack.c.h.b16 %v6956
        %v7316 = vunpack.c.l.b16 %v6957
        %v7317 = vunpack.c.h.b16 %v6957
        %v7318 = vunpack.c.l.b16 %v6958
        %v7319 = vunpack.c.h.b16 %v6958
        %v7320 = vunpack.c.l.b16 %v6959
        %v7321 = vunpack.c.h.b16 %v6959
        %v7322 = vunpack.c.l.b16 %v6960
        %v7323 = vunpack.c.h.b16 %v6960
        %v7324 = vunpack.c.l.b16 %v6961
        %v7325 = vunpack.c.h.b16 %v6961
        %v7326 = vunpack.c.l.b16 %v6962
        %v7327 = vunpack.c.h.b16 %v6962
        %v7328 = vunpack.c.l.b16 %v6963
        %v7329 = vunpack.c.h.b16 %v6963
        %v7330 = vunpack.c.l.b16 %v6964
        %v7331 = vunpack.c.h.b16 %v6964
        %v7332 = vunpack.c.l.b16 %v6965
        %v7333 = vunpack.c.h.b16 %v6965
        %v7334 = vunpack.c.l.b16 %v6966
        %v7335 = vunpack.c.h.b16 %v6966
        %v7336 = vunpack.c.l.b16 %v6967
        %v7337 = vunpack.c.h.b16 %v6967
        %v7338 = vunpack.c.l.b16 %v6968
        %v7339 = vunpack.c.h.b16 %v6968
        %v7340 = vunpack.c.l.b16 %v6969
        %v7341 = vunpack.c.h.b16 %v6969
        %v7342 = vunpack.c.l.b16 %v6970
        %v7343 = vunpack.c.h.b16 %v6970
        %v7344 = vunpack.c.l.b16 %v6971
        %v7345 = vunpack.c.h.b16 %v6971
        %v7346 = vunpack.c.l.b16 %v6972
        %v7347 = vunpack.c.h.b16 %v6972
        %v7348 = vunpack.c.l.b16 %v6973
        %v7349 = vunpack.c.h.b16 %v6973
        %v7350 = vunpack.c.l.b16 %v6974
        %v7351 = vunpack.c.h.b16 %v6974
        %v7352 = vunpack.c.l.b16 %v6975
        %v7353 = vunpack.c.h.b16 %v6975
        %v7354 = vunpack.c.l.b16 %v6976
        %v7355 = vunpack.c.h.b16 %v6976
        %v7356 = vunpack.c.l.b16 %v6977
        %v7357 = vunpack.c.h.b16 %v6977
        %v7358 = vunpack.c.l.b16 %v6978
        %v7359 = vunpack.c.h.b16 %v6978
        %v7360 = vunpack.c.l.b16 %v6979
        %v7361 = vunpack.c.h.b16 %v6979
        %v7362 = vunpack.c.l.b16 %v6980
        %v7363 = vunpack.c.h.b16 %v6980
        %v7364 = vunpack.c.l.b16 %v6981
        %v7365 = vunpack.c.h.b16 %v6981
        %v7366 = vunpack.c.l.b16 %v6982
        %v7367 = vunpack.c.h.b16 %v6982
        %v7368 = vunpack.c.l.b16 %v6983
        %v7369 = vunpack.c.h.b16 %v6983
        %v7370 = vunpack.c.l.b16 %v6984
        %v7371 = vunpack.c.h.b16 %v6984
        %v7372 = vunpack.c.l.b16 %v6985
        %v7373 = vunpack.c.h.b16 %v6985
        %v7374 = vunpack.c.l.b16 %v6986
        %v7375 = vunpack.c.h.b16 %v6986
        %v7376 = vunpack.c.l.b16 %v6987
        %v7377 = vunpack.c.h.b16 %v6987
        %v7378 = vunpack.c.l.b16 %v6988
        %v7379 = vunpack.c.h.b16 %v6988
        %v7380 = vunpack.c.l.b16 %v6989
        %v7381 = vunpack.c.h.b16 %v6989
        %v7382 = vunpack.c.l.b16 %v6990
        %v7383 = vunpack.c.h.b16 %v6990
        %v7384 = vunpack.c.l.b16 %v6991
        %v7385 = vunpack.c.h.b16 %v6991
        %v7386 = vunpack.c.l.b16 %v6992
        %v7387 = vunpack.c.h.b16 %v6992
        %v7388 = vunpack.c.l.b16 %v6993
        %v7389 = vunpack.c.h.b16 %v6993
        %v7390 = vunpack.c.l.b16 %v6994
        %v7391 = vunpack.c.h.b16 %v6994
        %v7392 = vunpack.c.l.b16 %v6995
        %v7393 = vunpack.c.h.b16 %v6995
        %v7394 = vunpack.c.l.b16 %v6996
        %v7395 = vunpack.c.h.b16 %v6996
        %v7396 = vunpack.c.l.b16 %v6997
        %v7397 = vunpack.c.h.b16 %v6997
        %v7398 = vunpack.c.l.b16 %v6998
        %v7399 = vunpack.c.h.b16 %v6998
        %v7400 = vunpack.c.l.b16 %v6999
        %v7401 = vunpack.c.h.b16 %v6999
        %v7402 = vunpack.c.l.b16 %v7000
        %v7403 = vunpack.c.h.b16 %v7000
        %v7404 = vunpack.c.l.b16 %v7001
        %v7405 = vunpack.c.h.b16 %v7001
        %v7406 = vunpack.c.l.b16 %v7002
        %v7407 = vunpack.c.h.b16 %v7002
        %v7408 = vunpack.c.l.b16 %v7003
        %v7409 = vunpack.c.h.b16 %v7003
        %v7410 = vunpack.c.l.b16 %v7004
        %v7411 = vunpack.c.h.b16 %v7004
        %v7412 = vunpack.c.l.b16 %v7005
        %v7413 = vunpack.c.h.b16 %v7005
        %v7414 = vunpack.c.l.b16 %v7006
        %v7415 = vunpack.c.h.b16 %v7006
        %v7416 = vunpack.c.l.b16 %v7007
        %v7417 = vunpack.c.h.b16 %v7007
        %v7418 = vunpack.c.l.b16 %v7008
        %v7419 = vunpack.c.h.b16 %v7008
        %v7420 = vunpack.c.l.b16 %v7009
        %v7421 = vunpack.c.h.b16 %v7009
        %v7422 = vunpack.c.l.b16 %v7010
        %v7423 = vunpack.c.h.b16 %v7010
        %v7424 = vunpack.c.l.b16 %v7011
        %v7425 = vunpack.c.h.b16 %v7011
        %v7426 = vunpack.c.l.b16 %v7012
        %v7427 = vunpack.c.h.b16 %v7012
        %v7428 = vunpack.c.l.b16 %v7013
        %v7429 = vunpack.c.h.b16 %v7013
        %v7430 = vunpack.c.l.b16 %v7014
        %v7431 = vunpack.c.h.b16 %v7014
        %v7432 = vunpack.c.l.b16 %v7015
        %v7433 = vunpack.c.h.b16 %v7015
        %v7434 = vunpack.c.l.b16 %v7016
        %v7435 = vunpack.c.h.b16 %v7016
        %v7436 = vunpack.c.l.b16 %v7017
        %v7437 = vunpack.c.h.b16 %v7017
        %v7438 = vunpack.c.l.b16 %v7018
        %v7439 = vunpack.c.h.b16 %v7018
        %v7440 = vunpack.c.l.b16 %v7019
        %v7441 = vunpack.c.h.b16 %v7019
        %v7442 = vunpack.c.l.b16 %v7020
        %v7443 = vunpack.c.h.b16 %v7020
        %v7444 = vunpack.c.l.b16 %v7021
        %v7445 = vunpack.c.h.b16 %v7021
        %v7446 = vunpack.c.l.b16 %v7022
        %v7447 = vunpack.c.h.b16 %v7022
        %v7448 = vunpack.c.l.b16 %v7023
        %v7449 = vunpack.c.h.b16 %v7023
        %v7450 = vunpack.c.l.b16 %v7024
        %v7451 = vunpack.c.h.b16 %v7024
        %v7452 = vunpack.c.l.b16 %v7025
        %v7453 = vunpack.c.h.b16 %v7025
        %v7454 = vunpack.c.l.b16 %v7026
        %v7455 = vunpack.c.h.b16 %v7026
        %v7456 = vunpack.c.l.b16 %v7027
        %v7457 = vunpack.c.h.b16 %v7027
        %v7458 = vunpack.c.l.b16 %v7028
        %v7459 = vunpack.c.h.b16 %v7028
        %v7460 = vunpack.c.l.b16 %v7029
        %v7461 = vunpack.c.h.b16 %v7029
        %v7462 = vunpack.c.l.b16 %v7030
        %v7463 = vunpack.c.h.b16 %v7030
        %v7464 = vunpack.c.l.b16 %v7031
        %v7465 = vunpack.c.h.b16 %v7031
        %v7466 = vunpack.c.l.b16 %v7032
        %v7467 = vunpack.c.h.b16 %v7032
        %v7468 = vunpack.c.l.b16 %v7033
        %v7469 = vunpack.c.h.b16 %v7033
        %v7470 = vunpack.c.l.b16 %v7034
        %v7471 = vunpack.c.h.b16 %v7034
        %v7472 = vunpack.c.l.b16 %v7035
        %v7473 = vunpack.c.h.b16 %v7035
        %v7474 = vunpack.c.l.b16 %v7036
        %v7475 = vunpack.c.h.b16 %v7036
        %v7476 = vunpack.c.l.b16 %v7037
        %v7477 = vunpack.c.h.b16 %v7037
        %v7478 = vunpack.c.l.b16 %v7038
        %v7479 = vunpack.c.h.b16 %v7038
        %v7480 = vunpack.c.l.b16 %v7039
        %v7481 = vunpack.c.h.b16 %v7039
        %v7482 = vunpack.c.l.b16 %v7040
        %v7483 = vunpack.c.h.b16 %v7040
        %v7484 = vunpack.c.l.b16 %v7041
        %v7485 = vunpack.c.h.b16 %v7041
        %v7486 = vunpack.c.l.b16 %v7042
        %v7487 = vunpack.c.h.b16 %v7042
        %v7488 = vunpack.c.l.b16 %v7043
        %v7489 = vunpack.c.h.b16 %v7043
        %v7490 = vunpack.c.l.b16 %v7044
        %v7491 = vunpack.c.h.b16 %v7044
        %v7492 = vunpack.c.l.b16 %v7045
        %v7493 = vunpack.c.h.b16 %v7045
        %v7494 = vpack.c.b16 %v7242, %v7238
        %v7495 = vpack.c.b16 %v7243, %v7239
        %v7496 = vpack.c.b16 %v7244, %v7240
        %v7497 = vpack.c.b16 %v7245, %v7241
        %v7498 = vpack.c.b16 %v7250, %v7246
        %v7499 = vpack.c.b16 %v7251, %v7247
        %v7500 = vpack.c.b16 %v7252, %v7248
        %v7501 = vpack.c.b16 %v7253, %v7249
        %v7502 = vpack.c.b16 %v7258, %v7254
        %v7503 = vpack.c.b16 %v7259, %v7255
        %v7504 = vpack.c.b16 %v7260, %v7256
        %v7505 = vpack.c.b16 %v7261, %v7257
        %v7506 = vpack.c.b16 %v7266, %v7262
        %v7507 = vpack.c.b16 %v7267, %v7263
        %v7508 = vpack.c.b16 %v7268, %v7264
        %v7509 = vpack.c.b16 %v7269, %v7265
        %v7510 = vpack.c.b16 %v7274, %v7270
        %v7511 = vpack.c.b16 %v7275, %v7271
        %v7512 = vpack.c.b16 %v7276, %v7272
        %v7513 = vpack.c.b16 %v7277, %v7273
        %v7514 = vpack.c.b16 %v7282, %v7278
        %v7515 = vpack.c.b16 %v7283, %v7279
        %v7516 = vpack.c.b16 %v7284, %v7280
        %v7517 = vpack.c.b16 %v7285, %v7281
        %v7518 = vpack.c.b16 %v7290, %v7286
        %v7519 = vpack.c.b16 %v7291, %v7287
        %v7520 = vpack.c.b16 %v7292, %v7288
        %v7521 = vpack.c.b16 %v7293, %v7289
        %v7522 = vpack.c.b16 %v7298, %v7294
        %v7523 = vpack.c.b16 %v7299, %v7295
        %v7524 = vpack.c.b16 %v7300, %v7296
        %v7525 = vpack.c.b16 %v7301, %v7297
        %v7526 = vpack.c.b16 %v7306, %v7302
        %v7527 = vpack.c.b16 %v7307, %v7303
        %v7528 = vpack.c.b16 %v7308, %v7304
        %v7529 = vpack.c.b16 %v7309, %v7305
        %v7530 = vpack.c.b16 %v7314, %v7310
        %v7531 = vpack.c.b16 %v7315, %v7311
        %v7532 = vpack.c.b16 %v7316, %v7312
        %v7533 = vpack.c.b16 %v7317, %v7313
        %v7534 = vpack.c.b16 %v7322, %v7318
        %v7535 = vpack.c.b16 %v7323, %v7319
        %v7536 = vpack.c.b16 %v7324, %v7320
        %v7537 = vpack.c.b16 %v7325, %v7321
        %v7538 = vpack.c.b16 %v7330, %v7326
        %v7539 = vpack.c.b16 %v7331, %v7327
        %v7540 = vpack.c.b16 %v7332, %v7328
        %v7541 = vpack.c.b16 %v7333, %v7329
        %v7542 = vpack.c.b16 %v7338, %v7334
        %v7543 = vpack.c.b16 %v7339, %v7335
        %v7544 = vpack.c.b16 %v7340, %v7336
        %v7545 = vpack.c.b16 %v7341, %v7337
        %v7546 = vpack.c.b16 %v7346, %v7342
        %v7547 = vpack.c.b16 %v7347, %v7343
        %v7548 = vpack.c.b16 %v7348, %v7344
        %v7549 = vpack.c.b16 %v7349, %v7345
        %v7550 = vpack.c.b16 %v7354, %v7350
        %v7551 = vpack.c.b16 %v7355, %v7351
        %v7552 = vpack.c.b16 %v7356, %v7352
        %v7553 = vpack.c.b16 %v7357, %v7353
        %v7554 = vpack.c.b16 %v7362, %v7358
        %v7555 = vpack.c.b16 %v7363, %v7359
        %v7556 = vpack.c.b16 %v7364, %v7360
        %v7557 = vpack.c.b16 %v7365, %v7361
        %v7558 = vpack.c.b16 %v7370, %v7366
        %v7559 = vpack.c.b16 %v7371, %v7367
        %v7560 = vpack.c.b16 %v7372, %v7368
        %v7561 = vpack.c.b16 %v7373, %v7369
        %v7562 = vpack.c.b16 %v7378, %v7374
        %v7563 = vpack.c.b16 %v7379, %v7375
        %v7564 = vpack.c.b16 %v7380, %v7376
        %v7565 = vpack.c.b16 %v7381, %v7377
        %v7566 = vpack.c.b16 %v7386, %v7382
        %v7567 = vpack.c.b16 %v7387, %v7383
        %v7568 = vpack.c.b16 %v7388, %v7384
        %v7569 = vpack.c.b16 %v7389, %v7385
        %v7570 = vpack.c.b16 %v7394, %v7390
        %v7571 = vpack.c.b16 %v7395, %v7391
        %v7572 = vpack.c.b16 %v7396, %v7392
        %v7573 = vpack.c.b16 %v7397, %v7393
        %v7574 = vpack.c.b16 %v7402, %v7398
        %v7575 = vpack.c.b16 %v7403, %v7399
        %v7576 = vpack.c.b16 %v7404, %v7400
        %v7577 = vpack.c.b16 %v7405, %v7401
        %v7578 = vpack.c.b16 %v7410, %v7406
        %v7579 = vpack.c.b16 %v7411, %v7407
        %v7580 = vpack.c.b16 %v7412, %v7408
        %v7581 = vpack.c.b16 %v7413, %v7409
        %v7582 = vpack.c.b16 %v7418, %v7414
        %v7583 = vpack.c.b16 %v7419, %v7415
        %v7584 = vpack.c.b16 %v7420, %v7416
        %v7585 = vpack.c.b16 %v7421, %v7417
        %v7586 = vpack.c.b16 %v7426, %v7422
        %v7587 = vpack.c.b16 %v7427, %v7423
        %v7588 = vpack.c.b16 %v7428, %v7424
        %v7589 = vpack.c.b16 %v7429, %v7425
        %v7590 = vpack.c.b16 %v7434, %v7430
        %v7591 = vpack.c.b16 %v7435, %v7431
        %v7592 = vpack.c.b16 %v7436, %v7432
        %v7593 = vpack.c.b16 %v7437, %v7433
        %v7594 = vpack.c.b16 %v7442, %v7438
        %v7595 = vpack.c.b16 %v7443, %v7439
        %v7596 = vpack.c.b16 %v7444, %v7440
        %v7597 = vpack.c.b16 %v7445, %v7441
        %v7598 = vpack.c.b16 %v7450, %v7446
        %v7599 = vpack.c.b16 %v7451, %v7447
        %v7600 = vpack.c.b16 %v7452, %v7448
        %v7601 = vpack.c.b16 %v7453, %v7449
        %v7602 = vpack.c.b16 %v7458, %v7454
        %v7603 = vpack.c.b16 %v7459, %v7455
        %v7604 = vpack.c.b16 %v7460, %v7456
        %v7605 = vpack.c.b16 %v7461, %v7457
        %v7606 = vpack.c.b16 %v7466, %v7462
        %v7607 = vpack.c.b16 %v7467, %v7463
        %v7608 = vpack.c.b16 %v7468, %v7464
        %v7609 = vpack.c.b16 %v7469, %v7465
        %v7610 = vpack.c.b16 %v7474, %v7470
        %v7611 = vpack.c.b16 %v7475, %v7471
        %v7612 = vpack.c.b16 %v7476, %v7472
        %v7613 = vpack.c.b16 %v7477, %v7473
        %v7614 = vpack.c.b16 %v7482, %v7478
        %v7615 = vpack.c.b16 %v7483, %v7479
        %v7616 = vpack.c.b16 %v7484, %v7480
        %v7617 = vpack.c.b16 %v7485, %v7481
        %v7618 = vpack.c.b16 %v7490, %v7486
        %v7619 = vpack.c.b16 %v7491, %v7487
        %v7620 = vpack.c.b16 %v7492, %v7488
        %v7621 = vpack.c.b16 %v7493, %v7489
        %7750 = vmatprep.subr.bf16.mxu0 %v7495
        %7751 = vmatpush1.bf16.msra.mxu0 %v7494
        %7752 = vmatprep.subr.bf16.mxu0 %v7499
        %7753 = vmatpush1.bf16.msra.mxu0 %v7498
        %7754 = vmatprep.subr.bf16.mxu0 %v7503
        %7755 = vmatpush1.bf16.msra.mxu0 %v7502
        %7756 = vmatprep.subr.bf16.mxu0 %v7507
        %7757 = vmatpush1.bf16.msra.mxu0 %v7506
        %7758 = vmatprep.subr.bf16.mxu0 %v7511
        %7759 = vmatpush1.bf16.msra.mxu0 %v7510
        %7760 = vmatprep.subr.bf16.mxu0 %v7515
        %7761 = vmatpush1.bf16.msra.mxu0 %v7514
        %7762 = vmatprep.subr.bf16.mxu0 %v7519
        %7763 = vmatpush1.bf16.msra.mxu0 %v7518
        %7764 = vmatprep.subr.bf16.mxu0 %v7523
        %7765 = vmatpush1.bf16.msra.mxu0 %v7522
        %7766 = vmatprep.subr.bf16.mxu0 %v7527
        %7767 = vmatpush1.bf16.msra.mxu0 %v7526
        %7768 = vmatprep.subr.bf16.mxu0 %v7531
        %7769 = vmatpush1.bf16.msra.mxu0 %v7530
        %7770 = vmatprep.subr.bf16.mxu0 %v7535
        %7771 = vmatpush1.bf16.msra.mxu0 %v7534
        %7772 = vmatprep.subr.bf16.mxu0 %v7539
        %7773 = vmatpush1.bf16.msra.mxu0 %v7538
        %7774 = vmatprep.subr.bf16.mxu0 %v7543
        %7775 = vmatpush1.bf16.msra.mxu0 %v7542
        %7776 = vmatprep.subr.bf16.mxu0 %v7547
        %7777 = vmatpush1.bf16.msra.mxu0 %v7546
        %7778 = vmatprep.subr.bf16.mxu0 %v7551
        %7779 = vmatpush1.bf16.msra.mxu0 %v7550
        %7780 = vmatprep.subr.bf16.mxu0 %v7555
        %7781 = vmatpush1.bf16.msra.mxu0 %v7554
        %7782 = vmatprep.mubr.bf16.mxu0 %v7079
        %7783 = vmatmul.mubr.bf16.gmra.mrb[0].mxu0 %v7078
        %v7784 = vpop.f32.mrb[0].mxu0
        %v7785 = vadd.f32 0.0, %v7784
        %v7786 = vpop.f32.mrb[0].mxu0
        %v7787 = vadd.f32 0.0, %v7786
        %v7788 = vpop.f32.mrb[0].mxu0
        %v7789 = vadd.f32 0.0, %v7788
        %v7790 = vpop.f32.mrb[0].mxu0
        %v7791 = vadd.f32 0.0, %v7790
        %7792 = vmatprep.mubr.bf16.mxu0 %v7083
        %7793 = vmatmul.mubr.bf16.gmra.mrb[0].mxu0 %v7082
        %v7794 = vpop.f32.mrb[0].mxu0
        %v7795 = vadd.f32 0.0, %v7794
        %v7796 = vpop.f32.mrb[0].mxu0
        %v7797 = vadd.f32 0.0, %v7796
        %v7798 = vpop.f32.mrb[0].mxu0
        %v7799 = vadd.f32 0.0, %v7798
        %v7800 = vpop.f32.mrb[0].mxu0
        %v7801 = vadd.f32 0.0, %v7800
        %7802 = vmatprep.mubr.bf16.mxu0 %v7087
        %7803 = vmatmul.mubr.bf16.gmra.mrb[0].mxu0 %v7086
        %v7804 = vpop.f32.mrb[0].mxu0
        %v7805 = vadd.f32 0.0, %v7804
        %v7806 = vpop.f32.mrb[0].mxu0
        %v7807 = vadd.f32 0.0, %v7806
        %v7808 = vpop.f32.mrb[0].mxu0
        %v7809 = vadd.f32 0.0, %v7808
        %v7810 = vpop.f32.mrb[0].mxu0
        %v7811 = vadd.f32 0.0, %v7810
        %7812 = vmatprep.mubr.bf16.mxu0 %v7091
        %7813 = vmatmul.mubr.bf16.gmra.mrb[0].mxu0 %v7090
        %v7814 = vpop.f32.mrb[0].mxu0
        %v7815 = vadd.f32 0.0, %v7814
        %v7816 = vpop.f32.mrb[0].mxu0
        %v7817 = vadd.f32 0.0, %v7816
        %v7818 = vpop.f32.mrb[0].mxu0
        %v7819 = vadd.f32 0.0, %v7818
        %v7820 = vpop.f32.mrb[0].mxu0
        %v7821 = vadd.f32 0.0, %v7820
        %7822 = vdwg.mxu0
        %7823 = vmatprep.subr.bf16.mxu0 %v7559
        %7824 = vmatpush1.bf16.msra.mxu0 %v7558
        %7825 = vmatprep.subr.bf16.mxu0 %v7563
        %7826 = vmatpush1.bf16.msra.mxu0 %v7562
        %7827 = vmatprep.subr.bf16.mxu0 %v7567
        %7828 = vmatpush1.bf16.msra.mxu0 %v7566
        %7829 = vmatprep.subr.bf16.mxu0 %v7571
        %7830 = vmatpush1.bf16.msra.mxu0 %v7570
        %7831 = vmatprep.subr.bf16.mxu0 %v7575
        %7832 = vmatpush1.bf16.msra.mxu0 %v7574
        %7833 = vmatprep.subr.bf16.mxu0 %v7579
        %7834 = vmatpush1.bf16.msra.mxu0 %v7578
        %7835 = vmatprep.subr.bf16.mxu0 %v7583
        %7836 = vmatpush1.bf16.msra.mxu0 %v7582
        %7837 = vmatprep.subr.bf16.mxu0 %v7587
        %7838 = vmatpush1.bf16.msra.mxu0 %v7586
        %7839 = vmatprep.subr.bf16.mxu0 %v7591
        %7840 = vmatpush1.bf16.msra.mxu0 %v7590
        %7841 = vmatprep.subr.bf16.mxu0 %v7595
        %7842 = vmatpush1.bf16.msra.mxu0 %v7594
        %7843 = vmatprep.subr.bf16.mxu0 %v7599
        %7844 = vmatpush1.bf16.msra.mxu0 %v7598
        %7845 = vmatprep.subr.bf16.mxu0 %v7603
        %7846 = vmatpush1.bf16.msra.mxu0 %v7602
        %7847 = vmatprep.subr.bf16.mxu0 %v7607
        %7848 = vmatpush1.bf16.msra.mxu0 %v7606
        %7849 = vmatprep.subr.bf16.mxu0 %v7611
        %7850 = vmatpush1.bf16.msra.mxu0 %v7610
        %7851 = vmatprep.subr.bf16.mxu0 %v7615
        %7852 = vmatpush1.bf16.msra.mxu0 %v7614
        %7853 = vmatprep.subr.bf16.mxu0 %v7619
        %7854 = vmatpush1.bf16.msra.mxu0 %v7618
        %7855 = vmatprep.mubr.bf16.mxu0 %v7081
        %7856 = vmatmul.mubr.bf16.gmra.mrb[0].mxu0 %v7080
        %v7857 = vpop.f32.mrb[0].mxu0
        %v7858 = vadd.f32 %v7785, %v7857
        %v7859 = vpop.f32.mrb[0].mxu0
        %v7860 = vadd.f32 %v7787, %v7859
        %v7861 = vpop.f32.mrb[0].mxu0
        %v7862 = vadd.f32 %v7789, %v7861
        %v7863 = vpop.f32.mrb[0].mxu0
        %v7864 = vadd.f32 %v7791, %v7863
        %7865 = vmatprep.mubr.bf16.mxu0 %v7085
        %7866 = vmatmul.mubr.bf16.gmra.mrb[0].mxu0 %v7084
        %v7867 = vpop.f32.mrb[0].mxu0
        %v7868 = vadd.f32 %v7795, %v7867
        %v7869 = vpop.f32.mrb[0].mxu0
        %v7870 = vadd.f32 %v7797, %v7869
        %v7871 = vpop.f32.mrb[0].mxu0
        %v7872 = vadd.f32 %v7799, %v7871
        %v7873 = vpop.f32.mrb[0].mxu0
        %v7874 = vadd.f32 %v7801, %v7873
        %7875 = vmatprep.mubr.bf16.mxu0 %v7089
        %7876 = vmatmul.mubr.bf16.gmra.mrb[0].mxu0 %v7088
        %v7877 = vpop.f32.mrb[0].mxu0
        %v7878 = vadd.f32 %v7805, %v7877
        %v7879 = vpop.f32.mrb[0].mxu0
        %v7880 = vadd.f32 %v7807, %v7879
        %v7881 = vpop.f32.mrb[0].mxu0
        %v7882 = vadd.f32 %v7809, %v7881
        %v7883 = vpop.f32.mrb[0].mxu0
        %v7884 = vadd.f32 %v7811, %v7883
        %7885 = vmatprep.mubr.bf16.mxu0 %v7093
        %7886 = vmatmul.mubr.bf16.gmra.mrb[0].mxu0 %v7092
        %v7887 = vpop.f32.mrb[0].mxu0
        %v7888 = vadd.f32 %v7815, %v7887
        %v7889 = vpop.f32.mrb[0].mxu0
        %v7890 = vadd.f32 %v7817, %v7889
        %v7891 = vpop.f32.mrb[0].mxu0
        %v7892 = vadd.f32 %v7819, %v7891
        %v7893 = vpop.f32.mrb[0].mxu0
        %v7894 = vadd.f32 %v7821, %v7893
        %7895 = vdwg.mxu0
        %7896 = vmatprep.subr.bf16.mxu0 %v7497
        %7897 = vmatpush1.bf16.msra.mxu0 %v7496
        %7898 = vmatprep.subr.bf16.mxu0 %v7501
        %7899 = vmatpush1.bf16.msra.mxu0 %v7500
        %7900 = vmatprep.subr.bf16.mxu0 %v7505
        %7901 = vmatpush1.bf16.msra.mxu0 %v7504
        %7902 = vmatprep.subr.bf16.mxu0 %v7509
        %7903 = vmatpush1.bf16.msra.mxu0 %v7508
        %7904 = vmatprep.subr.bf16.mxu0 %v7513
        %7905 = vmatpush1.bf16.msra.mxu0 %v7512
        %7906 = vmatprep.subr.bf16.mxu0 %v7517
        %7907 = vmatpush1.bf16.msra.mxu0 %v7516
        %7908 = vmatprep.subr.bf16.mxu0 %v7521
        %7909 = vmatpush1.bf16.msra.mxu0 %v7520
        %7910 = vmatprep.subr.bf16.mxu0 %v7525
        %7911 = vmatpush1.bf16.msra.mxu0 %v7524
        %7912 = vmatprep.subr.bf16.mxu0 %v7529
        %7913 = vmatpush1.bf16.msra.mxu0 %v7528
        %7914 = vmatprep.subr.bf16.mxu0 %v7533
        %7915 = vmatpush1.bf16.msra.mxu0 %v7532
        %7916 = vmatprep.subr.bf16.mxu0 %v7537
        %7917 = vmatpush1.bf16.msra.mxu0 %v7536
        %7918 = vmatprep.subr.bf16.mxu0 %v7541
        %7919 = vmatpush1.bf16.msra.mxu0 %v7540
        %7920 = vmatprep.subr.bf16.mxu0 %v7545
        %7921 = vmatpush1.bf16.msra.mxu0 %v7544
        %7922 = vmatprep.subr.bf16.mxu0 %v7549
        %7923 = vmatpush1.bf16.msra.mxu0 %v7548
        %7924 = vmatprep.subr.bf16.mxu0 %v7553
        %7925 = vmatpush1.bf16.msra.mxu0 %v7552
        %7926 = vmatprep.subr.bf16.mxu0 %v7557
        %7927 = vmatpush1.bf16.msra.mxu0 %v7556
        %7928 = vmatprep.mubr.bf16.mxu0 %v7079
        %7929 = vmatmul.mubr.bf16.gmra.mrb[0].mxu0 %v7078
        %v7930 = vpop.f32.mrb[0].mxu0
        %v7931 = vadd.f32 0.0, %v7930
        %v7932 = vpop.f32.mrb[0].mxu0
        %v7933 = vadd.f32 0.0, %v7932
        %v7934 = vpop.f32.mrb[0].mxu0
        %v7935 = vadd.f32 0.0, %v7934
        %v7936 = vpop.f32.mrb[0].mxu0
        %v7937 = vadd.f32 0.0, %v7936
        %7938 = vmatprep.mubr.bf16.mxu0 %v7083
        %7939 = vmatmul.mubr.bf16.gmra.mrb[0].mxu0 %v7082
        %v7940 = vpop.f32.mrb[0].mxu0
        %v7941 = vadd.f32 0.0, %v7940
        %v7942 = vpop.f32.mrb[0].mxu0
        %v7943 = vadd.f32 0.0, %v7942
        %v7944 = vpop.f32.mrb[0].mxu0
        %v7945 = vadd.f32 0.0, %v7944
        %v7946 = vpop.f32.mrb[0].mxu0
        %v7947 = vadd.f32 0.0, %v7946
        %7948 = vmatprep.mubr.bf16.mxu0 %v7087
        %7949 = vmatmul.mubr.bf16.gmra.mrb[0].mxu0 %v7086
        %v7950 = vpop.f32.mrb[0].mxu0
        %v7951 = vadd.f32 0.0, %v7950
        %v7952 = vpop.f32.mrb[0].mxu0
        %v7953 = vadd.f32 0.0, %v7952
        %v7954 = vpop.f32.mrb[0].mxu0
        %v7955 = vadd.f32 0.0, %v7954
        %v7956 = vpop.f32.mrb[0].mxu0
        %v7957 = vadd.f32 0.0, %v7956
        %7958 = vmatprep.mubr.bf16.mxu0 %v7091
        %7959 = vmatmul.mubr.bf16.gmra.mrb[0].mxu0 %v7090
        %v7960 = vpop.f32.mrb[0].mxu0
        %v7961 = vadd.f32 0.0, %v7960
        %v7962 = vpop.f32.mrb[0].mxu0
        %v7963 = vadd.f32 0.0, %v7962
        %v7964 = vpop.f32.mrb[0].mxu0
        %v7965 = vadd.f32 0.0, %v7964
        %v7966 = vpop.f32.mrb[0].mxu0
        %v7967 = vadd.f32 0.0, %v7966
        %7968 = vdwg.mxu0
        %7969 = vmatprep.subr.bf16.mxu0 %v7561
        %7970 = vmatpush1.bf16.msra.mxu0 %v7560
        %7971 = vmatprep.subr.bf16.mxu0 %v7565
        %7972 = vmatpush1.bf16.msra.mxu0 %v7564
        %7973 = vmatprep.subr.bf16.mxu0 %v7569
        %7974 = vmatpush1.bf16.msra.mxu0 %v7568
        %7975 = vmatprep.subr.bf16.mxu0 %v7573
        %7976 = vmatpush1.bf16.msra.mxu0 %v7572
        %7977 = vmatprep.subr.bf16.mxu0 %v7577
        %7978 = vmatpush1.bf16.msra.mxu0 %v7576
        %7979 = vmatprep.subr.bf16.mxu0 %v7581
        %7980 = vmatpush1.bf16.msra.mxu0 %v7580
        %7981 = vmatprep.subr.bf16.mxu0 %v7585
        %7982 = vmatpush1.bf16.msra.mxu0 %v7584
        %7983 = vmatprep.subr.bf16.mxu0 %v7589
        %7984 = vmatpush1.bf16.msra.mxu0 %v7588
        %7985 = vmatprep.subr.bf16.mxu0 %v7593
        %7986 = vmatpush1.bf16.msra.mxu0 %v7592
        %7987 = vmatprep.subr.bf16.mxu0 %v7597
        %7988 = vmatpush1.bf16.msra.mxu0 %v7596
        %7989 = vmatprep.subr.bf16.mxu0 %v7601
        %7990 = vmatpush1.bf16.msra.mxu0 %v7600
        %7991 = vmatprep.subr.bf16.mxu0 %v7605
        %7992 = vmatpush1.bf16.msra.mxu0 %v7604
        %7993 = vmatprep.subr.bf16.mxu0 %v7609
        %7994 = vmatpush1.bf16.msra.mxu0 %v7608
        %7995 = vmatprep.subr.bf16.mxu0 %v7613
        %7996 = vmatpush1.bf16.msra.mxu0 %v7612
        %7997 = vmatprep.subr.bf16.mxu0 %v7617
        %7998 = vmatpush1.bf16.msra.mxu0 %v7616
        %7999 = vmatprep.subr.bf16.mxu0 %v7621
        %8000 = vmatpush1.bf16.msra.mxu0 %v7620
        %8001 = vmatprep.mubr.bf16.mxu0 %v7081
        %8002 = vmatmul.mubr.bf16.gmra.mrb[0].mxu0 %v7080
        %v8003 = vpop.f32.mrb[0].mxu0
        %v8004 = vadd.f32 %v7931, %v8003
        %v8005 = vpop.f32.mrb[0].mxu0
        %v8006 = vadd.f32 %v7933, %v8005
        %v8007 = vpop.f32.mrb[0].mxu0
        %v8008 = vadd.f32 %v7935, %v8007
        %v8009 = vpop.f32.mrb[0].mxu0
        %v8010 = vadd.f32 %v7937, %v8009
        %8011 = vmatprep.mubr.bf16.mxu0 %v7085
        %8012 = vmatmul.mubr.bf16.gmra.mrb[0].mxu0 %v7084
        %v8013 = vpop.f32.mrb[0].mxu0
        %v8014 = vadd.f32 %v7941, %v8013
        %v8015 = vpop.f32.mrb[0].mxu0
        %v8016 = vadd.f32 %v7943, %v8015
        %v8017 = vpop.f32.mrb[0].mxu0
        %v8018 = vadd.f32 %v7945, %v8017
        %v8019 = vpop.f32.mrb[0].mxu0
        %v8020 = vadd.f32 %v7947, %v8019
        %8021 = vmatprep.mubr.bf16.mxu0 %v7089
        %8022 = vmatmul.mubr.bf16.gmra.mrb[0].mxu0 %v7088
        %v8023 = vpop.f32.mrb[0].mxu0
        %v8024 = vadd.f32 %v7951, %v8023
        %v8025 = vpop.f32.mrb[0].mxu0
        %v8026 = vadd.f32 %v7953, %v8025
        %v8027 = vpop.f32.mrb[0].mxu0
        %v8028 = vadd.f32 %v7955, %v8027
        %v8029 = vpop.f32.mrb[0].mxu0
        %v8030 = vadd.f32 %v7957, %v8029
        %8031 = vmatprep.mubr.bf16.mxu0 %v7093
        %8032 = vmatmul.mubr.bf16.gmra.mrb[0].mxu0 %v7092
        %v8033 = vpop.f32.mrb[0].mxu0
        %v8034 = vadd.f32 %v7961, %v8033
        %v8035 = vpop.f32.mrb[0].mxu0
        %v8036 = vadd.f32 %v7963, %v8035
        %v8037 = vpop.f32.mrb[0].mxu0
        %v8038 = vadd.f32 %v7965, %v8037
        %v8039 = vpop.f32.mrb[0].mxu0
        %v8040 = vadd.f32 %v7967, %v8039
        %8041 = vdwg.mxu0
        %v8042 = vadd.f32 %v6771, %v7858
        %v8043 = vadd.f32 %v6772, %v7860
        %v8044 = vadd.f32 %v6773, %v8004
        %v8045 = vadd.f32 %v6774, %v8006
        %v8046 = vadd.f32 %v6775, %v7862
        %v8047 = vadd.f32 %v6776, %v7864
        %v8048 = vadd.f32 %v6777, %v8008
        %v8049 = vadd.f32 %v6778, %v8010
        %v8050 = vadd.f32 %v6779, %v7868
        %v8051 = vadd.f32 %v6780, %v7870
        %v8052 = vadd.f32 %v6781, %v8014
        %v8053 = vadd.f32 %v6782, %v8016
        %v8054 = vadd.f32 %v6783, %v7872
        %v8055 = vadd.f32 %v6784, %v7874
        %v8056 = vadd.f32 %v6785, %v8018
        %v8057 = vadd.f32 %v6786, %v8020
        %v8058 = vadd.f32 %v6787, %v7878
        %v8059 = vadd.f32 %v6788, %v7880
        %v8060 = vadd.f32 %v6789, %v8024
        %v8061 = vadd.f32 %v6790, %v8026
        %v8062 = vadd.f32 %v6791, %v7882
        %v8063 = vadd.f32 %v6792, %v7884
        %v8064 = vadd.f32 %v6793, %v8028
        %v8065 = vadd.f32 %v6794, %v8030
        %v8066 = vadd.f32 %v6795, %v7888
        %v8067 = vadd.f32 %v6796, %v7890
        %v8068 = vadd.f32 %v6797, %v8034
        %v8069 = vadd.f32 %v6798, %v8036
        %v8070 = vadd.f32 %v6799, %v7892
        %v8071 = vadd.f32 %v6800, %v7894
        %v8072 = vadd.f32 %v6801, %v8038
        %v8073 = vadd.f32 %v6802, %v8040
        %s8074 = scalar_lea.vmem %s213, 64 [#allocation3]
        %v8075 = vld [vmem:[%s8074] sm:$0xff]
        %v8076 = vld [vmem:[%s8074 + $0x8] sm:$0xff]
        %v8077 = vld [vmem:[%s8074 + $0x20] sm:$0xff]
        %v8078 = vld [vmem:[%s8074 + $0x28] sm:$0xff]
        %v8079 = vld [vmem:[%s8074 + $0x40] sm:$0xff]
        %v8080 = vld [vmem:[%s8074 + $0x48] sm:$0xff]
        %v8081 = vld [vmem:[%s8074 + $0x60] sm:$0xff]
        %v8082 = vld [vmem:[%s8074 + $0x68] sm:$0xff]
        %v8083 = vld [vmem:[%s8074 + $0x80] sm:$0xff]
        %v8084 = vld [vmem:[%s8074 + $0x88] sm:$0xff]
        %v8085 = vld [vmem:[%s8074 + $0xa0] sm:$0xff]
        %v8086 = vld [vmem:[%s8074 + $0xa8] sm:$0xff]
        %v8087 = vld [vmem:[%s8074 + $0xc0] sm:$0xff]
        %v8088 = vld [vmem:[%s8074 + $0xc8] sm:$0xff]
        %v8089 = vld [vmem:[%s8074 + $0xe0] sm:$0xff]
        %v8090 = vld [vmem:[%s8074 + $0xe8] sm:$0xff]
        %s8091 = sadd.s32 1536, %s329
        %s8092 = smul.addr %s8091, 4
        %s8093 = scalar_lea.vmem [#allocation6], %s8092
        %v8094 = vld [vmem:[%s8093] sm:$0xff]
        %v8095 = vld [vmem:[%s8093 + $0x8] sm:$0xff]
        %v8096 = vld [vmem:[%s8093 + $0x10] sm:$0xff]
        %v8097 = vld [vmem:[%s8093 + $0x18] sm:$0xff]
        %v8098 = vld [vmem:[%s8093 + $0x20] sm:$0xff]
        %v8099 = vld [vmem:[%s8093 + $0x28] sm:$0xff]
        %v8100 = vld [vmem:[%s8093 + $0x30] sm:$0xff]
        %v8101 = vld [vmem:[%s8093 + $0x38] sm:$0xff]
        %v8102 = vld [vmem:[%s8093 + $0x40] sm:$0xff]
        %v8103 = vld [vmem:[%s8093 + $0x48] sm:$0xff]
        %v8104 = vld [vmem:[%s8093 + $0x50] sm:$0xff]
        %v8105 = vld [vmem:[%s8093 + $0x58] sm:$0xff]
        %v8106 = vld [vmem:[%s8093 + $0x60] sm:$0xff]
        %v8107 = vld [vmem:[%s8093 + $0x68] sm:$0xff]
        %v8108 = vld [vmem:[%s8093 + $0x70] sm:$0xff]
        %v8109 = vld [vmem:[%s8093 + $0x78] sm:$0xff]
        %v8110 = vld [vmem:[%s8093 + $0x80] sm:$0xff]
        %v8111 = vld [vmem:[%s8093 + $0x88] sm:$0xff]
        %v8112 = vld [vmem:[%s8093 + $0x90] sm:$0xff]
        %v8113 = vld [vmem:[%s8093 + $0x98] sm:$0xff]
        %v8114 = vld [vmem:[%s8093 + $0xa0] sm:$0xff]
        %v8115 = vld [vmem:[%s8093 + $0xa8] sm:$0xff]
        %v8116 = vld [vmem:[%s8093 + $0xb0] sm:$0xff]
        %v8117 = vld [vmem:[%s8093 + $0xb8] sm:$0xff]
        %v8118 = vld [vmem:[%s8093 + $0xc0] sm:$0xff]
        %v8119 = vld [vmem:[%s8093 + $0xc8] sm:$0xff]
        %v8120 = vld [vmem:[%s8093 + $0xd0] sm:$0xff]
        %v8121 = vld [vmem:[%s8093 + $0xd8] sm:$0xff]
        %v8122 = vld [vmem:[%s8093 + $0xe0] sm:$0xff]
        %v8123 = vld [vmem:[%s8093 + $0xe8] sm:$0xff]
        %v8124 = vld [vmem:[%s8093 + $0xf0] sm:$0xff]
        %v8125 = vld [vmem:[%s8093 + $0xf8] sm:$0xff]
        %v8126 = vld [vmem:[%s8093 + $0x100] sm:$0xff]
        %v8127 = vld [vmem:[%s8093 + $0x108] sm:$0xff]
        %v8128 = vld [vmem:[%s8093 + $0x110] sm:$0xff]
        %v8129 = vld [vmem:[%s8093 + $0x118] sm:$0xff]
        %v8130 = vld [vmem:[%s8093 + $0x120] sm:$0xff]
        %v8131 = vld [vmem:[%s8093 + $0x128] sm:$0xff]
        %v8132 = vld [vmem:[%s8093 + $0x130] sm:$0xff]
        %v8133 = vld [vmem:[%s8093 + $0x138] sm:$0xff]
        %v8134 = vld [vmem:[%s8093 + $0x140] sm:$0xff]
        %v8135 = vld [vmem:[%s8093 + $0x148] sm:$0xff]
        %v8136 = vld [vmem:[%s8093 + $0x150] sm:$0xff]
        %v8137 = vld [vmem:[%s8093 + $0x158] sm:$0xff]
        %v8138 = vld [vmem:[%s8093 + $0x160] sm:$0xff]
        %v8139 = vld [vmem:[%s8093 + $0x168] sm:$0xff]
        %v8140 = vld [vmem:[%s8093 + $0x170] sm:$0xff]
        %v8141 = vld [vmem:[%s8093 + $0x178] sm:$0xff]
        %v8142 = vld [vmem:[%s8093 + $0x180] sm:$0xff]
        %v8143 = vld [vmem:[%s8093 + $0x188] sm:$0xff]
        %v8144 = vld [vmem:[%s8093 + $0x190] sm:$0xff]
        %v8145 = vld [vmem:[%s8093 + $0x198] sm:$0xff]
        %v8146 = vld [vmem:[%s8093 + $0x1a0] sm:$0xff]
        %v8147 = vld [vmem:[%s8093 + $0x1a8] sm:$0xff]
        %v8148 = vld [vmem:[%s8093 + $0x1b0] sm:$0xff]
        %v8149 = vld [vmem:[%s8093 + $0x1b8] sm:$0xff]
        %v8150 = vld [vmem:[%s8093 + $0x1c0] sm:$0xff]
        %v8151 = vld [vmem:[%s8093 + $0x1c8] sm:$0xff]
        %v8152 = vld [vmem:[%s8093 + $0x1d0] sm:$0xff]
        %v8153 = vld [vmem:[%s8093 + $0x1d8] sm:$0xff]
        %v8154 = vld [vmem:[%s8093 + $0x1e0] sm:$0xff]
        %v8155 = vld [vmem:[%s8093 + $0x1e8] sm:$0xff]
        %v8156 = vld [vmem:[%s8093 + $0x1f0] sm:$0xff]
        %v8157 = vld [vmem:[%s8093 + $0x1f8] sm:$0xff]
        %v8158 = vld [vmem:[%s8093 + $0x200] sm:$0xff]
        %v8159 = vld [vmem:[%s8093 + $0x208] sm:$0xff]
        %v8160 = vld [vmem:[%s8093 + $0x210] sm:$0xff]
        %v8161 = vld [vmem:[%s8093 + $0x218] sm:$0xff]
        %v8162 = vld [vmem:[%s8093 + $0x220] sm:$0xff]
        %v8163 = vld [vmem:[%s8093 + $0x228] sm:$0xff]
        %v8164 = vld [vmem:[%s8093 + $0x230] sm:$0xff]
        %v8165 = vld [vmem:[%s8093 + $0x238] sm:$0xff]
        %v8166 = vld [vmem:[%s8093 + $0x240] sm:$0xff]
        %v8167 = vld [vmem:[%s8093 + $0x248] sm:$0xff]
        %v8168 = vld [vmem:[%s8093 + $0x250] sm:$0xff]
        %v8169 = vld [vmem:[%s8093 + $0x258] sm:$0xff]
        %v8170 = vld [vmem:[%s8093 + $0x260] sm:$0xff]
        %v8171 = vld [vmem:[%s8093 + $0x268] sm:$0xff]
        %v8172 = vld [vmem:[%s8093 + $0x270] sm:$0xff]
        %v8173 = vld [vmem:[%s8093 + $0x278] sm:$0xff]
        %v8174 = vld [vmem:[%s8093 + $0x280] sm:$0xff]
        %v8175 = vld [vmem:[%s8093 + $0x288] sm:$0xff]
        %v8176 = vld [vmem:[%s8093 + $0x290] sm:$0xff]
        %v8177 = vld [vmem:[%s8093 + $0x298] sm:$0xff]
        %v8178 = vld [vmem:[%s8093 + $0x2a0] sm:$0xff]
        %v8179 = vld [vmem:[%s8093 + $0x2a8] sm:$0xff]
        %v8180 = vld [vmem:[%s8093 + $0x2b0] sm:$0xff]
        %v8181 = vld [vmem:[%s8093 + $0x2b8] sm:$0xff]
        %v8182 = vld [vmem:[%s8093 + $0x2c0] sm:$0xff]
        %v8183 = vld [vmem:[%s8093 + $0x2c8] sm:$0xff]
        %v8184 = vld [vmem:[%s8093 + $0x2d0] sm:$0xff]
        %v8185 = vld [vmem:[%s8093 + $0x2d8] sm:$0xff]
        %v8186 = vld [vmem:[%s8093 + $0x2e0] sm:$0xff]
        %v8187 = vld [vmem:[%s8093 + $0x2e8] sm:$0xff]
        %v8188 = vld [vmem:[%s8093 + $0x2f0] sm:$0xff]
        %v8189 = vld [vmem:[%s8093 + $0x2f8] sm:$0xff]
        %v8190 = vld [vmem:[%s8093 + $0x300] sm:$0xff]
        %v8191 = vld [vmem:[%s8093 + $0x308] sm:$0xff]
        %v8192 = vld [vmem:[%s8093 + $0x310] sm:$0xff]
        %v8193 = vld [vmem:[%s8093 + $0x318] sm:$0xff]
        %v8194 = vld [vmem:[%s8093 + $0x320] sm:$0xff]
        %v8195 = vld [vmem:[%s8093 + $0x328] sm:$0xff]
        %v8196 = vld [vmem:[%s8093 + $0x330] sm:$0xff]
        %v8197 = vld [vmem:[%s8093 + $0x338] sm:$0xff]
        %v8198 = vld [vmem:[%s8093 + $0x340] sm:$0xff]
        %v8199 = vld [vmem:[%s8093 + $0x348] sm:$0xff]
        %v8200 = vld [vmem:[%s8093 + $0x350] sm:$0xff]
        %v8201 = vld [vmem:[%s8093 + $0x358] sm:$0xff]
        %v8202 = vld [vmem:[%s8093 + $0x360] sm:$0xff]
        %v8203 = vld [vmem:[%s8093 + $0x368] sm:$0xff]
        %v8204 = vld [vmem:[%s8093 + $0x370] sm:$0xff]
        %v8205 = vld [vmem:[%s8093 + $0x378] sm:$0xff]
        %v8206 = vld [vmem:[%s8093 + $0x380] sm:$0xff]
        %v8207 = vld [vmem:[%s8093 + $0x388] sm:$0xff]
        %v8208 = vld [vmem:[%s8093 + $0x390] sm:$0xff]
        %v8209 = vld [vmem:[%s8093 + $0x398] sm:$0xff]
        %v8210 = vld [vmem:[%s8093 + $0x3a0] sm:$0xff]
        %v8211 = vld [vmem:[%s8093 + $0x3a8] sm:$0xff]
        %v8212 = vld [vmem:[%s8093 + $0x3b0] sm:$0xff]
        %v8213 = vld [vmem:[%s8093 + $0x3b8] sm:$0xff]
        %v8214 = vld [vmem:[%s8093 + $0x3c0] sm:$0xff]
        %v8215 = vld [vmem:[%s8093 + $0x3c8] sm:$0xff]
        %v8216 = vld [vmem:[%s8093 + $0x3d0] sm:$0xff]
        %v8217 = vld [vmem:[%s8093 + $0x3d8] sm:$0xff]
        %v8218 = vld [vmem:[%s8093 + $0x3e0] sm:$0xff]
        %v8219 = vld [vmem:[%s8093 + $0x3e8] sm:$0xff]
        %v8220 = vld [vmem:[%s8093 + $0x3f0] sm:$0xff]
        %v8221 = vld [vmem:[%s8093 + $0x3f8] sm:$0xff]
        %v8238 = vunpack.c.l.b16 %v8075
        %v8239 = vunpack.c.h.b16 %v8075
        %v8240 = vunpack.c.l.b16 %v8076
        %v8241 = vunpack.c.h.b16 %v8076
        %v8242 = vunpack.c.l.b16 %v8077
        %v8243 = vunpack.c.h.b16 %v8077
        %v8244 = vunpack.c.l.b16 %v8078
        %v8245 = vunpack.c.h.b16 %v8078
        %v8246 = vunpack.c.l.b16 %v8079
        %v8247 = vunpack.c.h.b16 %v8079
        %v8248 = vunpack.c.l.b16 %v8080
        %v8249 = vunpack.c.h.b16 %v8080
        %v8250 = vunpack.c.l.b16 %v8081
        %v8251 = vunpack.c.h.b16 %v8081
        %v8252 = vunpack.c.l.b16 %v8082
        %v8253 = vunpack.c.h.b16 %v8082
        %v8254 = vunpack.c.l.b16 %v8083
        %v8255 = vunpack.c.h.b16 %v8083
        %v8256 = vunpack.c.l.b16 %v8084
        %v8257 = vunpack.c.h.b16 %v8084
        %v8258 = vunpack.c.l.b16 %v8085
        %v8259 = vunpack.c.h.b16 %v8085
        %v8260 = vunpack.c.l.b16 %v8086
        %v8261 = vunpack.c.h.b16 %v8086
        %v8262 = vunpack.c.l.b16 %v8087
        %v8263 = vunpack.c.h.b16 %v8087
        %v8264 = vunpack.c.l.b16 %v8088
        %v8265 = vunpack.c.h.b16 %v8088
        %v8266 = vunpack.c.l.b16 %v8089
        %v8267 = vunpack.c.h.b16 %v8089
        %v8268 = vunpack.c.l.b16 %v8090
        %v8269 = vunpack.c.h.b16 %v8090
        %v8270 = vpack.c.b16 %v8242, %v8238
        %v8271 = vpack.c.b16 %v8243, %v8239
        %v8272 = vpack.c.b16 %v8244, %v8240
        %v8273 = vpack.c.b16 %v8245, %v8241
        %v8274 = vpack.c.b16 %v8250, %v8246
        %v8275 = vpack.c.b16 %v8251, %v8247
        %v8276 = vpack.c.b16 %v8252, %v8248
        %v8277 = vpack.c.b16 %v8253, %v8249
        %v8278 = vpack.c.b16 %v8258, %v8254
        %v8279 = vpack.c.b16 %v8259, %v8255
        %v8280 = vpack.c.b16 %v8260, %v8256
        %v8281 = vpack.c.b16 %v8261, %v8257
        %v8282 = vpack.c.b16 %v8266, %v8262
        %v8283 = vpack.c.b16 %v8267, %v8263
        %v8284 = vpack.c.b16 %v8268, %v8264
        %v8285 = vpack.c.b16 %v8269, %v8265
        %v8430 = vunpack.c.l.b16 %v8094
        %v8431 = vunpack.c.h.b16 %v8094
        %v8432 = vunpack.c.l.b16 %v8095
        %v8433 = vunpack.c.h.b16 %v8095
        %v8434 = vunpack.c.l.b16 %v8096
        %v8435 = vunpack.c.h.b16 %v8096
        %v8436 = vunpack.c.l.b16 %v8097
        %v8437 = vunpack.c.h.b16 %v8097
        %v8438 = vunpack.c.l.b16 %v8098
        %v8439 = vunpack.c.h.b16 %v8098
        %v8440 = vunpack.c.l.b16 %v8099
        %v8441 = vunpack.c.h.b16 %v8099
        %v8442 = vunpack.c.l.b16 %v8100
        %v8443 = vunpack.c.h.b16 %v8100
        %v8444 = vunpack.c.l.b16 %v8101
        %v8445 = vunpack.c.h.b16 %v8101
        %v8446 = vunpack.c.l.b16 %v8102
        %v8447 = vunpack.c.h.b16 %v8102
        %v8448 = vunpack.c.l.b16 %v8103
        %v8449 = vunpack.c.h.b16 %v8103
        %v8450 = vunpack.c.l.b16 %v8104
        %v8451 = vunpack.c.h.b16 %v8104
        %v8452 = vunpack.c.l.b16 %v8105
        %v8453 = vunpack.c.h.b16 %v8105
        %v8454 = vunpack.c.l.b16 %v8106
        %v8455 = vunpack.c.h.b16 %v8106
        %v8456 = vunpack.c.l.b16 %v8107
        %v8457 = vunpack.c.h.b16 %v8107
        %v8458 = vunpack.c.l.b16 %v8108
        %v8459 = vunpack.c.h.b16 %v8108
        %v8460 = vunpack.c.l.b16 %v8109
        %v8461 = vunpack.c.h.b16 %v8109
        %v8462 = vunpack.c.l.b16 %v8110
        %v8463 = vunpack.c.h.b16 %v8110
        %v8464 = vunpack.c.l.b16 %v8111
        %v8465 = vunpack.c.h.b16 %v8111
        %v8466 = vunpack.c.l.b16 %v8112
        %v8467 = vunpack.c.h.b16 %v8112
        %v8468 = vunpack.c.l.b16 %v8113
        %v8469 = vunpack.c.h.b16 %v8113
        %v8470 = vunpack.c.l.b16 %v8114
        %v8471 = vunpack.c.h.b16 %v8114
        %v8472 = vunpack.c.l.b16 %v8115
        %v8473 = vunpack.c.h.b16 %v8115
        %v8474 = vunpack.c.l.b16 %v8116
        %v8475 = vunpack.c.h.b16 %v8116
        %v8476 = vunpack.c.l.b16 %v8117
        %v8477 = vunpack.c.h.b16 %v8117
        %v8478 = vunpack.c.l.b16 %v8118
        %v8479 = vunpack.c.h.b16 %v8118
        %v8480 = vunpack.c.l.b16 %v8119
        %v8481 = vunpack.c.h.b16 %v8119
        %v8482 = vunpack.c.l.b16 %v8120
        %v8483 = vunpack.c.h.b16 %v8120
        %v8484 = vunpack.c.l.b16 %v8121
        %v8485 = vunpack.c.h.b16 %v8121
        %v8486 = vunpack.c.l.b16 %v8122
        %v8487 = vunpack.c.h.b16 %v8122
        %v8488 = vunpack.c.l.b16 %v8123
        %v8489 = vunpack.c.h.b16 %v8123
        %v8490 = vunpack.c.l.b16 %v8124
        %v8491 = vunpack.c.h.b16 %v8124
        %v8492 = vunpack.c.l.b16 %v8125
        %v8493 = vunpack.c.h.b16 %v8125
        %v8494 = vunpack.c.l.b16 %v8126
        %v8495 = vunpack.c.h.b16 %v8126
        %v8496 = vunpack.c.l.b16 %v8127
        %v8497 = vunpack.c.h.b16 %v8127
        %v8498 = vunpack.c.l.b16 %v8128
        %v8499 = vunpack.c.h.b16 %v8128
        %v8500 = vunpack.c.l.b16 %v8129
        %v8501 = vunpack.c.h.b16 %v8129
        %v8502 = vunpack.c.l.b16 %v8130
        %v8503 = vunpack.c.h.b16 %v8130
        %v8504 = vunpack.c.l.b16 %v8131
        %v8505 = vunpack.c.h.b16 %v8131
        %v8506 = vunpack.c.l.b16 %v8132
        %v8507 = vunpack.c.h.b16 %v8132
        %v8508 = vunpack.c.l.b16 %v8133
        %v8509 = vunpack.c.h.b16 %v8133
        %v8510 = vunpack.c.l.b16 %v8134
        %v8511 = vunpack.c.h.b16 %v8134
        %v8512 = vunpack.c.l.b16 %v8135
        %v8513 = vunpack.c.h.b16 %v8135
        %v8514 = vunpack.c.l.b16 %v8136
        %v8515 = vunpack.c.h.b16 %v8136
        %v8516 = vunpack.c.l.b16 %v8137
        %v8517 = vunpack.c.h.b16 %v8137
        %v8518 = vunpack.c.l.b16 %v8138
        %v8519 = vunpack.c.h.b16 %v8138
        %v8520 = vunpack.c.l.b16 %v8139
        %v8521 = vunpack.c.h.b16 %v8139
        %v8522 = vunpack.c.l.b16 %v8140
        %v8523 = vunpack.c.h.b16 %v8140
        %v8524 = vunpack.c.l.b16 %v8141
        %v8525 = vunpack.c.h.b16 %v8141
        %v8526 = vunpack.c.l.b16 %v8142
        %v8527 = vunpack.c.h.b16 %v8142
        %v8528 = vunpack.c.l.b16 %v8143
        %v8529 = vunpack.c.h.b16 %v8143
        %v8530 = vunpack.c.l.b16 %v8144
        %v8531 = vunpack.c.h.b16 %v8144
        %v8532 = vunpack.c.l.b16 %v8145
        %v8533 = vunpack.c.h.b16 %v8145
        %v8534 = vunpack.c.l.b16 %v8146
        %v8535 = vunpack.c.h.b16 %v8146
        %v8536 = vunpack.c.l.b16 %v8147
        %v8537 = vunpack.c.h.b16 %v8147
        %v8538 = vunpack.c.l.b16 %v8148
        %v8539 = vunpack.c.h.b16 %v8148
        %v8540 = vunpack.c.l.b16 %v8149
        %v8541 = vunpack.c.h.b16 %v8149
        %v8542 = vunpack.c.l.b16 %v8150
        %v8543 = vunpack.c.h.b16 %v8150
        %v8544 = vunpack.c.l.b16 %v8151
        %v8545 = vunpack.c.h.b16 %v8151
        %v8546 = vunpack.c.l.b16 %v8152
        %v8547 = vunpack.c.h.b16 %v8152
        %v8548 = vunpack.c.l.b16 %v8153
        %v8549 = vunpack.c.h.b16 %v8153
        %v8550 = vunpack.c.l.b16 %v8154
        %v8551 = vunpack.c.h.b16 %v8154
        %v8552 = vunpack.c.l.b16 %v8155
        %v8553 = vunpack.c.h.b16 %v8155
        %v8554 = vunpack.c.l.b16 %v8156
        %v8555 = vunpack.c.h.b16 %v8156
        %v8556 = vunpack.c.l.b16 %v8157
        %v8557 = vunpack.c.h.b16 %v8157
        %v8558 = vunpack.c.l.b16 %v8158
        %v8559 = vunpack.c.h.b16 %v8158
        %v8560 = vunpack.c.l.b16 %v8159
        %v8561 = vunpack.c.h.b16 %v8159
        %v8562 = vunpack.c.l.b16 %v8160
        %v8563 = vunpack.c.h.b16 %v8160
        %v8564 = vunpack.c.l.b16 %v8161
        %v8565 = vunpack.c.h.b16 %v8161
        %v8566 = vunpack.c.l.b16 %v8162
        %v8567 = vunpack.c.h.b16 %v8162
        %v8568 = vunpack.c.l.b16 %v8163
        %v8569 = vunpack.c.h.b16 %v8163
        %v8570 = vunpack.c.l.b16 %v8164
        %v8571 = vunpack.c.h.b16 %v8164
        %v8572 = vunpack.c.l.b16 %v8165
        %v8573 = vunpack.c.h.b16 %v8165
        %v8574 = vunpack.c.l.b16 %v8166
        %v8575 = vunpack.c.h.b16 %v8166
        %v8576 = vunpack.c.l.b16 %v8167
        %v8577 = vunpack.c.h.b16 %v8167
        %v8578 = vunpack.c.l.b16 %v8168
        %v8579 = vunpack.c.h.b16 %v8168
        %v8580 = vunpack.c.l.b16 %v8169
        %v8581 = vunpack.c.h.b16 %v8169
        %v8582 = vunpack.c.l.b16 %v8170
        %v8583 = vunpack.c.h.b16 %v8170
        %v8584 = vunpack.c.l.b16 %v8171
        %v8585 = vunpack.c.h.b16 %v8171
        %v8586 = vunpack.c.l.b16 %v8172
        %v8587 = vunpack.c.h.b16 %v8172
        %v8588 = vunpack.c.l.b16 %v8173
        %v8589 = vunpack.c.h.b16 %v8173
        %v8590 = vunpack.c.l.b16 %v8174
        %v8591 = vunpack.c.h.b16 %v8174
        %v8592 = vunpack.c.l.b16 %v8175
        %v8593 = vunpack.c.h.b16 %v8175
        %v8594 = vunpack.c.l.b16 %v8176
        %v8595 = vunpack.c.h.b16 %v8176
        %v8596 = vunpack.c.l.b16 %v8177
        %v8597 = vunpack.c.h.b16 %v8177
        %v8598 = vunpack.c.l.b16 %v8178
        %v8599 = vunpack.c.h.b16 %v8178
        %v8600 = vunpack.c.l.b16 %v8179
        %v8601 = vunpack.c.h.b16 %v8179
        %v8602 = vunpack.c.l.b16 %v8180
        %v8603 = vunpack.c.h.b16 %v8180
        %v8604 = vunpack.c.l.b16 %v8181
        %v8605 = vunpack.c.h.b16 %v8181
        %v8606 = vunpack.c.l.b16 %v8182
        %v8607 = vunpack.c.h.b16 %v8182
        %v8608 = vunpack.c.l.b16 %v8183
        %v8609 = vunpack.c.h.b16 %v8183
        %v8610 = vunpack.c.l.b16 %v8184
        %v8611 = vunpack.c.h.b16 %v8184
        %v8612 = vunpack.c.l.b16 %v8185
        %v8613 = vunpack.c.h.b16 %v8185
        %v8614 = vunpack.c.l.b16 %v8186
        %v8615 = vunpack.c.h.b16 %v8186
        %v8616 = vunpack.c.l.b16 %v8187
        %v8617 = vunpack.c.h.b16 %v8187
        %v8618 = vunpack.c.l.b16 %v8188
        %v8619 = vunpack.c.h.b16 %v8188
        %v8620 = vunpack.c.l.b16 %v8189
        %v8621 = vunpack.c.h.b16 %v8189
        %v8622 = vunpack.c.l.b16 %v8190
        %v8623 = vunpack.c.h.b16 %v8190
        %v8624 = vunpack.c.l.b16 %v8191
        %v8625 = vunpack.c.h.b16 %v8191
        %v8626 = vunpack.c.l.b16 %v8192
        %v8627 = vunpack.c.h.b16 %v8192
        %v8628 = vunpack.c.l.b16 %v8193
        %v8629 = vunpack.c.h.b16 %v8193
        %v8630 = vunpack.c.l.b16 %v8194
        %v8631 = vunpack.c.h.b16 %v8194
        %v8632 = vunpack.c.l.b16 %v8195
        %v8633 = vunpack.c.h.b16 %v8195
        %v8634 = vunpack.c.l.b16 %v8196
        %v8635 = vunpack.c.h.b16 %v8196
        %v8636 = vunpack.c.l.b16 %v8197
        %v8637 = vunpack.c.h.b16 %v8197
        %v8638 = vunpack.c.l.b16 %v8198
        %v8639 = vunpack.c.h.b16 %v8198
        %v8640 = vunpack.c.l.b16 %v8199
        %v8641 = vunpack.c.h.b16 %v8199
        %v8642 = vunpack.c.l.b16 %v8200
        %v8643 = vunpack.c.h.b16 %v8200
        %v8644 = vunpack.c.l.b16 %v8201
        %v8645 = vunpack.c.h.b16 %v8201
        %v8646 = vunpack.c.l.b16 %v8202
        %v8647 = vunpack.c.h.b16 %v8202
        %v8648 = vunpack.c.l.b16 %v8203
        %v8649 = vunpack.c.h.b16 %v8203
        %v8650 = vunpack.c.l.b16 %v8204
        %v8651 = vunpack.c.h.b16 %v8204
        %v8652 = vunpack.c.l.b16 %v8205
        %v8653 = vunpack.c.h.b16 %v8205
        %v8654 = vunpack.c.l.b16 %v8206
        %v8655 = vunpack.c.h.b16 %v8206
        %v8656 = vunpack.c.l.b16 %v8207
        %v8657 = vunpack.c.h.b16 %v8207
        %v8658 = vunpack.c.l.b16 %v8208
        %v8659 = vunpack.c.h.b16 %v8208
        %v8660 = vunpack.c.l.b16 %v8209
        %v8661 = vunpack.c.h.b16 %v8209
        %v8662 = vunpack.c.l.b16 %v8210
        %v8663 = vunpack.c.h.b16 %v8210
        %v8664 = vunpack.c.l.b16 %v8211
        %v8665 = vunpack.c.h.b16 %v8211
        %v8666 = vunpack.c.l.b16 %v8212
        %v8667 = vunpack.c.h.b16 %v8212
        %v8668 = vunpack.c.l.b16 %v8213
        %v8669 = vunpack.c.h.b16 %v8213
        %v8670 = vunpack.c.l.b16 %v8214
        %v8671 = vunpack.c.h.b16 %v8214
        %v8672 = vunpack.c.l.b16 %v8215
        %v8673 = vunpack.c.h.b16 %v8215
        %v8674 = vunpack.c.l.b16 %v8216
        %v8675 = vunpack.c.h.b16 %v8216
        %v8676 = vunpack.c.l.b16 %v8217
        %v8677 = vunpack.c.h.b16 %v8217
        %v8678 = vunpack.c.l.b16 %v8218
        %v8679 = vunpack.c.h.b16 %v8218
        %v8680 = vunpack.c.l.b16 %v8219
        %v8681 = vunpack.c.h.b16 %v8219
        %v8682 = vunpack.c.l.b16 %v8220
        %v8683 = vunpack.c.h.b16 %v8220
        %v8684 = vunpack.c.l.b16 %v8221
        %v8685 = vunpack.c.h.b16 %v8221
        %v8686 = vpack.c.b16 %v8434, %v8430
        %v8687 = vpack.c.b16 %v8435, %v8431
        %v8688 = vpack.c.b16 %v8436, %v8432
        %v8689 = vpack.c.b16 %v8437, %v8433
        %v8690 = vpack.c.b16 %v8442, %v8438
        %v8691 = vpack.c.b16 %v8443, %v8439
        %v8692 = vpack.c.b16 %v8444, %v8440
        %v8693 = vpack.c.b16 %v8445, %v8441
        %v8694 = vpack.c.b16 %v8450, %v8446
        %v8695 = vpack.c.b16 %v8451, %v8447
        %v8696 = vpack.c.b16 %v8452, %v8448
        %v8697 = vpack.c.b16 %v8453, %v8449
        %v8698 = vpack.c.b16 %v8458, %v8454
        %v8699 = vpack.c.b16 %v8459, %v8455
        %v8700 = vpack.c.b16 %v8460, %v8456
        %v8701 = vpack.c.b16 %v8461, %v8457
        %v8702 = vpack.c.b16 %v8466, %v8462
        %v8703 = vpack.c.b16 %v8467, %v8463
        %v8704 = vpack.c.b16 %v8468, %v8464
        %v8705 = vpack.c.b16 %v8469, %v8465
        %v8706 = vpack.c.b16 %v8474, %v8470
        %v8707 = vpack.c.b16 %v8475, %v8471
        %v8708 = vpack.c.b16 %v8476, %v8472
        %v8709 = vpack.c.b16 %v8477, %v8473
        %v8710 = vpack.c.b16 %v8482, %v8478
        %v8711 = vpack.c.b16 %v8483, %v8479
        %v8712 = vpack.c.b16 %v8484, %v8480
        %v8713 = vpack.c.b16 %v8485, %v8481
        %v8714 = vpack.c.b16 %v8490, %v8486
        %v8715 = vpack.c.b16 %v8491, %v8487
        %v8716 = vpack.c.b16 %v8492, %v8488
        %v8717 = vpack.c.b16 %v8493, %v8489
        %v8718 = vpack.c.b16 %v8498, %v8494
        %v8719 = vpack.c.b16 %v8499, %v8495
        %v8720 = vpack.c.b16 %v8500, %v8496
        %v8721 = vpack.c.b16 %v8501, %v8497
        %v8722 = vpack.c.b16 %v8506, %v8502
        %v8723 = vpack.c.b16 %v8507, %v8503
        %v8724 = vpack.c.b16 %v8508, %v8504
        %v8725 = vpack.c.b16 %v8509, %v8505
        %v8726 = vpack.c.b16 %v8514, %v8510
        %v8727 = vpack.c.b16 %v8515, %v8511
        %v8728 = vpack.c.b16 %v8516, %v8512
        %v8729 = vpack.c.b16 %v8517, %v8513
        %v8730 = vpack.c.b16 %v8522, %v8518
        %v8731 = vpack.c.b16 %v8523, %v8519
        %v8732 = vpack.c.b16 %v8524, %v8520
        %v8733 = vpack.c.b16 %v8525, %v8521
        %v8734 = vpack.c.b16 %v8530, %v8526
        %v8735 = vpack.c.b16 %v8531, %v8527
        %v8736 = vpack.c.b16 %v8532, %v8528
        %v8737 = vpack.c.b16 %v8533, %v8529
        %v8738 = vpack.c.b16 %v8538, %v8534
        %v8739 = vpack.c.b16 %v8539, %v8535
        %v8740 = vpack.c.b16 %v8540, %v8536
        %v8741 = vpack.c.b16 %v8541, %v8537
        %v8742 = vpack.c.b16 %v8546, %v8542
        %v8743 = vpack.c.b16 %v8547, %v8543
        %v8744 = vpack.c.b16 %v8548, %v8544
        %v8745 = vpack.c.b16 %v8549, %v8545
        %v8746 = vpack.c.b16 %v8554, %v8550
        %v8747 = vpack.c.b16 %v8555, %v8551
        %v8748 = vpack.c.b16 %v8556, %v8552
        %v8749 = vpack.c.b16 %v8557, %v8553
        %v8750 = vpack.c.b16 %v8562, %v8558
        %v8751 = vpack.c.b16 %v8563, %v8559
        %v8752 = vpack.c.b16 %v8564, %v8560
        %v8753 = vpack.c.b16 %v8565, %v8561
        %v8754 = vpack.c.b16 %v8570, %v8566
        %v8755 = vpack.c.b16 %v8571, %v8567
        %v8756 = vpack.c.b16 %v8572, %v8568
        %v8757 = vpack.c.b16 %v8573, %v8569
        %v8758 = vpack.c.b16 %v8578, %v8574
        %v8759 = vpack.c.b16 %v8579, %v8575
        %v8760 = vpack.c.b16 %v8580, %v8576
        %v8761 = vpack.c.b16 %v8581, %v8577
        %v8762 = vpack.c.b16 %v8586, %v8582
        %v8763 = vpack.c.b16 %v8587, %v8583
        %v8764 = vpack.c.b16 %v8588, %v8584
        %v8765 = vpack.c.b16 %v8589, %v8585
        %v8766 = vpack.c.b16 %v8594, %v8590
        %v8767 = vpack.c.b16 %v8595, %v8591
        %v8768 = vpack.c.b16 %v8596, %v8592
        %v8769 = vpack.c.b16 %v8597, %v8593
        %v8770 = vpack.c.b16 %v8602, %v8598
        %v8771 = vpack.c.b16 %v8603, %v8599
        %v8772 = vpack.c.b16 %v8604, %v8600
        %v8773 = vpack.c.b16 %v8605, %v8601
        %v8774 = vpack.c.b16 %v8610, %v8606
        %v8775 = vpack.c.b16 %v8611, %v8607
        %v8776 = vpack.c.b16 %v8612, %v8608
        %v8777 = vpack.c.b16 %v8613, %v8609
        %v8778 = vpack.c.b16 %v8618, %v8614
        %v8779 = vpack.c.b16 %v8619, %v8615
        %v8780 = vpack.c.b16 %v8620, %v8616
        %v8781 = vpack.c.b16 %v8621, %v8617
        %v8782 = vpack.c.b16 %v8626, %v8622
        %v8783 = vpack.c.b16 %v8627, %v8623
        %v8784 = vpack.c.b16 %v8628, %v8624
        %v8785 = vpack.c.b16 %v8629, %v8625
        %v8786 = vpack.c.b16 %v8634, %v8630
        %v8787 = vpack.c.b16 %v8635, %v8631
        %v8788 = vpack.c.b16 %v8636, %v8632
        %v8789 = vpack.c.b16 %v8637, %v8633
        %v8790 = vpack.c.b16 %v8642, %v8638
        %v8791 = vpack.c.b16 %v8643, %v8639
        %v8792 = vpack.c.b16 %v8644, %v8640
        %v8793 = vpack.c.b16 %v8645, %v8641
        %v8794 = vpack.c.b16 %v8650, %v8646
        %v8795 = vpack.c.b16 %v8651, %v8647
        %v8796 = vpack.c.b16 %v8652, %v8648
        %v8797 = vpack.c.b16 %v8653, %v8649
        %v8798 = vpack.c.b16 %v8658, %v8654
        %v8799 = vpack.c.b16 %v8659, %v8655
        %v8800 = vpack.c.b16 %v8660, %v8656
        %v8801 = vpack.c.b16 %v8661, %v8657
        %v8802 = vpack.c.b16 %v8666, %v8662
        %v8803 = vpack.c.b16 %v8667, %v8663
        %v8804 = vpack.c.b16 %v8668, %v8664
        %v8805 = vpack.c.b16 %v8669, %v8665
        %v8806 = vpack.c.b16 %v8674, %v8670
        %v8807 = vpack.c.b16 %v8675, %v8671
        %v8808 = vpack.c.b16 %v8676, %v8672
        %v8809 = vpack.c.b16 %v8677, %v8673
        %v8810 = vpack.c.b16 %v8682, %v8678
        %v8811 = vpack.c.b16 %v8683, %v8679
        %v8812 = vpack.c.b16 %v8684, %v8680
        %v8813 = vpack.c.b16 %v8685, %v8681
        %8942 = vmatprep.subr.bf16.mxu0 %v8687
        %8943 = vmatpush1.bf16.msra.mxu0 %v8686
        %8944 = vmatprep.subr.bf16.mxu0 %v8691
        %8945 = vmatpush1.bf16.msra.mxu0 %v8690
        %8946 = vmatprep.subr.bf16.mxu0 %v8695
        %8947 = vmatpush1.bf16.msra.mxu0 %v8694
        %8948 = vmatprep.subr.bf16.mxu0 %v8699
        %8949 = vmatpush1.bf16.msra.mxu0 %v8698
        %8950 = vmatprep.subr.bf16.mxu0 %v8703
        %8951 = vmatpush1.bf16.msra.mxu0 %v8702
        %8952 = vmatprep.subr.bf16.mxu0 %v8707
        %8953 = vmatpush1.bf16.msra.mxu0 %v8706
        %8954 = vmatprep.subr.bf16.mxu0 %v8711
        %8955 = vmatpush1.bf16.msra.mxu0 %v8710
        %8956 = vmatprep.subr.bf16.mxu0 %v8715
        %8957 = vmatpush1.bf16.msra.mxu0 %v8714
        %8958 = vmatprep.subr.bf16.mxu0 %v8719
        %8959 = vmatpush1.bf16.msra.mxu0 %v8718
        %8960 = vmatprep.subr.bf16.mxu0 %v8723
        %8961 = vmatpush1.bf16.msra.mxu0 %v8722
        %8962 = vmatprep.subr.bf16.mxu0 %v8727
        %8963 = vmatpush1.bf16.msra.mxu0 %v8726
        %8964 = vmatprep.subr.bf16.mxu0 %v8731
        %8965 = vmatpush1.bf16.msra.mxu0 %v8730
        %8966 = vmatprep.subr.bf16.mxu0 %v8735
        %8967 = vmatpush1.bf16.msra.mxu0 %v8734
        %8968 = vmatprep.subr.bf16.mxu0 %v8739
        %8969 = vmatpush1.bf16.msra.mxu0 %v8738
        %8970 = vmatprep.subr.bf16.mxu0 %v8743
        %8971 = vmatpush1.bf16.msra.mxu0 %v8742
        %8972 = vmatprep.subr.bf16.mxu0 %v8747
        %8973 = vmatpush1.bf16.msra.mxu0 %v8746
        %8974 = vmatprep.mubr.bf16.mxu0 %v8271
        %8975 = vmatmul.mubr.bf16.gmra.mrb[0].mxu0 %v8270
        %v8976 = vpop.f32.mrb[0].mxu0
        %v8977 = vadd.f32 0.0, %v8976
        %v8978 = vpop.f32.mrb[0].mxu0
        %v8979 = vadd.f32 0.0, %v8978
        %v8980 = vpop.f32.mrb[0].mxu0
        %v8981 = vadd.f32 0.0, %v8980
        %v8982 = vpop.f32.mrb[0].mxu0
        %v8983 = vadd.f32 0.0, %v8982
        %8984 = vmatprep.mubr.bf16.mxu0 %v8275
        %8985 = vmatmul.mubr.bf16.gmra.mrb[0].mxu0 %v8274
        %v8986 = vpop.f32.mrb[0].mxu0
        %v8987 = vadd.f32 0.0, %v8986
        %v8988 = vpop.f32.mrb[0].mxu0
        %v8989 = vadd.f32 0.0, %v8988
        %v8990 = vpop.f32.mrb[0].mxu0
        %v8991 = vadd.f32 0.0, %v8990
        %v8992 = vpop.f32.mrb[0].mxu0
        %v8993 = vadd.f32 0.0, %v8992
        %8994 = vmatprep.mubr.bf16.mxu0 %v8279
        %8995 = vmatmul.mubr.bf16.gmra.mrb[0].mxu0 %v8278
        %v8996 = vpop.f32.mrb[0].mxu0
        %v8997 = vadd.f32 0.0, %v8996
        %v8998 = vpop.f32.mrb[0].mxu0
        %v8999 = vadd.f32 0.0, %v8998
        %v9000 = vpop.f32.mrb[0].mxu0
        %v9001 = vadd.f32 0.0, %v9000
        %v9002 = vpop.f32.mrb[0].mxu0
        %v9003 = vadd.f32 0.0, %v9002
        %9004 = vmatprep.mubr.bf16.mxu0 %v8283
        %9005 = vmatmul.mubr.bf16.gmra.mrb[0].mxu0 %v8282
        %v9006 = vpop.f32.mrb[0].mxu0
        %v9007 = vadd.f32 0.0, %v9006
        %v9008 = vpop.f32.mrb[0].mxu0
        %v9009 = vadd.f32 0.0, %v9008
        %v9010 = vpop.f32.mrb[0].mxu0
        %v9011 = vadd.f32 0.0, %v9010
        %v9012 = vpop.f32.mrb[0].mxu0
        %v9013 = vadd.f32 0.0, %v9012
        %9014 = vdwg.mxu0
        %9015 = vmatprep.subr.bf16.mxu0 %v8751
        %9016 = vmatpush1.bf16.msra.mxu0 %v8750
        %9017 = vmatprep.subr.bf16.mxu0 %v8755
        %9018 = vmatpush1.bf16.msra.mxu0 %v8754
        %9019 = vmatprep.subr.bf16.mxu0 %v8759
        %9020 = vmatpush1.bf16.msra.mxu0 %v8758
        %9021 = vmatprep.subr.bf16.mxu0 %v8763
        %9022 = vmatpush1.bf16.msra.mxu0 %v8762
        %9023 = vmatprep.subr.bf16.mxu0 %v8767
        %9024 = vmatpush1.bf16.msra.mxu0 %v8766
        %9025 = vmatprep.subr.bf16.mxu0 %v8771
        %9026 = vmatpush1.bf16.msra.mxu0 %v8770
        %9027 = vmatprep.subr.bf16.mxu0 %v8775
        %9028 = vmatpush1.bf16.msra.mxu0 %v8774
        %9029 = vmatprep.subr.bf16.mxu0 %v8779
        %9030 = vmatpush1.bf16.msra.mxu0 %v8778
        %9031 = vmatprep.subr.bf16.mxu0 %v8783
        %9032 = vmatpush1.bf16.msra.mxu0 %v8782
        %9033 = vmatprep.subr.bf16.mxu0 %v8787
        %9034 = vmatpush1.bf16.msra.mxu0 %v8786
        %9035 = vmatprep.subr.bf16.mxu0 %v8791
        %9036 = vmatpush1.bf16.msra.mxu0 %v8790
        %9037 = vmatprep.subr.bf16.mxu0 %v8795
        %9038 = vmatpush1.bf16.msra.mxu0 %v8794
        %9039 = vmatprep.subr.bf16.mxu0 %v8799
        %9040 = vmatpush1.bf16.msra.mxu0 %v8798
        %9041 = vmatprep.subr.bf16.mxu0 %v8803
        %9042 = vmatpush1.bf16.msra.mxu0 %v8802
        %9043 = vmatprep.subr.bf16.mxu0 %v8807
        %9044 = vmatpush1.bf16.msra.mxu0 %v8806
        %9045 = vmatprep.subr.bf16.mxu0 %v8811
        %9046 = vmatpush1.bf16.msra.mxu0 %v8810
        %9047 = vmatprep.mubr.bf16.mxu0 %v8273
        %9048 = vmatmul.mubr.bf16.gmra.mrb[0].mxu0 %v8272
        %v9049 = vpop.f32.mrb[0].mxu0
        %v9050 = vadd.f32 %v8977, %v9049
        %v9051 = vpop.f32.mrb[0].mxu0
        %v9052 = vadd.f32 %v8979, %v9051
        %v9053 = vpop.f32.mrb[0].mxu0
        %v9054 = vadd.f32 %v8981, %v9053
        %v9055 = vpop.f32.mrb[0].mxu0
        %v9056 = vadd.f32 %v8983, %v9055
        %9057 = vmatprep.mubr.bf16.mxu0 %v8277
        %9058 = vmatmul.mubr.bf16.gmra.mrb[0].mxu0 %v8276
        %v9059 = vpop.f32.mrb[0].mxu0
        %v9060 = vadd.f32 %v8987, %v9059
        %v9061 = vpop.f32.mrb[0].mxu0
        %v9062 = vadd.f32 %v8989, %v9061
        %v9063 = vpop.f32.mrb[0].mxu0
        %v9064 = vadd.f32 %v8991, %v9063
        %v9065 = vpop.f32.mrb[0].mxu0
        %v9066 = vadd.f32 %v8993, %v9065
        %9067 = vmatprep.mubr.bf16.mxu0 %v8281
        %9068 = vmatmul.mubr.bf16.gmra.mrb[0].mxu0 %v8280
        %v9069 = vpop.f32.mrb[0].mxu0
        %v9070 = vadd.f32 %v8997, %v9069
        %v9071 = vpop.f32.mrb[0].mxu0
        %v9072 = vadd.f32 %v8999, %v9071
        %v9073 = vpop.f32.mrb[0].mxu0
        %v9074 = vadd.f32 %v9001, %v9073
        %v9075 = vpop.f32.mrb[0].mxu0
        %v9076 = vadd.f32 %v9003, %v9075
        %9077 = vmatprep.mubr.bf16.mxu0 %v8285
        %9078 = vmatmul.mubr.bf16.gmra.mrb[0].mxu0 %v8284
        %v9079 = vpop.f32.mrb[0].mxu0
        %v9080 = vadd.f32 %v9007, %v9079
        %v9081 = vpop.f32.mrb[0].mxu0
        %v9082 = vadd.f32 %v9009, %v9081
        %v9083 = vpop.f32.mrb[0].mxu0
        %v9084 = vadd.f32 %v9011, %v9083
        %v9085 = vpop.f32.mrb[0].mxu0
        %v9086 = vadd.f32 %v9013, %v9085
        %9087 = vdwg.mxu0
        %9088 = vmatprep.subr.bf16.mxu0 %v8689
        %9089 = vmatpush1.bf16.msra.mxu0 %v8688
        %9090 = vmatprep.subr.bf16.mxu0 %v8693
        %9091 = vmatpush1.bf16.msra.mxu0 %v8692
        %9092 = vmatprep.subr.bf16.mxu0 %v8697
        %9093 = vmatpush1.bf16.msra.mxu0 %v8696
        %9094 = vmatprep.subr.bf16.mxu0 %v8701
        %9095 = vmatpush1.bf16.msra.mxu0 %v8700
        %9096 = vmatprep.subr.bf16.mxu0 %v8705
        %9097 = vmatpush1.bf16.msra.mxu0 %v8704
        %9098 = vmatprep.subr.bf16.mxu0 %v8709
        %9099 = vmatpush1.bf16.msra.mxu0 %v8708
        %9100 = vmatprep.subr.bf16.mxu0 %v8713
        %9101 = vmatpush1.bf16.msra.mxu0 %v8712
        %9102 = vmatprep.subr.bf16.mxu0 %v8717
        %9103 = vmatpush1.bf16.msra.mxu0 %v8716
        %9104 = vmatprep.subr.bf16.mxu0 %v8721
        %9105 = vmatpush1.bf16.msra.mxu0 %v8720
        %9106 = vmatprep.subr.bf16.mxu0 %v8725
        %9107 = vmatpush1.bf16.msra.mxu0 %v8724
        %9108 = vmatprep.subr.bf16.mxu0 %v8729
        %9109 = vmatpush1.bf16.msra.mxu0 %v8728
        %9110 = vmatprep.subr.bf16.mxu0 %v8733
        %9111 = vmatpush1.bf16.msra.mxu0 %v8732
        %9112 = vmatprep.subr.bf16.mxu0 %v8737
        %9113 = vmatpush1.bf16.msra.mxu0 %v8736
        %9114 = vmatprep.subr.bf16.mxu0 %v8741
        %9115 = vmatpush1.bf16.msra.mxu0 %v8740
        %9116 = vmatprep.subr.bf16.mxu0 %v8745
        %9117 = vmatpush1.bf16.msra.mxu0 %v8744
        %9118 = vmatprep.subr.bf16.mxu0 %v8749
        %9119 = vmatpush1.bf16.msra.mxu0 %v8748
        %9120 = vmatprep.mubr.bf16.mxu0 %v8271
        %9121 = vmatmul.mubr.bf16.gmra.mrb[0].mxu0 %v8270
        %v9122 = vpop.f32.mrb[0].mxu0
        %v9123 = vadd.f32 0.0, %v9122
        %v9124 = vpop.f32.mrb[0].mxu0
        %v9125 = vadd.f32 0.0, %v9124
        %v9126 = vpop.f32.mrb[0].mxu0
        %v9127 = vadd.f32 0.0, %v9126
        %v9128 = vpop.f32.mrb[0].mxu0
        %v9129 = vadd.f32 0.0, %v9128
        %9130 = vmatprep.mubr.bf16.mxu0 %v8275
        %9131 = vmatmul.mubr.bf16.gmra.mrb[0].mxu0 %v8274
        %v9132 = vpop.f32.mrb[0].mxu0
        %v9133 = vadd.f32 0.0, %v9132
        %v9134 = vpop.f32.mrb[0].mxu0
        %v9135 = vadd.f32 0.0, %v9134
        %v9136 = vpop.f32.mrb[0].mxu0
        %v9137 = vadd.f32 0.0, %v9136
        %v9138 = vpop.f32.mrb[0].mxu0
        %v9139 = vadd.f32 0.0, %v9138
        %9140 = vmatprep.mubr.bf16.mxu0 %v8279
        %9141 = vmatmul.mubr.bf16.gmra.mrb[0].mxu0 %v8278
        %v9142 = vpop.f32.mrb[0].mxu0
        %v9143 = vadd.f32 0.0, %v9142
        %v9144 = vpop.f32.mrb[0].mxu0
        %v9145 = vadd.f32 0.0, %v9144
        %v9146 = vpop.f32.mrb[0].mxu0
        %v9147 = vadd.f32 0.0, %v9146
        %v9148 = vpop.f32.mrb[0].mxu0
        %v9149 = vadd.f32 0.0, %v9148
        %9150 = vmatprep.mubr.bf16.mxu0 %v8283
        %9151 = vmatmul.mubr.bf16.gmra.mrb[0].mxu0 %v8282
        %v9152 = vpop.f32.mrb[0].mxu0
        %v9153 = vadd.f32 0.0, %v9152
        %v9154 = vpop.f32.mrb[0].mxu0
        %v9155 = vadd.f32 0.0, %v9154
        %v9156 = vpop.f32.mrb[0].mxu0
        %v9157 = vadd.f32 0.0, %v9156
        %v9158 = vpop.f32.mrb[0].mxu0
        %v9159 = vadd.f32 0.0, %v9158
        %9160 = vdwg.mxu0
        %9161 = vmatprep.subr.bf16.mxu0 %v8753
        %9162 = vmatpush1.bf16.msra.mxu0 %v8752
        %9163 = vmatprep.subr.bf16.mxu0 %v8757
        %9164 = vmatpush1.bf16.msra.mxu0 %v8756
        %9165 = vmatprep.subr.bf16.mxu0 %v8761
        %9166 = vmatpush1.bf16.msra.mxu0 %v8760
        %9167 = vmatprep.subr.bf16.mxu0 %v8765
        %9168 = vmatpush1.bf16.msra.mxu0 %v8764
        %9169 = vmatprep.subr.bf16.mxu0 %v8769
        %9170 = vmatpush1.bf16.msra.mxu0 %v8768
        %9171 = vmatprep.subr.bf16.mxu0 %v8773
        %9172 = vmatpush1.bf16.msra.mxu0 %v8772
        %9173 = vmatprep.subr.bf16.mxu0 %v8777
        %9174 = vmatpush1.bf16.msra.mxu0 %v8776
        %9175 = vmatprep.subr.bf16.mxu0 %v8781
        %9176 = vmatpush1.bf16.msra.mxu0 %v8780
        %9177 = vmatprep.subr.bf16.mxu0 %v8785
        %9178 = vmatpush1.bf16.msra.mxu0 %v8784
        %9179 = vmatprep.subr.bf16.mxu0 %v8789
        %9180 = vmatpush1.bf16.msra.mxu0 %v8788
        %9181 = vmatprep.subr.bf16.mxu0 %v8793
        %9182 = vmatpush1.bf16.msra.mxu0 %v8792
        %9183 = vmatprep.subr.bf16.mxu0 %v8797
        %9184 = vmatpush1.bf16.msra.mxu0 %v8796
        %9185 = vmatprep.subr.bf16.mxu0 %v8801
        %9186 = vmatpush1.bf16.msra.mxu0 %v8800
        %9187 = vmatprep.subr.bf16.mxu0 %v8805
        %9188 = vmatpush1.bf16.msra.mxu0 %v8804
        %9189 = vmatprep.subr.bf16.mxu0 %v8809
        %9190 = vmatpush1.bf16.msra.mxu0 %v8808
        %9191 = vmatprep.subr.bf16.mxu0 %v8813
        %9192 = vmatpush1.bf16.msra.mxu0 %v8812
        %9193 = vmatprep.mubr.bf16.mxu0 %v8273
        %9194 = vmatmul.mubr.bf16.gmra.mrb[0].mxu0 %v8272
        %v9195 = vpop.f32.mrb[0].mxu0
        %v9196 = vadd.f32 %v9123, %v9195
        %v9197 = vpop.f32.mrb[0].mxu0
        %v9198 = vadd.f32 %v9125, %v9197
        %v9199 = vpop.f32.mrb[0].mxu0
        %v9200 = vadd.f32 %v9127, %v9199
        %v9201 = vpop.f32.mrb[0].mxu0
        %v9202 = vadd.f32 %v9129, %v9201
        %9203 = vmatprep.mubr.bf16.mxu0 %v8277
        %9204 = vmatmul.mubr.bf16.gmra.mrb[0].mxu0 %v8276
        %v9205 = vpop.f32.mrb[0].mxu0
        %v9206 = vadd.f32 %v9133, %v9205
        %v9207 = vpop.f32.mrb[0].mxu0
        %v9208 = vadd.f32 %v9135, %v9207
        %v9209 = vpop.f32.mrb[0].mxu0
        %v9210 = vadd.f32 %v9137, %v9209
        %v9211 = vpop.f32.mrb[0].mxu0
        %v9212 = vadd.f32 %v9139, %v9211
        %9213 = vmatprep.mubr.bf16.mxu0 %v8281
        %9214 = vmatmul.mubr.bf16.gmra.mrb[0].mxu0 %v8280
        %v9215 = vpop.f32.mrb[0].mxu0
        %v9216 = vadd.f32 %v9143, %v9215
        %v9217 = vpop.f32.mrb[0].mxu0
        %v9218 = vadd.f32 %v9145, %v9217
        %v9219 = vpop.f32.mrb[0].mxu0
        %v9220 = vadd.f32 %v9147, %v9219
        %v9221 = vpop.f32.mrb[0].mxu0
        %v9222 = vadd.f32 %v9149, %v9221
        %9223 = vmatprep.mubr.bf16.mxu0 %v8285
        %9224 = vmatmul.mubr.bf16.gmra.mrb[0].mxu0 %v8284
        %v9225 = vpop.f32.mrb[0].mxu0
        %v9226 = vadd.f32 %v9153, %v9225
        %v9227 = vpop.f32.mrb[0].mxu0
        %v9228 = vadd.f32 %v9155, %v9227
        %v9229 = vpop.f32.mrb[0].mxu0
        %v9230 = vadd.f32 %v9157, %v9229
        %v9231 = vpop.f32.mrb[0].mxu0
        %v9232 = vadd.f32 %v9159, %v9231
        %9233 = vdwg.mxu0
        %v9234 = vadd.f32 %v8042, %v9050
        %v9235 = vadd.f32 %v8043, %v9052
        %v9236 = vadd.f32 %v8044, %v9196
        %v9237 = vadd.f32 %v8045, %v9198
        %v9238 = vadd.f32 %v8046, %v9054
        %v9239 = vadd.f32 %v8047, %v9056
        %v9240 = vadd.f32 %v8048, %v9200
        %v9241 = vadd.f32 %v8049, %v9202
        %v9242 = vadd.f32 %v8050, %v9060
        %v9243 = vadd.f32 %v8051, %v9062
        %v9244 = vadd.f32 %v8052, %v9206
        %v9245 = vadd.f32 %v8053, %v9208
        %v9246 = vadd.f32 %v8054, %v9064
        %v9247 = vadd.f32 %v8055, %v9066
        %v9248 = vadd.f32 %v8056, %v9210
        %v9249 = vadd.f32 %v8057, %v9212
        %v9250 = vadd.f32 %v8058, %v9070
        %v9251 = vadd.f32 %v8059, %v9072
        %v9252 = vadd.f32 %v8060, %v9216
        %v9253 = vadd.f32 %v8061, %v9218
        %v9254 = vadd.f32 %v8062, %v9074
        %v9255 = vadd.f32 %v8063, %v9076
        %v9256 = vadd.f32 %v8064, %v9220
        %v9257 = vadd.f32 %v8065, %v9222
        %v9258 = vadd.f32 %v8066, %v9080
        %v9259 = vadd.f32 %v8067, %v9082
        %v9260 = vadd.f32 %v8068, %v9226
        %v9261 = vadd.f32 %v8069, %v9228
        %v9262 = vadd.f32 %v8070, %v9084
        %v9263 = vadd.f32 %v8071, %v9086
        %v9264 = vadd.f32 %v8072, %v9230
        %v9265 = vadd.f32 %v8073, %v9232
        %v9266 = vld [vmem:[%s8074] sm:$0xff]
        %v9267 = vld [vmem:[%s8074 + $0x8] sm:$0xff]
        %v9268 = vld [vmem:[%s8074 + $0x10] sm:$0x11]
        %v9269 = vld [vmem:[%s8074 + $0x18] sm:$0x11]
        %v9270 = vld [vmem:[%s8074 + $0x20] sm:$0xff]
        %v9271 = vld [vmem:[%s8074 + $0x28] sm:$0xff]
        %v9272 = vld [vmem:[%s8074 + $0x30] sm:$0x11]
        %v9273 = vld [vmem:[%s8074 + $0x38] sm:$0x11]
        %v9274 = vld [vmem:[%s8074 + $0x40] sm:$0xff]
        %v9275 = vld [vmem:[%s8074 + $0x48] sm:$0xff]
        %v9276 = vld [vmem:[%s8074 + $0x50] sm:$0x11]
        %v9277 = vld [vmem:[%s8074 + $0x58] sm:$0x11]
        %v9278 = vld [vmem:[%s8074 + $0x60] sm:$0xff]
        %v9279 = vld [vmem:[%s8074 + $0x68] sm:$0xff]
        %v9280 = vld [vmem:[%s8074 + $0x70] sm:$0x11]
        %v9281 = vld [vmem:[%s8074 + $0x78] sm:$0x11]
        %v9282 = vld [vmem:[%s8074 + $0x80] sm:$0xff]
        %v9283 = vld [vmem:[%s8074 + $0x88] sm:$0xff]
        %v9284 = vld [vmem:[%s8074 + $0x90] sm:$0x11]
        %v9285 = vld [vmem:[%s8074 + $0x98] sm:$0x11]
        %v9286 = vld [vmem:[%s8074 + $0xa0] sm:$0xff]
        %v9287 = vld [vmem:[%s8074 + $0xa8] sm:$0xff]
        %v9288 = vld [vmem:[%s8074 + $0xb0] sm:$0x11]
        %v9289 = vld [vmem:[%s8074 + $0xb8] sm:$0x11]
        %v9290 = vld [vmem:[%s8074 + $0xc0] sm:$0xff]
        %v9291 = vld [vmem:[%s8074 + $0xc8] sm:$0xff]
        %v9292 = vld [vmem:[%s8074 + $0xd0] sm:$0x11]
        %v9293 = vld [vmem:[%s8074 + $0xd8] sm:$0x11]
        %v9294 = vld [vmem:[%s8074 + $0xe0] sm:$0xff]
        %v9295 = vld [vmem:[%s8074 + $0xe8] sm:$0xff]
        %v9296 = vld [vmem:[%s8074 + $0xf0] sm:$0x11]
        %v9297 = vld [vmem:[%s8074 + $0xf8] sm:$0x11]
        %v9299 = vshrl.u32 %v9266, 16
        %v9301 = vrot.slane %v9299, 4
        %v9302 = vshll.u32 %v9266, 16
        %v9304 = vrot.slane %v9302, 5
        %v9305 = vor.u32 %v9301, %v9304
        %v9306 = vrot.slane %v9305, 4
        %v9308 = vshll.u32 %v9268, 16
        %v9310 = vrot.slane %v9308, 5
        %v9311 = vsel %vm1538, %v9306, %v9310
        %v9313 = vshrl.u32 %v9267, 16
        %v9315 = vrot.slane %v9313, 4
        %v9316 = vshll.u32 %v9267, 16
        %v9318 = vrot.slane %v9316, 5
        %v9319 = vor.u32 %v9315, %v9318
        %v9320 = vrot.slane %v9319, 4
        %v9322 = vshll.u32 %v9269, 16
        %v9324 = vrot.slane %v9322, 5
        %v9325 = vsel %vm1538, %v9320, %v9324
        %v9327 = vshrl.u32 %v9270, 16
        %v9329 = vrot.slane %v9327, 4
        %v9330 = vshll.u32 %v9270, 16
        %v9332 = vrot.slane %v9330, 5
        %v9333 = vor.u32 %v9329, %v9332
        %v9334 = vrot.slane %v9333, 4
        %v9336 = vshll.u32 %v9272, 16
        %v9338 = vrot.slane %v9336, 5
        %v9339 = vsel %vm1538, %v9334, %v9338
        %v9341 = vshrl.u32 %v9271, 16
        %v9343 = vrot.slane %v9341, 4
        %v9344 = vshll.u32 %v9271, 16
        %v9346 = vrot.slane %v9344, 5
        %v9347 = vor.u32 %v9343, %v9346
        %v9348 = vrot.slane %v9347, 4
        %v9350 = vshll.u32 %v9273, 16
        %v9352 = vrot.slane %v9350, 5
        %v9353 = vsel %vm1538, %v9348, %v9352
        %v9355 = vshrl.u32 %v9274, 16
        %v9357 = vrot.slane %v9355, 4
        %v9358 = vshll.u32 %v9274, 16
        %v9360 = vrot.slane %v9358, 5
        %v9361 = vor.u32 %v9357, %v9360
        %v9362 = vrot.slane %v9361, 4
        %v9364 = vshll.u32 %v9276, 16
        %v9366 = vrot.slane %v9364, 5
        %v9367 = vsel %vm1538, %v9362, %v9366
        %v9369 = vshrl.u32 %v9275, 16
        %v9371 = vrot.slane %v9369, 4
        %v9372 = vshll.u32 %v9275, 16
        %v9374 = vrot.slane %v9372, 5
        %v9375 = vor.u32 %v9371, %v9374
        %v9376 = vrot.slane %v9375, 4
        %v9378 = vshll.u32 %v9277, 16
        %v9380 = vrot.slane %v9378, 5
        %v9381 = vsel %vm1538, %v9376, %v9380
        %v9383 = vshrl.u32 %v9278, 16
        %v9385 = vrot.slane %v9383, 4
        %v9386 = vshll.u32 %v9278, 16
        %v9388 = vrot.slane %v9386, 5
        %v9389 = vor.u32 %v9385, %v9388
        %v9390 = vrot.slane %v9389, 4
        %v9392 = vshll.u32 %v9280, 16
        %v9394 = vrot.slane %v9392, 5
        %v9395 = vsel %vm1538, %v9390, %v9394
        %v9397 = vshrl.u32 %v9279, 16
        %v9399 = vrot.slane %v9397, 4
        %v9400 = vshll.u32 %v9279, 16
        %v9402 = vrot.slane %v9400, 5
        %v9403 = vor.u32 %v9399, %v9402
        %v9404 = vrot.slane %v9403, 4
        %v9406 = vshll.u32 %v9281, 16
        %v9408 = vrot.slane %v9406, 5
        %v9409 = vsel %vm1538, %v9404, %v9408
        %v9411 = vshrl.u32 %v9282, 16
        %v9413 = vrot.slane %v9411, 4
        %v9414 = vshll.u32 %v9282, 16
        %v9416 = vrot.slane %v9414, 5
        %v9417 = vor.u32 %v9413, %v9416
        %v9418 = vrot.slane %v9417, 4
        %v9420 = vshll.u32 %v9284, 16
        %v9422 = vrot.slane %v9420, 5
        %v9423 = vsel %vm1538, %v9418, %v9422
        %v9425 = vshrl.u32 %v9283, 16
        %v9427 = vrot.slane %v9425, 4
        %v9428 = vshll.u32 %v9283, 16
        %v9430 = vrot.slane %v9428, 5
        %v9431 = vor.u32 %v9427, %v9430
        %v9432 = vrot.slane %v9431, 4
        %v9434 = vshll.u32 %v9285, 16
        %v9436 = vrot.slane %v9434, 5
        %v9437 = vsel %vm1538, %v9432, %v9436
        %v9439 = vshrl.u32 %v9286, 16
        %v9441 = vrot.slane %v9439, 4
        %v9442 = vshll.u32 %v9286, 16
        %v9444 = vrot.slane %v9442, 5
        %v9445 = vor.u32 %v9441, %v9444
        %v9446 = vrot.slane %v9445, 4
        %v9448 = vshll.u32 %v9288, 16
        %v9450 = vrot.slane %v9448, 5
        %v9451 = vsel %vm1538, %v9446, %v9450
        %v9453 = vshrl.u32 %v9287, 16
        %v9455 = vrot.slane %v9453, 4
        %v9456 = vshll.u32 %v9287, 16
        %v9458 = vrot.slane %v9456, 5
        %v9459 = vor.u32 %v9455, %v9458
        %v9460 = vrot.slane %v9459, 4
        %v9462 = vshll.u32 %v9289, 16
        %v9464 = vrot.slane %v9462, 5
        %v9465 = vsel %vm1538, %v9460, %v9464
        %v9467 = vshrl.u32 %v9290, 16
        %v9469 = vrot.slane %v9467, 4
        %v9470 = vshll.u32 %v9290, 16
        %v9472 = vrot.slane %v9470, 5
        %v9473 = vor.u32 %v9469, %v9472
        %v9474 = vrot.slane %v9473, 4
        %v9476 = vshll.u32 %v9292, 16
        %v9478 = vrot.slane %v9476, 5
        %v9479 = vsel %vm1538, %v9474, %v9478
        %v9481 = vshrl.u32 %v9291, 16
        %v9483 = vrot.slane %v9481, 4
        %v9484 = vshll.u32 %v9291, 16
        %v9486 = vrot.slane %v9484, 5
        %v9487 = vor.u32 %v9483, %v9486
        %v9488 = vrot.slane %v9487, 4
        %v9490 = vshll.u32 %v9293, 16
        %v9492 = vrot.slane %v9490, 5
        %v9493 = vsel %vm1538, %v9488, %v9492
        %v9495 = vshrl.u32 %v9294, 16
        %v9497 = vrot.slane %v9495, 4
        %v9498 = vshll.u32 %v9294, 16
        %v9500 = vrot.slane %v9498, 5
        %v9501 = vor.u32 %v9497, %v9500
        %v9502 = vrot.slane %v9501, 4
        %v9504 = vshll.u32 %v9296, 16
        %v9506 = vrot.slane %v9504, 5
        %v9507 = vsel %vm1538, %v9502, %v9506
        %v9509 = vshrl.u32 %v9295, 16
        %v9511 = vrot.slane %v9509, 4
        %v9512 = vshll.u32 %v9295, 16
        %v9514 = vrot.slane %v9512, 5
        %v9515 = vor.u32 %v9511, %v9514
        %v9516 = vrot.slane %v9515, 4
        %v9518 = vshll.u32 %v9297, 16
        %v9520 = vrot.slane %v9518, 5
        %v9521 = vsel %vm1538, %v9516, %v9520
        %s9522 = sadd.s32 1792, %s329
        %s9523 = smul.addr %s9522, 4
        %s9524 = scalar_lea.vmem [#allocation6], %s9523
        %v9525 = vld [vmem:[%s9524] sm:$0xff]
        %v9526 = vld [vmem:[%s9524 + $0x8] sm:$0xff]
        %v9527 = vld [vmem:[%s9524 + $0x10] sm:$0xff]
        %v9528 = vld [vmem:[%s9524 + $0x18] sm:$0xff]
        %v9529 = vld [vmem:[%s9524 + $0x20] sm:$0xff]
        %v9530 = vld [vmem:[%s9524 + $0x28] sm:$0xff]
        %v9531 = vld [vmem:[%s9524 + $0x30] sm:$0xff]
        %v9532 = vld [vmem:[%s9524 + $0x38] sm:$0xff]
        %v9533 = vld [vmem:[%s9524 + $0x40] sm:$0xff]
        %v9534 = vld [vmem:[%s9524 + $0x48] sm:$0xff]
        %v9535 = vld [vmem:[%s9524 + $0x50] sm:$0xff]
        %v9536 = vld [vmem:[%s9524 + $0x58] sm:$0xff]
        %v9537 = vld [vmem:[%s9524 + $0x60] sm:$0xff]
        %v9538 = vld [vmem:[%s9524 + $0x68] sm:$0xff]
        %v9539 = vld [vmem:[%s9524 + $0x70] sm:$0xff]
        %v9540 = vld [vmem:[%s9524 + $0x78] sm:$0xff]
        %v9541 = vld [vmem:[%s9524 + $0x80] sm:$0xff]
        %v9542 = vld [vmem:[%s9524 + $0x88] sm:$0xff]
        %v9543 = vld [vmem:[%s9524 + $0x90] sm:$0xff]
        %v9544 = vld [vmem:[%s9524 + $0x98] sm:$0xff]
        %v9545 = vld [vmem:[%s9524 + $0xa0] sm:$0xff]
        %v9546 = vld [vmem:[%s9524 + $0xa8] sm:$0xff]
        %v9547 = vld [vmem:[%s9524 + $0xb0] sm:$0xff]
        %v9548 = vld [vmem:[%s9524 + $0xb8] sm:$0xff]
        %v9549 = vld [vmem:[%s9524 + $0xc0] sm:$0xff]
        %v9550 = vld [vmem:[%s9524 + $0xc8] sm:$0xff]
        %v9551 = vld [vmem:[%s9524 + $0xd0] sm:$0xff]
        %v9552 = vld [vmem:[%s9524 + $0xd8] sm:$0xff]
        %v9553 = vld [vmem:[%s9524 + $0xe0] sm:$0xff]
        %v9554 = vld [vmem:[%s9524 + $0xe8] sm:$0xff]
        %v9555 = vld [vmem:[%s9524 + $0xf0] sm:$0xff]
        %v9556 = vld [vmem:[%s9524 + $0xf8] sm:$0xff]
        %v9557 = vld [vmem:[%s9524 + $0x100] sm:$0xff]
        %v9558 = vld [vmem:[%s9524 + $0x108] sm:$0xff]
        %v9559 = vld [vmem:[%s9524 + $0x110] sm:$0xff]
        %v9560 = vld [vmem:[%s9524 + $0x118] sm:$0xff]
        %v9561 = vld [vmem:[%s9524 + $0x120] sm:$0xff]
        %v9562 = vld [vmem:[%s9524 + $0x128] sm:$0xff]
        %v9563 = vld [vmem:[%s9524 + $0x130] sm:$0xff]
        %v9564 = vld [vmem:[%s9524 + $0x138] sm:$0xff]
        %v9565 = vld [vmem:[%s9524 + $0x140] sm:$0xff]
        %v9566 = vld [vmem:[%s9524 + $0x148] sm:$0xff]
        %v9567 = vld [vmem:[%s9524 + $0x150] sm:$0xff]
        %v9568 = vld [vmem:[%s9524 + $0x158] sm:$0xff]
        %v9569 = vld [vmem:[%s9524 + $0x160] sm:$0xff]
        %v9570 = vld [vmem:[%s9524 + $0x168] sm:$0xff]
        %v9571 = vld [vmem:[%s9524 + $0x170] sm:$0xff]
        %v9572 = vld [vmem:[%s9524 + $0x178] sm:$0xff]
        %v9573 = vld [vmem:[%s9524 + $0x180] sm:$0xff]
        %v9574 = vld [vmem:[%s9524 + $0x188] sm:$0xff]
        %v9575 = vld [vmem:[%s9524 + $0x190] sm:$0xff]
        %v9576 = vld [vmem:[%s9524 + $0x198] sm:$0xff]
        %v9577 = vld [vmem:[%s9524 + $0x1a0] sm:$0xff]
        %v9578 = vld [vmem:[%s9524 + $0x1a8] sm:$0xff]
        %v9579 = vld [vmem:[%s9524 + $0x1b0] sm:$0xff]
        %v9580 = vld [vmem:[%s9524 + $0x1b8] sm:$0xff]
        %v9581 = vld [vmem:[%s9524 + $0x1c0] sm:$0xff]
        %v9582 = vld [vmem:[%s9524 + $0x1c8] sm:$0xff]
        %v9583 = vld [vmem:[%s9524 + $0x1d0] sm:$0xff]
        %v9584 = vld [vmem:[%s9524 + $0x1d8] sm:$0xff]
        %v9585 = vld [vmem:[%s9524 + $0x1e0] sm:$0xff]
        %v9586 = vld [vmem:[%s9524 + $0x1e8] sm:$0xff]
        %v9587 = vld [vmem:[%s9524 + $0x1f0] sm:$0xff]
        %v9588 = vld [vmem:[%s9524 + $0x1f8] sm:$0xff]
        %v9589 = vld [vmem:[%s9524 + $0x200] sm:$0xff]
        %v9590 = vld [vmem:[%s9524 + $0x208] sm:$0xff]
        %v9591 = vld [vmem:[%s9524 + $0x210] sm:$0xff]
        %v9592 = vld [vmem:[%s9524 + $0x218] sm:$0xff]
        %v9593 = vld [vmem:[%s9524 + $0x220] sm:$0xff]
        %v9594 = vld [vmem:[%s9524 + $0x228] sm:$0xff]
        %v9595 = vld [vmem:[%s9524 + $0x230] sm:$0xff]
        %v9596 = vld [vmem:[%s9524 + $0x238] sm:$0xff]
        %v9597 = vld [vmem:[%s9524 + $0x240] sm:$0xff]
        %v9598 = vld [vmem:[%s9524 + $0x248] sm:$0xff]
        %v9599 = vld [vmem:[%s9524 + $0x250] sm:$0xff]
        %v9600 = vld [vmem:[%s9524 + $0x258] sm:$0xff]
        %v9601 = vld [vmem:[%s9524 + $0x260] sm:$0xff]
        %v9602 = vld [vmem:[%s9524 + $0x268] sm:$0xff]
        %v9603 = vld [vmem:[%s9524 + $0x270] sm:$0xff]
        %v9604 = vld [vmem:[%s9524 + $0x278] sm:$0xff]
        %v9605 = vld [vmem:[%s9524 + $0x280] sm:$0xff]
        %v9606 = vld [vmem:[%s9524 + $0x288] sm:$0xff]
        %v9607 = vld [vmem:[%s9524 + $0x290] sm:$0xff]
        %v9608 = vld [vmem:[%s9524 + $0x298] sm:$0xff]
        %v9609 = vld [vmem:[%s9524 + $0x2a0] sm:$0xff]
        %v9610 = vld [vmem:[%s9524 + $0x2a8] sm:$0xff]
        %v9611 = vld [vmem:[%s9524 + $0x2b0] sm:$0xff]
        %v9612 = vld [vmem:[%s9524 + $0x2b8] sm:$0xff]
        %v9613 = vld [vmem:[%s9524 + $0x2c0] sm:$0xff]
        %v9614 = vld [vmem:[%s9524 + $0x2c8] sm:$0xff]
        %v9615 = vld [vmem:[%s9524 + $0x2d0] sm:$0xff]
        %v9616 = vld [vmem:[%s9524 + $0x2d8] sm:$0xff]
        %v9617 = vld [vmem:[%s9524 + $0x2e0] sm:$0xff]
        %v9618 = vld [vmem:[%s9524 + $0x2e8] sm:$0xff]
        %v9619 = vld [vmem:[%s9524 + $0x2f0] sm:$0xff]
        %v9620 = vld [vmem:[%s9524 + $0x2f8] sm:$0xff]
        %v9621 = vld [vmem:[%s9524 + $0x300] sm:$0xff]
        %v9622 = vld [vmem:[%s9524 + $0x308] sm:$0xff]
        %v9623 = vld [vmem:[%s9524 + $0x310] sm:$0xff]
        %v9624 = vld [vmem:[%s9524 + $0x318] sm:$0xff]
        %v9625 = vld [vmem:[%s9524 + $0x320] sm:$0xff]
        %v9626 = vld [vmem:[%s9524 + $0x328] sm:$0xff]
        %v9627 = vld [vmem:[%s9524 + $0x330] sm:$0xff]
        %v9628 = vld [vmem:[%s9524 + $0x338] sm:$0xff]
        %v9629 = vld [vmem:[%s9524 + $0x340] sm:$0xff]
        %v9630 = vld [vmem:[%s9524 + $0x348] sm:$0xff]
        %v9631 = vld [vmem:[%s9524 + $0x350] sm:$0xff]
        %v9632 = vld [vmem:[%s9524 + $0x358] sm:$0xff]
        %v9633 = vld [vmem:[%s9524 + $0x360] sm:$0xff]
        %v9634 = vld [vmem:[%s9524 + $0x368] sm:$0xff]
        %v9635 = vld [vmem:[%s9524 + $0x370] sm:$0xff]
        %v9636 = vld [vmem:[%s9524 + $0x378] sm:$0xff]
        %v9637 = vld [vmem:[%s9524 + $0x380] sm:$0xff]
        %v9638 = vld [vmem:[%s9524 + $0x388] sm:$0xff]
        %v9639 = vld [vmem:[%s9524 + $0x390] sm:$0xff]
        %v9640 = vld [vmem:[%s9524 + $0x398] sm:$0xff]
        %v9641 = vld [vmem:[%s9524 + $0x3a0] sm:$0xff]
        %v9642 = vld [vmem:[%s9524 + $0x3a8] sm:$0xff]
        %v9643 = vld [vmem:[%s9524 + $0x3b0] sm:$0xff]
        %v9644 = vld [vmem:[%s9524 + $0x3b8] sm:$0xff]
        %v9645 = vld [vmem:[%s9524 + $0x3c0] sm:$0xff]
        %v9646 = vld [vmem:[%s9524 + $0x3c8] sm:$0xff]
        %v9647 = vld [vmem:[%s9524 + $0x3d0] sm:$0xff]
        %v9648 = vld [vmem:[%s9524 + $0x3d8] sm:$0xff]
        %v9649 = vld [vmem:[%s9524 + $0x3e0] sm:$0xff]
        %v9650 = vld [vmem:[%s9524 + $0x3e8] sm:$0xff]
        %v9651 = vld [vmem:[%s9524 + $0x3f0] sm:$0xff]
        %v9652 = vld [vmem:[%s9524 + $0x3f8] sm:$0xff]
        %v9653 = vunpack.c.l.b16 %v9311
        %v9654 = vunpack.c.h.b16 %v9311
        %v9655 = vunpack.c.l.b16 %v9325
        %v9656 = vunpack.c.h.b16 %v9325
        %v9657 = vunpack.c.l.b16 %v9339
        %v9658 = vunpack.c.h.b16 %v9339
        %v9659 = vunpack.c.l.b16 %v9353
        %v9660 = vunpack.c.h.b16 %v9353
        %v9661 = vunpack.c.l.b16 %v9367
        %v9662 = vunpack.c.h.b16 %v9367
        %v9663 = vunpack.c.l.b16 %v9381
        %v9664 = vunpack.c.h.b16 %v9381
        %v9665 = vunpack.c.l.b16 %v9395
        %v9666 = vunpack.c.h.b16 %v9395
        %v9667 = vunpack.c.l.b16 %v9409
        %v9668 = vunpack.c.h.b16 %v9409
        %v9669 = vunpack.c.l.b16 %v9423
        %v9670 = vunpack.c.h.b16 %v9423
        %v9671 = vunpack.c.l.b16 %v9437
        %v9672 = vunpack.c.h.b16 %v9437
        %v9673 = vunpack.c.l.b16 %v9451
        %v9674 = vunpack.c.h.b16 %v9451
        %v9675 = vunpack.c.l.b16 %v9465
        %v9676 = vunpack.c.h.b16 %v9465
        %v9677 = vunpack.c.l.b16 %v9479
        %v9678 = vunpack.c.h.b16 %v9479
        %v9679 = vunpack.c.l.b16 %v9493
        %v9680 = vunpack.c.h.b16 %v9493
        %v9681 = vunpack.c.l.b16 %v9507
        %v9682 = vunpack.c.h.b16 %v9507
        %v9683 = vunpack.c.l.b16 %v9521
        %v9684 = vunpack.c.h.b16 %v9521
        %v9685 = vpack.c.b16 %v9657, %v9653
        %v9686 = vpack.c.b16 %v9658, %v9654
        %v9687 = vpack.c.b16 %v9659, %v9655
        %v9688 = vpack.c.b16 %v9660, %v9656
        %v9689 = vpack.c.b16 %v9665, %v9661
        %v9690 = vpack.c.b16 %v9666, %v9662
        %v9691 = vpack.c.b16 %v9667, %v9663
        %v9692 = vpack.c.b16 %v9668, %v9664
        %v9693 = vpack.c.b16 %v9673, %v9669
        %v9694 = vpack.c.b16 %v9674, %v9670
        %v9695 = vpack.c.b16 %v9675, %v9671
        %v9696 = vpack.c.b16 %v9676, %v9672
        %v9697 = vpack.c.b16 %v9681, %v9677
        %v9698 = vpack.c.b16 %v9682, %v9678
        %v9699 = vpack.c.b16 %v9683, %v9679
        %v9700 = vpack.c.b16 %v9684, %v9680
        %v9845 = vunpack.c.l.b16 %v9525
        %v9846 = vunpack.c.h.b16 %v9525
        %v9847 = vunpack.c.l.b16 %v9526
        %v9848 = vunpack.c.h.b16 %v9526
        %v9849 = vunpack.c.l.b16 %v9527
        %v9850 = vunpack.c.h.b16 %v9527
        %v9851 = vunpack.c.l.b16 %v9528
        %v9852 = vunpack.c.h.b16 %v9528
        %v9853 = vunpack.c.l.b16 %v9529
        %v9854 = vunpack.c.h.b16 %v9529
        %v9855 = vunpack.c.l.b16 %v9530
        %v9856 = vunpack.c.h.b16 %v9530
        %v9857 = vunpack.c.l.b16 %v9531
        %v9858 = vunpack.c.h.b16 %v9531
        %v9859 = vunpack.c.l.b16 %v9532
        %v9860 = vunpack.c.h.b16 %v9532
        %v9861 = vunpack.c.l.b16 %v9533
        %v9862 = vunpack.c.h.b16 %v9533
        %v9863 = vunpack.c.l.b16 %v9534
        %v9864 = vunpack.c.h.b16 %v9534
        %v9865 = vunpack.c.l.b16 %v9535
        %v9866 = vunpack.c.h.b16 %v9535
        %v9867 = vunpack.c.l.b16 %v9536
        %v9868 = vunpack.c.h.b16 %v9536
        %v9869 = vunpack.c.l.b16 %v9537
        %v9870 = vunpack.c.h.b16 %v9537
        %v9871 = vunpack.c.l.b16 %v9538
        %v9872 = vunpack.c.h.b16 %v9538
        %v9873 = vunpack.c.l.b16 %v9539
        %v9874 = vunpack.c.h.b16 %v9539
        %v9875 = vunpack.c.l.b16 %v9540
        %v9876 = vunpack.c.h.b16 %v9540
        %v9877 = vunpack.c.l.b16 %v9541
        %v9878 = vunpack.c.h.b16 %v9541
        %v9879 = vunpack.c.l.b16 %v9542
        %v9880 = vunpack.c.h.b16 %v9542
        %v9881 = vunpack.c.l.b16 %v9543
        %v9882 = vunpack.c.h.b16 %v9543
        %v9883 = vunpack.c.l.b16 %v9544
        %v9884 = vunpack.c.h.b16 %v9544
        %v9885 = vunpack.c.l.b16 %v9545
        %v9886 = vunpack.c.h.b16 %v9545
        %v9887 = vunpack.c.l.b16 %v9546
        %v9888 = vunpack.c.h.b16 %v9546
        %v9889 = vunpack.c.l.b16 %v9547
        %v9890 = vunpack.c.h.b16 %v9547
        %v9891 = vunpack.c.l.b16 %v9548
        %v9892 = vunpack.c.h.b16 %v9548
        %v9893 = vunpack.c.l.b16 %v9549
        %v9894 = vunpack.c.h.b16 %v9549
        %v9895 = vunpack.c.l.b16 %v9550
        %v9896 = vunpack.c.h.b16 %v9550
        %v9897 = vunpack.c.l.b16 %v9551
        %v9898 = vunpack.c.h.b16 %v9551
        %v9899 = vunpack.c.l.b16 %v9552
        %v9900 = vunpack.c.h.b16 %v9552
        %v9901 = vunpack.c.l.b16 %v9553
        %v9902 = vunpack.c.h.b16 %v9553
        %v9903 = vunpack.c.l.b16 %v9554
        %v9904 = vunpack.c.h.b16 %v9554
        %v9905 = vunpack.c.l.b16 %v9555
        %v9906 = vunpack.c.h.b16 %v9555
        %v9907 = vunpack.c.l.b16 %v9556
        %v9908 = vunpack.c.h.b16 %v9556
        %v9909 = vunpack.c.l.b16 %v9557
        %v9910 = vunpack.c.h.b16 %v9557
        %v9911 = vunpack.c.l.b16 %v9558
        %v9912 = vunpack.c.h.b16 %v9558
        %v9913 = vunpack.c.l.b16 %v9559
        %v9914 = vunpack.c.h.b16 %v9559
        %v9915 = vunpack.c.l.b16 %v9560
        %v9916 = vunpack.c.h.b16 %v9560
        %v9917 = vunpack.c.l.b16 %v9561
        %v9918 = vunpack.c.h.b16 %v9561
        %v9919 = vunpack.c.l.b16 %v9562
        %v9920 = vunpack.c.h.b16 %v9562
        %v9921 = vunpack.c.l.b16 %v9563
        %v9922 = vunpack.c.h.b16 %v9563
        %v9923 = vunpack.c.l.b16 %v9564
        %v9924 = vunpack.c.h.b16 %v9564
        %v9925 = vunpack.c.l.b16 %v9565
        %v9926 = vunpack.c.h.b16 %v9565
        %v9927 = vunpack.c.l.b16 %v9566
        %v9928 = vunpack.c.h.b16 %v9566
        %v9929 = vunpack.c.l.b16 %v9567
        %v9930 = vunpack.c.h.b16 %v9567
        %v9931 = vunpack.c.l.b16 %v9568
        %v9932 = vunpack.c.h.b16 %v9568
        %v9933 = vunpack.c.l.b16 %v9569
        %v9934 = vunpack.c.h.b16 %v9569
        %v9935 = vunpack.c.l.b16 %v9570
        %v9936 = vunpack.c.h.b16 %v9570
        %v9937 = vunpack.c.l.b16 %v9571
        %v9938 = vunpack.c.h.b16 %v9571
        %v9939 = vunpack.c.l.b16 %v9572
        %v9940 = vunpack.c.h.b16 %v9572
        %v9941 = vunpack.c.l.b16 %v9573
        %v9942 = vunpack.c.h.b16 %v9573
        %v9943 = vunpack.c.l.b16 %v9574
        %v9944 = vunpack.c.h.b16 %v9574
        %v9945 = vunpack.c.l.b16 %v9575
        %v9946 = vunpack.c.h.b16 %v9575
        %v9947 = vunpack.c.l.b16 %v9576
        %v9948 = vunpack.c.h.b16 %v9576
        %v9949 = vunpack.c.l.b16 %v9577
        %v9950 = vunpack.c.h.b16 %v9577
        %v9951 = vunpack.c.l.b16 %v9578
        %v9952 = vunpack.c.h.b16 %v9578
        %v9953 = vunpack.c.l.b16 %v9579
        %v9954 = vunpack.c.h.b16 %v9579
        %v9955 = vunpack.c.l.b16 %v9580
        %v9956 = vunpack.c.h.b16 %v9580
        %v9957 = vunpack.c.l.b16 %v9581
        %v9958 = vunpack.c.h.b16 %v9581
        %v9959 = vunpack.c.l.b16 %v9582
        %v9960 = vunpack.c.h.b16 %v9582
        %v9961 = vunpack.c.l.b16 %v9583
        %v9962 = vunpack.c.h.b16 %v9583
        %v9963 = vunpack.c.l.b16 %v9584
        %v9964 = vunpack.c.h.b16 %v9584
        %v9965 = vunpack.c.l.b16 %v9585
        %v9966 = vunpack.c.h.b16 %v9585
        %v9967 = vunpack.c.l.b16 %v9586
        %v9968 = vunpack.c.h.b16 %v9586
        %v9969 = vunpack.c.l.b16 %v9587
        %v9970 = vunpack.c.h.b16 %v9587
        %v9971 = vunpack.c.l.b16 %v9588
        %v9972 = vunpack.c.h.b16 %v9588
        %v9973 = vunpack.c.l.b16 %v9589
        %v9974 = vunpack.c.h.b16 %v9589
        %v9975 = vunpack.c.l.b16 %v9590
        %v9976 = vunpack.c.h.b16 %v9590
        %v9977 = vunpack.c.l.b16 %v9591
        %v9978 = vunpack.c.h.b16 %v9591
        %v9979 = vunpack.c.l.b16 %v9592
        %v9980 = vunpack.c.h.b16 %v9592
        %v9981 = vunpack.c.l.b16 %v9593
        %v9982 = vunpack.c.h.b16 %v9593
        %v9983 = vunpack.c.l.b16 %v9594
        %v9984 = vunpack.c.h.b16 %v9594
        %v9985 = vunpack.c.l.b16 %v9595
        %v9986 = vunpack.c.h.b16 %v9595
        %v9987 = vunpack.c.l.b16 %v9596
        %v9988 = vunpack.c.h.b16 %v9596
        %v9989 = vunpack.c.l.b16 %v9597
        %v9990 = vunpack.c.h.b16 %v9597
        %v9991 = vunpack.c.l.b16 %v9598
        %v9992 = vunpack.c.h.b16 %v9598
        %v9993 = vunpack.c.l.b16 %v9599
        %v9994 = vunpack.c.h.b16 %v9599
        %v9995 = vunpack.c.l.b16 %v9600
        %v9996 = vunpack.c.h.b16 %v9600
        %v9997 = vunpack.c.l.b16 %v9601
        %v9998 = vunpack.c.h.b16 %v9601
        %v9999 = vunpack.c.l.b16 %v9602
        %v10000 = vunpack.c.h.b16 %v9602
        %v10001 = vunpack.c.l.b16 %v9603
        %v10002 = vunpack.c.h.b16 %v9603
        %v10003 = vunpack.c.l.b16 %v9604
        %v10004 = vunpack.c.h.b16 %v9604
        %v10005 = vunpack.c.l.b16 %v9605
        %v10006 = vunpack.c.h.b16 %v9605
        %v10007 = vunpack.c.l.b16 %v9606
        %v10008 = vunpack.c.h.b16 %v9606
        %v10009 = vunpack.c.l.b16 %v9607
        %v10010 = vunpack.c.h.b16 %v9607
        %v10011 = vunpack.c.l.b16 %v9608
        %v10012 = vunpack.c.h.b16 %v9608
        %v10013 = vunpack.c.l.b16 %v9609
        %v10014 = vunpack.c.h.b16 %v9609
        %v10015 = vunpack.c.l.b16 %v9610
        %v10016 = vunpack.c.h.b16 %v9610
        %v10017 = vunpack.c.l.b16 %v9611
        %v10018 = vunpack.c.h.b16 %v9611
        %v10019 = vunpack.c.l.b16 %v9612
        %v10020 = vunpack.c.h.b16 %v9612
        %v10021 = vunpack.c.l.b16 %v9613
        %v10022 = vunpack.c.h.b16 %v9613
        %v10023 = vunpack.c.l.b16 %v9614
        %v10024 = vunpack.c.h.b16 %v9614
        %v10025 = vunpack.c.l.b16 %v9615
        %v10026 = vunpack.c.h.b16 %v9615
        %v10027 = vunpack.c.l.b16 %v9616
        %v10028 = vunpack.c.h.b16 %v9616
        %v10029 = vunpack.c.l.b16 %v9617
        %v10030 = vunpack.c.h.b16 %v9617
        %v10031 = vunpack.c.l.b16 %v9618
        %v10032 = vunpack.c.h.b16 %v9618
        %v10033 = vunpack.c.l.b16 %v9619
        %v10034 = vunpack.c.h.b16 %v9619
        %v10035 = vunpack.c.l.b16 %v9620
        %v10036 = vunpack.c.h.b16 %v9620
        %v10037 = vunpack.c.l.b16 %v9621
        %v10038 = vunpack.c.h.b16 %v9621
        %v10039 = vunpack.c.l.b16 %v9622
        %v10040 = vunpack.c.h.b16 %v9622
        %v10041 = vunpack.c.l.b16 %v9623
        %v10042 = vunpack.c.h.b16 %v9623
        %v10043 = vunpack.c.l.b16 %v9624
        %v10044 = vunpack.c.h.b16 %v9624
        %v10045 = vunpack.c.l.b16 %v9625
        %v10046 = vunpack.c.h.b16 %v9625
        %v10047 = vunpack.c.l.b16 %v9626
        %v10048 = vunpack.c.h.b16 %v9626
        %v10049 = vunpack.c.l.b16 %v9627
        %v10050 = vunpack.c.h.b16 %v9627
        %v10051 = vunpack.c.l.b16 %v9628
        %v10052 = vunpack.c.h.b16 %v9628
        %v10053 = vunpack.c.l.b16 %v9629
        %v10054 = vunpack.c.h.b16 %v9629
        %v10055 = vunpack.c.l.b16 %v9630
        %v10056 = vunpack.c.h.b16 %v9630
        %v10057 = vunpack.c.l.b16 %v9631
        %v10058 = vunpack.c.h.b16 %v9631
        %v10059 = vunpack.c.l.b16 %v9632
        %v10060 = vunpack.c.h.b16 %v9632
        %v10061 = vunpack.c.l.b16 %v9633
        %v10062 = vunpack.c.h.b16 %v9633
        %v10063 = vunpack.c.l.b16 %v9634
        %v10064 = vunpack.c.h.b16 %v9634
        %v10065 = vunpack.c.l.b16 %v9635
        %v10066 = vunpack.c.h.b16 %v9635
        %v10067 = vunpack.c.l.b16 %v9636
        %v10068 = vunpack.c.h.b16 %v9636
        %v10069 = vunpack.c.l.b16 %v9637
        %v10070 = vunpack.c.h.b16 %v9637
        %v10071 = vunpack.c.l.b16 %v9638
        %v10072 = vunpack.c.h.b16 %v9638
        %v10073 = vunpack.c.l.b16 %v9639
        %v10074 = vunpack.c.h.b16 %v9639
        %v10075 = vunpack.c.l.b16 %v9640
        %v10076 = vunpack.c.h.b16 %v9640
        %v10077 = vunpack.c.l.b16 %v9641
        %v10078 = vunpack.c.h.b16 %v9641
        %v10079 = vunpack.c.l.b16 %v9642
        %v10080 = vunpack.c.h.b16 %v9642
        %v10081 = vunpack.c.l.b16 %v9643
        %v10082 = vunpack.c.h.b16 %v9643
        %v10083 = vunpack.c.l.b16 %v9644
        %v10084 = vunpack.c.h.b16 %v9644
        %v10085 = vunpack.c.l.b16 %v9645
        %v10086 = vunpack.c.h.b16 %v9645
        %v10087 = vunpack.c.l.b16 %v9646
        %v10088 = vunpack.c.h.b16 %v9646
        %v10089 = vunpack.c.l.b16 %v9647
        %v10090 = vunpack.c.h.b16 %v9647
        %v10091 = vunpack.c.l.b16 %v9648
        %v10092 = vunpack.c.h.b16 %v9648
        %v10093 = vunpack.c.l.b16 %v9649
        %v10094 = vunpack.c.h.b16 %v9649
        %v10095 = vunpack.c.l.b16 %v9650
        %v10096 = vunpack.c.h.b16 %v9650
        %v10097 = vunpack.c.l.b16 %v9651
        %v10098 = vunpack.c.h.b16 %v9651
        %v10099 = vunpack.c.l.b16 %v9652
        %v10100 = vunpack.c.h.b16 %v9652
        %v10101 = vpack.c.b16 %v9849, %v9845
        %v10102 = vpack.c.b16 %v9850, %v9846
        %v10103 = vpack.c.b16 %v9851, %v9847
        %v10104 = vpack.c.b16 %v9852, %v9848
        %v10105 = vpack.c.b16 %v9857, %v9853
        %v10106 = vpack.c.b16 %v9858, %v9854
        %v10107 = vpack.c.b16 %v9859, %v9855
        %v10108 = vpack.c.b16 %v9860, %v9856
        %v10109 = vpack.c.b16 %v9865, %v9861
        %v10110 = vpack.c.b16 %v9866, %v9862
        %v10111 = vpack.c.b16 %v9867, %v9863
        %v10112 = vpack.c.b16 %v9868, %v9864
        %v10113 = vpack.c.b16 %v9873, %v9869
        %v10114 = vpack.c.b16 %v9874, %v9870
        %v10115 = vpack.c.b16 %v9875, %v9871
        %v10116 = vpack.c.b16 %v9876, %v9872
        %v10117 = vpack.c.b16 %v9881, %v9877
        %v10118 = vpack.c.b16 %v9882, %v9878
        %v10119 = vpack.c.b16 %v9883, %v9879
        %v10120 = vpack.c.b16 %v9884, %v9880
        %v10121 = vpack.c.b16 %v9889, %v9885
        %v10122 = vpack.c.b16 %v9890, %v9886
        %v10123 = vpack.c.b16 %v9891, %v9887
        %v10124 = vpack.c.b16 %v9892, %v9888
        %v10125 = vpack.c.b16 %v9897, %v9893
        %v10126 = vpack.c.b16 %v9898, %v9894
        %v10127 = vpack.c.b16 %v9899, %v9895
        %v10128 = vpack.c.b16 %v9900, %v9896
        %v10129 = vpack.c.b16 %v9905, %v9901
        %v10130 = vpack.c.b16 %v9906, %v9902
        %v10131 = vpack.c.b16 %v9907, %v9903
        %v10132 = vpack.c.b16 %v9908, %v9904
        %v10133 = vpack.c.b16 %v9913, %v9909
        %v10134 = vpack.c.b16 %v9914, %v9910
        %v10135 = vpack.c.b16 %v9915, %v9911
        %v10136 = vpack.c.b16 %v9916, %v9912
        %v10137 = vpack.c.b16 %v9921, %v9917
        %v10138 = vpack.c.b16 %v9922, %v9918
        %v10139 = vpack.c.b16 %v9923, %v9919
        %v10140 = vpack.c.b16 %v9924, %v9920
        %v10141 = vpack.c.b16 %v9929, %v9925
        %v10142 = vpack.c.b16 %v9930, %v9926
        %v10143 = vpack.c.b16 %v9931, %v9927
        %v10144 = vpack.c.b16 %v9932, %v9928
        %v10145 = vpack.c.b16 %v9937, %v9933
        %v10146 = vpack.c.b16 %v9938, %v9934
        %v10147 = vpack.c.b16 %v9939, %v9935
        %v10148 = vpack.c.b16 %v9940, %v9936
        %v10149 = vpack.c.b16 %v9945, %v9941
        %v10150 = vpack.c.b16 %v9946, %v9942
        %v10151 = vpack.c.b16 %v9947, %v9943
        %v10152 = vpack.c.b16 %v9948, %v9944
        %v10153 = vpack.c.b16 %v9953, %v9949
        %v10154 = vpack.c.b16 %v9954, %v9950
        %v10155 = vpack.c.b16 %v9955, %v9951
        %v10156 = vpack.c.b16 %v9956, %v9952
        %v10157 = vpack.c.b16 %v9961, %v9957
        %v10158 = vpack.c.b16 %v9962, %v9958
        %v10159 = vpack.c.b16 %v9963, %v9959
        %v10160 = vpack.c.b16 %v9964, %v9960
        %v10161 = vpack.c.b16 %v9969, %v9965
        %v10162 = vpack.c.b16 %v9970, %v9966
        %v10163 = vpack.c.b16 %v9971, %v9967
        %v10164 = vpack.c.b16 %v9972, %v9968
        %v10165 = vpack.c.b16 %v9977, %v9973
        %v10166 = vpack.c.b16 %v9978, %v9974
        %v10167 = vpack.c.b16 %v9979, %v9975
        %v10168 = vpack.c.b16 %v9980, %v9976
        %v10169 = vpack.c.b16 %v9985, %v9981
        %v10170 = vpack.c.b16 %v9986, %v9982
        %v10171 = vpack.c.b16 %v9987, %v9983
        %v10172 = vpack.c.b16 %v9988, %v9984
        %v10173 = vpack.c.b16 %v9993, %v9989
        %v10174 = vpack.c.b16 %v9994, %v9990
        %v10175 = vpack.c.b16 %v9995, %v9991
        %v10176 = vpack.c.b16 %v9996, %v9992
        %v10177 = vpack.c.b16 %v10001, %v9997
        %v10178 = vpack.c.b16 %v10002, %v9998
        %v10179 = vpack.c.b16 %v10003, %v9999
        %v10180 = vpack.c.b16 %v10004, %v10000
        %v10181 = vpack.c.b16 %v10009, %v10005
        %v10182 = vpack.c.b16 %v10010, %v10006
        %v10183 = vpack.c.b16 %v10011, %v10007
        %v10184 = vpack.c.b16 %v10012, %v10008
        %v10185 = vpack.c.b16 %v10017, %v10013
        %v10186 = vpack.c.b16 %v10018, %v10014
        %v10187 = vpack.c.b16 %v10019, %v10015
        %v10188 = vpack.c.b16 %v10020, %v10016
        %v10189 = vpack.c.b16 %v10025, %v10021
        %v10190 = vpack.c.b16 %v10026, %v10022
        %v10191 = vpack.c.b16 %v10027, %v10023
        %v10192 = vpack.c.b16 %v10028, %v10024
        %v10193 = vpack.c.b16 %v10033, %v10029
        %v10194 = vpack.c.b16 %v10034, %v10030
        %v10195 = vpack.c.b16 %v10035, %v10031
        %v10196 = vpack.c.b16 %v10036, %v10032
        %v10197 = vpack.c.b16 %v10041, %v10037
        %v10198 = vpack.c.b16 %v10042, %v10038
        %v10199 = vpack.c.b16 %v10043, %v10039
        %v10200 = vpack.c.b16 %v10044, %v10040
        %v10201 = vpack.c.b16 %v10049, %v10045
        %v10202 = vpack.c.b16 %v10050, %v10046
        %v10203 = vpack.c.b16 %v10051, %v10047
        %v10204 = vpack.c.b16 %v10052, %v10048
        %v10205 = vpack.c.b16 %v10057, %v10053
        %v10206 = vpack.c.b16 %v10058, %v10054
        %v10207 = vpack.c.b16 %v10059, %v10055
        %v10208 = vpack.c.b16 %v10060, %v10056
        %v10209 = vpack.c.b16 %v10065, %v10061
        %v10210 = vpack.c.b16 %v10066, %v10062
        %v10211 = vpack.c.b16 %v10067, %v10063
        %v10212 = vpack.c.b16 %v10068, %v10064
        %v10213 = vpack.c.b16 %v10073, %v10069
        %v10214 = vpack.c.b16 %v10074, %v10070
        %v10215 = vpack.c.b16 %v10075, %v10071
        %v10216 = vpack.c.b16 %v10076, %v10072
        %v10217 = vpack.c.b16 %v10081, %v10077
        %v10218 = vpack.c.b16 %v10082, %v10078
        %v10219 = vpack.c.b16 %v10083, %v10079
        %v10220 = vpack.c.b16 %v10084, %v10080
        %v10221 = vpack.c.b16 %v10089, %v10085
        %v10222 = vpack.c.b16 %v10090, %v10086
        %v10223 = vpack.c.b16 %v10091, %v10087
        %v10224 = vpack.c.b16 %v10092, %v10088
        %v10225 = vpack.c.b16 %v10097, %v10093
        %v10226 = vpack.c.b16 %v10098, %v10094
        %v10227 = vpack.c.b16 %v10099, %v10095
        %v10228 = vpack.c.b16 %v10100, %v10096
        %10357 = vmatprep.subr.bf16.mxu0 %v10102
        %10358 = vmatpush1.bf16.msra.mxu0 %v10101
        %10359 = vmatprep.subr.bf16.mxu0 %v10106
        %10360 = vmatpush1.bf16.msra.mxu0 %v10105
        %10361 = vmatprep.subr.bf16.mxu0 %v10110
        %10362 = vmatpush1.bf16.msra.mxu0 %v10109
        %10363 = vmatprep.subr.bf16.mxu0 %v10114
        %10364 = vmatpush1.bf16.msra.mxu0 %v10113
        %10365 = vmatprep.subr.bf16.mxu0 %v10118
        %10366 = vmatpush1.bf16.msra.mxu0 %v10117
        %10367 = vmatprep.subr.bf16.mxu0 %v10122
        %10368 = vmatpush1.bf16.msra.mxu0 %v10121
        %10369 = vmatprep.subr.bf16.mxu0 %v10126
        %10370 = vmatpush1.bf16.msra.mxu0 %v10125
        %10371 = vmatprep.subr.bf16.mxu0 %v10130
        %10372 = vmatpush1.bf16.msra.mxu0 %v10129
        %10373 = vmatprep.subr.bf16.mxu0 %v10134
        %10374 = vmatpush1.bf16.msra.mxu0 %v10133
        %10375 = vmatprep.subr.bf16.mxu0 %v10138
        %10376 = vmatpush1.bf16.msra.mxu0 %v10137
        %10377 = vmatprep.subr.bf16.mxu0 %v10142
        %10378 = vmatpush1.bf16.msra.mxu0 %v10141
        %10379 = vmatprep.subr.bf16.mxu0 %v10146
        %10380 = vmatpush1.bf16.msra.mxu0 %v10145
        %10381 = vmatprep.subr.bf16.mxu0 %v10150
        %10382 = vmatpush1.bf16.msra.mxu0 %v10149
        %10383 = vmatprep.subr.bf16.mxu0 %v10154
        %10384 = vmatpush1.bf16.msra.mxu0 %v10153
        %10385 = vmatprep.subr.bf16.mxu0 %v10158
        %10386 = vmatpush1.bf16.msra.mxu0 %v10157
        %10387 = vmatprep.subr.bf16.mxu0 %v10162
        %10388 = vmatpush1.bf16.msra.mxu0 %v10161
        %10389 = vmatprep.mubr.bf16.mxu0 %v9686
        %10390 = vmatmul.mubr.bf16.gmra.mrb[0].mxu0 %v9685
        %v10391 = vpop.f32.mrb[0].mxu0
        %v10392 = vadd.f32 0.0, %v10391
        %v10393 = vpop.f32.mrb[0].mxu0
        %v10394 = vadd.f32 0.0, %v10393
        %v10395 = vpop.f32.mrb[0].mxu0
        %v10396 = vadd.f32 0.0, %v10395
        %v10397 = vpop.f32.mrb[0].mxu0
        %v10398 = vadd.f32 0.0, %v10397
        %10399 = vmatprep.mubr.bf16.mxu0 %v9690
        %10400 = vmatmul.mubr.bf16.gmra.mrb[0].mxu0 %v9689
        %v10401 = vpop.f32.mrb[0].mxu0
        %v10402 = vadd.f32 0.0, %v10401
        %v10403 = vpop.f32.mrb[0].mxu0
        %v10404 = vadd.f32 0.0, %v10403
        %v10405 = vpop.f32.mrb[0].mxu0
        %v10406 = vadd.f32 0.0, %v10405
        %v10407 = vpop.f32.mrb[0].mxu0
        %v10408 = vadd.f32 0.0, %v10407
        %10409 = vmatprep.mubr.bf16.mxu0 %v9694
        %10410 = vmatmul.mubr.bf16.gmra.mrb[0].mxu0 %v9693
        %v10411 = vpop.f32.mrb[0].mxu0
        %v10412 = vadd.f32 0.0, %v10411
        %v10413 = vpop.f32.mrb[0].mxu0
        %v10414 = vadd.f32 0.0, %v10413
        %v10415 = vpop.f32.mrb[0].mxu0
        %v10416 = vadd.f32 0.0, %v10415
        %v10417 = vpop.f32.mrb[0].mxu0
        %v10418 = vadd.f32 0.0, %v10417
        %10419 = vmatprep.mubr.bf16.mxu0 %v9698
        %10420 = vmatmul.mubr.bf16.gmra.mrb[0].mxu0 %v9697
        %v10421 = vpop.f32.mrb[0].mxu0
        %v10422 = vadd.f32 0.0, %v10421
        %v10423 = vpop.f32.mrb[0].mxu0
        %v10424 = vadd.f32 0.0, %v10423
        %v10425 = vpop.f32.mrb[0].mxu0
        %v10426 = vadd.f32 0.0, %v10425
        %v10427 = vpop.f32.mrb[0].mxu0
        %v10428 = vadd.f32 0.0, %v10427
        %10429 = vdwg.mxu0
        %10430 = vmatprep.subr.bf16.mxu0 %v10166
        %10431 = vmatpush1.bf16.msra.mxu0 %v10165
        %10432 = vmatprep.subr.bf16.mxu0 %v10170
        %10433 = vmatpush1.bf16.msra.mxu0 %v10169
        %10434 = vmatprep.subr.bf16.mxu0 %v10174
        %10435 = vmatpush1.bf16.msra.mxu0 %v10173
        %10436 = vmatprep.subr.bf16.mxu0 %v10178
        %10437 = vmatpush1.bf16.msra.mxu0 %v10177
        %10438 = vmatprep.subr.bf16.mxu0 %v10182
        %10439 = vmatpush1.bf16.msra.mxu0 %v10181
        %10440 = vmatprep.subr.bf16.mxu0 %v10186
        %10441 = vmatpush1.bf16.msra.mxu0 %v10185
        %10442 = vmatprep.subr.bf16.mxu0 %v10190
        %10443 = vmatpush1.bf16.msra.mxu0 %v10189
        %10444 = vmatprep.subr.bf16.mxu0 %v10194
        %10445 = vmatpush1.bf16.msra.mxu0 %v10193
        %10446 = vmatprep.subr.bf16.mxu0 %v10198
        %10447 = vmatpush1.bf16.msra.mxu0 %v10197
        %10448 = vmatprep.subr.bf16.mxu0 %v10202
        %10449 = vmatpush1.bf16.msra.mxu0 %v10201
        %10450 = vmatprep.subr.bf16.mxu0 %v10206
        %10451 = vmatpush1.bf16.msra.mxu0 %v10205
        %10452 = vmatprep.subr.bf16.mxu0 %v10210
        %10453 = vmatpush1.bf16.msra.mxu0 %v10209
        %10454 = vmatprep.subr.bf16.mxu0 %v10214
        %10455 = vmatpush1.bf16.msra.mxu0 %v10213
        %10456 = vmatprep.subr.bf16.mxu0 %v10218
        %10457 = vmatpush1.bf16.msra.mxu0 %v10217
        %10458 = vmatprep.subr.bf16.mxu0 %v10222
        %10459 = vmatpush1.bf16.msra.mxu0 %v10221
        %10460 = vmatprep.subr.bf16.mxu0 %v10226
        %10461 = vmatpush1.bf16.msra.mxu0 %v10225
        %10462 = vmatprep.mubr.bf16.mxu0 %v9688
        %10463 = vmatmul.mubr.bf16.gmra.mrb[0].mxu0 %v9687
        %v10464 = vpop.f32.mrb[0].mxu0
        %v10465 = vadd.f32 %v10392, %v10464
        %v10466 = vpop.f32.mrb[0].mxu0
        %v10467 = vadd.f32 %v10394, %v10466
        %v10468 = vpop.f32.mrb[0].mxu0
        %v10469 = vadd.f32 %v10396, %v10468
        %v10470 = vpop.f32.mrb[0].mxu0
        %v10471 = vadd.f32 %v10398, %v10470
        %10472 = vmatprep.mubr.bf16.mxu0 %v9692
        %10473 = vmatmul.mubr.bf16.gmra.mrb[0].mxu0 %v9691
        %v10474 = vpop.f32.mrb[0].mxu0
        %v10475 = vadd.f32 %v10402, %v10474
        %v10476 = vpop.f32.mrb[0].mxu0
        %v10477 = vadd.f32 %v10404, %v10476
        %v10478 = vpop.f32.mrb[0].mxu0
        %v10479 = vadd.f32 %v10406, %v10478
        %v10480 = vpop.f32.mrb[0].mxu0
        %v10481 = vadd.f32 %v10408, %v10480
        %10482 = vmatprep.mubr.bf16.mxu0 %v9696
        %10483 = vmatmul.mubr.bf16.gmra.mrb[0].mxu0 %v9695
        %v10484 = vpop.f32.mrb[0].mxu0
        %v10485 = vadd.f32 %v10412, %v10484
        %v10486 = vpop.f32.mrb[0].mxu0
        %v10487 = vadd.f32 %v10414, %v10486
        %v10488 = vpop.f32.mrb[0].mxu0
        %v10489 = vadd.f32 %v10416, %v10488
        %v10490 = vpop.f32.mrb[0].mxu0
        %v10491 = vadd.f32 %v10418, %v10490
        %10492 = vmatprep.mubr.bf16.mxu0 %v9700
        %10493 = vmatmul.mubr.bf16.gmra.mrb[0].mxu0 %v9699
        %v10494 = vpop.f32.mrb[0].mxu0
        %v10495 = vadd.f32 %v10422, %v10494
        %v10496 = vpop.f32.mrb[0].mxu0
        %v10497 = vadd.f32 %v10424, %v10496
        %v10498 = vpop.f32.mrb[0].mxu0
        %v10499 = vadd.f32 %v10426, %v10498
        %v10500 = vpop.f32.mrb[0].mxu0
        %v10501 = vadd.f32 %v10428, %v10500
        %10502 = vdwg.mxu0
        %10503 = vmatprep.subr.bf16.mxu0 %v10104
        %10504 = vmatpush1.bf16.msra.mxu0 %v10103
        %10505 = vmatprep.subr.bf16.mxu0 %v10108
        %10506 = vmatpush1.bf16.msra.mxu0 %v10107
        %10507 = vmatprep.subr.bf16.mxu0 %v10112
        %10508 = vmatpush1.bf16.msra.mxu0 %v10111
        %10509 = vmatprep.subr.bf16.mxu0 %v10116
        %10510 = vmatpush1.bf16.msra.mxu0 %v10115
        %10511 = vmatprep.subr.bf16.mxu0 %v10120
        %10512 = vmatpush1.bf16.msra.mxu0 %v10119
        %10513 = vmatprep.subr.bf16.mxu0 %v10124
        %10514 = vmatpush1.bf16.msra.mxu0 %v10123
        %10515 = vmatprep.subr.bf16.mxu0 %v10128
        %10516 = vmatpush1.bf16.msra.mxu0 %v10127
        %10517 = vmatprep.subr.bf16.mxu0 %v10132
        %10518 = vmatpush1.bf16.msra.mxu0 %v10131
        %10519 = vmatprep.subr.bf16.mxu0 %v10136
        %10520 = vmatpush1.bf16.msra.mxu0 %v10135
        %10521 = vmatprep.subr.bf16.mxu0 %v10140
        %10522 = vmatpush1.bf16.msra.mxu0 %v10139
        %10523 = vmatprep.subr.bf16.mxu0 %v10144
        %10524 = vmatpush1.bf16.msra.mxu0 %v10143
        %10525 = vmatprep.subr.bf16.mxu0 %v10148
        %10526 = vmatpush1.bf16.msra.mxu0 %v10147
        %10527 = vmatprep.subr.bf16.mxu0 %v10152
        %10528 = vmatpush1.bf16.msra.mxu0 %v10151
        %10529 = vmatprep.subr.bf16.mxu0 %v10156
        %10530 = vmatpush1.bf16.msra.mxu0 %v10155
        %10531 = vmatprep.subr.bf16.mxu0 %v10160
        %10532 = vmatpush1.bf16.msra.mxu0 %v10159
        %10533 = vmatprep.subr.bf16.mxu0 %v10164
        %10534 = vmatpush1.bf16.msra.mxu0 %v10163
        %10535 = vmatprep.mubr.bf16.mxu0 %v9686
        %10536 = vmatmul.mubr.bf16.gmra.mrb[0].mxu0 %v9685
        %v10537 = vpop.f32.mrb[0].mxu0
        %v10538 = vadd.f32 0.0, %v10537
        %v10539 = vpop.f32.mrb[0].mxu0
        %v10540 = vadd.f32 0.0, %v10539
        %v10541 = vpop.f32.mrb[0].mxu0
        %v10542 = vadd.f32 0.0, %v10541
        %v10543 = vpop.f32.mrb[0].mxu0
        %v10544 = vadd.f32 0.0, %v10543
        %10545 = vmatprep.mubr.bf16.mxu0 %v9690
        %10546 = vmatmul.mubr.bf16.gmra.mrb[0].mxu0 %v9689
        %v10547 = vpop.f32.mrb[0].mxu0
        %v10548 = vadd.f32 0.0, %v10547
        %v10549 = vpop.f32.mrb[0].mxu0
        %v10550 = vadd.f32 0.0, %v10549
        %v10551 = vpop.f32.mrb[0].mxu0
        %v10552 = vadd.f32 0.0, %v10551
        %v10553 = vpop.f32.mrb[0].mxu0
        %v10554 = vadd.f32 0.0, %v10553
        %10555 = vmatprep.mubr.bf16.mxu0 %v9694
        %10556 = vmatmul.mubr.bf16.gmra.mrb[0].mxu0 %v9693
        %v10557 = vpop.f32.mrb[0].mxu0
        %v10558 = vadd.f32 0.0, %v10557
        %v10559 = vpop.f32.mrb[0].mxu0
        %v10560 = vadd.f32 0.0, %v10559
        %v10561 = vpop.f32.mrb[0].mxu0
        %v10562 = vadd.f32 0.0, %v10561
        %v10563 = vpop.f32.mrb[0].mxu0
        %v10564 = vadd.f32 0.0, %v10563
        %10565 = vmatprep.mubr.bf16.mxu0 %v9698
        %10566 = vmatmul.mubr.bf16.gmra.mrb[0].mxu0 %v9697
        %v10567 = vpop.f32.mrb[0].mxu0
        %v10568 = vadd.f32 0.0, %v10567
        %v10569 = vpop.f32.mrb[0].mxu0
        %v10570 = vadd.f32 0.0, %v10569
        %v10571 = vpop.f32.mrb[0].mxu0
        %v10572 = vadd.f32 0.0, %v10571
        %v10573 = vpop.f32.mrb[0].mxu0
        %v10574 = vadd.f32 0.0, %v10573
        %10575 = vdwg.mxu0
        %10576 = vmatprep.subr.bf16.mxu0 %v10168
        %10577 = vmatpush1.bf16.msra.mxu0 %v10167
        %10578 = vmatprep.subr.bf16.mxu0 %v10172
        %10579 = vmatpush1.bf16.msra.mxu0 %v10171
        %10580 = vmatprep.subr.bf16.mxu0 %v10176
        %10581 = vmatpush1.bf16.msra.mxu0 %v10175
        %10582 = vmatprep.subr.bf16.mxu0 %v10180
        %10583 = vmatpush1.bf16.msra.mxu0 %v10179
        %10584 = vmatprep.subr.bf16.mxu0 %v10184
        %10585 = vmatpush1.bf16.msra.mxu0 %v10183
        %10586 = vmatprep.subr.bf16.mxu0 %v10188
        %10587 = vmatpush1.bf16.msra.mxu0 %v10187
        %10588 = vmatprep.subr.bf16.mxu0 %v10192
        %10589 = vmatpush1.bf16.msra.mxu0 %v10191
        %10590 = vmatprep.subr.bf16.mxu0 %v10196
        %10591 = vmatpush1.bf16.msra.mxu0 %v10195
        %10592 = vmatprep.subr.bf16.mxu0 %v10200
        %10593 = vmatpush1.bf16.msra.mxu0 %v10199
        %10594 = vmatprep.subr.bf16.mxu0 %v10204
        %10595 = vmatpush1.bf16.msra.mxu0 %v10203
        %10596 = vmatprep.subr.bf16.mxu0 %v10208
        %10597 = vmatpush1.bf16.msra.mxu0 %v10207
        %10598 = vmatprep.subr.bf16.mxu0 %v10212
        %10599 = vmatpush1.bf16.msra.mxu0 %v10211
        %10600 = vmatprep.subr.bf16.mxu0 %v10216
        %10601 = vmatpush1.bf16.msra.mxu0 %v10215
        %10602 = vmatprep.subr.bf16.mxu0 %v10220
        %10603 = vmatpush1.bf16.msra.mxu0 %v10219
        %10604 = vmatprep.subr.bf16.mxu0 %v10224
        %10605 = vmatpush1.bf16.msra.mxu0 %v10223
        %10606 = vmatprep.subr.bf16.mxu0 %v10228
        %10607 = vmatpush1.bf16.msra.mxu0 %v10227
        %10608 = vmatprep.mubr.bf16.mxu0 %v9688
        %10609 = vmatmul.mubr.bf16.gmra.mrb[0].mxu0 %v9687
        %v10610 = vpop.f32.mrb[0].mxu0
        %v10611 = vadd.f32 %v10538, %v10610
        %v10612 = vpop.f32.mrb[0].mxu0
        %v10613 = vadd.f32 %v10540, %v10612
        %v10614 = vpop.f32.mrb[0].mxu0
        %v10615 = vadd.f32 %v10542, %v10614
        %v10616 = vpop.f32.mrb[0].mxu0
        %v10617 = vadd.f32 %v10544, %v10616
        %10618 = vmatprep.mubr.bf16.mxu0 %v9692
        %10619 = vmatmul.mubr.bf16.gmra.mrb[0].mxu0 %v9691
        %v10620 = vpop.f32.mrb[0].mxu0
        %v10621 = vadd.f32 %v10548, %v10620
        %v10622 = vpop.f32.mrb[0].mxu0
        %v10623 = vadd.f32 %v10550, %v10622
        %v10624 = vpop.f32.mrb[0].mxu0
        %v10625 = vadd.f32 %v10552, %v10624
        %v10626 = vpop.f32.mrb[0].mxu0
        %v10627 = vadd.f32 %v10554, %v10626
        %10628 = vmatprep.mubr.bf16.mxu0 %v9696
        %10629 = vmatmul.mubr.bf16.gmra.mrb[0].mxu0 %v9695
        %v10630 = vpop.f32.mrb[0].mxu0
        %v10631 = vadd.f32 %v10558, %v10630
        %v10632 = vpop.f32.mrb[0].mxu0
        %v10633 = vadd.f32 %v10560, %v10632
        %v10634 = vpop.f32.mrb[0].mxu0
        %v10635 = vadd.f32 %v10562, %v10634
        %v10636 = vpop.f32.mrb[0].mxu0
        %v10637 = vadd.f32 %v10564, %v10636
        %10638 = vmatprep.mubr.bf16.mxu0 %v9700
        %10639 = vmatmul.mubr.bf16.gmra.mrb[0].mxu0 %v9699
        %v10640 = vpop.f32.mrb[0].mxu0
        %v10641 = vadd.f32 %v10568, %v10640
        %v10642 = vpop.f32.mrb[0].mxu0
        %v10643 = vadd.f32 %v10570, %v10642
        %v10644 = vpop.f32.mrb[0].mxu0
        %v10645 = vadd.f32 %v10572, %v10644
        %v10646 = vpop.f32.mrb[0].mxu0
        %v10647 = vadd.f32 %v10574, %v10646
        %10648 = vdwg.mxu0
        %v10649 = vadd.f32 %v9234, %v10465
        %v10650 = vadd.f32 %v9235, %v10467
        %v10651 = vadd.f32 %v9236, %v10611
        %v10652 = vadd.f32 %v9237, %v10613
        %v10653 = vadd.f32 %v9238, %v10469
        %v10654 = vadd.f32 %v9239, %v10471
        %v10655 = vadd.f32 %v9240, %v10615
        %v10656 = vadd.f32 %v9241, %v10617
        %v10657 = vadd.f32 %v9242, %v10475
        %v10658 = vadd.f32 %v9243, %v10477
        %v10659 = vadd.f32 %v9244, %v10621
        %v10660 = vadd.f32 %v9245, %v10623
        %v10661 = vadd.f32 %v9246, %v10479
        %v10662 = vadd.f32 %v9247, %v10481
        %v10663 = vadd.f32 %v9248, %v10625
        %v10664 = vadd.f32 %v9249, %v10627
        %v10665 = vadd.f32 %v9250, %v10485
        %v10666 = vadd.f32 %v9251, %v10487
        %v10667 = vadd.f32 %v9252, %v10631
        %v10668 = vadd.f32 %v9253, %v10633
        %v10669 = vadd.f32 %v9254, %v10489
        %v10670 = vadd.f32 %v9255, %v10491
        %v10671 = vadd.f32 %v9256, %v10635
        %v10672 = vadd.f32 %v9257, %v10637
        %v10673 = vadd.f32 %v9258, %v10495
        %v10674 = vadd.f32 %v9259, %v10497
        %v10675 = vadd.f32 %v9260, %v10641
        %v10676 = vadd.f32 %v9261, %v10643
        %v10677 = vadd.f32 %v9262, %v10499
        %v10678 = vadd.f32 %v9263, %v10501
        %v10679 = vadd.f32 %v9264, %v10645
        %v10680 = vadd.f32 %v9265, %v10647
        %v10681 = vld [vmem:[%s8074] sm:$0xee]
        %v10682 = vld [vmem:[%s8074 + $0x8] sm:$0xee]
        %v10683 = vld [vmem:[%s8074 + $0x20] sm:$0xee]
        %v10684 = vld [vmem:[%s8074 + $0x28] sm:$0xee]
        %v10685 = vld [vmem:[%s8074 + $0x40] sm:$0xee]
        %v10686 = vld [vmem:[%s8074 + $0x48] sm:$0xee]
        %v10687 = vld [vmem:[%s8074 + $0x60] sm:$0xee]
        %v10688 = vld [vmem:[%s8074 + $0x68] sm:$0xee]
        %v10689 = vld [vmem:[%s8074 + $0x80] sm:$0xee]
        %v10690 = vld [vmem:[%s8074 + $0x88] sm:$0xee]
        %v10691 = vld [vmem:[%s8074 + $0xa0] sm:$0xee]
        %v10692 = vld [vmem:[%s8074 + $0xa8] sm:$0xee]
        %v10693 = vld [vmem:[%s8074 + $0xc0] sm:$0xee]
        %v10694 = vld [vmem:[%s8074 + $0xc8] sm:$0xee]
        %v10695 = vld [vmem:[%s8074 + $0xe0] sm:$0xee]
        %v10696 = vld [vmem:[%s8074 + $0xe8] sm:$0xee]
        %v10729 = vrot.slane %v10681, 5
        %v10730 = vrot.slane %v10729, 4
        %v10731 = vrot.slane %v9268, 5
        %v10732 = vsel %vm2972, %v10730, %v10731
        %v10733 = vrot.slane %v10682, 5
        %v10734 = vrot.slane %v10733, 4
        %v10735 = vrot.slane %v9269, 5
        %v10736 = vsel %vm2972, %v10734, %v10735
        %v10737 = vrot.slane %v10683, 5
        %v10738 = vrot.slane %v10737, 4
        %v10739 = vrot.slane %v9272, 5
        %v10740 = vsel %vm2972, %v10738, %v10739
        %v10741 = vrot.slane %v10684, 5
        %v10742 = vrot.slane %v10741, 4
        %v10743 = vrot.slane %v9273, 5
        %v10744 = vsel %vm2972, %v10742, %v10743
        %v10745 = vrot.slane %v10685, 5
        %v10746 = vrot.slane %v10745, 4
        %v10747 = vrot.slane %v9276, 5
        %v10748 = vsel %vm2972, %v10746, %v10747
        %v10749 = vrot.slane %v10686, 5
        %v10750 = vrot.slane %v10749, 4
        %v10751 = vrot.slane %v9277, 5
        %v10752 = vsel %vm2972, %v10750, %v10751
        %v10753 = vrot.slane %v10687, 5
        %v10754 = vrot.slane %v10753, 4
        %v10755 = vrot.slane %v9280, 5
        %v10756 = vsel %vm2972, %v10754, %v10755
        %v10757 = vrot.slane %v10688, 5
        %v10758 = vrot.slane %v10757, 4
        %v10759 = vrot.slane %v9281, 5
        %v10760 = vsel %vm2972, %v10758, %v10759
        %v10761 = vrot.slane %v10689, 5
        %v10762 = vrot.slane %v10761, 4
        %v10763 = vrot.slane %v9284, 5
        %v10764 = vsel %vm2972, %v10762, %v10763
        %v10765 = vrot.slane %v10690, 5
        %v10766 = vrot.slane %v10765, 4
        %v10767 = vrot.slane %v9285, 5
        %v10768 = vsel %vm2972, %v10766, %v10767
        %v10769 = vrot.slane %v10691, 5
        %v10770 = vrot.slane %v10769, 4
        %v10771 = vrot.slane %v9288, 5
        %v10772 = vsel %vm2972, %v10770, %v10771
        %v10773 = vrot.slane %v10692, 5
        %v10774 = vrot.slane %v10773, 4
        %v10775 = vrot.slane %v9289, 5
        %v10776 = vsel %vm2972, %v10774, %v10775
        %v10777 = vrot.slane %v10693, 5
        %v10778 = vrot.slane %v10777, 4
        %v10779 = vrot.slane %v9292, 5
        %v10780 = vsel %vm2972, %v10778, %v10779
        %v10781 = vrot.slane %v10694, 5
        %v10782 = vrot.slane %v10781, 4
        %v10783 = vrot.slane %v9293, 5
        %v10784 = vsel %vm2972, %v10782, %v10783
        %v10785 = vrot.slane %v10695, 5
        %v10786 = vrot.slane %v10785, 4
        %v10787 = vrot.slane %v9296, 5
        %v10788 = vsel %vm2972, %v10786, %v10787
        %v10789 = vrot.slane %v10696, 5
        %v10790 = vrot.slane %v10789, 4
        %v10791 = vrot.slane %v9297, 5
        %v10792 = vsel %vm2972, %v10790, %v10791
        %s10793 = sadd.s32 2048, %s329
        %s10794 = smul.addr %s10793, 4
        %s10795 = scalar_lea.vmem [#allocation6], %s10794
        %v10796 = vld [vmem:[%s10795] sm:$0xff]
        %v10797 = vld [vmem:[%s10795 + $0x8] sm:$0xff]
        %v10798 = vld [vmem:[%s10795 + $0x10] sm:$0xff]
        %v10799 = vld [vmem:[%s10795 + $0x18] sm:$0xff]
        %v10800 = vld [vmem:[%s10795 + $0x20] sm:$0xff]
        %v10801 = vld [vmem:[%s10795 + $0x28] sm:$0xff]
        %v10802 = vld [vmem:[%s10795 + $0x30] sm:$0xff]
        %v10803 = vld [vmem:[%s10795 + $0x38] sm:$0xff]
        %v10804 = vld [vmem:[%s10795 + $0x40] sm:$0xff]
        %v10805 = vld [vmem:[%s10795 + $0x48] sm:$0xff]
        %v10806 = vld [vmem:[%s10795 + $0x50] sm:$0xff]
        %v10807 = vld [vmem:[%s10795 + $0x58] sm:$0xff]
        %v10808 = vld [vmem:[%s10795 + $0x60] sm:$0xff]
        %v10809 = vld [vmem:[%s10795 + $0x68] sm:$0xff]
        %v10810 = vld [vmem:[%s10795 + $0x70] sm:$0xff]
        %v10811 = vld [vmem:[%s10795 + $0x78] sm:$0xff]
        %v10812 = vld [vmem:[%s10795 + $0x80] sm:$0xff]
        %v10813 = vld [vmem:[%s10795 + $0x88] sm:$0xff]
        %v10814 = vld [vmem:[%s10795 + $0x90] sm:$0xff]
        %v10815 = vld [vmem:[%s10795 + $0x98] sm:$0xff]
        %v10816 = vld [vmem:[%s10795 + $0xa0] sm:$0xff]
        %v10817 = vld [vmem:[%s10795 + $0xa8] sm:$0xff]
        %v10818 = vld [vmem:[%s10795 + $0xb0] sm:$0xff]
        %v10819 = vld [vmem:[%s10795 + $0xb8] sm:$0xff]
        %v10820 = vld [vmem:[%s10795 + $0xc0] sm:$0xff]
        %v10821 = vld [vmem:[%s10795 + $0xc8] sm:$0xff]
        %v10822 = vld [vmem:[%s10795 + $0xd0] sm:$0xff]
        %v10823 = vld [vmem:[%s10795 + $0xd8] sm:$0xff]
        %v10824 = vld [vmem:[%s10795 + $0xe0] sm:$0xff]
        %v10825 = vld [vmem:[%s10795 + $0xe8] sm:$0xff]
        %v10826 = vld [vmem:[%s10795 + $0xf0] sm:$0xff]
        %v10827 = vld [vmem:[%s10795 + $0xf8] sm:$0xff]
        %v10828 = vld [vmem:[%s10795 + $0x100] sm:$0xff]
        %v10829 = vld [vmem:[%s10795 + $0x108] sm:$0xff]
        %v10830 = vld [vmem:[%s10795 + $0x110] sm:$0xff]
        %v10831 = vld [vmem:[%s10795 + $0x118] sm:$0xff]
        %v10832 = vld [vmem:[%s10795 + $0x120] sm:$0xff]
        %v10833 = vld [vmem:[%s10795 + $0x128] sm:$0xff]
        %v10834 = vld [vmem:[%s10795 + $0x130] sm:$0xff]
        %v10835 = vld [vmem:[%s10795 + $0x138] sm:$0xff]
        %v10836 = vld [vmem:[%s10795 + $0x140] sm:$0xff]
        %v10837 = vld [vmem:[%s10795 + $0x148] sm:$0xff]
        %v10838 = vld [vmem:[%s10795 + $0x150] sm:$0xff]
        %v10839 = vld [vmem:[%s10795 + $0x158] sm:$0xff]
        %v10840 = vld [vmem:[%s10795 + $0x160] sm:$0xff]
        %v10841 = vld [vmem:[%s10795 + $0x168] sm:$0xff]
        %v10842 = vld [vmem:[%s10795 + $0x170] sm:$0xff]
        %v10843 = vld [vmem:[%s10795 + $0x178] sm:$0xff]
        %v10844 = vld [vmem:[%s10795 + $0x180] sm:$0xff]
        %v10845 = vld [vmem:[%s10795 + $0x188] sm:$0xff]
        %v10846 = vld [vmem:[%s10795 + $0x190] sm:$0xff]
        %v10847 = vld [vmem:[%s10795 + $0x198] sm:$0xff]
        %v10848 = vld [vmem:[%s10795 + $0x1a0] sm:$0xff]
        %v10849 = vld [vmem:[%s10795 + $0x1a8] sm:$0xff]
        %v10850 = vld [vmem:[%s10795 + $0x1b0] sm:$0xff]
        %v10851 = vld [vmem:[%s10795 + $0x1b8] sm:$0xff]
        %v10852 = vld [vmem:[%s10795 + $0x1c0] sm:$0xff]
        %v10853 = vld [vmem:[%s10795 + $0x1c8] sm:$0xff]
        %v10854 = vld [vmem:[%s10795 + $0x1d0] sm:$0xff]
        %v10855 = vld [vmem:[%s10795 + $0x1d8] sm:$0xff]
        %v10856 = vld [vmem:[%s10795 + $0x1e0] sm:$0xff]
        %v10857 = vld [vmem:[%s10795 + $0x1e8] sm:$0xff]
        %v10858 = vld [vmem:[%s10795 + $0x1f0] sm:$0xff]
        %v10859 = vld [vmem:[%s10795 + $0x1f8] sm:$0xff]
        %v10860 = vld [vmem:[%s10795 + $0x200] sm:$0xff]
        %v10861 = vld [vmem:[%s10795 + $0x208] sm:$0xff]
        %v10862 = vld [vmem:[%s10795 + $0x210] sm:$0xff]
        %v10863 = vld [vmem:[%s10795 + $0x218] sm:$0xff]
        %v10864 = vld [vmem:[%s10795 + $0x220] sm:$0xff]
        %v10865 = vld [vmem:[%s10795 + $0x228] sm:$0xff]
        %v10866 = vld [vmem:[%s10795 + $0x230] sm:$0xff]
        %v10867 = vld [vmem:[%s10795 + $0x238] sm:$0xff]
        %v10868 = vld [vmem:[%s10795 + $0x240] sm:$0xff]
        %v10869 = vld [vmem:[%s10795 + $0x248] sm:$0xff]
        %v10870 = vld [vmem:[%s10795 + $0x250] sm:$0xff]
        %v10871 = vld [vmem:[%s10795 + $0x258] sm:$0xff]
        %v10872 = vld [vmem:[%s10795 + $0x260] sm:$0xff]
        %v10873 = vld [vmem:[%s10795 + $0x268] sm:$0xff]
        %v10874 = vld [vmem:[%s10795 + $0x270] sm:$0xff]
        %v10875 = vld [vmem:[%s10795 + $0x278] sm:$0xff]
        %v10876 = vld [vmem:[%s10795 + $0x280] sm:$0xff]
        %v10877 = vld [vmem:[%s10795 + $0x288] sm:$0xff]
        %v10878 = vld [vmem:[%s10795 + $0x290] sm:$0xff]
        %v10879 = vld [vmem:[%s10795 + $0x298] sm:$0xff]
        %v10880 = vld [vmem:[%s10795 + $0x2a0] sm:$0xff]
        %v10881 = vld [vmem:[%s10795 + $0x2a8] sm:$0xff]
        %v10882 = vld [vmem:[%s10795 + $0x2b0] sm:$0xff]
        %v10883 = vld [vmem:[%s10795 + $0x2b8] sm:$0xff]
        %v10884 = vld [vmem:[%s10795 + $0x2c0] sm:$0xff]
        %v10885 = vld [vmem:[%s10795 + $0x2c8] sm:$0xff]
        %v10886 = vld [vmem:[%s10795 + $0x2d0] sm:$0xff]
        %v10887 = vld [vmem:[%s10795 + $0x2d8] sm:$0xff]
        %v10888 = vld [vmem:[%s10795 + $0x2e0] sm:$0xff]
        %v10889 = vld [vmem:[%s10795 + $0x2e8] sm:$0xff]
        %v10890 = vld [vmem:[%s10795 + $0x2f0] sm:$0xff]
        %v10891 = vld [vmem:[%s10795 + $0x2f8] sm:$0xff]
        %v10892 = vld [vmem:[%s10795 + $0x300] sm:$0xff]
        %v10893 = vld [vmem:[%s10795 + $0x308] sm:$0xff]
        %v10894 = vld [vmem:[%s10795 + $0x310] sm:$0xff]
        %v10895 = vld [vmem:[%s10795 + $0x318] sm:$0xff]
        %v10896 = vld [vmem:[%s10795 + $0x320] sm:$0xff]
        %v10897 = vld [vmem:[%s10795 + $0x328] sm:$0xff]
        %v10898 = vld [vmem:[%s10795 + $0x330] sm:$0xff]
        %v10899 = vld [vmem:[%s10795 + $0x338] sm:$0xff]
        %v10900 = vld [vmem:[%s10795 + $0x340] sm:$0xff]
        %v10901 = vld [vmem:[%s10795 + $0x348] sm:$0xff]
        %v10902 = vld [vmem:[%s10795 + $0x350] sm:$0xff]
        %v10903 = vld [vmem:[%s10795 + $0x358] sm:$0xff]
        %v10904 = vld [vmem:[%s10795 + $0x360] sm:$0xff]
        %v10905 = vld [vmem:[%s10795 + $0x368] sm:$0xff]
        %v10906 = vld [vmem:[%s10795 + $0x370] sm:$0xff]
        %v10907 = vld [vmem:[%s10795 + $0x378] sm:$0xff]
        %v10908 = vld [vmem:[%s10795 + $0x380] sm:$0xff]
        %v10909 = vld [vmem:[%s10795 + $0x388] sm:$0xff]
        %v10910 = vld [vmem:[%s10795 + $0x390] sm:$0xff]
        %v10911 = vld [vmem:[%s10795 + $0x398] sm:$0xff]
        %v10912 = vld [vmem:[%s10795 + $0x3a0] sm:$0xff]
        %v10913 = vld [vmem:[%s10795 + $0x3a8] sm:$0xff]
        %v10914 = vld [vmem:[%s10795 + $0x3b0] sm:$0xff]
        %v10915 = vld [vmem:[%s10795 + $0x3b8] sm:$0xff]
        %v10916 = vld [vmem:[%s10795 + $0x3c0] sm:$0xff]
        %v10917 = vld [vmem:[%s10795 + $0x3c8] sm:$0xff]
        %v10918 = vld [vmem:[%s10795 + $0x3d0] sm:$0xff]
        %v10919 = vld [vmem:[%s10795 + $0x3d8] sm:$0xff]
        %v10920 = vld [vmem:[%s10795 + $0x3e0] sm:$0xff]
        %v10921 = vld [vmem:[%s10795 + $0x3e8] sm:$0xff]
        %v10922 = vld [vmem:[%s10795 + $0x3f0] sm:$0xff]
        %v10923 = vld [vmem:[%s10795 + $0x3f8] sm:$0xff]
        %v10924 = vunpack.c.l.b16 %v10732
        %v10925 = vunpack.c.h.b16 %v10732
        %v10926 = vunpack.c.l.b16 %v10736
        %v10927 = vunpack.c.h.b16 %v10736
        %v10928 = vunpack.c.l.b16 %v10740
        %v10929 = vunpack.c.h.b16 %v10740
        %v10930 = vunpack.c.l.b16 %v10744
        %v10931 = vunpack.c.h.b16 %v10744
        %v10932 = vunpack.c.l.b16 %v10748
        %v10933 = vunpack.c.h.b16 %v10748
        %v10934 = vunpack.c.l.b16 %v10752
        %v10935 = vunpack.c.h.b16 %v10752
        %v10936 = vunpack.c.l.b16 %v10756
        %v10937 = vunpack.c.h.b16 %v10756
        %v10938 = vunpack.c.l.b16 %v10760
        %v10939 = vunpack.c.h.b16 %v10760
        %v10940 = vunpack.c.l.b16 %v10764
        %v10941 = vunpack.c.h.b16 %v10764
        %v10942 = vunpack.c.l.b16 %v10768
        %v10943 = vunpack.c.h.b16 %v10768
        %v10944 = vunpack.c.l.b16 %v10772
        %v10945 = vunpack.c.h.b16 %v10772
        %v10946 = vunpack.c.l.b16 %v10776
        %v10947 = vunpack.c.h.b16 %v10776
        %v10948 = vunpack.c.l.b16 %v10780
        %v10949 = vunpack.c.h.b16 %v10780
        %v10950 = vunpack.c.l.b16 %v10784
        %v10951 = vunpack.c.h.b16 %v10784
        %v10952 = vunpack.c.l.b16 %v10788
        %v10953 = vunpack.c.h.b16 %v10788
        %v10954 = vunpack.c.l.b16 %v10792
        %v10955 = vunpack.c.h.b16 %v10792
        %v10956 = vpack.c.b16 %v10928, %v10924
        %v10957 = vpack.c.b16 %v10929, %v10925
        %v10958 = vpack.c.b16 %v10930, %v10926
        %v10959 = vpack.c.b16 %v10931, %v10927
        %v10960 = vpack.c.b16 %v10936, %v10932
        %v10961 = vpack.c.b16 %v10937, %v10933
        %v10962 = vpack.c.b16 %v10938, %v10934
        %v10963 = vpack.c.b16 %v10939, %v10935
        %v10964 = vpack.c.b16 %v10944, %v10940
        %v10965 = vpack.c.b16 %v10945, %v10941
        %v10966 = vpack.c.b16 %v10946, %v10942
        %v10967 = vpack.c.b16 %v10947, %v10943
        %v10968 = vpack.c.b16 %v10952, %v10948
        %v10969 = vpack.c.b16 %v10953, %v10949
        %v10970 = vpack.c.b16 %v10954, %v10950
        %v10971 = vpack.c.b16 %v10955, %v10951
        %v11116 = vunpack.c.l.b16 %v10796
        %v11117 = vunpack.c.h.b16 %v10796
        %v11118 = vunpack.c.l.b16 %v10797
        %v11119 = vunpack.c.h.b16 %v10797
        %v11120 = vunpack.c.l.b16 %v10798
        %v11121 = vunpack.c.h.b16 %v10798
        %v11122 = vunpack.c.l.b16 %v10799
        %v11123 = vunpack.c.h.b16 %v10799
        %v11124 = vunpack.c.l.b16 %v10800
        %v11125 = vunpack.c.h.b16 %v10800
        %v11126 = vunpack.c.l.b16 %v10801
        %v11127 = vunpack.c.h.b16 %v10801
        %v11128 = vunpack.c.l.b16 %v10802
        %v11129 = vunpack.c.h.b16 %v10802
        %v11130 = vunpack.c.l.b16 %v10803
        %v11131 = vunpack.c.h.b16 %v10803
        %v11132 = vunpack.c.l.b16 %v10804
        %v11133 = vunpack.c.h.b16 %v10804
        %v11134 = vunpack.c.l.b16 %v10805
        %v11135 = vunpack.c.h.b16 %v10805
        %v11136 = vunpack.c.l.b16 %v10806
        %v11137 = vunpack.c.h.b16 %v10806
        %v11138 = vunpack.c.l.b16 %v10807
        %v11139 = vunpack.c.h.b16 %v10807
        %v11140 = vunpack.c.l.b16 %v10808
        %v11141 = vunpack.c.h.b16 %v10808
        %v11142 = vunpack.c.l.b16 %v10809
        %v11143 = vunpack.c.h.b16 %v10809
        %v11144 = vunpack.c.l.b16 %v10810
        %v11145 = vunpack.c.h.b16 %v10810
        %v11146 = vunpack.c.l.b16 %v10811
        %v11147 = vunpack.c.h.b16 %v10811
        %v11148 = vunpack.c.l.b16 %v10812
        %v11149 = vunpack.c.h.b16 %v10812
        %v11150 = vunpack.c.l.b16 %v10813
        %v11151 = vunpack.c.h.b16 %v10813
        %v11152 = vunpack.c.l.b16 %v10814
        %v11153 = vunpack.c.h.b16 %v10814
        %v11154 = vunpack.c.l.b16 %v10815
        %v11155 = vunpack.c.h.b16 %v10815
        %v11156 = vunpack.c.l.b16 %v10816
        %v11157 = vunpack.c.h.b16 %v10816
        %v11158 = vunpack.c.l.b16 %v10817
        %v11159 = vunpack.c.h.b16 %v10817
        %v11160 = vunpack.c.l.b16 %v10818
        %v11161 = vunpack.c.h.b16 %v10818
        %v11162 = vunpack.c.l.b16 %v10819
        %v11163 = vunpack.c.h.b16 %v10819
        %v11164 = vunpack.c.l.b16 %v10820
        %v11165 = vunpack.c.h.b16 %v10820
        %v11166 = vunpack.c.l.b16 %v10821
        %v11167 = vunpack.c.h.b16 %v10821
        %v11168 = vunpack.c.l.b16 %v10822
        %v11169 = vunpack.c.h.b16 %v10822
        %v11170 = vunpack.c.l.b16 %v10823
        %v11171 = vunpack.c.h.b16 %v10823
        %v11172 = vunpack.c.l.b16 %v10824
        %v11173 = vunpack.c.h.b16 %v10824
        %v11174 = vunpack.c.l.b16 %v10825
        %v11175 = vunpack.c.h.b16 %v10825
        %v11176 = vunpack.c.l.b16 %v10826
        %v11177 = vunpack.c.h.b16 %v10826
        %v11178 = vunpack.c.l.b16 %v10827
        %v11179 = vunpack.c.h.b16 %v10827
        %v11180 = vunpack.c.l.b16 %v10828
        %v11181 = vunpack.c.h.b16 %v10828
        %v11182 = vunpack.c.l.b16 %v10829
        %v11183 = vunpack.c.h.b16 %v10829
        %v11184 = vunpack.c.l.b16 %v10830
        %v11185 = vunpack.c.h.b16 %v10830
        %v11186 = vunpack.c.l.b16 %v10831
        %v11187 = vunpack.c.h.b16 %v10831
        %v11188 = vunpack.c.l.b16 %v10832
        %v11189 = vunpack.c.h.b16 %v10832
        %v11190 = vunpack.c.l.b16 %v10833
        %v11191 = vunpack.c.h.b16 %v10833
        %v11192 = vunpack.c.l.b16 %v10834
        %v11193 = vunpack.c.h.b16 %v10834
        %v11194 = vunpack.c.l.b16 %v10835
        %v11195 = vunpack.c.h.b16 %v10835
        %v11196 = vunpack.c.l.b16 %v10836
        %v11197 = vunpack.c.h.b16 %v10836
        %v11198 = vunpack.c.l.b16 %v10837
        %v11199 = vunpack.c.h.b16 %v10837
        %v11200 = vunpack.c.l.b16 %v10838
        %v11201 = vunpack.c.h.b16 %v10838
        %v11202 = vunpack.c.l.b16 %v10839
        %v11203 = vunpack.c.h.b16 %v10839
        %v11204 = vunpack.c.l.b16 %v10840
        %v11205 = vunpack.c.h.b16 %v10840
        %v11206 = vunpack.c.l.b16 %v10841
        %v11207 = vunpack.c.h.b16 %v10841
        %v11208 = vunpack.c.l.b16 %v10842
        %v11209 = vunpack.c.h.b16 %v10842
        %v11210 = vunpack.c.l.b16 %v10843
        %v11211 = vunpack.c.h.b16 %v10843
        %v11212 = vunpack.c.l.b16 %v10844
        %v11213 = vunpack.c.h.b16 %v10844
        %v11214 = vunpack.c.l.b16 %v10845
        %v11215 = vunpack.c.h.b16 %v10845
        %v11216 = vunpack.c.l.b16 %v10846
        %v11217 = vunpack.c.h.b16 %v10846
        %v11218 = vunpack.c.l.b16 %v10847
        %v11219 = vunpack.c.h.b16 %v10847
        %v11220 = vunpack.c.l.b16 %v10848
        %v11221 = vunpack.c.h.b16 %v10848
        %v11222 = vunpack.c.l.b16 %v10849
        %v11223 = vunpack.c.h.b16 %v10849
        %v11224 = vunpack.c.l.b16 %v10850
        %v11225 = vunpack.c.h.b16 %v10850
        %v11226 = vunpack.c.l.b16 %v10851
        %v11227 = vunpack.c.h.b16 %v10851
        %v11228 = vunpack.c.l.b16 %v10852
        %v11229 = vunpack.c.h.b16 %v10852
        %v11230 = vunpack.c.l.b16 %v10853
        %v11231 = vunpack.c.h.b16 %v10853
        %v11232 = vunpack.c.l.b16 %v10854
        %v11233 = vunpack.c.h.b16 %v10854
        %v11234 = vunpack.c.l.b16 %v10855
        %v11235 = vunpack.c.h.b16 %v10855
        %v11236 = vunpack.c.l.b16 %v10856
        %v11237 = vunpack.c.h.b16 %v10856
        %v11238 = vunpack.c.l.b16 %v10857
        %v11239 = vunpack.c.h.b16 %v10857
        %v11240 = vunpack.c.l.b16 %v10858
        %v11241 = vunpack.c.h.b16 %v10858
        %v11242 = vunpack.c.l.b16 %v10859
        %v11243 = vunpack.c.h.b16 %v10859
        %v11244 = vunpack.c.l.b16 %v10860
        %v11245 = vunpack.c.h.b16 %v10860
        %v11246 = vunpack.c.l.b16 %v10861
        %v11247 = vunpack.c.h.b16 %v10861
        %v11248 = vunpack.c.l.b16 %v10862
        %v11249 = vunpack.c.h.b16 %v10862
        %v11250 = vunpack.c.l.b16 %v10863
        %v11251 = vunpack.c.h.b16 %v10863
        %v11252 = vunpack.c.l.b16 %v10864
        %v11253 = vunpack.c.h.b16 %v10864
        %v11254 = vunpack.c.l.b16 %v10865
        %v11255 = vunpack.c.h.b16 %v10865
        %v11256 = vunpack.c.l.b16 %v10866
        %v11257 = vunpack.c.h.b16 %v10866
        %v11258 = vunpack.c.l.b16 %v10867
        %v11259 = vunpack.c.h.b16 %v10867
        %v11260 = vunpack.c.l.b16 %v10868
        %v11261 = vunpack.c.h.b16 %v10868
        %v11262 = vunpack.c.l.b16 %v10869
        %v11263 = vunpack.c.h.b16 %v10869
        %v11264 = vunpack.c.l.b16 %v10870
        %v11265 = vunpack.c.h.b16 %v10870
        %v11266 = vunpack.c.l.b16 %v10871
        %v11267 = vunpack.c.h.b16 %v10871
        %v11268 = vunpack.c.l.b16 %v10872
        %v11269 = vunpack.c.h.b16 %v10872
        %v11270 = vunpack.c.l.b16 %v10873
        %v11271 = vunpack.c.h.b16 %v10873
        %v11272 = vunpack.c.l.b16 %v10874
        %v11273 = vunpack.c.h.b16 %v10874
        %v11274 = vunpack.c.l.b16 %v10875
        %v11275 = vunpack.c.h.b16 %v10875
        %v11276 = vunpack.c.l.b16 %v10876
        %v11277 = vunpack.c.h.b16 %v10876
        %v11278 = vunpack.c.l.b16 %v10877
        %v11279 = vunpack.c.h.b16 %v10877
        %v11280 = vunpack.c.l.b16 %v10878
        %v11281 = vunpack.c.h.b16 %v10878
        %v11282 = vunpack.c.l.b16 %v10879
        %v11283 = vunpack.c.h.b16 %v10879
        %v11284 = vunpack.c.l.b16 %v10880
        %v11285 = vunpack.c.h.b16 %v10880
        %v11286 = vunpack.c.l.b16 %v10881
        %v11287 = vunpack.c.h.b16 %v10881
        %v11288 = vunpack.c.l.b16 %v10882
        %v11289 = vunpack.c.h.b16 %v10882
        %v11290 = vunpack.c.l.b16 %v10883
        %v11291 = vunpack.c.h.b16 %v10883
        %v11292 = vunpack.c.l.b16 %v10884
        %v11293 = vunpack.c.h.b16 %v10884
        %v11294 = vunpack.c.l.b16 %v10885
        %v11295 = vunpack.c.h.b16 %v10885
        %v11296 = vunpack.c.l.b16 %v10886
        %v11297 = vunpack.c.h.b16 %v10886
        %v11298 = vunpack.c.l.b16 %v10887
        %v11299 = vunpack.c.h.b16 %v10887
        %v11300 = vunpack.c.l.b16 %v10888
        %v11301 = vunpack.c.h.b16 %v10888
        %v11302 = vunpack.c.l.b16 %v10889
        %v11303 = vunpack.c.h.b16 %v10889
        %v11304 = vunpack.c.l.b16 %v10890
        %v11305 = vunpack.c.h.b16 %v10890
        %v11306 = vunpack.c.l.b16 %v10891
        %v11307 = vunpack.c.h.b16 %v10891
        %v11308 = vunpack.c.l.b16 %v10892
        %v11309 = vunpack.c.h.b16 %v10892
        %v11310 = vunpack.c.l.b16 %v10893
        %v11311 = vunpack.c.h.b16 %v10893
        %v11312 = vunpack.c.l.b16 %v10894
        %v11313 = vunpack.c.h.b16 %v10894
        %v11314 = vunpack.c.l.b16 %v10895
        %v11315 = vunpack.c.h.b16 %v10895
        %v11316 = vunpack.c.l.b16 %v10896
        %v11317 = vunpack.c.h.b16 %v10896
        %v11318 = vunpack.c.l.b16 %v10897
        %v11319 = vunpack.c.h.b16 %v10897
        %v11320 = vunpack.c.l.b16 %v10898
        %v11321 = vunpack.c.h.b16 %v10898
        %v11322 = vunpack.c.l.b16 %v10899
        %v11323 = vunpack.c.h.b16 %v10899
        %v11324 = vunpack.c.l.b16 %v10900
        %v11325 = vunpack.c.h.b16 %v10900
        %v11326 = vunpack.c.l.b16 %v10901
        %v11327 = vunpack.c.h.b16 %v10901
        %v11328 = vunpack.c.l.b16 %v10902
        %v11329 = vunpack.c.h.b16 %v10902
        %v11330 = vunpack.c.l.b16 %v10903
        %v11331 = vunpack.c.h.b16 %v10903
        %v11332 = vunpack.c.l.b16 %v10904
        %v11333 = vunpack.c.h.b16 %v10904
        %v11334 = vunpack.c.l.b16 %v10905
        %v11335 = vunpack.c.h.b16 %v10905
        %v11336 = vunpack.c.l.b16 %v10906
        %v11337 = vunpack.c.h.b16 %v10906
        %v11338 = vunpack.c.l.b16 %v10907
        %v11339 = vunpack.c.h.b16 %v10907
        %v11340 = vunpack.c.l.b16 %v10908
        %v11341 = vunpack.c.h.b16 %v10908
        %v11342 = vunpack.c.l.b16 %v10909
        %v11343 = vunpack.c.h.b16 %v10909
        %v11344 = vunpack.c.l.b16 %v10910
        %v11345 = vunpack.c.h.b16 %v10910
        %v11346 = vunpack.c.l.b16 %v10911
        %v11347 = vunpack.c.h.b16 %v10911
        %v11348 = vunpack.c.l.b16 %v10912
        %v11349 = vunpack.c.h.b16 %v10912
        %v11350 = vunpack.c.l.b16 %v10913
        %v11351 = vunpack.c.h.b16 %v10913
        %v11352 = vunpack.c.l.b16 %v10914
        %v11353 = vunpack.c.h.b16 %v10914
        %v11354 = vunpack.c.l.b16 %v10915
        %v11355 = vunpack.c.h.b16 %v10915
        %v11356 = vunpack.c.l.b16 %v10916
        %v11357 = vunpack.c.h.b16 %v10916
        %v11358 = vunpack.c.l.b16 %v10917
        %v11359 = vunpack.c.h.b16 %v10917
        %v11360 = vunpack.c.l.b16 %v10918
        %v11361 = vunpack.c.h.b16 %v10918
        %v11362 = vunpack.c.l.b16 %v10919
        %v11363 = vunpack.c.h.b16 %v10919
        %v11364 = vunpack.c.l.b16 %v10920
        %v11365 = vunpack.c.h.b16 %v10920
        %v11366 = vunpack.c.l.b16 %v10921
        %v11367 = vunpack.c.h.b16 %v10921
        %v11368 = vunpack.c.l.b16 %v10922
        %v11369 = vunpack.c.h.b16 %v10922
        %v11370 = vunpack.c.l.b16 %v10923
        %v11371 = vunpack.c.h.b16 %v10923
        %v11372 = vpack.c.b16 %v11120, %v11116
        %v11373 = vpack.c.b16 %v11121, %v11117
        %v11374 = vpack.c.b16 %v11122, %v11118
        %v11375 = vpack.c.b16 %v11123, %v11119
        %v11376 = vpack.c.b16 %v11128, %v11124
        %v11377 = vpack.c.b16 %v11129, %v11125
        %v11378 = vpack.c.b16 %v11130, %v11126
        %v11379 = vpack.c.b16 %v11131, %v11127
        %v11380 = vpack.c.b16 %v11136, %v11132
        %v11381 = vpack.c.b16 %v11137, %v11133
        %v11382 = vpack.c.b16 %v11138, %v11134
        %v11383 = vpack.c.b16 %v11139, %v11135
        %v11384 = vpack.c.b16 %v11144, %v11140
        %v11385 = vpack.c.b16 %v11145, %v11141
        %v11386 = vpack.c.b16 %v11146, %v11142
        %v11387 = vpack.c.b16 %v11147, %v11143
        %v11388 = vpack.c.b16 %v11152, %v11148
        %v11389 = vpack.c.b16 %v11153, %v11149
        %v11390 = vpack.c.b16 %v11154, %v11150
        %v11391 = vpack.c.b16 %v11155, %v11151
        %v11392 = vpack.c.b16 %v11160, %v11156
        %v11393 = vpack.c.b16 %v11161, %v11157
        %v11394 = vpack.c.b16 %v11162, %v11158
        %v11395 = vpack.c.b16 %v11163, %v11159
        %v11396 = vpack.c.b16 %v11168, %v11164
        %v11397 = vpack.c.b16 %v11169, %v11165
        %v11398 = vpack.c.b16 %v11170, %v11166
        %v11399 = vpack.c.b16 %v11171, %v11167
        %v11400 = vpack.c.b16 %v11176, %v11172
        %v11401 = vpack.c.b16 %v11177, %v11173
        %v11402 = vpack.c.b16 %v11178, %v11174
        %v11403 = vpack.c.b16 %v11179, %v11175
        %v11404 = vpack.c.b16 %v11184, %v11180
        %v11405 = vpack.c.b16 %v11185, %v11181
        %v11406 = vpack.c.b16 %v11186, %v11182
        %v11407 = vpack.c.b16 %v11187, %v11183
        %v11408 = vpack.c.b16 %v11192, %v11188
        %v11409 = vpack.c.b16 %v11193, %v11189
        %v11410 = vpack.c.b16 %v11194, %v11190
        %v11411 = vpack.c.b16 %v11195, %v11191
        %v11412 = vpack.c.b16 %v11200, %v11196
        %v11413 = vpack.c.b16 %v11201, %v11197
        %v11414 = vpack.c.b16 %v11202, %v11198
        %v11415 = vpack.c.b16 %v11203, %v11199
        %v11416 = vpack.c.b16 %v11208, %v11204
        %v11417 = vpack.c.b16 %v11209, %v11205
        %v11418 = vpack.c.b16 %v11210, %v11206
        %v11419 = vpack.c.b16 %v11211, %v11207
        %v11420 = vpack.c.b16 %v11216, %v11212
        %v11421 = vpack.c.b16 %v11217, %v11213
        %v11422 = vpack.c.b16 %v11218, %v11214
        %v11423 = vpack.c.b16 %v11219, %v11215
        %v11424 = vpack.c.b16 %v11224, %v11220
        %v11425 = vpack.c.b16 %v11225, %v11221
        %v11426 = vpack.c.b16 %v11226, %v11222
        %v11427 = vpack.c.b16 %v11227, %v11223
        %v11428 = vpack.c.b16 %v11232, %v11228
        %v11429 = vpack.c.b16 %v11233, %v11229
        %v11430 = vpack.c.b16 %v11234, %v11230
        %v11431 = vpack.c.b16 %v11235, %v11231
        %v11432 = vpack.c.b16 %v11240, %v11236
        %v11433 = vpack.c.b16 %v11241, %v11237
        %v11434 = vpack.c.b16 %v11242, %v11238
        %v11435 = vpack.c.b16 %v11243, %v11239
        %v11436 = vpack.c.b16 %v11248, %v11244
        %v11437 = vpack.c.b16 %v11249, %v11245
        %v11438 = vpack.c.b16 %v11250, %v11246
        %v11439 = vpack.c.b16 %v11251, %v11247
        %v11440 = vpack.c.b16 %v11256, %v11252
        %v11441 = vpack.c.b16 %v11257, %v11253
        %v11442 = vpack.c.b16 %v11258, %v11254
        %v11443 = vpack.c.b16 %v11259, %v11255
        %v11444 = vpack.c.b16 %v11264, %v11260
        %v11445 = vpack.c.b16 %v11265, %v11261
        %v11446 = vpack.c.b16 %v11266, %v11262
        %v11447 = vpack.c.b16 %v11267, %v11263
        %v11448 = vpack.c.b16 %v11272, %v11268
        %v11449 = vpack.c.b16 %v11273, %v11269
        %v11450 = vpack.c.b16 %v11274, %v11270
        %v11451 = vpack.c.b16 %v11275, %v11271
        %v11452 = vpack.c.b16 %v11280, %v11276
        %v11453 = vpack.c.b16 %v11281, %v11277
        %v11454 = vpack.c.b16 %v11282, %v11278
        %v11455 = vpack.c.b16 %v11283, %v11279
        %v11456 = vpack.c.b16 %v11288, %v11284
        %v11457 = vpack.c.b16 %v11289, %v11285
        %v11458 = vpack.c.b16 %v11290, %v11286
        %v11459 = vpack.c.b16 %v11291, %v11287
        %v11460 = vpack.c.b16 %v11296, %v11292
        %v11461 = vpack.c.b16 %v11297, %v11293
        %v11462 = vpack.c.b16 %v11298, %v11294
        %v11463 = vpack.c.b16 %v11299, %v11295
        %v11464 = vpack.c.b16 %v11304, %v11300
        %v11465 = vpack.c.b16 %v11305, %v11301
        %v11466 = vpack.c.b16 %v11306, %v11302
        %v11467 = vpack.c.b16 %v11307, %v11303
        %v11468 = vpack.c.b16 %v11312, %v11308
        %v11469 = vpack.c.b16 %v11313, %v11309
        %v11470 = vpack.c.b16 %v11314, %v11310
        %v11471 = vpack.c.b16 %v11315, %v11311
        %v11472 = vpack.c.b16 %v11320, %v11316
        %v11473 = vpack.c.b16 %v11321, %v11317
        %v11474 = vpack.c.b16 %v11322, %v11318
        %v11475 = vpack.c.b16 %v11323, %v11319
        %v11476 = vpack.c.b16 %v11328, %v11324
        %v11477 = vpack.c.b16 %v11329, %v11325
        %v11478 = vpack.c.b16 %v11330, %v11326
        %v11479 = vpack.c.b16 %v11331, %v11327
        %v11480 = vpack.c.b16 %v11336, %v11332
        %v11481 = vpack.c.b16 %v11337, %v11333
        %v11482 = vpack.c.b16 %v11338, %v11334
        %v11483 = vpack.c.b16 %v11339, %v11335
        %v11484 = vpack.c.b16 %v11344, %v11340
        %v11485 = vpack.c.b16 %v11345, %v11341
        %v11486 = vpack.c.b16 %v11346, %v11342
        %v11487 = vpack.c.b16 %v11347, %v11343
        %v11488 = vpack.c.b16 %v11352, %v11348
        %v11489 = vpack.c.b16 %v11353, %v11349
        %v11490 = vpack.c.b16 %v11354, %v11350
        %v11491 = vpack.c.b16 %v11355, %v11351
        %v11492 = vpack.c.b16 %v11360, %v11356
        %v11493 = vpack.c.b16 %v11361, %v11357
        %v11494 = vpack.c.b16 %v11362, %v11358
        %v11495 = vpack.c.b16 %v11363, %v11359
        %v11496 = vpack.c.b16 %v11368, %v11364
        %v11497 = vpack.c.b16 %v11369, %v11365
        %v11498 = vpack.c.b16 %v11370, %v11366
        %v11499 = vpack.c.b16 %v11371, %v11367
        %11628 = vmatprep.subr.bf16.mxu0 %v11373
        %11629 = vmatpush1.bf16.msra.mxu0 %v11372
        %11630 = vmatprep.subr.bf16.mxu0 %v11377
        %11631 = vmatpush1.bf16.msra.mxu0 %v11376
        %11632 = vmatprep.subr.bf16.mxu0 %v11381
        %11633 = vmatpush1.bf16.msra.mxu0 %v11380
        %11634 = vmatprep.subr.bf16.mxu0 %v11385
        %11635 = vmatpush1.bf16.msra.mxu0 %v11384
        %11636 = vmatprep.subr.bf16.mxu0 %v11389
        %11637 = vmatpush1.bf16.msra.mxu0 %v11388
        %11638 = vmatprep.subr.bf16.mxu0 %v11393
        %11639 = vmatpush1.bf16.msra.mxu0 %v11392
        %11640 = vmatprep.subr.bf16.mxu0 %v11397
        %11641 = vmatpush1.bf16.msra.mxu0 %v11396
        %11642 = vmatprep.subr.bf16.mxu0 %v11401
        %11643 = vmatpush1.bf16.msra.mxu0 %v11400
        %11644 = vmatprep.subr.bf16.mxu0 %v11405
        %11645 = vmatpush1.bf16.msra.mxu0 %v11404
        %11646 = vmatprep.subr.bf16.mxu0 %v11409
        %11647 = vmatpush1.bf16.msra.mxu0 %v11408
        %11648 = vmatprep.subr.bf16.mxu0 %v11413
        %11649 = vmatpush1.bf16.msra.mxu0 %v11412
        %11650 = vmatprep.subr.bf16.mxu0 %v11417
        %11651 = vmatpush1.bf16.msra.mxu0 %v11416
        %11652 = vmatprep.subr.bf16.mxu0 %v11421
        %11653 = vmatpush1.bf16.msra.mxu0 %v11420
        %11654 = vmatprep.subr.bf16.mxu0 %v11425
        %11655 = vmatpush1.bf16.msra.mxu0 %v11424
        %11656 = vmatprep.subr.bf16.mxu0 %v11429
        %11657 = vmatpush1.bf16.msra.mxu0 %v11428
        %11658 = vmatprep.subr.bf16.mxu0 %v11433
        %11659 = vmatpush1.bf16.msra.mxu0 %v11432
        %11660 = vmatprep.mubr.bf16.mxu0 %v10957
        %11661 = vmatmul.mubr.bf16.gmra.mrb[0].mxu0 %v10956
        %v11662 = vpop.f32.mrb[0].mxu0
        %v11663 = vadd.f32 0.0, %v11662
        %v11664 = vpop.f32.mrb[0].mxu0
        %v11665 = vadd.f32 0.0, %v11664
        %v11666 = vpop.f32.mrb[0].mxu0
        %v11667 = vadd.f32 0.0, %v11666
        %v11668 = vpop.f32.mrb[0].mxu0
        %v11669 = vadd.f32 0.0, %v11668
        %11670 = vmatprep.mubr.bf16.mxu0 %v10961
        %11671 = vmatmul.mubr.bf16.gmra.mrb[0].mxu0 %v10960
        %v11672 = vpop.f32.mrb[0].mxu0
        %v11673 = vadd.f32 0.0, %v11672
        %v11674 = vpop.f32.mrb[0].mxu0
        %v11675 = vadd.f32 0.0, %v11674
        %v11676 = vpop.f32.mrb[0].mxu0
        %v11677 = vadd.f32 0.0, %v11676
        %v11678 = vpop.f32.mrb[0].mxu0
        %v11679 = vadd.f32 0.0, %v11678
        %11680 = vmatprep.mubr.bf16.mxu0 %v10965
        %11681 = vmatmul.mubr.bf16.gmra.mrb[0].mxu0 %v10964
        %v11682 = vpop.f32.mrb[0].mxu0
        %v11683 = vadd.f32 0.0, %v11682
        %v11684 = vpop.f32.mrb[0].mxu0
        %v11685 = vadd.f32 0.0, %v11684
        %v11686 = vpop.f32.mrb[0].mxu0
        %v11687 = vadd.f32 0.0, %v11686
        %v11688 = vpop.f32.mrb[0].mxu0
        %v11689 = vadd.f32 0.0, %v11688
        %11690 = vmatprep.mubr.bf16.mxu0 %v10969
        %11691 = vmatmul.mubr.bf16.gmra.mrb[0].mxu0 %v10968
        %v11692 = vpop.f32.mrb[0].mxu0
        %v11693 = vadd.f32 0.0, %v11692
        %v11694 = vpop.f32.mrb[0].mxu0
        %v11695 = vadd.f32 0.0, %v11694
        %v11696 = vpop.f32.mrb[0].mxu0
        %v11697 = vadd.f32 0.0, %v11696
        %v11698 = vpop.f32.mrb[0].mxu0
        %v11699 = vadd.f32 0.0, %v11698
        %11700 = vdwg.mxu0
        %11701 = vmatprep.subr.bf16.mxu0 %v11437
        %11702 = vmatpush1.bf16.msra.mxu0 %v11436
        %11703 = vmatprep.subr.bf16.mxu0 %v11441
        %11704 = vmatpush1.bf16.msra.mxu0 %v11440
        %11705 = vmatprep.subr.bf16.mxu0 %v11445
        %11706 = vmatpush1.bf16.msra.mxu0 %v11444
        %11707 = vmatprep.subr.bf16.mxu0 %v11449
        %11708 = vmatpush1.bf16.msra.mxu0 %v11448
        %11709 = vmatprep.subr.bf16.mxu0 %v11453
        %11710 = vmatpush1.bf16.msra.mxu0 %v11452
        %11711 = vmatprep.subr.bf16.mxu0 %v11457
        %11712 = vmatpush1.bf16.msra.mxu0 %v11456
        %11713 = vmatprep.subr.bf16.mxu0 %v11461
        %11714 = vmatpush1.bf16.msra.mxu0 %v11460
        %11715 = vmatprep.subr.bf16.mxu0 %v11465
        %11716 = vmatpush1.bf16.msra.mxu0 %v11464
        %11717 = vmatprep.subr.bf16.mxu0 %v11469
        %11718 = vmatpush1.bf16.msra.mxu0 %v11468
        %11719 = vmatprep.subr.bf16.mxu0 %v11473
        %11720 = vmatpush1.bf16.msra.mxu0 %v11472
        %11721 = vmatprep.subr.bf16.mxu0 %v11477
        %11722 = vmatpush1.bf16.msra.mxu0 %v11476
        %11723 = vmatprep.subr.bf16.mxu0 %v11481
        %11724 = vmatpush1.bf16.msra.mxu0 %v11480
        %11725 = vmatprep.subr.bf16.mxu0 %v11485
        %11726 = vmatpush1.bf16.msra.mxu0 %v11484
        %11727 = vmatprep.subr.bf16.mxu0 %v11489
        %11728 = vmatpush1.bf16.msra.mxu0 %v11488
        %11729 = vmatprep.subr.bf16.mxu0 %v11493
        %11730 = vmatpush1.bf16.msra.mxu0 %v11492
        %11731 = vmatprep.subr.bf16.mxu0 %v11497
        %11732 = vmatpush1.bf16.msra.mxu0 %v11496
        %11733 = vmatprep.mubr.bf16.mxu0 %v10959
        %11734 = vmatmul.mubr.bf16.gmra.mrb[0].mxu0 %v10958
        %v11735 = vpop.f32.mrb[0].mxu0
        %v11736 = vadd.f32 %v11663, %v11735
        %v11737 = vpop.f32.mrb[0].mxu0
        %v11738 = vadd.f32 %v11665, %v11737
        %v11739 = vpop.f32.mrb[0].mxu0
        %v11740 = vadd.f32 %v11667, %v11739
        %v11741 = vpop.f32.mrb[0].mxu0
        %v11742 = vadd.f32 %v11669, %v11741
        %11743 = vmatprep.mubr.bf16.mxu0 %v10963
        %11744 = vmatmul.mubr.bf16.gmra.mrb[0].mxu0 %v10962
        %v11745 = vpop.f32.mrb[0].mxu0
        %v11746 = vadd.f32 %v11673, %v11745
        %v11747 = vpop.f32.mrb[0].mxu0
        %v11748 = vadd.f32 %v11675, %v11747
        %v11749 = vpop.f32.mrb[0].mxu0
        %v11750 = vadd.f32 %v11677, %v11749
        %v11751 = vpop.f32.mrb[0].mxu0
        %v11752 = vadd.f32 %v11679, %v11751
        %11753 = vmatprep.mubr.bf16.mxu0 %v10967
        %11754 = vmatmul.mubr.bf16.gmra.mrb[0].mxu0 %v10966
        %v11755 = vpop.f32.mrb[0].mxu0
        %v11756 = vadd.f32 %v11683, %v11755
        %v11757 = vpop.f32.mrb[0].mxu0
        %v11758 = vadd.f32 %v11685, %v11757
        %v11759 = vpop.f32.mrb[0].mxu0
        %v11760 = vadd.f32 %v11687, %v11759
        %v11761 = vpop.f32.mrb[0].mxu0
        %v11762 = vadd.f32 %v11689, %v11761
        %11763 = vmatprep.mubr.bf16.mxu0 %v10971
        %11764 = vmatmul.mubr.bf16.gmra.mrb[0].mxu0 %v10970
        %v11765 = vpop.f32.mrb[0].mxu0
        %v11766 = vadd.f32 %v11693, %v11765
        %v11767 = vpop.f32.mrb[0].mxu0
        %v11768 = vadd.f32 %v11695, %v11767
        %v11769 = vpop.f32.mrb[0].mxu0
        %v11770 = vadd.f32 %v11697, %v11769
        %v11771 = vpop.f32.mrb[0].mxu0
        %v11772 = vadd.f32 %v11699, %v11771
        %11773 = vdwg.mxu0
        %11774 = vmatprep.subr.bf16.mxu0 %v11375
        %11775 = vmatpush1.bf16.msra.mxu0 %v11374
        %11776 = vmatprep.subr.bf16.mxu0 %v11379
        %11777 = vmatpush1.bf16.msra.mxu0 %v11378
        %11778 = vmatprep.subr.bf16.mxu0 %v11383
        %11779 = vmatpush1.bf16.msra.mxu0 %v11382
        %11780 = vmatprep.subr.bf16.mxu0 %v11387
        %11781 = vmatpush1.bf16.msra.mxu0 %v11386
        %11782 = vmatprep.subr.bf16.mxu0 %v11391
        %11783 = vmatpush1.bf16.msra.mxu0 %v11390
        %11784 = vmatprep.subr.bf16.mxu0 %v11395
        %11785 = vmatpush1.bf16.msra.mxu0 %v11394
        %11786 = vmatprep.subr.bf16.mxu0 %v11399
        %11787 = vmatpush1.bf16.msra.mxu0 %v11398
        %11788 = vmatprep.subr.bf16.mxu0 %v11403
        %11789 = vmatpush1.bf16.msra.mxu0 %v11402
        %11790 = vmatprep.subr.bf16.mxu0 %v11407
        %11791 = vmatpush1.bf16.msra.mxu0 %v11406
        %11792 = vmatprep.subr.bf16.mxu0 %v11411
        %11793 = vmatpush1.bf16.msra.mxu0 %v11410
        %11794 = vmatprep.subr.bf16.mxu0 %v11415
        %11795 = vmatpush1.bf16.msra.mxu0 %v11414
        %11796 = vmatprep.subr.bf16.mxu0 %v11419
        %11797 = vmatpush1.bf16.msra.mxu0 %v11418
        %11798 = vmatprep.subr.bf16.mxu0 %v11423
        %11799 = vmatpush1.bf16.msra.mxu0 %v11422
        %11800 = vmatprep.subr.bf16.mxu0 %v11427
        %11801 = vmatpush1.bf16.msra.mxu0 %v11426
        %11802 = vmatprep.subr.bf16.mxu0 %v11431
        %11803 = vmatpush1.bf16.msra.mxu0 %v11430
        %11804 = vmatprep.subr.bf16.mxu0 %v11435
        %11805 = vmatpush1.bf16.msra.mxu0 %v11434
        %11806 = vmatprep.mubr.bf16.mxu0 %v10957
        %11807 = vmatmul.mubr.bf16.gmra.mrb[0].mxu0 %v10956
        %v11808 = vpop.f32.mrb[0].mxu0
        %v11809 = vadd.f32 0.0, %v11808
        %v11810 = vpop.f32.mrb[0].mxu0
        %v11811 = vadd.f32 0.0, %v11810
        %v11812 = vpop.f32.mrb[0].mxu0
        %v11813 = vadd.f32 0.0, %v11812
        %v11814 = vpop.f32.mrb[0].mxu0
        %v11815 = vadd.f32 0.0, %v11814
        %11816 = vmatprep.mubr.bf16.mxu0 %v10961
        %11817 = vmatmul.mubr.bf16.gmra.mrb[0].mxu0 %v10960
        %v11818 = vpop.f32.mrb[0].mxu0
        %v11819 = vadd.f32 0.0, %v11818
        %v11820 = vpop.f32.mrb[0].mxu0
        %v11821 = vadd.f32 0.0, %v11820
        %v11822 = vpop.f32.mrb[0].mxu0
        %v11823 = vadd.f32 0.0, %v11822
        %v11824 = vpop.f32.mrb[0].mxu0
        %v11825 = vadd.f32 0.0, %v11824
        %11826 = vmatprep.mubr.bf16.mxu0 %v10965
        %11827 = vmatmul.mubr.bf16.gmra.mrb[0].mxu0 %v10964
        %v11828 = vpop.f32.mrb[0].mxu0
        %v11829 = vadd.f32 0.0, %v11828
        %v11830 = vpop.f32.mrb[0].mxu0
        %v11831 = vadd.f32 0.0, %v11830
        %v11832 = vpop.f32.mrb[0].mxu0
        %v11833 = vadd.f32 0.0, %v11832
        %v11834 = vpop.f32.mrb[0].mxu0
        %v11835 = vadd.f32 0.0, %v11834
        %11836 = vmatprep.mubr.bf16.mxu0 %v10969
        %11837 = vmatmul.mubr.bf16.gmra.mrb[0].mxu0 %v10968
        %v11838 = vpop.f32.mrb[0].mxu0
        %v11839 = vadd.f32 0.0, %v11838
        %v11840 = vpop.f32.mrb[0].mxu0
        %v11841 = vadd.f32 0.0, %v11840
        %v11842 = vpop.f32.mrb[0].mxu0
        %v11843 = vadd.f32 0.0, %v11842
        %v11844 = vpop.f32.mrb[0].mxu0
        %v11845 = vadd.f32 0.0, %v11844
        %11846 = vdwg.mxu0
        %11847 = vmatprep.subr.bf16.mxu0 %v11439
        %11848 = vmatpush1.bf16.msra.mxu0 %v11438
        %11849 = vmatprep.subr.bf16.mxu0 %v11443
        %11850 = vmatpush1.bf16.msra.mxu0 %v11442
        %11851 = vmatprep.subr.bf16.mxu0 %v11447
        %11852 = vmatpush1.bf16.msra.mxu0 %v11446
        %11853 = vmatprep.subr.bf16.mxu0 %v11451
        %11854 = vmatpush1.bf16.msra.mxu0 %v11450
        %11855 = vmatprep.subr.bf16.mxu0 %v11455
        %11856 = vmatpush1.bf16.msra.mxu0 %v11454
        %11857 = vmatprep.subr.bf16.mxu0 %v11459
        %11858 = vmatpush1.bf16.msra.mxu0 %v11458
        %11859 = vmatprep.subr.bf16.mxu0 %v11463
        %11860 = vmatpush1.bf16.msra.mxu0 %v11462
        %11861 = vmatprep.subr.bf16.mxu0 %v11467
        %11862 = vmatpush1.bf16.msra.mxu0 %v11466
        %11863 = vmatprep.subr.bf16.mxu0 %v11471
        %11864 = vmatpush1.bf16.msra.mxu0 %v11470
        %11865 = vmatprep.subr.bf16.mxu0 %v11475
        %11866 = vmatpush1.bf16.msra.mxu0 %v11474
        %11867 = vmatprep.subr.bf16.mxu0 %v11479
        %11868 = vmatpush1.bf16.msra.mxu0 %v11478
        %11869 = vmatprep.subr.bf16.mxu0 %v11483
        %11870 = vmatpush1.bf16.msra.mxu0 %v11482
        %11871 = vmatprep.subr.bf16.mxu0 %v11487
        %11872 = vmatpush1.bf16.msra.mxu0 %v11486
        %11873 = vmatprep.subr.bf16.mxu0 %v11491
        %11874 = vmatpush1.bf16.msra.mxu0 %v11490
        %11875 = vmatprep.subr.bf16.mxu0 %v11495
        %11876 = vmatpush1.bf16.msra.mxu0 %v11494
        %11877 = vmatprep.subr.bf16.mxu0 %v11499
        %11878 = vmatpush1.bf16.msra.mxu0 %v11498
        %11879 = vmatprep.mubr.bf16.mxu0 %v10959
        %11880 = vmatmul.mubr.bf16.gmra.mrb[0].mxu0 %v10958
        %v11881 = vpop.f32.mrb[0].mxu0
        %v11882 = vadd.f32 %v11809, %v11881
        %v11883 = vpop.f32.mrb[0].mxu0
        %v11884 = vadd.f32 %v11811, %v11883
        %v11885 = vpop.f32.mrb[0].mxu0
        %v11886 = vadd.f32 %v11813, %v11885
        %v11887 = vpop.f32.mrb[0].mxu0
        %v11888 = vadd.f32 %v11815, %v11887
        %11889 = vmatprep.mubr.bf16.mxu0 %v10963
        %11890 = vmatmul.mubr.bf16.gmra.mrb[0].mxu0 %v10962
        %v11891 = vpop.f32.mrb[0].mxu0
        %v11892 = vadd.f32 %v11819, %v11891
        %v11893 = vpop.f32.mrb[0].mxu0
        %v11894 = vadd.f32 %v11821, %v11893
        %v11895 = vpop.f32.mrb[0].mxu0
        %v11896 = vadd.f32 %v11823, %v11895
        %v11897 = vpop.f32.mrb[0].mxu0
        %v11898 = vadd.f32 %v11825, %v11897
        %11899 = vmatprep.mubr.bf16.mxu0 %v10967
        %11900 = vmatmul.mubr.bf16.gmra.mrb[0].mxu0 %v10966
        %v11901 = vpop.f32.mrb[0].mxu0
        %v11902 = vadd.f32 %v11829, %v11901
        %v11903 = vpop.f32.mrb[0].mxu0
        %v11904 = vadd.f32 %v11831, %v11903
        %v11905 = vpop.f32.mrb[0].mxu0
        %v11906 = vadd.f32 %v11833, %v11905
        %v11907 = vpop.f32.mrb[0].mxu0
        %v11908 = vadd.f32 %v11835, %v11907
        %11909 = vmatprep.mubr.bf16.mxu0 %v10971
        %11910 = vmatmul.mubr.bf16.gmra.mrb[0].mxu0 %v10970
        %v11911 = vpop.f32.mrb[0].mxu0
        %v11912 = vadd.f32 %v11839, %v11911
        %v11913 = vpop.f32.mrb[0].mxu0
        %v11914 = vadd.f32 %v11841, %v11913
        %v11915 = vpop.f32.mrb[0].mxu0
        %v11916 = vadd.f32 %v11843, %v11915
        %v11917 = vpop.f32.mrb[0].mxu0
        %v11918 = vadd.f32 %v11845, %v11917
        %11919 = vdwg.mxu0
        %v11920 = vadd.f32 %v10649, %v11736
        %v11921 = vadd.f32 %v10650, %v11738
        %v11922 = vadd.f32 %v10651, %v11882
        %v11923 = vadd.f32 %v10652, %v11884
        %v11924 = vadd.f32 %v10653, %v11740
        %v11925 = vadd.f32 %v10654, %v11742
        %v11926 = vadd.f32 %v10655, %v11886
        %v11927 = vadd.f32 %v10656, %v11888
        %v11928 = vadd.f32 %v10657, %v11746
        %v11929 = vadd.f32 %v10658, %v11748
        %v11930 = vadd.f32 %v10659, %v11892
        %v11931 = vadd.f32 %v10660, %v11894
        %v11932 = vadd.f32 %v10661, %v11750
        %v11933 = vadd.f32 %v10662, %v11752
        %v11934 = vadd.f32 %v10663, %v11896
        %v11935 = vadd.f32 %v10664, %v11898
        %v11936 = vadd.f32 %v10665, %v11756
        %v11937 = vadd.f32 %v10666, %v11758
        %v11938 = vadd.f32 %v10667, %v11902
        %v11939 = vadd.f32 %v10668, %v11904
        %v11940 = vadd.f32 %v10669, %v11760
        %v11941 = vadd.f32 %v10670, %v11762
        %v11942 = vadd.f32 %v10671, %v11906
        %v11943 = vadd.f32 %v10672, %v11908
        %v11944 = vadd.f32 %v10673, %v11766
        %v11945 = vadd.f32 %v10674, %v11768
        %v11946 = vadd.f32 %v10675, %v11912
        %v11947 = vadd.f32 %v10676, %v11914
        %v11948 = vadd.f32 %v10677, %v11770
        %v11949 = vadd.f32 %v10678, %v11772
        %v11950 = vadd.f32 %v10679, %v11916
        %v11951 = vadd.f32 %v10680, %v11918
        %11952 = vst [vmem:[#allocation2] sm:$0xff] %v11920
        %11953 = vst [vmem:[#allocation2 + $0x8] sm:$0xff] %v11921
        %11954 = vst [vmem:[#allocation2 + $0x10] sm:$0xff] %v11922
        %11955 = vst [vmem:[#allocation2 + $0x18] sm:$0xff] %v11923
        %11956 = vst [vmem:[#allocation2 + $0x20] sm:$0xff] %v11924
        %11957 = vst [vmem:[#allocation2 + $0x28] sm:$0xff] %v11925
        %11958 = vst [vmem:[#allocation2 + $0x30] sm:$0xff] %v11926
        %11959 = vst [vmem:[#allocation2 + $0x38] sm:$0xff] %v11927
        %11960 = vst [vmem:[#allocation2 + $0x40] sm:$0xff] %v11928
        %11961 = vst [vmem:[#allocation2 + $0x48] sm:$0xff] %v11929
        %11962 = vst [vmem:[#allocation2 + $0x50] sm:$0xff] %v11930
        %11963 = vst [vmem:[#allocation2 + $0x58] sm:$0xff] %v11931
        %11964 = vst [vmem:[#allocation2 + $0x60] sm:$0xff] %v11932
        %11965 = vst [vmem:[#allocation2 + $0x68] sm:$0xff] %v11933
        %11966 = vst [vmem:[#allocation2 + $0x70] sm:$0xff] %v11934
        %11967 = vst [vmem:[#allocation2 + $0x78] sm:$0xff] %v11935
        %11968 = vst [vmem:[#allocation2 + $0x80] sm:$0xff] %v11936
        %11969 = vst [vmem:[#allocation2 + $0x88] sm:$0xff] %v11937
        %11970 = vst [vmem:[#allocation2 + $0x90] sm:$0xff] %v11938
        %11971 = vst [vmem:[#allocation2 + $0x98] sm:$0xff] %v11939
        %11972 = vst [vmem:[#allocation2 + $0xa0] sm:$0xff] %v11940
        %11973 = vst [vmem:[#allocation2 + $0xa8] sm:$0xff] %v11941
        %11974 = vst [vmem:[#allocation2 + $0xb0] sm:$0xff] %v11942
        %11975 = vst [vmem:[#allocation2 + $0xb8] sm:$0xff] %v11943
        %11976 = vst [vmem:[#allocation2 + $0xc0] sm:$0xff] %v11944
        %11977 = vst [vmem:[#allocation2 + $0xc8] sm:$0xff] %v11945
        %11978 = vst [vmem:[#allocation2 + $0xd0] sm:$0xff] %v11946
        %11979 = vst [vmem:[#allocation2 + $0xd8] sm:$0xff] %v11947
        %11980 = vst [vmem:[#allocation2 + $0xe0] sm:$0xff] %v11948
        %11981 = vst [vmem:[#allocation2 + $0xe8] sm:$0xff] %v11949
        %11982 = vst [vmem:[#allocation2 + $0xf0] sm:$0xff] %v11950
        %11983 = vst [vmem:[#allocation2 + $0xf8] sm:$0xff] %v11951
        %p11984 = scmp.eq.s32.totalorder %s28, 2
        // Predicated region
        $region49: #{tpu_custom_call.1} parent=31 // pred_check
          %p11985 = pneg %p11984
        $region50: #{tpu_custom_call.1} parent=31 // pred_check_branch
          %11987 = sbr.rel (%p11985) target = $region52
        $region51: #{tpu_custom_call.1} parent=31 // pred_region
          %v11988 = vld [vmem:[#allocation8] sm:$0xf]
          %v11990 = vlaneseq
          %v11991 = vshrl.u32 %v11990, 7
          %v11992 = vsub.s32 0, %v11991
          %v11993 = vrot.slane %v11988, %v11992
          %v11994 = vlaneseq
          %v11995 = vshrl.u32 %v11994, 7
          %v11996 = vsub.s32 1, %v11995
          %v11997 = vrot.slane %v11988, %v11996
          %v11998 = vlaneseq
          %v11999 = vshrl.u32 %v11998, 7
          %v12000 = vsub.s32 2, %v11999
          %v12001 = vrot.slane %v11988, %v12000
          %v12002 = vlaneseq
          %v12003 = vshrl.u32 %v12002, 7
          %v12004 = vsub.s32 3, %v12003
          %v12005 = vrot.slane %v11988, %v12004
          %v12010 = vadd.f32 %v11920, %v11993
          %v12011 = vadd.f32 %v11921, %v11997
          %v12012 = vadd.f32 %v11922, %v12001
          %v12013 = vadd.f32 %v11923, %v12005
          %v12014 = vadd.f32 %v11924, %v11993
          %v12015 = vadd.f32 %v11925, %v11997
          %v12016 = vadd.f32 %v11926, %v12001
          %v12017 = vadd.f32 %v11927, %v12005
          %v12018 = vadd.f32 %v11928, %v11993
          %v12019 = vadd.f32 %v11929, %v11997
          %v12020 = vadd.f32 %v11930, %v12001
          %v12021 = vadd.f32 %v11931, %v12005
          %v12022 = vadd.f32 %v11932, %v11993
          %v12023 = vadd.f32 %v11933, %v11997
          %v12024 = vadd.f32 %v11934, %v12001
          %v12025 = vadd.f32 %v11935, %v12005
          %v12026 = vadd.f32 %v11936, %v11993
          %v12027 = vadd.f32 %v11937, %v11997
          %v12028 = vadd.f32 %v11938, %v12001
          %v12029 = vadd.f32 %v11939, %v12005
          %v12030 = vadd.f32 %v11940, %v11993
          %v12031 = vadd.f32 %v11941, %v11997
          %v12032 = vadd.f32 %v11942, %v12001
          %v12033 = vadd.f32 %v11943, %v12005
          %v12034 = vadd.f32 %v11944, %v11993
          %v12035 = vadd.f32 %v11945, %v11997
          %v12036 = vadd.f32 %v11946, %v12001
          %v12037 = vadd.f32 %v11947, %v12005
          %v12038 = vadd.f32 %v11948, %v11993
          %v12039 = vadd.f32 %v11949, %v11997
          %v12040 = vadd.f32 %v11950, %v12001
          %v12041 = vadd.f32 %v11951, %v12005
          %vm12042 = vcmp.ge.f32.partialorder %v12010, 0.0
          %vm12043 = vcmp.ge.f32.partialorder %v12011, 0.0
          %vm12044 = vcmp.ge.f32.partialorder %v12012, 0.0
          %vm12045 = vcmp.ge.f32.partialorder %v12013, 0.0
          %vm12046 = vcmp.ge.f32.partialorder %v12014, 0.0
          %vm12047 = vcmp.ge.f32.partialorder %v12015, 0.0
          %vm12048 = vcmp.ge.f32.partialorder %v12016, 0.0
          %vm12049 = vcmp.ge.f32.partialorder %v12017, 0.0
          %vm12050 = vcmp.ge.f32.partialorder %v12018, 0.0
          %vm12051 = vcmp.ge.f32.partialorder %v12019, 0.0
          %vm12052 = vcmp.ge.f32.partialorder %v12020, 0.0
          %vm12053 = vcmp.ge.f32.partialorder %v12021, 0.0
          %vm12054 = vcmp.ge.f32.partialorder %v12022, 0.0
          %vm12055 = vcmp.ge.f32.partialorder %v12023, 0.0
          %vm12056 = vcmp.ge.f32.partialorder %v12024, 0.0
          %vm12057 = vcmp.ge.f32.partialorder %v12025, 0.0
          %vm12058 = vcmp.ge.f32.partialorder %v12026, 0.0
          %vm12059 = vcmp.ge.f32.partialorder %v12027, 0.0
          %vm12060 = vcmp.ge.f32.partialorder %v12028, 0.0
          %vm12061 = vcmp.ge.f32.partialorder %v12029, 0.0
          %vm12062 = vcmp.ge.f32.partialorder %v12030, 0.0
          %vm12063 = vcmp.ge.f32.partialorder %v12031, 0.0
          %vm12064 = vcmp.ge.f32.partialorder %v12032, 0.0
          %vm12065 = vcmp.ge.f32.partialorder %v12033, 0.0
          %vm12066 = vcmp.ge.f32.partialorder %v12034, 0.0
          %vm12067 = vcmp.ge.f32.partialorder %v12035, 0.0
          %vm12068 = vcmp.ge.f32.partialorder %v12036, 0.0
          %vm12069 = vcmp.ge.f32.partialorder %v12037, 0.0
          %vm12070 = vcmp.ge.f32.partialorder %v12038, 0.0
          %vm12071 = vcmp.ge.f32.partialorder %v12039, 0.0
          %vm12072 = vcmp.ge.f32.partialorder %v12040, 0.0
          %vm12073 = vcmp.ge.f32.partialorder %v12041, 0.0
          %v12074 = vmul.f32 %v12010, 0.2
          %v12075 = vmul.f32 %v12011, 0.2
          %v12076 = vmul.f32 %v12012, 0.2
          %v12077 = vmul.f32 %v12013, 0.2
          %v12078 = vmul.f32 %v12014, 0.2
          %v12079 = vmul.f32 %v12015, 0.2
          %v12080 = vmul.f32 %v12016, 0.2
          %v12081 = vmul.f32 %v12017, 0.2
          %v12082 = vmul.f32 %v12018, 0.2
          %v12083 = vmul.f32 %v12019, 0.2
          %v12084 = vmul.f32 %v12020, 0.2
          %v12085 = vmul.f32 %v12021, 0.2
          %v12086 = vmul.f32 %v12022, 0.2
          %v12087 = vmul.f32 %v12023, 0.2
          %v12088 = vmul.f32 %v12024, 0.2
          %v12089 = vmul.f32 %v12025, 0.2
          %v12090 = vmul.f32 %v12026, 0.2
          %v12091 = vmul.f32 %v12027, 0.2
          %v12092 = vmul.f32 %v12028, 0.2
          %v12093 = vmul.f32 %v12029, 0.2
          %v12094 = vmul.f32 %v12030, 0.2
          %v12095 = vmul.f32 %v12031, 0.2
          %v12096 = vmul.f32 %v12032, 0.2
          %v12097 = vmul.f32 %v12033, 0.2
          %v12098 = vmul.f32 %v12034, 0.2
          %v12099 = vmul.f32 %v12035, 0.2
          %v12100 = vmul.f32 %v12036, 0.2
          %v12101 = vmul.f32 %v12037, 0.2
          %v12102 = vmul.f32 %v12038, 0.2
          %v12103 = vmul.f32 %v12039, 0.2
          %v12104 = vmul.f32 %v12040, 0.2
          %v12105 = vmul.f32 %v12041, 0.2
          %v12106 = vsel %vm12042, %v12010, %v12074
          %v12107 = vsel %vm12043, %v12011, %v12075
          %v12108 = vsel %vm12044, %v12012, %v12076
          %v12109 = vsel %vm12045, %v12013, %v12077
          %v12110 = vsel %vm12046, %v12014, %v12078
          %v12111 = vsel %vm12047, %v12015, %v12079
          %v12112 = vsel %vm12048, %v12016, %v12080
          %v12113 = vsel %vm12049, %v12017, %v12081
          %v12114 = vsel %vm12050, %v12018, %v12082
          %v12115 = vsel %vm12051, %v12019, %v12083
          %v12116 = vsel %vm12052, %v12020, %v12084
          %v12117 = vsel %vm12053, %v12021, %v12085
          %v12118 = vsel %vm12054, %v12022, %v12086
          %v12119 = vsel %vm12055, %v12023, %v12087
          %v12120 = vsel %vm12056, %v12024, %v12088
          %v12121 = vsel %vm12057, %v12025, %v12089
          %v12122 = vsel %vm12058, %v12026, %v12090
          %v12123 = vsel %vm12059, %v12027, %v12091
          %v12124 = vsel %vm12060, %v12028, %v12092
          %v12125 = vsel %vm12061, %v12029, %v12093
          %v12126 = vsel %vm12062, %v12030, %v12094
          %v12127 = vsel %vm12063, %v12031, %v12095
          %v12128 = vsel %vm12064, %v12032, %v12096
          %v12129 = vsel %vm12065, %v12033, %v12097
          %v12130 = vsel %vm12066, %v12034, %v12098
          %v12131 = vsel %vm12067, %v12035, %v12099
          %v12132 = vsel %vm12068, %v12036, %v12100
          %v12133 = vsel %vm12069, %v12037, %v12101
          %v12134 = vsel %vm12070, %v12038, %v12102
          %v12135 = vsel %vm12071, %v12039, %v12103
          %v12136 = vsel %vm12072, %v12040, %v12104
          %v12137 = vsel %vm12073, %v12041, %v12105
          %v12138 = vmul.f32 %v12106, 1.4142135
          %v12139 = vmul.f32 %v12107, 1.4142135
          %v12140 = vmul.f32 %v12108, 1.4142135
          %v12141 = vmul.f32 %v12109, 1.4142135
          %v12142 = vmul.f32 %v12110, 1.4142135
          %v12143 = vmul.f32 %v12111, 1.4142135
          %v12144 = vmul.f32 %v12112, 1.4142135
          %v12145 = vmul.f32 %v12113, 1.4142135
          %v12146 = vmul.f32 %v12114, 1.4142135
          %v12147 = vmul.f32 %v12115, 1.4142135
          %v12148 = vmul.f32 %v12116, 1.4142135
          %v12149 = vmul.f32 %v12117, 1.4142135
          %v12150 = vmul.f32 %v12118, 1.4142135
          %v12151 = vmul.f32 %v12119, 1.4142135
          %v12152 = vmul.f32 %v12120, 1.4142135
          %v12153 = vmul.f32 %v12121, 1.4142135
          %v12154 = vmul.f32 %v12122, 1.4142135
          %v12155 = vmul.f32 %v12123, 1.4142135
          %v12156 = vmul.f32 %v12124, 1.4142135
          %v12157 = vmul.f32 %v12125, 1.4142135
          %v12158 = vmul.f32 %v12126, 1.4142135
          %v12159 = vmul.f32 %v12127, 1.4142135
          %v12160 = vmul.f32 %v12128, 1.4142135
          %v12161 = vmul.f32 %v12129, 1.4142135
          %v12162 = vmul.f32 %v12130, 1.4142135
          %v12163 = vmul.f32 %v12131, 1.4142135
          %v12164 = vmul.f32 %v12132, 1.4142135
          %v12165 = vmul.f32 %v12133, 1.4142135
          %v12166 = vmul.f32 %v12134, 1.4142135
          %v12167 = vmul.f32 %v12135, 1.4142135
          %v12168 = vmul.f32 %v12136, 1.4142135
          %v12169 = vmul.f32 %v12137, 1.4142135
          %v12170 = vpack.c.bf16 %v12142, %v12138
          %v12171 = vpack.c.bf16 %v12143, %v12139
          %v12172 = vpack.c.bf16 %v12144, %v12140
          %v12173 = vpack.c.bf16 %v12145, %v12141
          %v12174 = vpack.c.bf16 %v12150, %v12146
          %v12175 = vpack.c.bf16 %v12151, %v12147
          %v12176 = vpack.c.bf16 %v12152, %v12148
          %v12177 = vpack.c.bf16 %v12153, %v12149
          %v12178 = vpack.c.bf16 %v12158, %v12154
          %v12179 = vpack.c.bf16 %v12159, %v12155
          %v12180 = vpack.c.bf16 %v12160, %v12156
          %v12181 = vpack.c.bf16 %v12161, %v12157
          %v12182 = vpack.c.bf16 %v12166, %v12162
          %v12183 = vpack.c.bf16 %v12167, %v12163
          %v12184 = vpack.c.bf16 %v12168, %v12164
          %v12185 = vpack.c.bf16 %v12169, %v12165
          %v12202 = vunpack.c.l.b16 %v12170
          %v12203 = vunpack.c.l.b16 %v12171
          %v12204 = vunpack.c.l.b16 %v12172
          %v12205 = vunpack.c.l.b16 %v12173
          %v12206 = vunpack.c.h.b16 %v12170
          %v12207 = vunpack.c.h.b16 %v12171
          %v12208 = vunpack.c.h.b16 %v12172
          %v12209 = vunpack.c.h.b16 %v12173
          %v12210 = vunpack.c.l.b16 %v12174
          %v12211 = vunpack.c.l.b16 %v12175
          %v12212 = vunpack.c.l.b16 %v12176
          %v12213 = vunpack.c.l.b16 %v12177
          %v12214 = vunpack.c.h.b16 %v12174
          %v12215 = vunpack.c.h.b16 %v12175
          %v12216 = vunpack.c.h.b16 %v12176
          %v12217 = vunpack.c.h.b16 %v12177
          %v12218 = vunpack.c.l.b16 %v12178
          %v12219 = vunpack.c.l.b16 %v12179
          %v12220 = vunpack.c.l.b16 %v12180
          %v12221 = vunpack.c.l.b16 %v12181
          %v12222 = vunpack.c.h.b16 %v12178
          %v12223 = vunpack.c.h.b16 %v12179
          %v12224 = vunpack.c.h.b16 %v12180
          %v12225 = vunpack.c.h.b16 %v12181
          %v12226 = vunpack.c.l.b16 %v12182
          %v12227 = vunpack.c.l.b16 %v12183
          %v12228 = vunpack.c.l.b16 %v12184
          %v12229 = vunpack.c.l.b16 %v12185
          %v12230 = vunpack.c.h.b16 %v12182
          %v12231 = vunpack.c.h.b16 %v12183
          %v12232 = vunpack.c.h.b16 %v12184
          %v12233 = vunpack.c.h.b16 %v12185
          %v12234 = vpack.c.b16 %v12203, %v12202
          %v12235 = vpack.c.b16 %v12205, %v12204
          %v12236 = vpack.c.b16 %v12207, %v12206
          %v12237 = vpack.c.b16 %v12209, %v12208
          %v12238 = vpack.c.b16 %v12211, %v12210
          %v12239 = vpack.c.b16 %v12213, %v12212
          %v12240 = vpack.c.b16 %v12215, %v12214
          %v12241 = vpack.c.b16 %v12217, %v12216
          %v12242 = vpack.c.b16 %v12219, %v12218
          %v12243 = vpack.c.b16 %v12221, %v12220
          %v12244 = vpack.c.b16 %v12223, %v12222
          %v12245 = vpack.c.b16 %v12225, %v12224
          %v12246 = vpack.c.b16 %v12227, %v12226
          %v12247 = vpack.c.b16 %v12229, %v12228
          %v12248 = vpack.c.b16 %v12231, %v12230
          %v12249 = vpack.c.b16 %v12233, %v12232
          %12266 = vst [vmem:[%s243] sm:$0xff] %v12234
          %12267 = vst [vmem:[%s243 + $0x8] sm:$0xff] %v12235
          %12268 = vst [vmem:[%s243 + $0x10] sm:$0xff] %v12236
          %12269 = vst [vmem:[%s243 + $0x18] sm:$0xff] %v12237
          %12270 = vst [vmem:[%s243 + $0x20] sm:$0xff] %v12238
          %12271 = vst [vmem:[%s243 + $0x28] sm:$0xff] %v12239
          %12272 = vst [vmem:[%s243 + $0x30] sm:$0xff] %v12240
          %12273 = vst [vmem:[%s243 + $0x38] sm:$0xff] %v12241
          %12274 = vst [vmem:[%s243 + $0x40] sm:$0xff] %v12242
          %12275 = vst [vmem:[%s243 + $0x48] sm:$0xff] %v12243
          %12276 = vst [vmem:[%s243 + $0x50] sm:$0xff] %v12244
          %12277 = vst [vmem:[%s243 + $0x58] sm:$0xff] %v12245
          %12278 = vst [vmem:[%s243 + $0x60] sm:$0xff] %v12246
          %12279 = vst [vmem:[%s243 + $0x68] sm:$0xff] %v12247
          %12280 = vst [vmem:[%s243 + $0x70] sm:$0xff] %v12248
          %12281 = vst [vmem:[%s243 + $0x78] sm:$0xff] %v12249
        $region52: #{tpu_custom_call.1} parent=31 // pred_fallthru
          _
        %s12282 = sand.u32 %s122, 1
        %s12283 = scalar_lea.sflag [#allocation5], %s12282
        %s12284 = sand.u32 %s122, 1
        %s12285 = smul.addr %s12284, 128
        %s12286 = scalar_lea.vmem [#allocation9], %s12285
        // Predicated region
        $region53: #{tpu_custom_call.1} parent=31 // pred_check
          %p12287 = pneg %p132
        $region54: #{tpu_custom_call.1} parent=31 // pred_check_branch
          %12289 = sbr.rel (%p12287) target = $region56
        $region55: #{tpu_custom_call.1} parent=31 // pred_region
          %s12291 = ssub.s32 2048, 2048
          %12292 = vsyncadd %s12283, %s12291
          %s12293 = smul.addr %s27, 32
          %s12294 = smul.addr %s26, 128
          %s12295 = sadd.s32 %s12293, %s12294
          %s12296 = smul.addr %s12295, 64
          %s12297 = scalar_lea.hbm %s3, %s12296
          %s12298 = sshll.u32 %s12286, 4
          %s12299 = int_to_ptr.vmem [resolvable:$true] %s12298
          %12304 = dma.vmem_to_hbm [thread:$0]  %s12299, 2048, %s12297, %s12283, 256, 256, 16
        $region56: #{tpu_custom_call.1} parent=31 // pred_fallthru
          _
      $region32: #{tpu_custom_call.1} parent=5 // pred_fallthru
        _
      %p12305 = scmp.le.s32.totalorder 2, %s16
      // Predicated region
      $region57: #{tpu_custom_call.1} parent=5 // pred_check
        %p12306 = pneg %p12305
      $region58: #{tpu_custom_call.1} parent=5 // pred_check_branch
        %12308 = sbr.rel (%p12306) target = $region60
      $region59: #{tpu_custom_call.1} parent=5 // pred_region
        %s12309 = ssub.s32 %s16, 2
        // Predicated region
        $region61: #{tpu_custom_call.1} parent=59 // pred_check
          %p12310 = pneg %p138
        $region62: #{tpu_custom_call.1} parent=59 // pred_check_branch
          %12312 = sbr.rel (%p12310) target = $region64
        $region63: #{tpu_custom_call.1} parent=59 // pred_region
          %s12313 = sand.u32 %s123, 1
          %s12314 = scalar_lea.sflag [#allocation5], %s12313
          %s12315 = sand.u32 %s123, 1
          %s12316 = smul.addr %s12315, 128
          %s12317 = scalar_lea.vmem [#allocation9], %s12316
          %12318 = dma.done %s12314, 2048
        $region64: #{tpu_custom_call.1} parent=59 // pred_fallthru
          _
      $region60: #{tpu_custom_call.1} parent=5 // pred_fallthru
        _
    $region6: #{tpu_custom_call.1} parent=1 // loop_footer
      %s20 = sadd.s32 1, %s16
    $region7: #{tpu_custom_call.1} parent=1 // loop_footer_branch
      %15 = sbr.rel target = $region3
    $region8: #{tpu_custom_call.1} parent=1 // loop_exit
      _
    %12319 = vsyncpa [#allocation4], 1
    %s12320 = scalar_lea.sflag [#allocation4], 1
    %12321 = vsyncpa %s12320, 1
    %12322 = vsyncpa [#allocation7], 1
    %12323 = vsyncpa [#allocation5], 1
    %s12324 = scalar_lea.sflag [#allocation5], 1
    %12325 = vsyncpa %s12324, 1

</llo_original>
